<compile_context>
chip_gen: v5e
topology: v5e:2x2
jax: 0.10.0
libtpu: 0.0.40
codegen_flags: <defaults>
</compile_context>

<pallas_src>
import functools
import math

import jax
import jax.numpy as jnp
from jax import lax
from jax.experimental import pallas as pl
from jax.experimental.pallas import tpu as pltpu

NUM_BLOCKS = 15
AUX_AFTER_BLOCK = 7          # aux head taps the activation right after block7


# ---------------------------------------------------------------------------
# Kernels
# ---------------------------------------------------------------------------
def _resident_kernel(x_ref, w_hid_ref, b_hid_ref, w_blk_ref, b_blk_ref,
                     w_aux_ref, b_aux_ref, w_out_ref, b_out_ref,
                     out_ref, aux_ref, h_ref):
    """All 15 block weights VMEM-resident; grid is batch tiles only."""
    # h = relu(hid1(x))  — explicit cast to weight dtype for the bf16 MXU path.
    h0 = jnp.dot(x_ref[...].astype(w_hid_ref.dtype), w_hid_ref[...],
                 preferred_element_type=jnp.float32)
    h_ref[...] = jnp.maximum(h0 + b_hid_ref[...], 0.0)

    def block_step(l, carry):
        h = h_ref[...]                                        # f32 activation
        y = jnp.dot(h.astype(w_blk_ref.dtype), w_blk_ref[l],
                    preferred_element_type=jnp.float32)       # bf16 MXU, f32 acc
        h_ref[...] = jnp.maximum(y + b_blk_ref[l] + h, 0.0)   # bias + skip + ReLU
        return carry

    # blocks 1..7
    lax.fori_loop(0, AUX_AFTER_BLOCK, block_step, 0, unroll=True)
    h_aux = h_ref[...]
    # aux head: VPU multiply + lane reduction against lane-dense (1, C) weight.
    aux_ref[...] = (jnp.sum(h_aux * w_aux_ref[...], axis=-1, keepdims=True)
                    + b_aux_ref[...])

    # blocks 8..15
    lax.fori_loop(AUX_AFTER_BLOCK, NUM_BLOCKS, block_step, 0, unroll=True)
    h_out = h_ref[...]
    out_ref[...] = (jnp.sum(h_out * w_out_ref[...], axis=-1, keepdims=True)
                    + b_out_ref[...])


def _streaming_kernel(x_ref, w_hid_ref, b_hid_ref, w_blk_ref, b_blk_ref,
                      w_aux_ref, b_aux_ref, w_out_ref, b_out_ref,
                      out_ref, aux_ref, h_ref):
    """Block weights streamed one layer per grid step (production-size C)."""
    l = pl.program_id(1)

    # ---- prologue on the first layer step: h = relu(hid1(x)) ----------------
    @pl.when(l == 0)
    def _():
        h0 = jnp.dot(x_ref[...].astype(w_hid_ref.dtype), w_hid_ref[...],
                     preferred_element_type=jnp.float32)
        h_ref[...] = jnp.maximum(h0 + b_hid_ref[...], 0.0)

    # ---- residual block l (== block{l+1} in the PyTorch module) -------------
    h = h_ref[...]                                            # f32 VMEM-resident
    y = jnp.dot(h.astype(w_blk_ref.dtype), w_blk_ref[0],
                preferred_element_type=jnp.float32)
    h_new = jnp.maximum(y + b_blk_ref[0] + h, 0.0)
    h_ref[...] = h_new

    # ---- aux head right after block7 -----------------------------------------
    @pl.when(l == AUX_AFTER_BLOCK - 1)
    def _():
        aux_ref[...] = (jnp.sum(h_new * w_aux_ref[...], axis=-1, keepdims=True)
                        + b_aux_ref[...])

    # ---- main head after block15 (last layer step) ---------------------------
    @pl.when(l == pl.num_programs(1) - 1)
    def _():
        out_ref[...] = (jnp.sum(h_new * w_out_ref[...], axis=-1, keepdims=True)
                        + b_out_ref[...])


# ---------------------------------------------------------------------------
# Wrapper
# ---------------------------------------------------------------------------
def _round_up(v, m):
    return ((v + m - 1) // m) * m


def _pick_tm(M, cap=512):
    """Batch-tile: multiple of 8, <= cap, and >= 2 tiles when possible so the
    'parallel' batch axis feeds both v7x TensorCores."""
    if M <= 8:
        return M
    tm = min(cap, _round_up(M, 8))
    if tm >= M:
        tm = max(8, _round_up((M + 1) // 2, 8))
    return tm


@functools.partial(jax.jit, static_argnames=("tm", "force_streaming"))
def fully_connected_net_forward(x, params, *, tm=None, force_streaming=False):
    """x: (M, Cin) bf16/f32 -> (out (M, 1) f32, aux (M, 1) f32)."""
    M, Cin = x.shape
    C = params["w_hid"].shape[1]
    wbytes = jnp.dtype(params["w_blocks"].dtype).itemsize
    xbytes = jnp.dtype(x.dtype).itemsize

    # Resident path only if the (conservatively double-buffered) weight
    # footprint fits comfortably in VMEM on every generation (v7x: 64 MiB).
    resident_w_bytes = 2 * (NUM_BLOCKS * C * C + Cin * C) * wbytes
    use_resident = (not force_streaming) and resident_w_bytes <= (36 << 20)

    if tm is None:
        tm = _pick_tm(M, cap=512)
    tm = min(tm, _round_up(M, 8))
    nbt = pl.cdiv(M, tm)

    # ---- advisory cost estimate (honest about per-batch-tile weight restream)
    flops = 2 * M * (Cin * C + NUM_BLOCKS * C * C + 2 * C)
    block_w_bytes = NUM_BLOCKS * C * C * wbytes
    bytes_accessed = (M * Cin * xbytes
                      + Cin * C * wbytes
                      + block_w_bytes * (1 if use_resident else nbt)
                      + (NUM_BLOCKS + 1) * C * 4      # biases
                      + 2 * (C + 1) * 4               # head weights/biases
                      + 2 * M * 4)                    # outputs
    cost = pl.CostEstimate(flops=int(flops), transcendentals=0,
                           bytes_accessed=int(bytes_accessed))

    # ---- VMEM budget: set vmem_limit_bytes from the actual buffer sizes -----
    common = (2 * tm * Cin * xbytes            # x tile (double buffered)
              + 2 * Cin * C * wbytes           # hid1 W
              + 2 * C * 4                      # hid1 b
              + 4 * (C + 1) * 4                # head W/b (2 heads, 2 bufs)
              + 2 * 2 * tm * 4                 # out/aux tiles
              + tm * C * 4)                    # h scratch (f32)
    if use_resident:
        need = common + 2 * NUM_BLOCKS * C * (C * wbytes + 4)
    else:
        need = common + 2 * C * (C * wbytes + 4)   # one streamed layer, 2 bufs
    vmem_limit = min(max(int(need * 1.3) + (1 << 20), 32 << 20), 96 << 20)

    if use_resident:
        grid = (nbt,)
        in_specs = [
            pl.BlockSpec((tm, Cin), lambda i: (i, 0)),               # x row tile
            pl.BlockSpec((Cin, C), lambda i: (0, 0)),                # hid1 W (resident)
            pl.BlockSpec((1, C), lambda i: (0, 0)),                  # hid1 b
            pl.BlockSpec((NUM_BLOCKS, C, C), lambda i: (0, 0, 0)),   # block Ws (resident)
            pl.BlockSpec((NUM_BLOCKS, 1, C), lambda i: (0, 0, 0)),   # block bs
            pl.BlockSpec((1, C), lambda i: (0, 0)),                  # aux head W (lane-dense)
            pl.BlockSpec((1, 1), lambda i: (0, 0)),                  # aux head b
            pl.BlockSpec((1, C), lambda i: (0, 0)),                  # out head W
            pl.BlockSpec((1, 1), lambda i: (0, 0)),                  # out head b
        ]
        out_specs = [pl.BlockSpec((tm, 1), lambda i: (i, 0)),
                     pl.BlockSpec((tm, 1), lambda i: (i, 0))]
        kernel = _resident_kernel
        dim_sem = ("parallel",)
    else:
        grid = (nbt, NUM_BLOCKS)
        in_specs = [
            pl.BlockSpec((tm, Cin), lambda i, l: (i, 0)),            # x row tile
            pl.BlockSpec((Cin, C), lambda i, l: (0, 0)),             # hid1 W (resident)
            pl.BlockSpec((1, C), lambda i, l: (0, 0)),               # hid1 b
            pl.BlockSpec((1, C, C), lambda i, l: (l, 0, 0)),         # block-l W (streamed)
            pl.BlockSpec((1, 1, C), lambda i, l: (l, 0, 0)),         # block-l b (streamed)
            pl.BlockSpec((1, C), lambda i, l: (0, 0)),               # aux head W
            pl.BlockSpec((1, 1), lambda i, l: (0, 0)),               # aux head b
            pl.BlockSpec((1, C), lambda i, l: (0, 0)),               # out head W
            pl.BlockSpec((1, 1), lambda i, l: (0, 0)),               # out head b
        ]
        out_specs = [pl.BlockSpec((tm, 1), lambda i, l: (i, 0)),
                     pl.BlockSpec((tm, 1), lambda i, l: (i, 0))]
        kernel = _streaming_kernel
        dim_sem = ("parallel", "arbitrary")

    out, aux = pl.pallas_call(
        kernel,
        out_shape=(jax.ShapeDtypeStruct((M, 1), jnp.float32),
                   jax.ShapeDtypeStruct((M, 1), jnp.float32)),
        grid_spec=pltpu.PrefetchScalarGridSpec(
            num_scalar_prefetch=0,
            grid=grid,
            in_specs=in_specs,
            out_specs=out_specs,
            scratch_shapes=[pltpu.VMEM((tm, C), jnp.float32)],  # resident activation
        ),
        compiler_params=pltpu.CompilerParams(
            dimension_semantics=dim_sem,
            vmem_limit_bytes=vmem_limit),
        cost_estimate=cost,
    )(x, params["w_hid"], params["b_hid"],
      params["w_blocks"], params["b_blocks"],
      params["w_aux"], params["b_aux"],
      params["w_out"], params["b_out"])
    return out, aux


# ---------------------------------------------------------------------------
# Parameter construction (deterministic, PyTorch-style uniform init).
# Matmul weights pre-transposed to (in, out) bf16; head weights lane-dense
# (1, C) f32; all biases f32.
# ---------------------------------------------------------------------------
def init_params(key, channels_in, channels, num_blocks=NUM_BLOCKS,
                w_dtype=jnp.bfloat16):
    def lin(k, fan_in, fan_out):
        kw, kb = jax.random.split(k)
        bound = 1.0 / math.sqrt(float(fan_in))
        w = jax.random.uniform(kw, (fan_in, fan_out), jnp.float32, -bound, bound)
        b = jax.random.uniform(kb, (1, fan_out), jnp.float32, -bound, bound)
        return w, b

    keys = jax.random.split(key, num_blocks + 3)
    w_hid, b_hid = lin(keys[0], channels_in, channels)
    blk = [lin(keys[1 + i], channels, channels) for i in range(num_blocks)]
    w_aux, b_aux = lin(keys[num_blocks + 1], channels, 1)
    w_out, b_out = lin(keys[num_blocks + 2], channels, 1)
    return dict(
        w_hid=w_hid.astype(w_dtype), b_hid=b_hid,
        w_blocks=jnp.stack([w for w, _ in blk]).astype(w_dtype),  # (15, C, C) bf16
        b_blocks=jnp.stack([b for _, b in blk]),                  # (15, 1, C) f32
        w_aux=w_aux.T, b_aux=b_aux,                               # (1, C), (1, 1) f32
        w_out=w_out.T, b_out=b_out,                               # (1, C), (1, 1) f32
    )


# ---------------------------------------------------------------------------
# Pure-JAX reference with identical numerics (bf16 matmul inputs, f32 epilogue,
# heads as f32 multiply + row-sum).
# ---------------------------------------------------------------------------
def _reference_forward(x, params):
    def lin_mxu(h, w, b):
        return jnp.dot(h.astype(w.dtype), w,
                       preferred_element_type=jnp.float32) + b

    def head(h, w, b):
        return jnp.sum(h * w, axis=-1, keepdims=True) + b

    h = jnp.maximum(lin_mxu(x, params["w_hid"], params["b_hid"]), 0.0)
    aux = None
    for l in range(NUM_BLOCKS):
        y = lin_mxu(h, params["w_blocks"][l], params["b_blocks"][l]) + h
        h = jnp.maximum(y, 0.0)
        if l == AUX_AFTER_BLOCK - 1:
            aux = head(h, params["w_aux"], params["b_aux"])
    out = head(h, params["w_out"], params["b_out"])
    return out, aux


if __name__ == "__main__":
    # Small, TPU-tile-friendly shapes consistent with the module structure:
    # FullyConnectedNet(channels_in=1066, channels=3000) scaled down.
    batch, channels_in, channels = 256, 128, 256

    root = jax.random.PRNGKey(0)
    k_params, k_x, k_x2 = jax.random.split(root, 3)
    params = init_params(k_params, channels_in, channels)
    x = jax.random.normal(k_x, (batch, channels_in), jnp.float32).astype(jnp.bfloat16)

    def check(got, want, name):
        o, a = got
        ro, ra = want
        assert o.shape == ro.shape and a.shape == ra.shape, name
        assert jnp.allclose(o, ro, atol=1e-2, rtol=1e-2), \
            (name, float(jnp.max(jnp.abs(o - ro))))
        assert jnp.allclose(a, ra, atol=1e-2, rtol=1e-2), \
            (name, float(jnp.max(jnp.abs(a - ra))))

    ref = _reference_forward(x, params)

    # 1) Resident path (weights fit in VMEM -> single batch grid axis).
    res = fully_connected_net_forward(x, params)
    jax.block_until_ready(res)
    check(res, ref, "resident")

    # 2) Streaming path (layer grid axis; this is the production-C path),
    #    exercised here at small shapes for correctness.
    strm = fully_connected_net_forward(x, params, tm=128, force_streaming=True)
    jax.block_until_ready(strm)
    check(strm, ref, "streaming")

    # 3) Ragged batch (M % tm != 0): padded rows must not contaminate outputs.
    xr = jax.random.normal(k_x2, (200, channels_in), jnp.float32).astype(jnp.bfloat16)
    refr = _reference_forward(xr, params)
    resr = fully_connected_net_forward(xr, params, tm=128)
    jax.block_until_ready(resr)
    check(resr, refr, "resident-ragged")
    strr = fully_connected_net_forward(xr, params, tm=128, force_streaming=True)
    jax.block_until_ready(strr)
    check(strr, refr, "streaming-ragged")

    print("KERNEL_OK")
</pallas_src>

<mosaic_0001>
module attributes {stable_mosaic.version = 11 : i64} {
  func.func @_resident_kernel(%arg0: i32, %arg1: memref<128x128xbf16, #tpu.memory_space<vmem>>, %arg2: memref<128x256xbf16, #tpu.memory_space<vmem>>, %arg3: memref<1x256xf32, #tpu.memory_space<vmem>>, %arg4: memref<15x256x256xbf16, #tpu.memory_space<vmem>>, %arg5: memref<15x1x256xf32, #tpu.memory_space<vmem>>, %arg6: memref<1x256xf32, #tpu.memory_space<vmem>>, %arg7: memref<1x1xf32, #tpu.memory_space<vmem>>, %arg8: memref<1x256xf32, #tpu.memory_space<vmem>>, %arg9: memref<1x1xf32, #tpu.memory_space<vmem>>, %arg10: memref<128x1xf32, #tpu.memory_space<vmem>>, %arg11: memref<128x1xf32, #tpu.memory_space<vmem>>, %arg12: memref<128x256xf32, #tpu.memory_space<vmem>>) attributes {dimension_semantics = [#tpu.dimension_semantics<parallel>], iteration_bounds = array<i64: 2>, scalar_prefetch = 0 : i64, scratch_operands = 1 : i64, tpu.core_type = #tpu.core_type<tc>, window_params = [{transform_indices = @transform_0, window_bounds = array<i64: 128, 128>}, {pipeline_mode = #tpu.pipeline_mode<synchronous>, transform_indices = @transform_1, window_bounds = array<i64: 128, 256>}, {pipeline_mode = #tpu.pipeline_mode<synchronous>, transform_indices = @transform_2, window_bounds = array<i64: 1, 256>}, {pipeline_mode = #tpu.pipeline_mode<synchronous>, transform_indices = @transform_3, window_bounds = array<i64: 15, 256, 256>}, {pipeline_mode = #tpu.pipeline_mode<synchronous>, transform_indices = @transform_4, window_bounds = array<i64: 15, 1, 256>}, {pipeline_mode = #tpu.pipeline_mode<synchronous>, transform_indices = @transform_5, window_bounds = array<i64: 1, 256>}, {pipeline_mode = #tpu.pipeline_mode<synchronous>, transform_indices = @transform_6, window_bounds = array<i64: 1, 1>}, {pipeline_mode = #tpu.pipeline_mode<synchronous>, transform_indices = @transform_7, window_bounds = array<i64: 1, 256>}, {pipeline_mode = #tpu.pipeline_mode<synchronous>, transform_indices = @transform_8, window_bounds = array<i64: 1, 1>}, {transform_indices = @transform_9, window_bounds = array<i64: 128, 1>}, {transform_indices = @transform_10, window_bounds = array<i64: 128, 1>}]} {
    %c0 = arith.constant 0 : index
    %c0_0 = arith.constant 0 : index
    %0 = vector.load %arg1[%c0, %c0_0] : memref<128x128xbf16, #tpu.memory_space<vmem>>, vector<128x128xbf16>
    %c0_1 = arith.constant 0 : index
    %c0_2 = arith.constant 0 : index
    %1 = vector.load %arg2[%c0_1, %c0_2] : memref<128x256xbf16, #tpu.memory_space<vmem>>, vector<128x256xbf16>
    %cst = arith.constant dense<0.000000e+00> : vector<128x256xf32>
    %2 = tpu.matmul %0, %1, %cst {dimension_numbers = #tpu.dot_dimension_numbers<[1], [0], [0], [1], [0, 0, 1, 1], [], []>} : vector<128x128xbf16>, vector<128x256xbf16>, vector<128x256xf32> -> vector<128x256xf32>
    %c0_3 = arith.constant 0 : index
    %c0_4 = arith.constant 0 : index
    %3 = vector.load %arg3[%c0_3, %c0_4] : memref<1x256xf32, #tpu.memory_space<vmem>>, vector<1x256xf32>
    %4 = vector.broadcast %3 : vector<1x256xf32> to vector<128x256xf32>
    %5 = arith.addf %2, %4 : vector<128x256xf32>
    %cst_5 = arith.constant 0.000000e+00 : f32
    %6 = vector.broadcast %cst_5 : f32 to vector<128x256xf32>
    %7 = arith.maximumf %5, %6 : vector<128x256xf32>
    %c0_6 = arith.constant 0 : index
    %c0_7 = arith.constant 0 : index
    %8 = vector.load %arg12[%c0_6, %c0_7] : memref<128x256xf32, #tpu.memory_space<vmem>>, vector<128x256xf32>
    tpu.vector_store %arg12[%c0_6, %c0_7], %7 {strides = array<i32>} : memref<128x256xf32, #tpu.memory_space<vmem>>, vector<128x256xf32>,
    %c0_i32 = arith.constant 0 : i32
    %c0_8 = arith.constant 0 : index
    %c0_9 = arith.constant 0 : index
    %9 = vector.load %arg12[%c0_8, %c0_9] : memref<128x256xf32, #tpu.memory_space<vmem>>, vector<128x256xf32>
    %10 = arith.truncf %9 : vector<128x256xf32> to vector<128x256xbf16>
    %11 = arith.index_cast %c0_i32 : i32 to index
    %c0_10 = arith.constant 0 : index
    %c0_11 = arith.constant 0 : index
    %12 = vector.load %arg4[%11, %c0_10, %c0_11] : memref<15x256x256xbf16, #tpu.memory_space<vmem>>, vector<1x256x256xbf16>
    %13 = vector.shape_cast %12 : vector<1x256x256xbf16> to vector<256x256xbf16>
    %cst_12 = arith.constant dense<0.000000e+00> : vector<128x256xf32>
    %14 = tpu.matmul %10, %13, %cst_12 {dimension_numbers = #tpu.dot_dimension_numbers<[1], [0], [0], [1], [0, 0, 1, 1], [], []>} : vector<128x256xbf16>, vector<256x256xbf16>, vector<128x256xf32> -> vector<128x256xf32>
    %15 = arith.index_cast %c0_i32 : i32 to index
    %c0_13 = arith.constant 0 : index
    %c0_14 = arith.constant 0 : index
    %16 = vector.load %arg5[%15, %c0_13, %c0_14] : memref<15x1x256xf32, #tpu.memory_space<vmem>>, vector<1x1x256xf32>
    %17 = vector.shape_cast %16 : vector<1x1x256xf32> to vector<1x256xf32>
    %18 = vector.broadcast %17 : vector<1x256xf32> to vector<128x256xf32>
    %19 = arith.addf %14, %18 : vector<128x256xf32>
    %20 = arith.addf %19, %9 : vector<128x256xf32>
    %cst_15 = arith.constant 0.000000e+00 : f32
    %21 = vector.broadcast %cst_15 : f32 to vector<128x256xf32>
    %22 = arith.maximumf %20, %21 : vector<128x256xf32>
    %c0_16 = arith.constant 0 : index
    %c0_17 = arith.constant 0 : index
    %23 = vector.load %arg12[%c0_16, %c0_17] : memref<128x256xf32, #tpu.memory_space<vmem>>, vector<128x256xf32>
    tpu.vector_store %arg12[%c0_16, %c0_17], %22 {strides = array<i32>} : memref<128x256xf32, #tpu.memory_space<vmem>>, vector<128x256xf32>,
    %c1_i32 = arith.constant 1 : i32
    %c0_18 = arith.constant 0 : index
    %c0_19 = arith.constant 0 : index
    %24 = vector.load %arg12[%c0_18, %c0_19] : memref<128x256xf32, #tpu.memory_space<vmem>>, vector<128x256xf32>
    %25 = arith.truncf %24 : vector<128x256xf32> to vector<128x256xbf16>
    %26 = arith.index_cast %c1_i32 : i32 to index
    %c0_20 = arith.constant 0 : index
    %c0_21 = arith.constant 0 : index
    %27 = vector.load %arg4[%26, %c0_20, %c0_21] : memref<15x256x256xbf16, #tpu.memory_space<vmem>>, vector<1x256x256xbf16>
    %28 = vector.shape_cast %27 : vector<1x256x256xbf16> to vector<256x256xbf16>
    %cst_22 = arith.constant dense<0.000000e+00> : vector<128x256xf32>
    %29 = tpu.matmul %25, %28, %cst_22 {dimension_numbers = #tpu.dot_dimension_numbers<[1], [0], [0], [1], [0, 0, 1, 1], [], []>} : vector<128x256xbf16>, vector<256x256xbf16>, vector<128x256xf32> -> vector<128x256xf32>
    %30 = arith.index_cast %c1_i32 : i32 to index
    %c0_23 = arith.constant 0 : index
    %c0_24 = arith.constant 0 : index
    %31 = vector.load %arg5[%30, %c0_23, %c0_24] : memref<15x1x256xf32, #tpu.memory_space<vmem>>, vector<1x1x256xf32>
    %32 = vector.shape_cast %31 : vector<1x1x256xf32> to vector<1x256xf32>
    %33 = vector.broadcast %32 : vector<1x256xf32> to vector<128x256xf32>
    %34 = arith.addf %29, %33 : vector<128x256xf32>
    %35 = arith.addf %34, %24 : vector<128x256xf32>
    %cst_25 = arith.constant 0.000000e+00 : f32
    %36 = vector.broadcast %cst_25 : f32 to vector<128x256xf32>
    %37 = arith.maximumf %35, %36 : vector<128x256xf32>
    %c0_26 = arith.constant 0 : index
    %c0_27 = arith.constant 0 : index
    %38 = vector.load %arg12[%c0_26, %c0_27] : memref<128x256xf32, #tpu.memory_space<vmem>>, vector<128x256xf32>
    tpu.vector_store %arg12[%c0_26, %c0_27], %37 {strides = array<i32>} : memref<128x256xf32, #tpu.memory_space<vmem>>, vector<128x256xf32>,
    %c2_i32 = arith.constant 2 : i32
    %c0_28 = arith.constant 0 : index
    %c0_29 = arith.constant 0 : index
    %39 = vector.load %arg12[%c0_28, %c0_29] : memref<128x256xf32, #tpu.memory_space<vmem>>, vector<128x256xf32>
    %40 = arith.truncf %39 : vector<128x256xf32> to vector<128x256xbf16>
    %41 = arith.index_cast %c2_i32 : i32 to index
    %c0_30 = arith.constant 0 : index
    %c0_31 = arith.constant 0 : index
    %42 = vector.load %arg4[%41, %c0_30, %c0_31] : memref<15x256x256xbf16, #tpu.memory_space<vmem>>, vector<1x256x256xbf16>
    %43 = vector.shape_cast %42 : vector<1x256x256xbf16> to vector<256x256xbf16>
    %cst_32 = arith.constant dense<0.000000e+00> : vector<128x256xf32>
    %44 = tpu.matmul %40, %43, %cst_32 {dimension_numbers = #tpu.dot_dimension_numbers<[1], [0], [0], [1], [0, 0, 1, 1], [], []>} : vector<128x256xbf16>, vector<256x256xbf16>, vector<128x256xf32> -> vector<128x256xf32>
    %45 = arith.index_cast %c2_i32 : i32 to index
    %c0_33 = arith.constant 0 : index
    %c0_34 = arith.constant 0 : index
    %46 = vector.load %arg5[%45, %c0_33, %c0_34] : memref<15x1x256xf32, #tpu.memory_space<vmem>>, vector<1x1x256xf32>
    %47 = vector.shape_cast %46 : vector<1x1x256xf32> to vector<1x256xf32>
    %48 = vector.broadcast %47 : vector<1x256xf32> to vector<128x256xf32>
    %49 = arith.addf %44, %48 : vector<128x256xf32>
    %50 = arith.addf %49, %39 : vector<128x256xf32>
    %cst_35 = arith.constant 0.000000e+00 : f32
    %51 = vector.broadcast %cst_35 : f32 to vector<128x256xf32>
    %52 = arith.maximumf %50, %51 : vector<128x256xf32>
    %c0_36 = arith.constant 0 : index
    %c0_37 = arith.constant 0 : index
    %53 = vector.load %arg12[%c0_36, %c0_37] : memref<128x256xf32, #tpu.memory_space<vmem>>, vector<128x256xf32>
    tpu.vector_store %arg12[%c0_36, %c0_37], %52 {strides = array<i32>} : memref<128x256xf32, #tpu.memory_space<vmem>>, vector<128x256xf32>,
    %c3_i32 = arith.constant 3 : i32
    %c0_38 = arith.constant 0 : index
    %c0_39 = arith.constant 0 : index
    %54 = vector.load %arg12[%c0_38, %c0_39] : memref<128x256xf32, #tpu.memory_space<vmem>>, vector<128x256xf32>
    %55 = arith.truncf %54 : vector<128x256xf32> to vector<128x256xbf16>
    %56 = arith.index_cast %c3_i32 : i32 to index
    %c0_40 = arith.constant 0 : index
    %c0_41 = arith.constant 0 : index
    %57 = vector.load %arg4[%56, %c0_40, %c0_41] : memref<15x256x256xbf16, #tpu.memory_space<vmem>>, vector<1x256x256xbf16>
    %58 = vector.shape_cast %57 : vector<1x256x256xbf16> to vector<256x256xbf16>
    %cst_42 = arith.constant dense<0.000000e+00> : vector<128x256xf32>
    %59 = tpu.matmul %55, %58, %cst_42 {dimension_numbers = #tpu.dot_dimension_numbers<[1], [0], [0], [1], [0, 0, 1, 1], [], []>} : vector<128x256xbf16>, vector<256x256xbf16>, vector<128x256xf32> -> vector<128x256xf32>
    %60 = arith.index_cast %c3_i32 : i32 to index
    %c0_43 = arith.constant 0 : index
    %c0_44 = arith.constant 0 : index
    %61 = vector.load %arg5[%60, %c0_43, %c0_44] : memref<15x1x256xf32, #tpu.memory_space<vmem>>, vector<1x1x256xf32>
    %62 = vector.shape_cast %61 : vector<1x1x256xf32> to vector<1x256xf32>
    %63 = vector.broadcast %62 : vector<1x256xf32> to vector<128x256xf32>
    %64 = arith.addf %59, %63 : vector<128x256xf32>
    %65 = arith.addf %64, %54 : vector<128x256xf32>
    %cst_45 = arith.constant 0.000000e+00 : f32
    %66 = vector.broadcast %cst_45 : f32 to vector<128x256xf32>
    %67 = arith.maximumf %65, %66 : vector<128x256xf32>
    %c0_46 = arith.constant 0 : index
    %c0_47 = arith.constant 0 : index
    %68 = vector.load %arg12[%c0_46, %c0_47] : memref<128x256xf32, #tpu.memory_space<vmem>>, vector<128x256xf32>
    tpu.vector_store %arg12[%c0_46, %c0_47], %67 {strides = array<i32>} : memref<128x256xf32, #tpu.memory_space<vmem>>, vector<128x256xf32>,
    %c4_i32 = arith.constant 4 : i32
    %c0_48 = arith.constant 0 : index
    %c0_49 = arith.constant 0 : index
    %69 = vector.load %arg12[%c0_48, %c0_49] : memref<128x256xf32, #tpu.memory_space<vmem>>, vector<128x256xf32>
    %70 = arith.truncf %69 : vector<128x256xf32> to vector<128x256xbf16>
    %71 = arith.index_cast %c4_i32 : i32 to index
    %c0_50 = arith.constant 0 : index
    %c0_51 = arith.constant 0 : index
    %72 = vector.load %arg4[%71, %c0_50, %c0_51] : memref<15x256x256xbf16, #tpu.memory_space<vmem>>, vector<1x256x256xbf16>
    %73 = vector.shape_cast %72 : vector<1x256x256xbf16> to vector<256x256xbf16>
    %cst_52 = arith.constant dense<0.000000e+00> : vector<128x256xf32>
    %74 = tpu.matmul %70, %73, %cst_52 {dimension_numbers = #tpu.dot_dimension_numbers<[1], [0], [0], [1], [0, 0, 1, 1], [], []>} : vector<128x256xbf16>, vector<256x256xbf16>, vector<128x256xf32> -> vector<128x256xf32>
    %75 = arith.index_cast %c4_i32 : i32 to index
    %c0_53 = arith.constant 0 : index
    %c0_54 = arith.constant 0 : index
    %76 = vector.load %arg5[%75, %c0_53, %c0_54] : memref<15x1x256xf32, #tpu.memory_space<vmem>>, vector<1x1x256xf32>
    %77 = vector.shape_cast %76 : vector<1x1x256xf32> to vector<1x256xf32>
    %78 = vector.broadcast %77 : vector<1x256xf32> to vector<128x256xf32>
    %79 = arith.addf %74, %78 : vector<128x256xf32>
    %80 = arith.addf %79, %69 : vector<128x256xf32>
    %cst_55 = arith.constant 0.000000e+00 : f32
    %81 = vector.broadcast %cst_55 : f32 to vector<128x256xf32>
    %82 = arith.maximumf %80, %81 : vector<128x256xf32>
    %c0_56 = arith.constant 0 : index
    %c0_57 = arith.constant 0 : index
    %83 = vector.load %arg12[%c0_56, %c0_57] : memref<128x256xf32, #tpu.memory_space<vmem>>, vector<128x256xf32>
    tpu.vector_store %arg12[%c0_56, %c0_57], %82 {strides = array<i32>} : memref<128x256xf32, #tpu.memory_space<vmem>>, vector<128x256xf32>,
    %c5_i32 = arith.constant 5 : i32
    %c0_58 = arith.constant 0 : index
    %c0_59 = arith.constant 0 : index
    %84 = vector.load %arg12[%c0_58, %c0_59] : memref<128x256xf32, #tpu.memory_space<vmem>>, vector<128x256xf32>
    %85 = arith.truncf %84 : vector<128x256xf32> to vector<128x256xbf16>
    %86 = arith.index_cast %c5_i32 : i32 to index
    %c0_60 = arith.constant 0 : index
    %c0_61 = arith.constant 0 : index
    %87 = vector.load %arg4[%86, %c0_60, %c0_61] : memref<15x256x256xbf16, #tpu.memory_space<vmem>>, vector<1x256x256xbf16>
    %88 = vector.shape_cast %87 : vector<1x256x256xbf16> to vector<256x256xbf16>
    %cst_62 = arith.constant dense<0.000000e+00> : vector<128x256xf32>
    %89 = tpu.matmul %85, %88, %cst_62 {dimension_numbers = #tpu.dot_dimension_numbers<[1], [0], [0], [1], [0, 0, 1, 1], [], []>} : vector<128x256xbf16>, vector<256x256xbf16>, vector<128x256xf32> -> vector<128x256xf32>
    %90 = arith.index_cast %c5_i32 : i32 to index
    %c0_63 = arith.constant 0 : index
    %c0_64 = arith.constant 0 : index
    %91 = vector.load %arg5[%90, %c0_63, %c0_64] : memref<15x1x256xf32, #tpu.memory_space<vmem>>, vector<1x1x256xf32>
    %92 = vector.shape_cast %91 : vector<1x1x256xf32> to vector<1x256xf32>
    %93 = vector.broadcast %92 : vector<1x256xf32> to vector<128x256xf32>
    %94 = arith.addf %89, %93 : vector<128x256xf32>
    %95 = arith.addf %94, %84 : vector<128x256xf32>
    %cst_65 = arith.constant 0.000000e+00 : f32
    %96 = vector.broadcast %cst_65 : f32 to vector<128x256xf32>
    %97 = arith.maximumf %95, %96 : vector<128x256xf32>
    %c0_66 = arith.constant 0 : index
    %c0_67 = arith.constant 0 : index
    %98 = vector.load %arg12[%c0_66, %c0_67] : memref<128x256xf32, #tpu.memory_space<vmem>>, vector<128x256xf32>
    tpu.vector_store %arg12[%c0_66, %c0_67], %97 {strides = array<i32>} : memref<128x256xf32, #tpu.memory_space<vmem>>, vector<128x256xf32>,
    %c6_i32 = arith.constant 6 : i32
    %c0_68 = arith.constant 0 : index
    %c0_69 = arith.constant 0 : index
    %99 = vector.load %arg12[%c0_68, %c0_69] : memref<128x256xf32, #tpu.memory_space<vmem>>, vector<128x256xf32>
    %100 = arith.truncf %99 : vector<128x256xf32> to vector<128x256xbf16>
    %101 = arith.index_cast %c6_i32 : i32 to index
    %c0_70 = arith.constant 0 : index
    %c0_71 = arith.constant 0 : index
    %102 = vector.load %arg4[%101, %c0_70, %c0_71] : memref<15x256x256xbf16, #tpu.memory_space<vmem>>, vector<1x256x256xbf16>
    %103 = vector.shape_cast %102 : vector<1x256x256xbf16> to vector<256x256xbf16>
    %cst_72 = arith.constant dense<0.000000e+00> : vector<128x256xf32>
    %104 = tpu.matmul %100, %103, %cst_72 {dimension_numbers = #tpu.dot_dimension_numbers<[1], [0], [0], [1], [0, 0, 1, 1], [], []>} : vector<128x256xbf16>, vector<256x256xbf16>, vector<128x256xf32> -> vector<128x256xf32>
    %105 = arith.index_cast %c6_i32 : i32 to index
    %c0_73 = arith.constant 0 : index
    %c0_74 = arith.constant 0 : index
    %106 = vector.load %arg5[%105, %c0_73, %c0_74] : memref<15x1x256xf32, #tpu.memory_space<vmem>>, vector<1x1x256xf32>
    %107 = vector.shape_cast %106 : vector<1x1x256xf32> to vector<1x256xf32>
    %108 = vector.broadcast %107 : vector<1x256xf32> to vector<128x256xf32>
    %109 = arith.addf %104, %108 : vector<128x256xf32>
    %110 = arith.addf %109, %99 : vector<128x256xf32>
    %cst_75 = arith.constant 0.000000e+00 : f32
    %111 = vector.broadcast %cst_75 : f32 to vector<128x256xf32>
    %112 = arith.maximumf %110, %111 : vector<128x256xf32>
    %c0_76 = arith.constant 0 : index
    %c0_77 = arith.constant 0 : index
    %113 = vector.load %arg12[%c0_76, %c0_77] : memref<128x256xf32, #tpu.memory_space<vmem>>, vector<128x256xf32>
    tpu.vector_store %arg12[%c0_76, %c0_77], %112 {strides = array<i32>} : memref<128x256xf32, #tpu.memory_space<vmem>>, vector<128x256xf32>,
    %c7_i32 = arith.constant 7 : i32
    %c0_78 = arith.constant 0 : index
    %c0_79 = arith.constant 0 : index
    %114 = vector.load %arg12[%c0_78, %c0_79] : memref<128x256xf32, #tpu.memory_space<vmem>>, vector<128x256xf32>
    %c0_80 = arith.constant 0 : index
    %c0_81 = arith.constant 0 : index
    %115 = vector.load %arg6[%c0_80, %c0_81] : memref<1x256xf32, #tpu.memory_space<vmem>>, vector<1x256xf32>
    %116 = vector.broadcast %115 : vector<1x256xf32> to vector<128x256xf32>
    %117 = arith.mulf %114, %116 : vector<128x256xf32>
    %cst_82 = arith.constant dense<0.000000e+00> : vector<128xf32>
    %118 = vector.multi_reduction <add>, %117, %cst_82 [1] : vector<128x256xf32> to vector<128xf32>
    %119 = vector.shape_cast %118 : vector<128xf32> to vector<128x1xf32>
    %c0_83 = arith.constant 0 : index
    %c0_84 = arith.constant 0 : index
    %120 = vector.load %arg7[%c0_83, %c0_84] : memref<1x1xf32, #tpu.memory_space<vmem>>, vector<1x1xf32>
    %121 = vector.broadcast %120 : vector<1x1xf32> to vector<128x1xf32>
    %122 = arith.addf %119, %121 : vector<128x1xf32>
    %c0_85 = arith.constant 0 : index
    %c0_86 = arith.constant 0 : index
    %123 = vector.load %arg11[%c0_85, %c0_86] : memref<128x1xf32, #tpu.memory_space<vmem>>, vector<128x1xf32>
    tpu.vector_store %arg11[%c0_85, %c0_86], %122 {strides = array<i32>} : memref<128x1xf32, #tpu.memory_space<vmem>>, vector<128x1xf32>,
    %c7_i32_87 = arith.constant 7 : i32
    %c0_88 = arith.constant 0 : index
    %c0_89 = arith.constant 0 : index
    %124 = vector.load %arg12[%c0_88, %c0_89] : memref<128x256xf32, #tpu.memory_space<vmem>>, vector<128x256xf32>
    %125 = arith.truncf %124 : vector<128x256xf32> to vector<128x256xbf16>
    %126 = arith.index_cast %c7_i32_87 : i32 to index
    %c0_90 = arith.constant 0 : index
    %c0_91 = arith.constant 0 : index
    %127 = vector.load %arg4[%126, %c0_90, %c0_91] : memref<15x256x256xbf16, #tpu.memory_space<vmem>>, vector<1x256x256xbf16>
    %128 = vector.shape_cast %127 : vector<1x256x256xbf16> to vector<256x256xbf16>
    %cst_92 = arith.constant dense<0.000000e+00> : vector<128x256xf32>
    %129 = tpu.matmul %125, %128, %cst_92 {dimension_numbers = #tpu.dot_dimension_numbers<[1], [0], [0], [1], [0, 0, 1, 1], [], []>} : vector<128x256xbf16>, vector<256x256xbf16>, vector<128x256xf32> -> vector<128x256xf32>
    %130 = arith.index_cast %c7_i32_87 : i32 to index
    %c0_93 = arith.constant 0 : index
    %c0_94 = arith.constant 0 : index
    %131 = vector.load %arg5[%130, %c0_93, %c0_94] : memref<15x1x256xf32, #tpu.memory_space<vmem>>, vector<1x1x256xf32>
    %132 = vector.shape_cast %131 : vector<1x1x256xf32> to vector<1x256xf32>
    %133 = vector.broadcast %132 : vector<1x256xf32> to vector<128x256xf32>
    %134 = arith.addf %129, %133 : vector<128x256xf32>
    %135 = arith.addf %134, %124 : vector<128x256xf32>
    %cst_95 = arith.constant 0.000000e+00 : f32
    %136 = vector.broadcast %cst_95 : f32 to vector<128x256xf32>
    %137 = arith.maximumf %135, %136 : vector<128x256xf32>
    %c0_96 = arith.constant 0 : index
    %c0_97 = arith.constant 0 : index
    %138 = vector.load %arg12[%c0_96, %c0_97] : memref<128x256xf32, #tpu.memory_space<vmem>>, vector<128x256xf32>
    tpu.vector_store %arg12[%c0_96, %c0_97], %137 {strides = array<i32>} : memref<128x256xf32, #tpu.memory_space<vmem>>, vector<128x256xf32>,
    %c8_i32 = arith.constant 8 : i32
    %c0_98 = arith.constant 0 : index
    %c0_99 = arith.constant 0 : index
    %139 = vector.load %arg12[%c0_98, %c0_99] : memref<128x256xf32, #tpu.memory_space<vmem>>, vector<128x256xf32>
    %140 = arith.truncf %139 : vector<128x256xf32> to vector<128x256xbf16>
    %141 = arith.index_cast %c8_i32 : i32 to index
    %c0_100 = arith.constant 0 : index
    %c0_101 = arith.constant 0 : index
    %142 = vector.load %arg4[%141, %c0_100, %c0_101] : memref<15x256x256xbf16, #tpu.memory_space<vmem>>, vector<1x256x256xbf16>
    %143 = vector.shape_cast %142 : vector<1x256x256xbf16> to vector<256x256xbf16>
    %cst_102 = arith.constant dense<0.000000e+00> : vector<128x256xf32>
    %144 = tpu.matmul %140, %143, %cst_102 {dimension_numbers = #tpu.dot_dimension_numbers<[1], [0], [0], [1], [0, 0, 1, 1], [], []>} : vector<128x256xbf16>, vector<256x256xbf16>, vector<128x256xf32> -> vector<128x256xf32>
    %145 = arith.index_cast %c8_i32 : i32 to index
    %c0_103 = arith.constant 0 : index
    %c0_104 = arith.constant 0 : index
    %146 = vector.load %arg5[%145, %c0_103, %c0_104] : memref<15x1x256xf32, #tpu.memory_space<vmem>>, vector<1x1x256xf32>
    %147 = vector.shape_cast %146 : vector<1x1x256xf32> to vector<1x256xf32>
    %148 = vector.broadcast %147 : vector<1x256xf32> to vector<128x256xf32>
    %149 = arith.addf %144, %148 : vector<128x256xf32>
    %150 = arith.addf %149, %139 : vector<128x256xf32>
    %cst_105 = arith.constant 0.000000e+00 : f32
    %151 = vector.broadcast %cst_105 : f32 to vector<128x256xf32>
    %152 = arith.maximumf %150, %151 : vector<128x256xf32>
    %c0_106 = arith.constant 0 : index
    %c0_107 = arith.constant 0 : index
    %153 = vector.load %arg12[%c0_106, %c0_107] : memref<128x256xf32, #tpu.memory_space<vmem>>, vector<128x256xf32>
    tpu.vector_store %arg12[%c0_106, %c0_107], %152 {strides = array<i32>} : memref<128x256xf32, #tpu.memory_space<vmem>>, vector<128x256xf32>,
    %c9_i32 = arith.constant 9 : i32
    %c0_108 = arith.constant 0 : index
    %c0_109 = arith.constant 0 : index
    %154 = vector.load %arg12[%c0_108, %c0_109] : memref<128x256xf32, #tpu.memory_space<vmem>>, vector<128x256xf32>
    %155 = arith.truncf %154 : vector<128x256xf32> to vector<128x256xbf16>
    %156 = arith.index_cast %c9_i32 : i32 to index
    %c0_110 = arith.constant 0 : index
    %c0_111 = arith.constant 0 : index
    %157 = vector.load %arg4[%156, %c0_110, %c0_111] : memref<15x256x256xbf16, #tpu.memory_space<vmem>>, vector<1x256x256xbf16>
    %158 = vector.shape_cast %157 : vector<1x256x256xbf16> to vector<256x256xbf16>
    %cst_112 = arith.constant dense<0.000000e+00> : vector<128x256xf32>
    %159 = tpu.matmul %155, %158, %cst_112 {dimension_numbers = #tpu.dot_dimension_numbers<[1], [0], [0], [1], [0, 0, 1, 1], [], []>} : vector<128x256xbf16>, vector<256x256xbf16>, vector<128x256xf32> -> vector<128x256xf32>
    %160 = arith.index_cast %c9_i32 : i32 to index
    %c0_113 = arith.constant 0 : index
    %c0_114 = arith.constant 0 : index
    %161 = vector.load %arg5[%160, %c0_113, %c0_114] : memref<15x1x256xf32, #tpu.memory_space<vmem>>, vector<1x1x256xf32>
    %162 = vector.shape_cast %161 : vector<1x1x256xf32> to vector<1x256xf32>
    %163 = vector.broadcast %162 : vector<1x256xf32> to vector<128x256xf32>
    %164 = arith.addf %159, %163 : vector<128x256xf32>
    %165 = arith.addf %164, %154 : vector<128x256xf32>
    %cst_115 = arith.constant 0.000000e+00 : f32
    %166 = vector.broadcast %cst_115 : f32 to vector<128x256xf32>
    %167 = arith.maximumf %165, %166 : vector<128x256xf32>
    %c0_116 = arith.constant 0 : index
    %c0_117 = arith.constant 0 : index
    %168 = vector.load %arg12[%c0_116, %c0_117] : memref<128x256xf32, #tpu.memory_space<vmem>>, vector<128x256xf32>
    tpu.vector_store %arg12[%c0_116, %c0_117], %167 {strides = array<i32>} : memref<128x256xf32, #tpu.memory_space<vmem>>, vector<128x256xf32>,
    %c10_i32 = arith.constant 10 : i32
    %c0_118 = arith.constant 0 : index
    %c0_119 = arith.constant 0 : index
    %169 = vector.load %arg12[%c0_118, %c0_119] : memref<128x256xf32, #tpu.memory_space<vmem>>, vector<128x256xf32>
    %170 = arith.truncf %169 : vector<128x256xf32> to vector<128x256xbf16>
    %171 = arith.index_cast %c10_i32 : i32 to index
    %c0_120 = arith.constant 0 : index
    %c0_121 = arith.constant 0 : index
    %172 = vector.load %arg4[%171, %c0_120, %c0_121] : memref<15x256x256xbf16, #tpu.memory_space<vmem>>, vector<1x256x256xbf16>
    %173 = vector.shape_cast %172 : vector<1x256x256xbf16> to vector<256x256xbf16>
    %cst_122 = arith.constant dense<0.000000e+00> : vector<128x256xf32>
    %174 = tpu.matmul %170, %173, %cst_122 {dimension_numbers = #tpu.dot_dimension_numbers<[1], [0], [0], [1], [0, 0, 1, 1], [], []>} : vector<128x256xbf16>, vector<256x256xbf16>, vector<128x256xf32> -> vector<128x256xf32>
    %175 = arith.index_cast %c10_i32 : i32 to index
    %c0_123 = arith.constant 0 : index
    %c0_124 = arith.constant 0 : index
    %176 = vector.load %arg5[%175, %c0_123, %c0_124] : memref<15x1x256xf32, #tpu.memory_space<vmem>>, vector<1x1x256xf32>
    %177 = vector.shape_cast %176 : vector<1x1x256xf32> to vector<1x256xf32>
    %178 = vector.broadcast %177 : vector<1x256xf32> to vector<128x256xf32>
    %179 = arith.addf %174, %178 : vector<128x256xf32>
    %180 = arith.addf %179, %169 : vector<128x256xf32>
    %cst_125 = arith.constant 0.000000e+00 : f32
    %181 = vector.broadcast %cst_125 : f32 to vector<128x256xf32>
    %182 = arith.maximumf %180, %181 : vector<128x256xf32>
    %c0_126 = arith.constant 0 : index
    %c0_127 = arith.constant 0 : index
    %183 = vector.load %arg12[%c0_126, %c0_127] : memref<128x256xf32, #tpu.memory_space<vmem>>, vector<128x256xf32>
    tpu.vector_store %arg12[%c0_126, %c0_127], %182 {strides = array<i32>} : memref<128x256xf32, #tpu.memory_space<vmem>>, vector<128x256xf32>,
    %c11_i32 = arith.constant 11 : i32
    %c0_128 = arith.constant 0 : index
    %c0_129 = arith.constant 0 : index
    %184 = vector.load %arg12[%c0_128, %c0_129] : memref<128x256xf32, #tpu.memory_space<vmem>>, vector<128x256xf32>
    %185 = arith.truncf %184 : vector<128x256xf32> to vector<128x256xbf16>
    %186 = arith.index_cast %c11_i32 : i32 to index
    %c0_130 = arith.constant 0 : index
    %c0_131 = arith.constant 0 : index
    %187 = vector.load %arg4[%186, %c0_130, %c0_131] : memref<15x256x256xbf16, #tpu.memory_space<vmem>>, vector<1x256x256xbf16>
    %188 = vector.shape_cast %187 : vector<1x256x256xbf16> to vector<256x256xbf16>
    %cst_132 = arith.constant dense<0.000000e+00> : vector<128x256xf32>
    %189 = tpu.matmul %185, %188, %cst_132 {dimension_numbers = #tpu.dot_dimension_numbers<[1], [0], [0], [1], [0, 0, 1, 1], [], []>} : vector<128x256xbf16>, vector<256x256xbf16>, vector<128x256xf32> -> vector<128x256xf32>
    %190 = arith.index_cast %c11_i32 : i32 to index
    %c0_133 = arith.constant 0 : index
    %c0_134 = arith.constant 0 : index
    %191 = vector.load %arg5[%190, %c0_133, %c0_134] : memref<15x1x256xf32, #tpu.memory_space<vmem>>, vector<1x1x256xf32>
    %192 = vector.shape_cast %191 : vector<1x1x256xf32> to vector<1x256xf32>
    %193 = vector.broadcast %192 : vector<1x256xf32> to vector<128x256xf32>
    %194 = arith.addf %189, %193 : vector<128x256xf32>
    %195 = arith.addf %194, %184 : vector<128x256xf32>
    %cst_135 = arith.constant 0.000000e+00 : f32
    %196 = vector.broadcast %cst_135 : f32 to vector<128x256xf32>
    %197 = arith.maximumf %195, %196 : vector<128x256xf32>
    %c0_136 = arith.constant 0 : index
    %c0_137 = arith.constant 0 : index
    %198 = vector.load %arg12[%c0_136, %c0_137] : memref<128x256xf32, #tpu.memory_space<vmem>>, vector<128x256xf32>
    tpu.vector_store %arg12[%c0_136, %c0_137], %197 {strides = array<i32>} : memref<128x256xf32, #tpu.memory_space<vmem>>, vector<128x256xf32>,
    %c12_i32 = arith.constant 12 : i32
    %c0_138 = arith.constant 0 : index
    %c0_139 = arith.constant 0 : index
    %199 = vector.load %arg12[%c0_138, %c0_139] : memref<128x256xf32, #tpu.memory_space<vmem>>, vector<128x256xf32>
    %200 = arith.truncf %199 : vector<128x256xf32> to vector<128x256xbf16>
    %201 = arith.index_cast %c12_i32 : i32 to index
    %c0_140 = arith.constant 0 : index
    %c0_141 = arith.constant 0 : index
    %202 = vector.load %arg4[%201, %c0_140, %c0_141] : memref<15x256x256xbf16, #tpu.memory_space<vmem>>, vector<1x256x256xbf16>
    %203 = vector.shape_cast %202 : vector<1x256x256xbf16> to vector<256x256xbf16>
    %cst_142 = arith.constant dense<0.000000e+00> : vector<128x256xf32>
    %204 = tpu.matmul %200, %203, %cst_142 {dimension_numbers = #tpu.dot_dimension_numbers<[1], [0], [0], [1], [0, 0, 1, 1], [], []>} : vector<128x256xbf16>, vector<256x256xbf16>, vector<128x256xf32> -> vector<128x256xf32>
    %205 = arith.index_cast %c12_i32 : i32 to index
    %c0_143 = arith.constant 0 : index
    %c0_144 = arith.constant 0 : index
    %206 = vector.load %arg5[%205, %c0_143, %c0_144] : memref<15x1x256xf32, #tpu.memory_space<vmem>>, vector<1x1x256xf32>
    %207 = vector.shape_cast %206 : vector<1x1x256xf32> to vector<1x256xf32>
    %208 = vector.broadcast %207 : vector<1x256xf32> to vector<128x256xf32>
    %209 = arith.addf %204, %208 : vector<128x256xf32>
    %210 = arith.addf %209, %199 : vector<128x256xf32>
    %cst_145 = arith.constant 0.000000e+00 : f32
    %211 = vector.broadcast %cst_145 : f32 to vector<128x256xf32>
    %212 = arith.maximumf %210, %211 : vector<128x256xf32>
    %c0_146 = arith.constant 0 : index
    %c0_147 = arith.constant 0 : index
    %213 = vector.load %arg12[%c0_146, %c0_147] : memref<128x256xf32, #tpu.memory_space<vmem>>, vector<128x256xf32>
    tpu.vector_store %arg12[%c0_146, %c0_147], %212 {strides = array<i32>} : memref<128x256xf32, #tpu.memory_space<vmem>>, vector<128x256xf32>,
    %c13_i32 = arith.constant 13 : i32
    %c0_148 = arith.constant 0 : index
    %c0_149 = arith.constant 0 : index
    %214 = vector.load %arg12[%c0_148, %c0_149] : memref<128x256xf32, #tpu.memory_space<vmem>>, vector<128x256xf32>
    %215 = arith.truncf %214 : vector<128x256xf32> to vector<128x256xbf16>
    %216 = arith.index_cast %c13_i32 : i32 to index
    %c0_150 = arith.constant 0 : index
    %c0_151 = arith.constant 0 : index
    %217 = vector.load %arg4[%216, %c0_150, %c0_151] : memref<15x256x256xbf16, #tpu.memory_space<vmem>>, vector<1x256x256xbf16>
    %218 = vector.shape_cast %217 : vector<1x256x256xbf16> to vector<256x256xbf16>
    %cst_152 = arith.constant dense<0.000000e+00> : vector<128x256xf32>
    %219 = tpu.matmul %215, %218, %cst_152 {dimension_numbers = #tpu.dot_dimension_numbers<[1], [0], [0], [1], [0, 0, 1, 1], [], []>} : vector<128x256xbf16>, vector<256x256xbf16>, vector<128x256xf32> -> vector<128x256xf32>
    %220 = arith.index_cast %c13_i32 : i32 to index
    %c0_153 = arith.constant 0 : index
    %c0_154 = arith.constant 0 : index
    %221 = vector.load %arg5[%220, %c0_153, %c0_154] : memref<15x1x256xf32, #tpu.memory_space<vmem>>, vector<1x1x256xf32>
    %222 = vector.shape_cast %221 : vector<1x1x256xf32> to vector<1x256xf32>
    %223 = vector.broadcast %222 : vector<1x256xf32> to vector<128x256xf32>
    %224 = arith.addf %219, %223 : vector<128x256xf32>
    %225 = arith.addf %224, %214 : vector<128x256xf32>
    %cst_155 = arith.constant 0.000000e+00 : f32
    %226 = vector.broadcast %cst_155 : f32 to vector<128x256xf32>
    %227 = arith.maximumf %225, %226 : vector<128x256xf32>
    %c0_156 = arith.constant 0 : index
    %c0_157 = arith.constant 0 : index
    %228 = vector.load %arg12[%c0_156, %c0_157] : memref<128x256xf32, #tpu.memory_space<vmem>>, vector<128x256xf32>
    tpu.vector_store %arg12[%c0_156, %c0_157], %227 {strides = array<i32>} : memref<128x256xf32, #tpu.memory_space<vmem>>, vector<128x256xf32>,
    %c14_i32 = arith.constant 14 : i32
    %c0_158 = arith.constant 0 : index
    %c0_159 = arith.constant 0 : index
    %229 = vector.load %arg12[%c0_158, %c0_159] : memref<128x256xf32, #tpu.memory_space<vmem>>, vector<128x256xf32>
    %230 = arith.truncf %229 : vector<128x256xf32> to vector<128x256xbf16>
    %231 = arith.index_cast %c14_i32 : i32 to index
    %c0_160 = arith.constant 0 : index
    %c0_161 = arith.constant 0 : index
    %232 = vector.load %arg4[%231, %c0_160, %c0_161] : memref<15x256x256xbf16, #tpu.memory_space<vmem>>, vector<1x256x256xbf16>
    %233 = vector.shape_cast %232 : vector<1x256x256xbf16> to vector<256x256xbf16>
    %cst_162 = arith.constant dense<0.000000e+00> : vector<128x256xf32>
    %234 = tpu.matmul %230, %233, %cst_162 {dimension_numbers = #tpu.dot_dimension_numbers<[1], [0], [0], [1], [0, 0, 1, 1], [], []>} : vector<128x256xbf16>, vector<256x256xbf16>, vector<128x256xf32> -> vector<128x256xf32>
    %235 = arith.index_cast %c14_i32 : i32 to index
    %c0_163 = arith.constant 0 : index
    %c0_164 = arith.constant 0 : index
    %236 = vector.load %arg5[%235, %c0_163, %c0_164] : memref<15x1x256xf32, #tpu.memory_space<vmem>>, vector<1x1x256xf32>
    %237 = vector.shape_cast %236 : vector<1x1x256xf32> to vector<1x256xf32>
    %238 = vector.broadcast %237 : vector<1x256xf32> to vector<128x256xf32>
    %239 = arith.addf %234, %238 : vector<128x256xf32>
    %240 = arith.addf %239, %229 : vector<128x256xf32>
    %cst_165 = arith.constant 0.000000e+00 : f32
    %241 = vector.broadcast %cst_165 : f32 to vector<128x256xf32>
    %242 = arith.maximumf %240, %241 : vector<128x256xf32>
    %c0_166 = arith.constant 0 : index
    %c0_167 = arith.constant 0 : index
    %243 = vector.load %arg12[%c0_166, %c0_167] : memref<128x256xf32, #tpu.memory_space<vmem>>, vector<128x256xf32>
    tpu.vector_store %arg12[%c0_166, %c0_167], %242 {strides = array<i32>} : memref<128x256xf32, #tpu.memory_space<vmem>>, vector<128x256xf32>,
    %c8_i32_168 = arith.constant 8 : i32
    %c0_169 = arith.constant 0 : index
    %c0_170 = arith.constant 0 : index
    %244 = vector.load %arg12[%c0_169, %c0_170] : memref<128x256xf32, #tpu.memory_space<vmem>>, vector<128x256xf32>
    %c0_171 = arith.constant 0 : index
    %c0_172 = arith.constant 0 : index
    %245 = vector.load %arg8[%c0_171, %c0_172] : memref<1x256xf32, #tpu.memory_space<vmem>>, vector<1x256xf32>
    %246 = vector.broadcast %245 : vector<1x256xf32> to vector<128x256xf32>
    %247 = arith.mulf %244, %246 : vector<128x256xf32>
    %cst_173 = arith.constant dense<0.000000e+00> : vector<128xf32>
    %248 = vector.multi_reduction <add>, %247, %cst_173 [1] : vector<128x256xf32> to vector<128xf32>
    %249 = vector.shape_cast %248 : vector<128xf32> to vector<128x1xf32>
    %c0_174 = arith.constant 0 : index
    %c0_175 = arith.constant 0 : index
    %250 = vector.load %arg9[%c0_174, %c0_175] : memref<1x1xf32, #tpu.memory_space<vmem>>, vector<1x1xf32>
    %251 = vector.broadcast %250 : vector<1x1xf32> to vector<128x1xf32>
    %252 = arith.addf %249, %251 : vector<128x1xf32>
    %c0_176 = arith.constant 0 : index
    %c0_177 = arith.constant 0 : index
    %253 = vector.load %arg10[%c0_176, %c0_177] : memref<128x1xf32, #tpu.memory_space<vmem>>, vector<128x1xf32>
    tpu.vector_store %arg10[%c0_176, %c0_177], %252 {strides = array<i32>} : memref<128x1xf32, #tpu.memory_space<vmem>>, vector<128x1xf32>,
    return
  }
  func.func @transform_0(%arg0: i32) -> (i32, i32) {
    %c0_i32 = arith.constant 0 : i32
    %c0_i32_0 = arith.constant 0 : i32
    return %arg0, %c0_i32 : i32, i32
  }
  func.func @transform_1(%arg0: i32) -> (i32, i32) {
    %c0_i32 = arith.constant 0 : i32
    %c0_i32_0 = arith.constant 0 : i32
    %c0_i32_1 = arith.constant 0 : i32
    return %c0_i32, %c0_i32_0 : i32, i32
  }
  func.func @transform_2(%arg0: i32) -> (i32, i32) {
    %c0_i32 = arith.constant 0 : i32
    %c0_i32_0 = arith.constant 0 : i32
    %c0_i32_1 = arith.constant 0 : i32
    return %c0_i32, %c0_i32_0 : i32, i32
  }
  func.func @transform_3(%arg0: i32) -> (i32, i32, i32) {
    %c0_i32 = arith.constant 0 : i32
    %c0_i32_0 = arith.constant 0 : i32
    %c0_i32_1 = arith.constant 0 : i32
    %c0_i32_2 = arith.constant 0 : i32
    return %c0_i32, %c0_i32_0, %c0_i32_1 : i32, i32, i32
  }
  func.func @transform_4(%arg0: i32) -> (i32, i32, i32) {
    %c0_i32 = arith.constant 0 : i32
    %c0_i32_0 = arith.constant 0 : i32
    %c0_i32_1 = arith.constant 0 : i32
    %c0_i32_2 = arith.constant 0 : i32
    return %c0_i32, %c0_i32_0, %c0_i32_1 : i32, i32, i32
  }
  func.func @transform_5(%arg0: i32) -> (i32, i32) {
    %c0_i32 = arith.constant 0 : i32
    %c0_i32_0 = arith.constant 0 : i32
    %c0_i32_1 = arith.constant 0 : i32
    return %c0_i32, %c0_i32_0 : i32, i32
  }
  func.func @transform_6(%arg0: i32) -> (i32, i32) {
    %c0_i32 = arith.constant 0 : i32
    %c0_i32_0 = arith.constant 0 : i32
    %c0_i32_1 = arith.constant 0 : i32
    return %c0_i32, %c0_i32_0 : i32, i32
  }
  func.func @transform_7(%arg0: i32) -> (i32, i32) {
    %c0_i32 = arith.constant 0 : i32
    %c0_i32_0 = arith.constant 0 : i32
    %c0_i32_1 = arith.constant 0 : i32
    return %c0_i32, %c0_i32_0 : i32, i32
  }
  func.func @transform_8(%arg0: i32) -> (i32, i32) {
    %c0_i32 = arith.constant 0 : i32
    %c0_i32_0 = arith.constant 0 : i32
    %c0_i32_1 = arith.constant 0 : i32
    return %c0_i32, %c0_i32_0 : i32, i32
  }
  func.func @transform_9(%arg0: i32) -> (i32, i32) {
    %c0_i32 = arith.constant 0 : i32
    %c0_i32_0 = arith.constant 0 : i32
    return %arg0, %c0_i32 : i32, i32
  }
  func.func @transform_10(%arg0: i32) -> (i32, i32) {
    %c0_i32 = arith.constant 0 : i32
    %c0_i32_0 = arith.constant 0 : i32
    return %arg0, %c0_i32 : i32, i32
  }
}

</mosaic_0001>

<llo_original>
// kernel: fully_connected_net_forward.1
$region0: #{fully_connected_net_forward.1}
  #allocation0 [shape = 'u32[]', space=smem, size = 0x4, offset = 0x4, fixed_abs, tag = 'smem constant byte address 0x4 - core index']
  #allocation1 [shape = 'u32[72,128]{1,0:T(1,128)}', space=vmem, size = 0x9000, scoped, tag = 'internal scratch']
  #allocation2 [shape = 'f32[128,256]{1,0:T(8,128)}', space=vmem, size = 0x20000, scoped, tag = 'scratch operand']
  #allocation3 [shape = 'f32[1,1]{1,0:T(1,128)S(1)}', space=vmem, size = 0x200, scoped, tag = 'scoped memory for fully_connected_net_forward.1']
  #allocation4 [shape = 'f32[1,1]{1,0:T(1,128)S(1)}', space=vmem, size = 0x200, scoped, tag = 'scoped memory for fully_connected_net_forward.1']
  %s0 = inlined_call_operand.hbm [shape: bf16[256,128], index: 0, kind: input, shape index: {}]
  %s1 = inlined_call_operand.hbm [shape: bf16[128,256], index: 1, kind: input, shape index: {}]
  %s2 = inlined_call_operand.hbm [shape: f32[1,256], index: 2, kind: input, shape index: {}]
  %s3 = inlined_call_operand.hbm [shape: bf16[15,256,256], index: 3, kind: input, shape index: {}]
  %s4 = inlined_call_operand.hbm [shape: f32[15,1,256], index: 4, kind: input, shape index: {}]
  %s5 = inlined_call_operand.hbm [shape: f32[1,256], index: 5, kind: input, shape index: {}]
  %s6 = inlined_call_operand.<no memory space> [shape: f32[1,1], index: 6, kind: input, shape index: {}]
  %s7 = inlined_call_operand.hbm [shape: f32[1,256], index: 7, kind: input, shape index: {}]
  %s8 = inlined_call_operand.<no memory space> [shape: f32[1,1], index: 8, kind: input, shape index: {}]
  %s9 = inlined_call_operand.vmem [shape: f32[256,1], index: 9, kind: output, shape index: {0}]
  %s10 = inlined_call_operand.vmem [shape: f32[256,1], index: 10, kind: output, shape index: {1}]
  %11 = xla_tuple %s9, %s10
  %s12 = sld [smem:[#allocation0]]
  $region105: #{fully_connected_net_forward.1} parent=0
    _
  %s14 = ssub.s32 1, %s12
  %s15 = scalar_select 0, %s14, %s12
  %v16 = vstv %s6
  %17 = vst [vmem:[#allocation3] sm:$0x1] %v16
  %v18 = vstv %s8
  %19 = vst [vmem:[#allocation4] sm:$0x1] %v18
  $region1: #{fully_connected_net_forward.1} parent=0
    #allocation5 [shape = 'u8[65536]{0}', space=vmem, size = 0x10000, scoped, tag = 'input window, operand 0']
    #allocation6 [shape = 's32[2]{0}', space=sflag, size = 0x8, scoped, tag = 'scoped memory for fully_connected_net_forward.1']
    #allocation7 [shape = 'u8[65536]{0}', space=vmem, size = 0x10000, scoped, tag = 'input window, operand 1, single buffered']
    #allocation8 [shape = 's32[1]{0}', space=sflag, size = 0x4, scoped, tag = 'scoped memory for fully_connected_net_forward.1']
    #allocation9 [shape = 'u8[1024]{0}', space=vmem, size = 0x400, scoped, tag = 'input window, operand 2, single buffered']
    #allocation10 [shape = 'u8[1966080]{0}', space=vmem, size = 0x1e0000, scoped, tag = 'input window, operand 3, single buffered']
    #allocation11 [shape = 's32[1]{0}', space=sflag, size = 0x4, scoped, tag = 'scoped memory for fully_connected_net_forward.1']
    #allocation12 [shape = 'u8[15360]{0}', space=vmem, size = 0x3c00, scoped, tag = 'input window, operand 4, single buffered']
    #allocation13 [shape = 'u8[1024]{0}', space=vmem, size = 0x400, scoped, tag = 'input window, operand 5, single buffered']
    #allocation14 [shape = 's32[1]{0}', space=sflag, size = 0x4, scoped, tag = 'scoped memory for fully_connected_net_forward.1']
    #allocation15 [shape = 'u8[1024]{0}', space=vmem, size = 0x400, scoped, tag = 'input window, operand 7, single buffered']
    %20 = vsyncpa [#allocation6], 0
    %s21 = scalar_lea.sflag [#allocation6], 1
    %22 = vsyncpa %s21, 0
    %23 = vsyncpa [#allocation8], 0
    %24 = vsyncpa [#allocation11], 0
    %25 = vsyncpa [#allocation14], 0
    loop: start=0, step=1, limit=4
    $region2: #{fully_connected_net_forward.1} parent=1 // loop_pre_header
      _
    $region3: #{fully_connected_net_forward.1} parent=1 // loop_header
      %s27 = sphi 0, %s31
      %p28 = scmp.ge.s32.totalorder %s27, 4
      %s37 = sphi 0, %s39
      %s40 = sphi 0, %s37
      %s41 = sphi 0, %s40
      %s57 = sphi 0, %s41
      %s61 = sphi 0, %s61
      %s63 = sphi 0, %s61
      %s64 = sphi 0, %s63
      %s78 = sphi 0, %s64
      %s82 = sphi 0, %s82
      %s84 = sphi 0, %s82
      %s85 = sphi 0, %s84
      %s99 = sphi 0, %s85
      %s103 = sphi 0, %s103
      %s105 = sphi 0, %s103
      %s106 = sphi 0, %s105
      %s120 = sphi 0, %s106
      %s124 = sphi 0, %s124
      %s126 = sphi 0, %s124
      %s127 = sphi 0, %s126
      %s141 = sphi 0, %s127
      %s145 = sphi 0, %s145
      %s147 = sphi 0, %s145
      %s148 = sphi 0, %s147
      %s162 = sphi 0, %s148
      %s166 = sphi 0, %s166
      %s168 = sphi 0, %s166
      %s169 = sphi 0, %s168
      %s183 = sphi 0, %s169
      %s187 = sphi 0, %s187
      %s189 = sphi 0, %s187
      %s190 = sphi 0, %s189
      %s204 = sphi 0, %s190
      %s208 = sphi 0, %s208
      %s210 = sphi 0, %s208
      %s211 = sphi 0, %s210
      %s225 = sphi 0, %s211
      %s231 = sphi 0, %s233
      %s234 = sphi 0, %s231
      %s235 = sphi 0, %s234
      %s251 = sphi 0, %s235
      %s257 = sphi 0, %s259
      %s260 = sphi 0, %s257
      %s261 = sphi 0, %s260
      %s277 = sphi 0, %s261
    $region4: #{fully_connected_net_forward.1} parent=1 // loop_header_branch
      %30 = sbr.rel (%p28) target = $region8
    $region5: #{fully_connected_net_forward.1} parent=1 // loop_body
      %s32 = ssub.s32 %s27, 1
      %s33 = ssub.s32 %s27, 2
      %s34 = sadd.s32 %s27, 1
      %s35 = ssub.s32 %s27, %s34
      %p36 = scmp.eq.s32.totalorder %s35, 0
      %s38 = sadd.s32 %s37, 1
      %s39 = scalar_select %p36, %s37, %s38
      %p42 = pneg %p36
      %p43 = scmp.eq.s32.totalorder %s27, 1
      %p44 = por %p42, %p43
      %p45 = scmp.ne.s32.totalorder %s37, %s40
      %p46 = scmp.eq.s32.totalorder %s27, 0
      %p47 = por %p45, %p46
      %p48 = scmp.ne.s32.totalorder %s37, %s40
      %p49 = scmp.eq.s32.totalorder %s32, 1
      %p50 = por %p48, %p49
      %p51 = scmp.ne.s32.totalorder %s40, %s41
      %p52 = scmp.eq.s32.totalorder %s32, 0
      %p53 = por %p51, %p52
      %p54 = scmp.ne.s32.totalorder %s40, %s41
      %p55 = scmp.eq.s32.totalorder %s33, 1
      %p56 = por %p54, %p55
      %p58 = scmp.ne.s32.totalorder %s41, %s57
      %p59 = scmp.eq.s32.totalorder %s33, 0
      %p60 = por %p58, %p59
      %s62 = sadd.s32 %s61, 1
      %p65 = scmp.eq.s32.totalorder %s27, 1
      %p66 = scmp.ne.s32.totalorder %s61, %s63
      %p67 = scmp.eq.s32.totalorder %s27, 0
      %p68 = por %p66, %p67
      %p69 = scmp.ne.s32.totalorder %s61, %s63
      %p70 = scmp.eq.s32.totalorder %s32, 1
      %p71 = por %p69, %p70
      %p72 = scmp.ne.s32.totalorder %s63, %s64
      %p73 = scmp.eq.s32.totalorder %s32, 0
      %p74 = por %p72, %p73
      %p75 = scmp.ne.s32.totalorder %s63, %s64
      %p76 = scmp.eq.s32.totalorder %s33, 1
      %p77 = por %p75, %p76
      %p79 = scmp.ne.s32.totalorder %s64, %s78
      %p80 = scmp.eq.s32.totalorder %s33, 0
      %p81 = por %p79, %p80
      %s83 = sadd.s32 %s82, 1
      %p86 = scmp.eq.s32.totalorder %s27, 1
      %p87 = scmp.ne.s32.totalorder %s82, %s84
      %p88 = scmp.eq.s32.totalorder %s27, 0
      %p89 = por %p87, %p88
      %p90 = scmp.ne.s32.totalorder %s82, %s84
      %p91 = scmp.eq.s32.totalorder %s32, 1
      %p92 = por %p90, %p91
      %p93 = scmp.ne.s32.totalorder %s84, %s85
      %p94 = scmp.eq.s32.totalorder %s32, 0
      %p95 = por %p93, %p94
      %p96 = scmp.ne.s32.totalorder %s84, %s85
      %p97 = scmp.eq.s32.totalorder %s33, 1
      %p98 = por %p96, %p97
      %p100 = scmp.ne.s32.totalorder %s85, %s99
      %p101 = scmp.eq.s32.totalorder %s33, 0
      %p102 = por %p100, %p101
      %s104 = sadd.s32 %s103, 1
      %p107 = scmp.eq.s32.totalorder %s27, 1
      %p108 = scmp.ne.s32.totalorder %s103, %s105
      %p109 = scmp.eq.s32.totalorder %s27, 0
      %p110 = por %p108, %p109
      %p111 = scmp.ne.s32.totalorder %s103, %s105
      %p112 = scmp.eq.s32.totalorder %s32, 1
      %p113 = por %p111, %p112
      %p114 = scmp.ne.s32.totalorder %s105, %s106
      %p115 = scmp.eq.s32.totalorder %s32, 0
      %p116 = por %p114, %p115
      %p117 = scmp.ne.s32.totalorder %s105, %s106
      %p118 = scmp.eq.s32.totalorder %s33, 1
      %p119 = por %p117, %p118
      %p121 = scmp.ne.s32.totalorder %s106, %s120
      %p122 = scmp.eq.s32.totalorder %s33, 0
      %p123 = por %p121, %p122
      %s125 = sadd.s32 %s124, 1
      %p128 = scmp.eq.s32.totalorder %s27, 1
      %p129 = scmp.ne.s32.totalorder %s124, %s126
      %p130 = scmp.eq.s32.totalorder %s27, 0
      %p131 = por %p129, %p130
      %p132 = scmp.ne.s32.totalorder %s124, %s126
      %p133 = scmp.eq.s32.totalorder %s32, 1
      %p134 = por %p132, %p133
      %p135 = scmp.ne.s32.totalorder %s126, %s127
      %p136 = scmp.eq.s32.totalorder %s32, 0
      %p137 = por %p135, %p136
      %p138 = scmp.ne.s32.totalorder %s126, %s127
      %p139 = scmp.eq.s32.totalorder %s33, 1
      %p140 = por %p138, %p139
      %p142 = scmp.ne.s32.totalorder %s127, %s141
      %p143 = scmp.eq.s32.totalorder %s33, 0
      %p144 = por %p142, %p143
      %s146 = sadd.s32 %s145, 1
      %p149 = scmp.eq.s32.totalorder %s27, 1
      %p150 = scmp.ne.s32.totalorder %s145, %s147
      %p151 = scmp.eq.s32.totalorder %s27, 0
      %p152 = por %p150, %p151
      %p153 = scmp.ne.s32.totalorder %s145, %s147
      %p154 = scmp.eq.s32.totalorder %s32, 1
      %p155 = por %p153, %p154
      %p156 = scmp.ne.s32.totalorder %s147, %s148
      %p157 = scmp.eq.s32.totalorder %s32, 0
      %p158 = por %p156, %p157
      %p159 = scmp.ne.s32.totalorder %s147, %s148
      %p160 = scmp.eq.s32.totalorder %s33, 1
      %p161 = por %p159, %p160
      %p163 = scmp.ne.s32.totalorder %s148, %s162
      %p164 = scmp.eq.s32.totalorder %s33, 0
      %p165 = por %p163, %p164
      %s167 = sadd.s32 %s166, 1
      %p170 = scmp.eq.s32.totalorder %s27, 1
      %p171 = scmp.ne.s32.totalorder %s166, %s168
      %p172 = scmp.eq.s32.totalorder %s27, 0
      %p173 = por %p171, %p172
      %p174 = scmp.ne.s32.totalorder %s166, %s168
      %p175 = scmp.eq.s32.totalorder %s32, 1
      %p176 = por %p174, %p175
      %p177 = scmp.ne.s32.totalorder %s168, %s169
      %p178 = scmp.eq.s32.totalorder %s32, 0
      %p179 = por %p177, %p178
      %p180 = scmp.ne.s32.totalorder %s168, %s169
      %p181 = scmp.eq.s32.totalorder %s33, 1
      %p182 = por %p180, %p181
      %p184 = scmp.ne.s32.totalorder %s169, %s183
      %p185 = scmp.eq.s32.totalorder %s33, 0
      %p186 = por %p184, %p185
      %s188 = sadd.s32 %s187, 1
      %p191 = scmp.eq.s32.totalorder %s27, 1
      %p192 = scmp.ne.s32.totalorder %s187, %s189
      %p193 = scmp.eq.s32.totalorder %s27, 0
      %p194 = por %p192, %p193
      %p195 = scmp.ne.s32.totalorder %s187, %s189
      %p196 = scmp.eq.s32.totalorder %s32, 1
      %p197 = por %p195, %p196
      %p198 = scmp.ne.s32.totalorder %s189, %s190
      %p199 = scmp.eq.s32.totalorder %s32, 0
      %p200 = por %p198, %p199
      %p201 = scmp.ne.s32.totalorder %s189, %s190
      %p202 = scmp.eq.s32.totalorder %s33, 1
      %p203 = por %p201, %p202
      %p205 = scmp.ne.s32.totalorder %s190, %s204
      %p206 = scmp.eq.s32.totalorder %s33, 0
      %p207 = por %p205, %p206
      %s209 = sadd.s32 %s208, 1
      %p212 = scmp.eq.s32.totalorder %s27, 1
      %p213 = scmp.ne.s32.totalorder %s208, %s210
      %p214 = scmp.eq.s32.totalorder %s27, 0
      %p215 = por %p213, %p214
      %p216 = scmp.ne.s32.totalorder %s208, %s210
      %p217 = scmp.eq.s32.totalorder %s32, 1
      %p218 = por %p216, %p217
      %p219 = scmp.ne.s32.totalorder %s210, %s211
      %p220 = scmp.eq.s32.totalorder %s32, 0
      %p221 = por %p219, %p220
      %p222 = scmp.ne.s32.totalorder %s210, %s211
      %p223 = scmp.eq.s32.totalorder %s33, 1
      %p224 = por %p222, %p223
      %p226 = scmp.ne.s32.totalorder %s211, %s225
      %p227 = scmp.eq.s32.totalorder %s33, 0
      %p228 = por %p226, %p227
      %s229 = ssub.s32 %s27, %s34
      %p230 = scmp.eq.s32.totalorder %s229, 0
      %s232 = sadd.s32 %s231, 1
      %s233 = scalar_select %p230, %s231, %s232
      %p236 = pneg %p230
      %p237 = scmp.eq.s32.totalorder %s27, 1
      %p238 = por %p236, %p237
      %p239 = scmp.ne.s32.totalorder %s231, %s234
      %p240 = scmp.eq.s32.totalorder %s27, 0
      %p241 = por %p239, %p240
      %p242 = scmp.ne.s32.totalorder %s231, %s234
      %p243 = scmp.eq.s32.totalorder %s32, 1
      %p244 = por %p242, %p243
      %p245 = scmp.ne.s32.totalorder %s234, %s235
      %p246 = scmp.eq.s32.totalorder %s32, 0
      %p247 = por %p245, %p246
      %p248 = scmp.ne.s32.totalorder %s234, %s235
      %p249 = scmp.eq.s32.totalorder %s33, 1
      %p250 = por %p248, %p249
      %p252 = scmp.ne.s32.totalorder %s235, %s251
      %p253 = scmp.eq.s32.totalorder %s33, 0
      %p254 = por %p252, %p253
      %s255 = ssub.s32 %s27, %s34
      %p256 = scmp.eq.s32.totalorder %s255, 0
      %s258 = sadd.s32 %s257, 1
      %s259 = scalar_select %p256, %s257, %s258
      %p262 = pneg %p256
      %p263 = scmp.eq.s32.totalorder %s27, 1
      %p264 = por %p262, %p263
      %p265 = scmp.ne.s32.totalorder %s257, %s260
      %p266 = scmp.eq.s32.totalorder %s27, 0
      %p267 = por %p265, %p266
      %p268 = scmp.ne.s32.totalorder %s257, %s260
      %p269 = scmp.eq.s32.totalorder %s32, 1
      %p270 = por %p268, %p269
      %p271 = scmp.ne.s32.totalorder %s260, %s261
      %p272 = scmp.eq.s32.totalorder %s32, 0
      %p273 = por %p271, %p272
      %p274 = scmp.ne.s32.totalorder %s260, %s261
      %p275 = scmp.eq.s32.totalorder %s33, 1
      %p276 = por %p274, %p275
      %p278 = scmp.ne.s32.totalorder %s261, %s277
      %p279 = scmp.eq.s32.totalorder %s33, 0
      %p280 = por %p278, %p279
      %p281 = scmp.le.s32.totalorder 1, %s27
      %p282 = scmp.lt.s32.totalorder %s27, 3
      %p283 = pnand %p281, %p282
      %p284 = pneg %p283
      // Predicated region
      $region9: #{fully_connected_net_forward.1} parent=5 // pred_check
        _
      $region10: #{fully_connected_net_forward.1} parent=5 // pred_check_branch
        %286 = sbr.rel (%p283) target = $region12
      $region11: #{fully_connected_net_forward.1} parent=5 // pred_region
        %s287 = ssub.s32 %s27, 1
        // Predicated region
        $region13: #{fully_connected_net_forward.1} parent=11 // pred_check
          %p288 = pneg %p74
        $region14: #{fully_connected_net_forward.1} parent=11 // pred_check_branch
          %290 = sbr.rel (%p288) target = $region16
        $region15: #{fully_connected_net_forward.1} parent=11 // pred_region
          %292 = vsyncadd [#allocation8], 0
          %s293 = sshll.u32 %s1, 4
          %s294 = int_to_ptr.hbm [resolvable:$true] %s293
          %s295 = sshll.u32 [#allocation7], 4
          %s296 = int_to_ptr.vmem [resolvable:$true] %s295
          %301 = dma.hbm_to_vmem [thread:$0]  %s294, 2048, %s296, [#allocation8], 128, 128, 8
        $region16: #{fully_connected_net_forward.1} parent=11 // pred_fallthru
          _
        // Predicated region
        $region17: #{fully_connected_net_forward.1} parent=11 // pred_check
          %p302 = pneg %p95
        $region18: #{fully_connected_net_forward.1} parent=11 // pred_check_branch
          %304 = sbr.rel (%p302) target = $region20
        $region19: #{fully_connected_net_forward.1} parent=11 // pred_region
          %306 = vsyncadd [#allocation8], 0
          %s308 = sshll.u32 %s2, 4
          %s309 = int_to_ptr.hbm [resolvable:$true] %s308
          %s310 = sshll.u32 [#allocation9], 4
          %s311 = int_to_ptr.vmem [resolvable:$true] %s310
          %313 = dma.hbm_to_vmem [thread:$0]  %s309, 32, %s311, [#allocation8]
        $region20: #{fully_connected_net_forward.1} parent=11 // pred_fallthru
          _
        // Predicated region
        $region21: #{fully_connected_net_forward.1} parent=11 // pred_check
          %p314 = pneg %p116
        $region22: #{fully_connected_net_forward.1} parent=11 // pred_check_branch
          %316 = sbr.rel (%p314) target = $region24
        $region23: #{fully_connected_net_forward.1} parent=11 // pred_region
          %318 = vsyncadd [#allocation11], 0
          %s319 = sshll.u32 %s3, 4
          %s320 = int_to_ptr.hbm [resolvable:$true] %s319
          %s321 = sshll.u32 [#allocation10], 4
          %s322 = int_to_ptr.vmem [resolvable:$true] %s321
          %327 = dma.hbm_to_vmem [thread:$0]  %s320, 61440, %s322, [#allocation11], 128, 128, 8
        $region24: #{fully_connected_net_forward.1} parent=11 // pred_fallthru
          _
        // Predicated region
        $region25: #{fully_connected_net_forward.1} parent=11 // pred_check
          %p328 = pneg %p137
        $region26: #{fully_connected_net_forward.1} parent=11 // pred_check_branch
          %330 = sbr.rel (%p328) target = $region28
        $region27: #{fully_connected_net_forward.1} parent=11 // pred_region
          %332 = vsyncadd [#allocation11], 0
          %s333 = sshll.u32 %s4, 4
          %s334 = int_to_ptr.hbm [resolvable:$true] %s333
          %s335 = sshll.u32 [#allocation12], 4
          %s336 = int_to_ptr.vmem [resolvable:$true] %s335
          %341 = dma.hbm_to_vmem [thread:$0]  %s334, 480, %s336, [#allocation11], 32, 32, 2
        $region28: #{fully_connected_net_forward.1} parent=11 // pred_fallthru
          _
        // Predicated region
        $region29: #{fully_connected_net_forward.1} parent=11 // pred_check
          %p342 = pneg %p158
        $region30: #{fully_connected_net_forward.1} parent=11 // pred_check_branch
          %344 = sbr.rel (%p342) target = $region32
        $region31: #{fully_connected_net_forward.1} parent=11 // pred_region
          %346 = vsyncadd [#allocation14], 0
          %s348 = sshll.u32 %s5, 4
          %s349 = int_to_ptr.hbm [resolvable:$true] %s348
          %s350 = sshll.u32 [#allocation13], 4
          %s351 = int_to_ptr.vmem [resolvable:$true] %s350
          %353 = dma.hbm_to_vmem [thread:$0]  %s349, 32, %s351, [#allocation14]
        $region32: #{fully_connected_net_forward.1} parent=11 // pred_fallthru
          _
        // Predicated region
        $region33: #{fully_connected_net_forward.1} parent=11 // pred_check
          %p354 = pneg %p179
        $region34: #{fully_connected_net_forward.1} parent=11 // pred_check_branch
          %356 = sbr.rel (%p354) target = $region36
        $region35: #{fully_connected_net_forward.1} parent=11 // pred_region
          _
        $region36: #{fully_connected_net_forward.1} parent=11 // pred_fallthru
          _
        // Predicated region
        $region37: #{fully_connected_net_forward.1} parent=11 // pred_check
          %p357 = pneg %p200
        $region38: #{fully_connected_net_forward.1} parent=11 // pred_check_branch
          %359 = sbr.rel (%p357) target = $region40
        $region39: #{fully_connected_net_forward.1} parent=11 // pred_region
          %361 = vsyncadd [#allocation14], 0
          %s363 = sshll.u32 %s7, 4
          %s364 = int_to_ptr.hbm [resolvable:$true] %s363
          %s365 = sshll.u32 [#allocation15], 4
          %s366 = int_to_ptr.vmem [resolvable:$true] %s365
          %368 = dma.hbm_to_vmem [thread:$0]  %s364, 32, %s366, [#allocation14]
        $region40: #{fully_connected_net_forward.1} parent=11 // pred_fallthru
          _
        // Predicated region
        $region41: #{fully_connected_net_forward.1} parent=11 // pred_check
          %p369 = pneg %p221
        $region42: #{fully_connected_net_forward.1} parent=11 // pred_check_branch
          %371 = sbr.rel (%p369) target = $region44
        $region43: #{fully_connected_net_forward.1} parent=11 // pred_region
          _
        $region44: #{fully_connected_net_forward.1} parent=11 // pred_fallthru
          _
      $region12: #{fully_connected_net_forward.1} parent=5 // pred_fallthru
        _
      %p372 = scmp.lt.s32.totalorder %s27, 2
      // Predicated region
      $region45: #{fully_connected_net_forward.1} parent=5 // pred_check
        %p373 = pneg %p372
      $region46: #{fully_connected_net_forward.1} parent=5 // pred_check_branch
        %375 = sbr.rel (%p373) target = $region48
      $region47: #{fully_connected_net_forward.1} parent=5 // pred_region
        // Predicated region
        $region49: #{fully_connected_net_forward.1} parent=47 // pred_check
          %p376 = pneg %p47
        $region50: #{fully_connected_net_forward.1} parent=47 // pred_check_branch
          %378 = sbr.rel (%p376) target = $region52
        $region51: #{fully_connected_net_forward.1} parent=47 // pred_region
          %s379 = sand.u32 %s37, 1
          %s380 = scalar_lea.sflag [#allocation6], %s379
          %s381 = sand.u32 %s37, 1
          %s382 = smul.addr %s381, 64
          %s383 = scalar_lea.vmem [#allocation5], %s382
          %s384 = smul.u32 16, %s27
          %386 = vsyncadd %s380, 0
          %s387 = smul.addr %s384, 4
          %s388 = scalar_lea.hbm %s0, %s387
          %s389 = sshll.u32 %s388, 4
          %s390 = int_to_ptr.hbm [resolvable:$true] %s389
          %s391 = sshll.u32 %s383, 4
          %s392 = int_to_ptr.vmem [resolvable:$true] %s391
          %397 = dma.hbm_to_vmem [thread:$0]  %s390, 1024, %s392, %s380, 64, 64, 4
        $region52: #{fully_connected_net_forward.1} parent=47 // pred_fallthru
          _
      $region48: #{fully_connected_net_forward.1} parent=5 // pred_fallthru
        _
      %p398 = scmp.le.s32.totalorder 1, %s27
      %p399 = scmp.lt.s32.totalorder %s27, 3
      %p400 = pnand %p398, %p399
      %p401 = pneg %p400
      // Predicated region
      $region53: #{fully_connected_net_forward.1} parent=5 // pred_check
        _
      $region54: #{fully_connected_net_forward.1} parent=5 // pred_check_branch
        %403 = sbr.rel (%p400) target = $region56
      $region55: #{fully_connected_net_forward.1} parent=5 // pred_region
        %s404 = ssub.s32 %s27, 1
        %s405 = sand.u32 %s40, 1
        %s406 = scalar_lea.sflag [#allocation6], %s405
        %s407 = sand.u32 %s40, 1
        %s408 = smul.addr %s407, 64
        %s409 = scalar_lea.vmem [#allocation5], %s408
        // Predicated region
        $region57: #{fully_connected_net_forward.1} parent=55 // pred_check
          %p410 = pneg %p53
        $region58: #{fully_connected_net_forward.1} parent=55 // pred_check_branch
          %412 = sbr.rel (%p410) target = $region60
        $region59: #{fully_connected_net_forward.1} parent=55 // pred_region
          %414 = dma.done %s406, 1024
        $region60: #{fully_connected_net_forward.1} parent=55 // pred_fallthru
          _
        // Predicated region
        $region61: #{fully_connected_net_forward.1} parent=55 // pred_check
          %p415 = pneg %p74
        $region62: #{fully_connected_net_forward.1} parent=55 // pred_check_branch
          %417 = sbr.rel (%p415) target = $region64
        $region63: #{fully_connected_net_forward.1} parent=55 // pred_region
          %419 = dma.done [#allocation8], 2048
        $region64: #{fully_connected_net_forward.1} parent=55 // pred_fallthru
          _
        // Predicated region
        $region65: #{fully_connected_net_forward.1} parent=55 // pred_check
          %p420 = pneg %p95
        $region66: #{fully_connected_net_forward.1} parent=55 // pred_check_branch
          %422 = sbr.rel (%p420) target = $region68
        $region67: #{fully_connected_net_forward.1} parent=55 // pred_region
          %424 = dma.done [#allocation8], 32
        $region68: #{fully_connected_net_forward.1} parent=55 // pred_fallthru
          _
        // Predicated region
        $region69: #{fully_connected_net_forward.1} parent=55 // pred_check
          %p425 = pneg %p116
        $region70: #{fully_connected_net_forward.1} parent=55 // pred_check_branch
          %427 = sbr.rel (%p425) target = $region72
        $region71: #{fully_connected_net_forward.1} parent=55 // pred_region
          %429 = dma.done [#allocation11], 61440
        $region72: #{fully_connected_net_forward.1} parent=55 // pred_fallthru
          _
        // Predicated region
        $region73: #{fully_connected_net_forward.1} parent=55 // pred_check
          %p430 = pneg %p137
        $region74: #{fully_connected_net_forward.1} parent=55 // pred_check_branch
          %432 = sbr.rel (%p430) target = $region76
        $region75: #{fully_connected_net_forward.1} parent=55 // pred_region
          %434 = dma.done [#allocation11], 480
        $region76: #{fully_connected_net_forward.1} parent=55 // pred_fallthru
          _
        // Predicated region
        $region77: #{fully_connected_net_forward.1} parent=55 // pred_check
          %p435 = pneg %p158
        $region78: #{fully_connected_net_forward.1} parent=55 // pred_check_branch
          %437 = sbr.rel (%p435) target = $region80
        $region79: #{fully_connected_net_forward.1} parent=55 // pred_region
          %439 = dma.done [#allocation14], 32
        $region80: #{fully_connected_net_forward.1} parent=55 // pred_fallthru
          _
        // Predicated region
        $region81: #{fully_connected_net_forward.1} parent=55 // pred_check
          %p440 = pneg %p200
        $region82: #{fully_connected_net_forward.1} parent=55 // pred_check_branch
          %442 = sbr.rel (%p440) target = $region84
        $region83: #{fully_connected_net_forward.1} parent=55 // pred_region
          %444 = dma.done [#allocation14], 32
        $region84: #{fully_connected_net_forward.1} parent=55 // pred_fallthru
          _
        %s445 = sand.u32 %s40, 1
        %s446 = scalar_lea.sflag [#allocation6], %s445
        %s447 = sand.u32 %s40, 1
        %s448 = smul.addr %s447, 64
        %s449 = scalar_lea.vmem [#allocation5], %s448
        %p450 = pneg %p53
        %p451 = pneg %p50
        %p452 = pneg %p74
        %p453 = pneg %p71
        %p454 = pneg %p95
        %p455 = pneg %p92
        %p456 = pneg %p116
        %p457 = pneg %p113
        %p458 = pneg %p137
        %p459 = pneg %p134
        %p460 = pneg %p158
        %p461 = pneg %p155
        %p462 = pneg %p179
        %p463 = pneg %p176
        %p464 = pneg %p200
        %p465 = pneg %p197
        %p466 = pneg %p221
        %p467 = pneg %p218
        %p468 = pneg %p247
        %p469 = pneg %p244
        %s470 = smul.u32 16, %s32
        %p471 = scmp.lt.s32.totalorder %s470, 31
        %s472 = scalar_select %p471, %s470, 31
        %s473 = smul.addr %s472, 8
        %s474 = scalar_lea.vmem %s9, %s473
        %p475 = pneg %p273
        %p476 = pneg %p270
        %s477 = smul.u32 16, %s32
        %p478 = scmp.lt.s32.totalorder %s477, 31
        %s479 = scalar_select %p478, %s477, 31
        %s480 = smul.addr %s479, 8
        %s481 = scalar_lea.vmem %s10, %s480
        %s482 = smul.u32 16, %s32
        %s483 = smul.u32 16, %s32
        %p484 = scmp.lt.s32.totalorder %s483, 31
        %s485 = scalar_select %p484, %s483, 31
        %s486 = smul.addr %s485, 8
        %s487 = scalar_lea.vmem %s9, %s486
        %s488 = smul.u32 16, %s32
        %s489 = smul.u32 16, %s32
        %p490 = scmp.lt.s32.totalorder %s489, 31
        %s491 = scalar_select %p490, %s489, 31
        %s492 = smul.addr %s491, 8
        %s493 = scalar_lea.vmem %s10, %s492
        %s494 = smul.u32 16, %s32
        %v495 = vld [vmem:[%s409] sm:$0xf]
        %v496 = vld [vmem:[%s409 + $0x4] sm:$0xf]
        %v497 = vld [vmem:[%s409 + $0x8] sm:$0xf]
        %v498 = vld [vmem:[%s409 + $0xc] sm:$0xf]
        %v499 = vld [vmem:[%s409 + $0x10] sm:$0xf]
        %v500 = vld [vmem:[%s409 + $0x14] sm:$0xf]
        %v501 = vld [vmem:[%s409 + $0x18] sm:$0xf]
        %v502 = vld [vmem:[%s409 + $0x1c] sm:$0xf]
        %v503 = vld [vmem:[%s409 + $0x20] sm:$0xf]
        %v504 = vld [vmem:[%s409 + $0x24] sm:$0xf]
        %v505 = vld [vmem:[%s409 + $0x28] sm:$0xf]
        %v506 = vld [vmem:[%s409 + $0x2c] sm:$0xf]
        %v507 = vld [vmem:[%s409 + $0x30] sm:$0xf]
        %v508 = vld [vmem:[%s409 + $0x34] sm:$0xf]
        %v509 = vld [vmem:[%s409 + $0x38] sm:$0xf]
        %v510 = vld [vmem:[%s409 + $0x3c] sm:$0xf]
        %v511 = vld [vmem:[#allocation7] sm:$0xff]
        %v512 = vld [vmem:[#allocation7 + $0x8] sm:$0xff]
        %v513 = vld [vmem:[#allocation7 + $0x10] sm:$0xff]
        %v514 = vld [vmem:[#allocation7 + $0x18] sm:$0xff]
        %v515 = vld [vmem:[#allocation7 + $0x20] sm:$0xff]
        %v516 = vld [vmem:[#allocation7 + $0x28] sm:$0xff]
        %v517 = vld [vmem:[#allocation7 + $0x30] sm:$0xff]
        %v518 = vld [vmem:[#allocation7 + $0x38] sm:$0xff]
        %v519 = vld [vmem:[#allocation7 + $0x40] sm:$0xff]
        %v520 = vld [vmem:[#allocation7 + $0x48] sm:$0xff]
        %v521 = vld [vmem:[#allocation7 + $0x50] sm:$0xff]
        %v522 = vld [vmem:[#allocation7 + $0x58] sm:$0xff]
        %v523 = vld [vmem:[#allocation7 + $0x60] sm:$0xff]
        %v524 = vld [vmem:[#allocation7 + $0x68] sm:$0xff]
        %v525 = vld [vmem:[#allocation7 + $0x70] sm:$0xff]
        %v526 = vld [vmem:[#allocation7 + $0x78] sm:$0xff]
        %v527 = vld [vmem:[#allocation9] sm:$0x3]
        %v529 = vperm.slane %v527, 0
        %v530 = vperm.slane %v527, 1
        %v549 = vunpack.c.l.b16 %v495
        %v550 = vunpack.c.l.b16 %v496
        %v551 = vunpack.c.l.b16 %v497
        %v552 = vunpack.c.l.b16 %v498
        %v553 = vunpack.c.l.b16 %v499
        %v554 = vunpack.c.l.b16 %v500
        %v555 = vunpack.c.l.b16 %v501
        %v556 = vunpack.c.l.b16 %v502
        %v557 = vunpack.c.l.b16 %v503
        %v558 = vunpack.c.l.b16 %v504
        %v559 = vunpack.c.l.b16 %v505
        %v560 = vunpack.c.l.b16 %v506
        %v561 = vunpack.c.l.b16 %v507
        %v562 = vunpack.c.l.b16 %v508
        %v563 = vunpack.c.l.b16 %v509
        %v564 = vunpack.c.l.b16 %v510
        %v565 = vpack.c.b16 %v550, %v549
        %v566 = vpack.c.b16 %v552, %v551
        %v567 = vpack.c.b16 %v554, %v553
        %v568 = vpack.c.b16 %v556, %v555
        %v569 = vpack.c.b16 %v558, %v557
        %v570 = vpack.c.b16 %v560, %v559
        %v571 = vpack.c.b16 %v562, %v561
        %v572 = vpack.c.b16 %v564, %v563
        %v597 = vunpack.c.l.b16 %v511
        %v598 = vunpack.c.h.b16 %v511
        %v599 = vunpack.c.l.b16 %v512
        %v600 = vunpack.c.h.b16 %v512
        %v601 = vunpack.c.l.b16 %v513
        %v602 = vunpack.c.h.b16 %v513
        %v603 = vunpack.c.l.b16 %v514
        %v604 = vunpack.c.h.b16 %v514
        %v605 = vunpack.c.l.b16 %v515
        %v606 = vunpack.c.h.b16 %v515
        %v607 = vunpack.c.l.b16 %v516
        %v608 = vunpack.c.h.b16 %v516
        %v609 = vunpack.c.l.b16 %v517
        %v610 = vunpack.c.h.b16 %v517
        %v611 = vunpack.c.l.b16 %v518
        %v612 = vunpack.c.h.b16 %v518
        %v613 = vunpack.c.l.b16 %v519
        %v614 = vunpack.c.h.b16 %v519
        %v615 = vunpack.c.l.b16 %v520
        %v616 = vunpack.c.h.b16 %v520
        %v617 = vunpack.c.l.b16 %v521
        %v618 = vunpack.c.h.b16 %v521
        %v619 = vunpack.c.l.b16 %v522
        %v620 = vunpack.c.h.b16 %v522
        %v621 = vunpack.c.l.b16 %v523
        %v622 = vunpack.c.h.b16 %v523
        %v623 = vunpack.c.l.b16 %v524
        %v624 = vunpack.c.h.b16 %v524
        %v625 = vunpack.c.l.b16 %v525
        %v626 = vunpack.c.h.b16 %v525
        %v627 = vunpack.c.l.b16 %v526
        %v628 = vunpack.c.h.b16 %v526
        %v629 = vpack.c.b16 %v599, %v597
        %v630 = vpack.c.b16 %v600, %v598
        %v631 = vpack.c.b16 %v603, %v601
        %v632 = vpack.c.b16 %v604, %v602
        %v633 = vpack.c.b16 %v607, %v605
        %v634 = vpack.c.b16 %v608, %v606
        %v635 = vpack.c.b16 %v611, %v609
        %v636 = vpack.c.b16 %v612, %v610
        %v637 = vpack.c.b16 %v615, %v613
        %v638 = vpack.c.b16 %v616, %v614
        %v639 = vpack.c.b16 %v619, %v617
        %v640 = vpack.c.b16 %v620, %v618
        %v641 = vpack.c.b16 %v623, %v621
        %v642 = vpack.c.b16 %v624, %v622
        %v643 = vpack.c.b16 %v627, %v625
        %v644 = vpack.c.b16 %v628, %v626
        %661 = vmatpush.bf16.msra.mxu0 %v643
        %662 = vmatpush.bf16.msra.mxu0 %v641
        %663 = vmatpush.bf16.msra.mxu0 %v639
        %664 = vmatpush.bf16.msra.mxu0 %v637
        %665 = vmatpush.bf16.msra.mxu0 %v635
        %666 = vmatpush.bf16.msra.mxu0 %v633
        %667 = vmatpush.bf16.msra.mxu0 %v631
        %668 = vmatpush.bf16.msra.mxu0 %v629
        %669 = vmatmul.bf16.gmra.mxu0 %v565
        %v670 = vpop.f32.mrf.mxu0
        %v671 = vadd.f32 %v529, %v670
        %v672 = vpop.f32.mrf.mxu0
        %v673 = vadd.f32 %v529, %v672
        %674 = vmatmul.bf16.gmra.mxu0 %v566
        %v675 = vpop.f32.mrf.mxu0
        %v676 = vadd.f32 %v529, %v675
        %v677 = vpop.f32.mrf.mxu0
        %v678 = vadd.f32 %v529, %v677
        %679 = vmatmul.bf16.gmra.mxu0 %v567
        %v680 = vpop.f32.mrf.mxu0
        %v681 = vadd.f32 %v529, %v680
        %v682 = vpop.f32.mrf.mxu0
        %v683 = vadd.f32 %v529, %v682
        %684 = vmatmul.bf16.gmra.mxu0 %v568
        %v685 = vpop.f32.mrf.mxu0
        %v686 = vadd.f32 %v529, %v685
        %v687 = vpop.f32.mrf.mxu0
        %v688 = vadd.f32 %v529, %v687
        %689 = vmatmul.bf16.gmra.mxu0 %v569
        %v690 = vpop.f32.mrf.mxu0
        %v691 = vadd.f32 %v529, %v690
        %v692 = vpop.f32.mrf.mxu0
        %v693 = vadd.f32 %v529, %v692
        %694 = vmatmul.bf16.gmra.mxu0 %v570
        %v695 = vpop.f32.mrf.mxu0
        %v696 = vadd.f32 %v529, %v695
        %v697 = vpop.f32.mrf.mxu0
        %v698 = vadd.f32 %v529, %v697
        %699 = vmatmul.bf16.gmra.mxu0 %v571
        %v700 = vpop.f32.mrf.mxu0
        %v701 = vadd.f32 %v529, %v700
        %v702 = vpop.f32.mrf.mxu0
        %v703 = vadd.f32 %v529, %v702
        %704 = vmatmul.bf16.gmra.mxu0 %v572
        %v705 = vpop.f32.mrf.mxu0
        %v706 = vadd.f32 %v529, %v705
        %v707 = vpop.f32.mrf.mxu0
        %v708 = vadd.f32 %v529, %v707
        %709 = vdwg.mxu0
        %710 = vmatpush.bf16.msra.mxu0 %v644
        %711 = vmatpush.bf16.msra.mxu0 %v642
        %712 = vmatpush.bf16.msra.mxu0 %v640
        %713 = vmatpush.bf16.msra.mxu0 %v638
        %714 = vmatpush.bf16.msra.mxu0 %v636
        %715 = vmatpush.bf16.msra.mxu0 %v634
        %716 = vmatpush.bf16.msra.mxu0 %v632
        %717 = vmatpush.bf16.msra.mxu0 %v630
        %718 = vmatmul.bf16.gmra.mxu0 %v565
        %v719 = vpop.f32.mrf.mxu0
        %v720 = vadd.f32 %v530, %v719
        %v721 = vpop.f32.mrf.mxu0
        %v722 = vadd.f32 %v530, %v721
        %723 = vmatmul.bf16.gmra.mxu0 %v566
        %v724 = vpop.f32.mrf.mxu0
        %v725 = vadd.f32 %v530, %v724
        %v726 = vpop.f32.mrf.mxu0
        %v727 = vadd.f32 %v530, %v726
        %728 = vmatmul.bf16.gmra.mxu0 %v567
        %v729 = vpop.f32.mrf.mxu0
        %v730 = vadd.f32 %v530, %v729
        %v731 = vpop.f32.mrf.mxu0
        %v732 = vadd.f32 %v530, %v731
        %733 = vmatmul.bf16.gmra.mxu0 %v568
        %v734 = vpop.f32.mrf.mxu0
        %v735 = vadd.f32 %v530, %v734
        %v736 = vpop.f32.mrf.mxu0
        %v737 = vadd.f32 %v530, %v736
        %738 = vmatmul.bf16.gmra.mxu0 %v569
        %v739 = vpop.f32.mrf.mxu0
        %v740 = vadd.f32 %v530, %v739
        %v741 = vpop.f32.mrf.mxu0
        %v742 = vadd.f32 %v530, %v741
        %743 = vmatmul.bf16.gmra.mxu0 %v570
        %v744 = vpop.f32.mrf.mxu0
        %v745 = vadd.f32 %v530, %v744
        %v746 = vpop.f32.mrf.mxu0
        %v747 = vadd.f32 %v530, %v746
        %748 = vmatmul.bf16.gmra.mxu0 %v571
        %v749 = vpop.f32.mrf.mxu0
        %v750 = vadd.f32 %v530, %v749
        %v751 = vpop.f32.mrf.mxu0
        %v752 = vadd.f32 %v530, %v751
        %753 = vmatmul.bf16.gmra.mxu0 %v572
        %v754 = vpop.f32.mrf.mxu0
        %v755 = vadd.f32 %v530, %v754
        %v756 = vpop.f32.mrf.mxu0
        %v757 = vadd.f32 %v530, %v756
        %758 = vdwg.mxu0
        %v759 = vmax.f32 %v671, 0.0
        %v760 = vmax.f32 %v720, 0.0
        %v761 = vmax.f32 %v673, 0.0
        %v762 = vmax.f32 %v722, 0.0
        %v763 = vmax.f32 %v676, 0.0
        %v764 = vmax.f32 %v725, 0.0
        %v765 = vmax.f32 %v678, 0.0
        %v766 = vmax.f32 %v727, 0.0
        %v767 = vmax.f32 %v681, 0.0
        %v768 = vmax.f32 %v730, 0.0
        %v769 = vmax.f32 %v683, 0.0
        %v770 = vmax.f32 %v732, 0.0
        %v771 = vmax.f32 %v686, 0.0
        %v772 = vmax.f32 %v735, 0.0
        %v773 = vmax.f32 %v688, 0.0
        %v774 = vmax.f32 %v737, 0.0
        %v775 = vmax.f32 %v691, 0.0
        %v776 = vmax.f32 %v740, 0.0
        %v777 = vmax.f32 %v693, 0.0
        %v778 = vmax.f32 %v742, 0.0
        %v779 = vmax.f32 %v696, 0.0
        %v780 = vmax.f32 %v745, 0.0
        %v781 = vmax.f32 %v698, 0.0
        %v782 = vmax.f32 %v747, 0.0
        %v783 = vmax.f32 %v701, 0.0
        %v784 = vmax.f32 %v750, 0.0
        %v785 = vmax.f32 %v703, 0.0
        %v786 = vmax.f32 %v752, 0.0
        %v787 = vmax.f32 %v706, 0.0
        %v788 = vmax.f32 %v755, 0.0
        %v789 = vmax.f32 %v708, 0.0
        %v790 = vmax.f32 %v757, 0.0
        %791 = vst [vmem:[#allocation2] sm:$0xff] %v759
        %792 = vst [vmem:[#allocation2 + $0x8] sm:$0xff] %v760
        %793 = vst [vmem:[#allocation2 + $0x10] sm:$0xff] %v761
        %794 = vst [vmem:[#allocation2 + $0x18] sm:$0xff] %v762
        %795 = vst [vmem:[#allocation2 + $0x20] sm:$0xff] %v763
        %796 = vst [vmem:[#allocation2 + $0x28] sm:$0xff] %v764
        %797 = vst [vmem:[#allocation2 + $0x30] sm:$0xff] %v765
        %798 = vst [vmem:[#allocation2 + $0x38] sm:$0xff] %v766
        %799 = vst [vmem:[#allocation2 + $0x40] sm:$0xff] %v767
        %800 = vst [vmem:[#allocation2 + $0x48] sm:$0xff] %v768
        %801 = vst [vmem:[#allocation2 + $0x50] sm:$0xff] %v769
        %802 = vst [vmem:[#allocation2 + $0x58] sm:$0xff] %v770
        %803 = vst [vmem:[#allocation2 + $0x60] sm:$0xff] %v771
        %804 = vst [vmem:[#allocation2 + $0x68] sm:$0xff] %v772
        %805 = vst [vmem:[#allocation2 + $0x70] sm:$0xff] %v773
        %806 = vst [vmem:[#allocation2 + $0x78] sm:$0xff] %v774
        %807 = vst [vmem:[#allocation2 + $0x80] sm:$0xff] %v775
        %808 = vst [vmem:[#allocation2 + $0x88] sm:$0xff] %v776
        %809 = vst [vmem:[#allocation2 + $0x90] sm:$0xff] %v777
        %810 = vst [vmem:[#allocation2 + $0x98] sm:$0xff] %v778
        %811 = vst [vmem:[#allocation2 + $0xa0] sm:$0xff] %v779
        %812 = vst [vmem:[#allocation2 + $0xa8] sm:$0xff] %v780
        %813 = vst [vmem:[#allocation2 + $0xb0] sm:$0xff] %v781
        %814 = vst [vmem:[#allocation2 + $0xb8] sm:$0xff] %v782
        %815 = vst [vmem:[#allocation2 + $0xc0] sm:$0xff] %v783
        %816 = vst [vmem:[#allocation2 + $0xc8] sm:$0xff] %v784
        %817 = vst [vmem:[#allocation2 + $0xd0] sm:$0xff] %v785
        %818 = vst [vmem:[#allocation2 + $0xd8] sm:$0xff] %v786
        %819 = vst [vmem:[#allocation2 + $0xe0] sm:$0xff] %v787
        %820 = vst [vmem:[#allocation2 + $0xe8] sm:$0xff] %v788
        %821 = vst [vmem:[#allocation2 + $0xf0] sm:$0xff] %v789
        %822 = vst [vmem:[#allocation2 + $0xf8] sm:$0xff] %v790
        %v823 = vld [vmem:[#allocation2] sm:$0xff]
        %v824 = vld [vmem:[#allocation2 + $0x8] sm:$0xff]
        %v825 = vld [vmem:[#allocation2 + $0x10] sm:$0xff]
        %v826 = vld [vmem:[#allocation2 + $0x18] sm:$0xff]
        %v827 = vld [vmem:[#allocation2 + $0x20] sm:$0xff]
        %v828 = vld [vmem:[#allocation2 + $0x28] sm:$0xff]
        %v829 = vld [vmem:[#allocation2 + $0x30] sm:$0xff]
        %v830 = vld [vmem:[#allocation2 + $0x38] sm:$0xff]
        %v831 = vld [vmem:[#allocation2 + $0x40] sm:$0xff]
        %v832 = vld [vmem:[#allocation2 + $0x48] sm:$0xff]
        %v833 = vld [vmem:[#allocation2 + $0x50] sm:$0xff]
        %v834 = vld [vmem:[#allocation2 + $0x58] sm:$0xff]
        %v835 = vld [vmem:[#allocation2 + $0x60] sm:$0xff]
        %v836 = vld [vmem:[#allocation2 + $0x68] sm:$0xff]
        %v837 = vld [vmem:[#allocation2 + $0x70] sm:$0xff]
        %v838 = vld [vmem:[#allocation2 + $0x78] sm:$0xff]
        %v839 = vld [vmem:[#allocation2 + $0x80] sm:$0xff]
        %v840 = vld [vmem:[#allocation2 + $0x88] sm:$0xff]
        %v841 = vld [vmem:[#allocation2 + $0x90] sm:$0xff]
        %v842 = vld [vmem:[#allocation2 + $0x98] sm:$0xff]
        %v843 = vld [vmem:[#allocation2 + $0xa0] sm:$0xff]
        %v844 = vld [vmem:[#allocation2 + $0xa8] sm:$0xff]
        %v845 = vld [vmem:[#allocation2 + $0xb0] sm:$0xff]
        %v846 = vld [vmem:[#allocation2 + $0xb8] sm:$0xff]
        %v847 = vld [vmem:[#allocation2 + $0xc0] sm:$0xff]
        %v848 = vld [vmem:[#allocation2 + $0xc8] sm:$0xff]
        %v849 = vld [vmem:[#allocation2 + $0xd0] sm:$0xff]
        %v850 = vld [vmem:[#allocation2 + $0xd8] sm:$0xff]
        %v851 = vld [vmem:[#allocation2 + $0xe0] sm:$0xff]
        %v852 = vld [vmem:[#allocation2 + $0xe8] sm:$0xff]
        %v853 = vld [vmem:[#allocation2 + $0xf0] sm:$0xff]
        %v854 = vld [vmem:[#allocation2 + $0xf8] sm:$0xff]
        %v855 = vpack.c.bf16 %v825, %v823
        %v856 = vpack.c.bf16 %v826, %v824
        %v857 = vpack.c.bf16 %v829, %v827
        %v858 = vpack.c.bf16 %v830, %v828
        %v859 = vpack.c.bf16 %v833, %v831
        %v860 = vpack.c.bf16 %v834, %v832
        %v861 = vpack.c.bf16 %v837, %v835
        %v862 = vpack.c.bf16 %v838, %v836
        %v863 = vpack.c.bf16 %v841, %v839
        %v864 = vpack.c.bf16 %v842, %v840
        %v865 = vpack.c.bf16 %v845, %v843
        %v866 = vpack.c.bf16 %v846, %v844
        %v867 = vpack.c.bf16 %v849, %v847
        %v868 = vpack.c.bf16 %v850, %v848
        %v869 = vpack.c.bf16 %v853, %v851
        %v870 = vpack.c.bf16 %v854, %v852
        %v871 = vld [vmem:[#allocation10] sm:$0xff]
        %v872 = vld [vmem:[#allocation10 + $0x8] sm:$0xff]
        %v873 = vld [vmem:[#allocation10 + $0x10] sm:$0xff]
        %v874 = vld [vmem:[#allocation10 + $0x18] sm:$0xff]
        %v875 = vld [vmem:[#allocation10 + $0x20] sm:$0xff]
        %v876 = vld [vmem:[#allocation10 + $0x28] sm:$0xff]
        %v877 = vld [vmem:[#allocation10 + $0x30] sm:$0xff]
        %v878 = vld [vmem:[#allocation10 + $0x38] sm:$0xff]
        %v879 = vld [vmem:[#allocation10 + $0x40] sm:$0xff]
        %v880 = vld [vmem:[#allocation10 + $0x48] sm:$0xff]
        %v881 = vld [vmem:[#allocation10 + $0x50] sm:$0xff]
        %v882 = vld [vmem:[#allocation10 + $0x58] sm:$0xff]
        %v883 = vld [vmem:[#allocation10 + $0x60] sm:$0xff]
        %v884 = vld [vmem:[#allocation10 + $0x68] sm:$0xff]
        %v885 = vld [vmem:[#allocation10 + $0x70] sm:$0xff]
        %v886 = vld [vmem:[#allocation10 + $0x78] sm:$0xff]
        %v887 = vld [vmem:[#allocation10 + $0x80] sm:$0xff]
        %v888 = vld [vmem:[#allocation10 + $0x88] sm:$0xff]
        %v889 = vld [vmem:[#allocation10 + $0x90] sm:$0xff]
        %v890 = vld [vmem:[#allocation10 + $0x98] sm:$0xff]
        %v891 = vld [vmem:[#allocation10 + $0xa0] sm:$0xff]
        %v892 = vld [vmem:[#allocation10 + $0xa8] sm:$0xff]
        %v893 = vld [vmem:[#allocation10 + $0xb0] sm:$0xff]
        %v894 = vld [vmem:[#allocation10 + $0xb8] sm:$0xff]
        %v895 = vld [vmem:[#allocation10 + $0xc0] sm:$0xff]
        %v896 = vld [vmem:[#allocation10 + $0xc8] sm:$0xff]
        %v897 = vld [vmem:[#allocation10 + $0xd0] sm:$0xff]
        %v898 = vld [vmem:[#allocation10 + $0xd8] sm:$0xff]
        %v899 = vld [vmem:[#allocation10 + $0xe0] sm:$0xff]
        %v900 = vld [vmem:[#allocation10 + $0xe8] sm:$0xff]
        %v901 = vld [vmem:[#allocation10 + $0xf0] sm:$0xff]
        %v902 = vld [vmem:[#allocation10 + $0xf8] sm:$0xff]
        %v903 = vld [vmem:[#allocation12] sm:$0x3]
        %v905 = vperm.slane %v903, 0
        %v906 = vperm.slane %v903, 1
        %v941 = vunpack.c.l.b16 %v871
        %v942 = vunpack.c.h.b16 %v871
        %v943 = vunpack.c.l.b16 %v872
        %v944 = vunpack.c.h.b16 %v872
        %v945 = vunpack.c.l.b16 %v873
        %v946 = vunpack.c.h.b16 %v873
        %v947 = vunpack.c.l.b16 %v874
        %v948 = vunpack.c.h.b16 %v874
        %v949 = vunpack.c.l.b16 %v875
        %v950 = vunpack.c.h.b16 %v875
        %v951 = vunpack.c.l.b16 %v876
        %v952 = vunpack.c.h.b16 %v876
        %v953 = vunpack.c.l.b16 %v877
        %v954 = vunpack.c.h.b16 %v877
        %v955 = vunpack.c.l.b16 %v878
        %v956 = vunpack.c.h.b16 %v878
        %v957 = vunpack.c.l.b16 %v879
        %v958 = vunpack.c.h.b16 %v879
        %v959 = vunpack.c.l.b16 %v880
        %v960 = vunpack.c.h.b16 %v880
        %v961 = vunpack.c.l.b16 %v881
        %v962 = vunpack.c.h.b16 %v881
        %v963 = vunpack.c.l.b16 %v882
        %v964 = vunpack.c.h.b16 %v882
        %v965 = vunpack.c.l.b16 %v883
        %v966 = vunpack.c.h.b16 %v883
        %v967 = vunpack.c.l.b16 %v884
        %v968 = vunpack.c.h.b16 %v884
        %v969 = vunpack.c.l.b16 %v885
        %v970 = vunpack.c.h.b16 %v885
        %v971 = vunpack.c.l.b16 %v886
        %v972 = vunpack.c.h.b16 %v886
        %v973 = vunpack.c.l.b16 %v887
        %v974 = vunpack.c.h.b16 %v887
        %v975 = vunpack.c.l.b16 %v888
        %v976 = vunpack.c.h.b16 %v888
        %v977 = vunpack.c.l.b16 %v889
        %v978 = vunpack.c.h.b16 %v889
        %v979 = vunpack.c.l.b16 %v890
        %v980 = vunpack.c.h.b16 %v890
        %v981 = vunpack.c.l.b16 %v891
        %v982 = vunpack.c.h.b16 %v891
        %v983 = vunpack.c.l.b16 %v892
        %v984 = vunpack.c.h.b16 %v892
        %v985 = vunpack.c.l.b16 %v893
        %v986 = vunpack.c.h.b16 %v893
        %v987 = vunpack.c.l.b16 %v894
        %v988 = vunpack.c.h.b16 %v894
        %v989 = vunpack.c.l.b16 %v895
        %v990 = vunpack.c.h.b16 %v895
        %v991 = vunpack.c.l.b16 %v896
        %v992 = vunpack.c.h.b16 %v896
        %v993 = vunpack.c.l.b16 %v897
        %v994 = vunpack.c.h.b16 %v897
        %v995 = vunpack.c.l.b16 %v898
        %v996 = vunpack.c.h.b16 %v898
        %v997 = vunpack.c.l.b16 %v899
        %v998 = vunpack.c.h.b16 %v899
        %v999 = vunpack.c.l.b16 %v900
        %v1000 = vunpack.c.h.b16 %v900
        %v1001 = vunpack.c.l.b16 %v901
        %v1002 = vunpack.c.h.b16 %v901
        %v1003 = vunpack.c.l.b16 %v902
        %v1004 = vunpack.c.h.b16 %v902
        %v1005 = vpack.c.b16 %v943, %v941
        %v1006 = vpack.c.b16 %v944, %v942
        %v1007 = vpack.c.b16 %v947, %v945
        %v1008 = vpack.c.b16 %v948, %v946
        %v1009 = vpack.c.b16 %v951, %v949
        %v1010 = vpack.c.b16 %v952, %v950
        %v1011 = vpack.c.b16 %v955, %v953
        %v1012 = vpack.c.b16 %v956, %v954
        %v1013 = vpack.c.b16 %v959, %v957
        %v1014 = vpack.c.b16 %v960, %v958
        %v1015 = vpack.c.b16 %v963, %v961
        %v1016 = vpack.c.b16 %v964, %v962
        %v1017 = vpack.c.b16 %v967, %v965
        %v1018 = vpack.c.b16 %v968, %v966
        %v1019 = vpack.c.b16 %v971, %v969
        %v1020 = vpack.c.b16 %v972, %v970
        %v1021 = vpack.c.b16 %v975, %v973
        %v1022 = vpack.c.b16 %v976, %v974
        %v1023 = vpack.c.b16 %v979, %v977
        %v1024 = vpack.c.b16 %v980, %v978
        %v1025 = vpack.c.b16 %v983, %v981
        %v1026 = vpack.c.b16 %v984, %v982
        %v1027 = vpack.c.b16 %v987, %v985
        %v1028 = vpack.c.b16 %v988, %v986
        %v1029 = vpack.c.b16 %v991, %v989
        %v1030 = vpack.c.b16 %v992, %v990
        %v1031 = vpack.c.b16 %v995, %v993
        %v1032 = vpack.c.b16 %v996, %v994
        %v1033 = vpack.c.b16 %v999, %v997
        %v1034 = vpack.c.b16 %v1000, %v998
        %v1035 = vpack.c.b16 %v1003, %v1001
        %v1036 = vpack.c.b16 %v1004, %v1002
        %1069 = vmatpush.bf16.msra.mxu0 %v1019
        %1070 = vmatpush.bf16.msra.mxu0 %v1017
        %1071 = vmatpush.bf16.msra.mxu0 %v1015
        %1072 = vmatpush.bf16.msra.mxu0 %v1013
        %1073 = vmatpush.bf16.msra.mxu0 %v1011
        %1074 = vmatpush.bf16.msra.mxu0 %v1009
        %1075 = vmatpush.bf16.msra.mxu0 %v1007
        %1076 = vmatpush.bf16.msra.mxu0 %v1005
        %1077 = vmatmul.bf16.gmra.mxu0 %v855
        %v1078 = vpop.f32.mrf.mxu0
        %v1079 = vadd.f32 %v905, %v1078
        %v1080 = vpop.f32.mrf.mxu0
        %v1081 = vadd.f32 %v905, %v1080
        %1082 = vmatmul.bf16.gmra.mxu0 %v857
        %v1083 = vpop.f32.mrf.mxu0
        %v1084 = vadd.f32 %v905, %v1083
        %v1085 = vpop.f32.mrf.mxu0
        %v1086 = vadd.f32 %v905, %v1085
        %1087 = vmatmul.bf16.gmra.mxu0 %v859
        %v1088 = vpop.f32.mrf.mxu0
        %v1089 = vadd.f32 %v905, %v1088
        %v1090 = vpop.f32.mrf.mxu0
        %v1091 = vadd.f32 %v905, %v1090
        %1092 = vmatmul.bf16.gmra.mxu0 %v861
        %v1093 = vpop.f32.mrf.mxu0
        %v1094 = vadd.f32 %v905, %v1093
        %v1095 = vpop.f32.mrf.mxu0
        %v1096 = vadd.f32 %v905, %v1095
        %1097 = vmatmul.bf16.gmra.mxu0 %v863
        %v1098 = vpop.f32.mrf.mxu0
        %v1099 = vadd.f32 %v905, %v1098
        %v1100 = vpop.f32.mrf.mxu0
        %v1101 = vadd.f32 %v905, %v1100
        %1102 = vmatmul.bf16.gmra.mxu0 %v865
        %v1103 = vpop.f32.mrf.mxu0
        %v1104 = vadd.f32 %v905, %v1103
        %v1105 = vpop.f32.mrf.mxu0
        %v1106 = vadd.f32 %v905, %v1105
        %1107 = vmatmul.bf16.gmra.mxu0 %v867
        %v1108 = vpop.f32.mrf.mxu0
        %v1109 = vadd.f32 %v905, %v1108
        %v1110 = vpop.f32.mrf.mxu0
        %v1111 = vadd.f32 %v905, %v1110
        %1112 = vmatmul.bf16.gmra.mxu0 %v869
        %v1113 = vpop.f32.mrf.mxu0
        %v1114 = vadd.f32 %v905, %v1113
        %v1115 = vpop.f32.mrf.mxu0
        %v1116 = vadd.f32 %v905, %v1115
        %1117 = vdwg.mxu0
        %1118 = vmatpush.bf16.msra.mxu0 %v1035
        %1119 = vmatpush.bf16.msra.mxu0 %v1033
        %1120 = vmatpush.bf16.msra.mxu0 %v1031
        %1121 = vmatpush.bf16.msra.mxu0 %v1029
        %1122 = vmatpush.bf16.msra.mxu0 %v1027
        %1123 = vmatpush.bf16.msra.mxu0 %v1025
        %1124 = vmatpush.bf16.msra.mxu0 %v1023
        %1125 = vmatpush.bf16.msra.mxu0 %v1021
        %1126 = vmatmul.bf16.gmra.mxu0 %v856
        %v1127 = vpop.f32.mrf.mxu0
        %v1128 = vadd.f32 %v1079, %v1127
        %v1129 = vpop.f32.mrf.mxu0
        %v1130 = vadd.f32 %v1081, %v1129
        %1131 = vmatmul.bf16.gmra.mxu0 %v858
        %v1132 = vpop.f32.mrf.mxu0
        %v1133 = vadd.f32 %v1084, %v1132
        %v1134 = vpop.f32.mrf.mxu0
        %v1135 = vadd.f32 %v1086, %v1134
        %1136 = vmatmul.bf16.gmra.mxu0 %v860
        %v1137 = vpop.f32.mrf.mxu0
        %v1138 = vadd.f32 %v1089, %v1137
        %v1139 = vpop.f32.mrf.mxu0
        %v1140 = vadd.f32 %v1091, %v1139
        %1141 = vmatmul.bf16.gmra.mxu0 %v862
        %v1142 = vpop.f32.mrf.mxu0
        %v1143 = vadd.f32 %v1094, %v1142
        %v1144 = vpop.f32.mrf.mxu0
        %v1145 = vadd.f32 %v1096, %v1144
        %1146 = vmatmul.bf16.gmra.mxu0 %v864
        %v1147 = vpop.f32.mrf.mxu0
        %v1148 = vadd.f32 %v1099, %v1147
        %v1149 = vpop.f32.mrf.mxu0
        %v1150 = vadd.f32 %v1101, %v1149
        %1151 = vmatmul.bf16.gmra.mxu0 %v866
        %v1152 = vpop.f32.mrf.mxu0
        %v1153 = vadd.f32 %v1104, %v1152
        %v1154 = vpop.f32.mrf.mxu0
        %v1155 = vadd.f32 %v1106, %v1154
        %1156 = vmatmul.bf16.gmra.mxu0 %v868
        %v1157 = vpop.f32.mrf.mxu0
        %v1158 = vadd.f32 %v1109, %v1157
        %v1159 = vpop.f32.mrf.mxu0
        %v1160 = vadd.f32 %v1111, %v1159
        %1161 = vmatmul.bf16.gmra.mxu0 %v870
        %v1162 = vpop.f32.mrf.mxu0
        %v1163 = vadd.f32 %v1114, %v1162
        %v1164 = vpop.f32.mrf.mxu0
        %v1165 = vadd.f32 %v1116, %v1164
        %1166 = vdwg.mxu0
        %1167 = vmatpush.bf16.msra.mxu0 %v1020
        %1168 = vmatpush.bf16.msra.mxu0 %v1018
        %1169 = vmatpush.bf16.msra.mxu0 %v1016
        %1170 = vmatpush.bf16.msra.mxu0 %v1014
        %1171 = vmatpush.bf16.msra.mxu0 %v1012
        %1172 = vmatpush.bf16.msra.mxu0 %v1010
        %1173 = vmatpush.bf16.msra.mxu0 %v1008
        %1174 = vmatpush.bf16.msra.mxu0 %v1006
        %1175 = vmatmul.bf16.gmra.mxu0 %v855
        %v1176 = vpop.f32.mrf.mxu0
        %v1177 = vadd.f32 %v906, %v1176
        %v1178 = vpop.f32.mrf.mxu0
        %v1179 = vadd.f32 %v906, %v1178
        %1180 = vmatmul.bf16.gmra.mxu0 %v857
        %v1181 = vpop.f32.mrf.mxu0
        %v1182 = vadd.f32 %v906, %v1181
        %v1183 = vpop.f32.mrf.mxu0
        %v1184 = vadd.f32 %v906, %v1183
        %1185 = vmatmul.bf16.gmra.mxu0 %v859
        %v1186 = vpop.f32.mrf.mxu0
        %v1187 = vadd.f32 %v906, %v1186
        %v1188 = vpop.f32.mrf.mxu0
        %v1189 = vadd.f32 %v906, %v1188
        %1190 = vmatmul.bf16.gmra.mxu0 %v861
        %v1191 = vpop.f32.mrf.mxu0
        %v1192 = vadd.f32 %v906, %v1191
        %v1193 = vpop.f32.mrf.mxu0
        %v1194 = vadd.f32 %v906, %v1193
        %1195 = vmatmul.bf16.gmra.mxu0 %v863
        %v1196 = vpop.f32.mrf.mxu0
        %v1197 = vadd.f32 %v906, %v1196
        %v1198 = vpop.f32.mrf.mxu0
        %v1199 = vadd.f32 %v906, %v1198
        %1200 = vmatmul.bf16.gmra.mxu0 %v865
        %v1201 = vpop.f32.mrf.mxu0
        %v1202 = vadd.f32 %v906, %v1201
        %v1203 = vpop.f32.mrf.mxu0
        %v1204 = vadd.f32 %v906, %v1203
        %1205 = vmatmul.bf16.gmra.mxu0 %v867
        %v1206 = vpop.f32.mrf.mxu0
        %v1207 = vadd.f32 %v906, %v1206
        %v1208 = vpop.f32.mrf.mxu0
        %v1209 = vadd.f32 %v906, %v1208
        %1210 = vmatmul.bf16.gmra.mxu0 %v869
        %v1211 = vpop.f32.mrf.mxu0
        %v1212 = vadd.f32 %v906, %v1211
        %v1213 = vpop.f32.mrf.mxu0
        %v1214 = vadd.f32 %v906, %v1213
        %1215 = vdwg.mxu0
        %1216 = vmatpush.bf16.msra.mxu0 %v1036
        %1217 = vmatpush.bf16.msra.mxu0 %v1034
        %1218 = vmatpush.bf16.msra.mxu0 %v1032
        %1219 = vmatpush.bf16.msra.mxu0 %v1030
        %1220 = vmatpush.bf16.msra.mxu0 %v1028
        %1221 = vmatpush.bf16.msra.mxu0 %v1026
        %1222 = vmatpush.bf16.msra.mxu0 %v1024
        %1223 = vmatpush.bf16.msra.mxu0 %v1022
        %1224 = vmatmul.bf16.gmra.mxu0 %v856
        %v1225 = vpop.f32.mrf.mxu0
        %v1226 = vadd.f32 %v1177, %v1225
        %v1227 = vpop.f32.mrf.mxu0
        %v1228 = vadd.f32 %v1179, %v1227
        %1229 = vmatmul.bf16.gmra.mxu0 %v858
        %v1230 = vpop.f32.mrf.mxu0
        %v1231 = vadd.f32 %v1182, %v1230
        %v1232 = vpop.f32.mrf.mxu0
        %v1233 = vadd.f32 %v1184, %v1232
        %1234 = vmatmul.bf16.gmra.mxu0 %v860
        %v1235 = vpop.f32.mrf.mxu0
        %v1236 = vadd.f32 %v1187, %v1235
        %v1237 = vpop.f32.mrf.mxu0
        %v1238 = vadd.f32 %v1189, %v1237
        %1239 = vmatmul.bf16.gmra.mxu0 %v862
        %v1240 = vpop.f32.mrf.mxu0
        %v1241 = vadd.f32 %v1192, %v1240
        %v1242 = vpop.f32.mrf.mxu0
        %v1243 = vadd.f32 %v1194, %v1242
        %1244 = vmatmul.bf16.gmra.mxu0 %v864
        %v1245 = vpop.f32.mrf.mxu0
        %v1246 = vadd.f32 %v1197, %v1245
        %v1247 = vpop.f32.mrf.mxu0
        %v1248 = vadd.f32 %v1199, %v1247
        %1249 = vmatmul.bf16.gmra.mxu0 %v866
        %v1250 = vpop.f32.mrf.mxu0
        %v1251 = vadd.f32 %v1202, %v1250
        %v1252 = vpop.f32.mrf.mxu0
        %v1253 = vadd.f32 %v1204, %v1252
        %1254 = vmatmul.bf16.gmra.mxu0 %v868
        %v1255 = vpop.f32.mrf.mxu0
        %v1256 = vadd.f32 %v1207, %v1255
        %v1257 = vpop.f32.mrf.mxu0
        %v1258 = vadd.f32 %v1209, %v1257
        %1259 = vmatmul.bf16.gmra.mxu0 %v870
        %v1260 = vpop.f32.mrf.mxu0
        %v1261 = vadd.f32 %v1212, %v1260
        %v1262 = vpop.f32.mrf.mxu0
        %v1263 = vadd.f32 %v1214, %v1262
        %1264 = vdwg.mxu0
        %v1265 = vadd.f32 %v1128, %v823
        %v1266 = vadd.f32 %v1226, %v824
        %v1267 = vadd.f32 %v1130, %v825
        %v1268 = vadd.f32 %v1228, %v826
        %v1269 = vadd.f32 %v1133, %v827
        %v1270 = vadd.f32 %v1231, %v828
        %v1271 = vadd.f32 %v1135, %v829
        %v1272 = vadd.f32 %v1233, %v830
        %v1273 = vadd.f32 %v1138, %v831
        %v1274 = vadd.f32 %v1236, %v832
        %v1275 = vadd.f32 %v1140, %v833
        %v1276 = vadd.f32 %v1238, %v834
        %v1277 = vadd.f32 %v1143, %v835
        %v1278 = vadd.f32 %v1241, %v836
        %v1279 = vadd.f32 %v1145, %v837
        %v1280 = vadd.f32 %v1243, %v838
        %v1281 = vadd.f32 %v1148, %v839
        %v1282 = vadd.f32 %v1246, %v840
        %v1283 = vadd.f32 %v1150, %v841
        %v1284 = vadd.f32 %v1248, %v842
        %v1285 = vadd.f32 %v1153, %v843
        %v1286 = vadd.f32 %v1251, %v844
        %v1287 = vadd.f32 %v1155, %v845
        %v1288 = vadd.f32 %v1253, %v846
        %v1289 = vadd.f32 %v1158, %v847
        %v1290 = vadd.f32 %v1256, %v848
        %v1291 = vadd.f32 %v1160, %v849
        %v1292 = vadd.f32 %v1258, %v850
        %v1293 = vadd.f32 %v1163, %v851
        %v1294 = vadd.f32 %v1261, %v852
        %v1295 = vadd.f32 %v1165, %v853
        %v1296 = vadd.f32 %v1263, %v854
        %v1297 = vmax.f32 %v1265, 0.0
        %v1298 = vmax.f32 %v1266, 0.0
        %v1299 = vmax.f32 %v1267, 0.0
        %v1300 = vmax.f32 %v1268, 0.0
        %v1301 = vmax.f32 %v1269, 0.0
        %v1302 = vmax.f32 %v1270, 0.0
        %v1303 = vmax.f32 %v1271, 0.0
        %v1304 = vmax.f32 %v1272, 0.0
        %v1305 = vmax.f32 %v1273, 0.0
        %v1306 = vmax.f32 %v1274, 0.0
        %v1307 = vmax.f32 %v1275, 0.0
        %v1308 = vmax.f32 %v1276, 0.0
        %v1309 = vmax.f32 %v1277, 0.0
        %v1310 = vmax.f32 %v1278, 0.0
        %v1311 = vmax.f32 %v1279, 0.0
        %v1312 = vmax.f32 %v1280, 0.0
        %v1313 = vmax.f32 %v1281, 0.0
        %v1314 = vmax.f32 %v1282, 0.0
        %v1315 = vmax.f32 %v1283, 0.0
        %v1316 = vmax.f32 %v1284, 0.0
        %v1317 = vmax.f32 %v1285, 0.0
        %v1318 = vmax.f32 %v1286, 0.0
        %v1319 = vmax.f32 %v1287, 0.0
        %v1320 = vmax.f32 %v1288, 0.0
        %v1321 = vmax.f32 %v1289, 0.0
        %v1322 = vmax.f32 %v1290, 0.0
        %v1323 = vmax.f32 %v1291, 0.0
        %v1324 = vmax.f32 %v1292, 0.0
        %v1325 = vmax.f32 %v1293, 0.0
        %v1326 = vmax.f32 %v1294, 0.0
        %v1327 = vmax.f32 %v1295, 0.0
        %v1328 = vmax.f32 %v1296, 0.0
        %1329 = vst [vmem:[#allocation2] sm:$0xff] %v1297
        %1330 = vst [vmem:[#allocation2 + $0x8] sm:$0xff] %v1298
        %1331 = vst [vmem:[#allocation2 + $0x10] sm:$0xff] %v1299
        %1332 = vst [vmem:[#allocation2 + $0x18] sm:$0xff] %v1300
        %1333 = vst [vmem:[#allocation2 + $0x20] sm:$0xff] %v1301
        %1334 = vst [vmem:[#allocation2 + $0x28] sm:$0xff] %v1302
        %1335 = vst [vmem:[#allocation2 + $0x30] sm:$0xff] %v1303
        %1336 = vst [vmem:[#allocation2 + $0x38] sm:$0xff] %v1304
        %1337 = vst [vmem:[#allocation2 + $0x40] sm:$0xff] %v1305
        %1338 = vst [vmem:[#allocation2 + $0x48] sm:$0xff] %v1306
        %1339 = vst [vmem:[#allocation2 + $0x50] sm:$0xff] %v1307
        %1340 = vst [vmem:[#allocation2 + $0x58] sm:$0xff] %v1308
        %1341 = vst [vmem:[#allocation2 + $0x60] sm:$0xff] %v1309
        %1342 = vst [vmem:[#allocation2 + $0x68] sm:$0xff] %v1310
        %1343 = vst [vmem:[#allocation2 + $0x70] sm:$0xff] %v1311
        %1344 = vst [vmem:[#allocation2 + $0x78] sm:$0xff] %v1312
        %1345 = vst [vmem:[#allocation2 + $0x80] sm:$0xff] %v1313
        %1346 = vst [vmem:[#allocation2 + $0x88] sm:$0xff] %v1314
        %1347 = vst [vmem:[#allocation2 + $0x90] sm:$0xff] %v1315
        %1348 = vst [vmem:[#allocation2 + $0x98] sm:$0xff] %v1316
        %1349 = vst [vmem:[#allocation2 + $0xa0] sm:$0xff] %v1317
        %1350 = vst [vmem:[#allocation2 + $0xa8] sm:$0xff] %v1318
        %1351 = vst [vmem:[#allocation2 + $0xb0] sm:$0xff] %v1319
        %1352 = vst [vmem:[#allocation2 + $0xb8] sm:$0xff] %v1320
        %1353 = vst [vmem:[#allocation2 + $0xc0] sm:$0xff] %v1321
        %1354 = vst [vmem:[#allocation2 + $0xc8] sm:$0xff] %v1322
        %1355 = vst [vmem:[#allocation2 + $0xd0] sm:$0xff] %v1323
        %1356 = vst [vmem:[#allocation2 + $0xd8] sm:$0xff] %v1324
        %1357 = vst [vmem:[#allocation2 + $0xe0] sm:$0xff] %v1325
        %1358 = vst [vmem:[#allocation2 + $0xe8] sm:$0xff] %v1326
        %1359 = vst [vmem:[#allocation2 + $0xf0] sm:$0xff] %v1327
        %1360 = vst [vmem:[#allocation2 + $0xf8] sm:$0xff] %v1328
        %v1361 = vld [vmem:[#allocation2] sm:$0xff]
        %v1362 = vld [vmem:[#allocation2 + $0x8] sm:$0xff]
        %v1363 = vld [vmem:[#allocation2 + $0x10] sm:$0xff]
        %v1364 = vld [vmem:[#allocation2 + $0x18] sm:$0xff]
        %v1365 = vld [vmem:[#allocation2 + $0x20] sm:$0xff]
        %v1366 = vld [vmem:[#allocation2 + $0x28] sm:$0xff]
        %v1367 = vld [vmem:[#allocation2 + $0x30] sm:$0xff]
        %v1368 = vld [vmem:[#allocation2 + $0x38] sm:$0xff]
        %v1369 = vld [vmem:[#allocation2 + $0x40] sm:$0xff]
        %v1370 = vld [vmem:[#allocation2 + $0x48] sm:$0xff]
        %v1371 = vld [vmem:[#allocation2 + $0x50] sm:$0xff]
        %v1372 = vld [vmem:[#allocation2 + $0x58] sm:$0xff]
        %v1373 = vld [vmem:[#allocation2 + $0x60] sm:$0xff]
        %v1374 = vld [vmem:[#allocation2 + $0x68] sm:$0xff]
        %v1375 = vld [vmem:[#allocation2 + $0x70] sm:$0xff]
        %v1376 = vld [vmem:[#allocation2 + $0x78] sm:$0xff]
        %v1377 = vld [vmem:[#allocation2 + $0x80] sm:$0xff]
        %v1378 = vld [vmem:[#allocation2 + $0x88] sm:$0xff]
        %v1379 = vld [vmem:[#allocation2 + $0x90] sm:$0xff]
        %v1380 = vld [vmem:[#allocation2 + $0x98] sm:$0xff]
        %v1381 = vld [vmem:[#allocation2 + $0xa0] sm:$0xff]
        %v1382 = vld [vmem:[#allocation2 + $0xa8] sm:$0xff]
        %v1383 = vld [vmem:[#allocation2 + $0xb0] sm:$0xff]
        %v1384 = vld [vmem:[#allocation2 + $0xb8] sm:$0xff]
        %v1385 = vld [vmem:[#allocation2 + $0xc0] sm:$0xff]
        %v1386 = vld [vmem:[#allocation2 + $0xc8] sm:$0xff]
        %v1387 = vld [vmem:[#allocation2 + $0xd0] sm:$0xff]
        %v1388 = vld [vmem:[#allocation2 + $0xd8] sm:$0xff]
        %v1389 = vld [vmem:[#allocation2 + $0xe0] sm:$0xff]
        %v1390 = vld [vmem:[#allocation2 + $0xe8] sm:$0xff]
        %v1391 = vld [vmem:[#allocation2 + $0xf0] sm:$0xff]
        %v1392 = vld [vmem:[#allocation2 + $0xf8] sm:$0xff]
        %v1393 = vpack.c.bf16 %v1363, %v1361
        %v1394 = vpack.c.bf16 %v1364, %v1362
        %v1395 = vpack.c.bf16 %v1367, %v1365
        %v1396 = vpack.c.bf16 %v1368, %v1366
        %v1397 = vpack.c.bf16 %v1371, %v1369
        %v1398 = vpack.c.bf16 %v1372, %v1370
        %v1399 = vpack.c.bf16 %v1375, %v1373
        %v1400 = vpack.c.bf16 %v1376, %v1374
        %v1401 = vpack.c.bf16 %v1379, %v1377
        %v1402 = vpack.c.bf16 %v1380, %v1378
        %v1403 = vpack.c.bf16 %v1383, %v1381
        %v1404 = vpack.c.bf16 %v1384, %v1382
        %v1405 = vpack.c.bf16 %v1387, %v1385
        %v1406 = vpack.c.bf16 %v1388, %v1386
        %v1407 = vpack.c.bf16 %v1391, %v1389
        %v1408 = vpack.c.bf16 %v1392, %v1390
        %s1409 = scalar_lea.vmem [#allocation10], 256
        %v1410 = vld [vmem:[%s1409] sm:$0xff]
        %v1411 = vld [vmem:[%s1409 + $0x8] sm:$0xff]
        %v1412 = vld [vmem:[%s1409 + $0x10] sm:$0xff]
        %v1413 = vld [vmem:[%s1409 + $0x18] sm:$0xff]
        %v1414 = vld [vmem:[%s1409 + $0x20] sm:$0xff]
        %v1415 = vld [vmem:[%s1409 + $0x28] sm:$0xff]
        %v1416 = vld [vmem:[%s1409 + $0x30] sm:$0xff]
        %v1417 = vld [vmem:[%s1409 + $0x38] sm:$0xff]
        %v1418 = vld [vmem:[%s1409 + $0x40] sm:$0xff]
        %v1419 = vld [vmem:[%s1409 + $0x48] sm:$0xff]
        %v1420 = vld [vmem:[%s1409 + $0x50] sm:$0xff]
        %v1421 = vld [vmem:[%s1409 + $0x58] sm:$0xff]
        %v1422 = vld [vmem:[%s1409 + $0x60] sm:$0xff]
        %v1423 = vld [vmem:[%s1409 + $0x68] sm:$0xff]
        %v1424 = vld [vmem:[%s1409 + $0x70] sm:$0xff]
        %v1425 = vld [vmem:[%s1409 + $0x78] sm:$0xff]
        %v1426 = vld [vmem:[%s1409 + $0x80] sm:$0xff]
        %v1427 = vld [vmem:[%s1409 + $0x88] sm:$0xff]
        %v1428 = vld [vmem:[%s1409 + $0x90] sm:$0xff]
        %v1429 = vld [vmem:[%s1409 + $0x98] sm:$0xff]
        %v1430 = vld [vmem:[%s1409 + $0xa0] sm:$0xff]
        %v1431 = vld [vmem:[%s1409 + $0xa8] sm:$0xff]
        %v1432 = vld [vmem:[%s1409 + $0xb0] sm:$0xff]
        %v1433 = vld [vmem:[%s1409 + $0xb8] sm:$0xff]
        %v1434 = vld [vmem:[%s1409 + $0xc0] sm:$0xff]
        %v1435 = vld [vmem:[%s1409 + $0xc8] sm:$0xff]
        %v1436 = vld [vmem:[%s1409 + $0xd0] sm:$0xff]
        %v1437 = vld [vmem:[%s1409 + $0xd8] sm:$0xff]
        %v1438 = vld [vmem:[%s1409 + $0xe0] sm:$0xff]
        %v1439 = vld [vmem:[%s1409 + $0xe8] sm:$0xff]
        %v1440 = vld [vmem:[%s1409 + $0xf0] sm:$0xff]
        %v1441 = vld [vmem:[%s1409 + $0xf8] sm:$0xff]
        %s1442 = scalar_lea.vmem [#allocation12], 2
        %v1443 = vld [vmem:[%s1442] sm:$0x3]
        %v1445 = vperm.slane %v1443, 0
        %v1446 = vperm.slane %v1443, 1
        %v1481 = vunpack.c.l.b16 %v1410
        %v1482 = vunpack.c.h.b16 %v1410
        %v1483 = vunpack.c.l.b16 %v1411
        %v1484 = vunpack.c.h.b16 %v1411
        %v1485 = vunpack.c.l.b16 %v1412
        %v1486 = vunpack.c.h.b16 %v1412
        %v1487 = vunpack.c.l.b16 %v1413
        %v1488 = vunpack.c.h.b16 %v1413
        %v1489 = vunpack.c.l.b16 %v1414
        %v1490 = vunpack.c.h.b16 %v1414
        %v1491 = vunpack.c.l.b16 %v1415
        %v1492 = vunpack.c.h.b16 %v1415
        %v1493 = vunpack.c.l.b16 %v1416
        %v1494 = vunpack.c.h.b16 %v1416
        %v1495 = vunpack.c.l.b16 %v1417
        %v1496 = vunpack.c.h.b16 %v1417
        %v1497 = vunpack.c.l.b16 %v1418
        %v1498 = vunpack.c.h.b16 %v1418
        %v1499 = vunpack.c.l.b16 %v1419
        %v1500 = vunpack.c.h.b16 %v1419
        %v1501 = vunpack.c.l.b16 %v1420
        %v1502 = vunpack.c.h.b16 %v1420
        %v1503 = vunpack.c.l.b16 %v1421
        %v1504 = vunpack.c.h.b16 %v1421
        %v1505 = vunpack.c.l.b16 %v1422
        %v1506 = vunpack.c.h.b16 %v1422
        %v1507 = vunpack.c.l.b16 %v1423
        %v1508 = vunpack.c.h.b16 %v1423
        %v1509 = vunpack.c.l.b16 %v1424
        %v1510 = vunpack.c.h.b16 %v1424
        %v1511 = vunpack.c.l.b16 %v1425
        %v1512 = vunpack.c.h.b16 %v1425
        %v1513 = vunpack.c.l.b16 %v1426
        %v1514 = vunpack.c.h.b16 %v1426
        %v1515 = vunpack.c.l.b16 %v1427
        %v1516 = vunpack.c.h.b16 %v1427
        %v1517 = vunpack.c.l.b16 %v1428
        %v1518 = vunpack.c.h.b16 %v1428
        %v1519 = vunpack.c.l.b16 %v1429
        %v1520 = vunpack.c.h.b16 %v1429
        %v1521 = vunpack.c.l.b16 %v1430
        %v1522 = vunpack.c.h.b16 %v1430
        %v1523 = vunpack.c.l.b16 %v1431
        %v1524 = vunpack.c.h.b16 %v1431
        %v1525 = vunpack.c.l.b16 %v1432
        %v1526 = vunpack.c.h.b16 %v1432
        %v1527 = vunpack.c.l.b16 %v1433
        %v1528 = vunpack.c.h.b16 %v1433
        %v1529 = vunpack.c.l.b16 %v1434
        %v1530 = vunpack.c.h.b16 %v1434
        %v1531 = vunpack.c.l.b16 %v1435
        %v1532 = vunpack.c.h.b16 %v1435
        %v1533 = vunpack.c.l.b16 %v1436
        %v1534 = vunpack.c.h.b16 %v1436
        %v1535 = vunpack.c.l.b16 %v1437
        %v1536 = vunpack.c.h.b16 %v1437
        %v1537 = vunpack.c.l.b16 %v1438
        %v1538 = vunpack.c.h.b16 %v1438
        %v1539 = vunpack.c.l.b16 %v1439
        %v1540 = vunpack.c.h.b16 %v1439
        %v1541 = vunpack.c.l.b16 %v1440
        %v1542 = vunpack.c.h.b16 %v1440
        %v1543 = vunpack.c.l.b16 %v1441
        %v1544 = vunpack.c.h.b16 %v1441
        %v1545 = vpack.c.b16 %v1483, %v1481
        %v1546 = vpack.c.b16 %v1484, %v1482
        %v1547 = vpack.c.b16 %v1487, %v1485
        %v1548 = vpack.c.b16 %v1488, %v1486
        %v1549 = vpack.c.b16 %v1491, %v1489
        %v1550 = vpack.c.b16 %v1492, %v1490
        %v1551 = vpack.c.b16 %v1495, %v1493
        %v1552 = vpack.c.b16 %v1496, %v1494
        %v1553 = vpack.c.b16 %v1499, %v1497
        %v1554 = vpack.c.b16 %v1500, %v1498
        %v1555 = vpack.c.b16 %v1503, %v1501
        %v1556 = vpack.c.b16 %v1504, %v1502
        %v1557 = vpack.c.b16 %v1507, %v1505
        %v1558 = vpack.c.b16 %v1508, %v1506
        %v1559 = vpack.c.b16 %v1511, %v1509
        %v1560 = vpack.c.b16 %v1512, %v1510
        %v1561 = vpack.c.b16 %v1515, %v1513
        %v1562 = vpack.c.b16 %v1516, %v1514
        %v1563 = vpack.c.b16 %v1519, %v1517
        %v1564 = vpack.c.b16 %v1520, %v1518
        %v1565 = vpack.c.b16 %v1523, %v1521
        %v1566 = vpack.c.b16 %v1524, %v1522
        %v1567 = vpack.c.b16 %v1527, %v1525
        %v1568 = vpack.c.b16 %v1528, %v1526
        %v1569 = vpack.c.b16 %v1531, %v1529
        %v1570 = vpack.c.b16 %v1532, %v1530
        %v1571 = vpack.c.b16 %v1535, %v1533
        %v1572 = vpack.c.b16 %v1536, %v1534
        %v1573 = vpack.c.b16 %v1539, %v1537
        %v1574 = vpack.c.b16 %v1540, %v1538
        %v1575 = vpack.c.b16 %v1543, %v1541
        %v1576 = vpack.c.b16 %v1544, %v1542
        %1609 = vmatpush.bf16.msra.mxu0 %v1559
        %1610 = vmatpush.bf16.msra.mxu0 %v1557
        %1611 = vmatpush.bf16.msra.mxu0 %v1555
        %1612 = vmatpush.bf16.msra.mxu0 %v1553
        %1613 = vmatpush.bf16.msra.mxu0 %v1551
        %1614 = vmatpush.bf16.msra.mxu0 %v1549
        %1615 = vmatpush.bf16.msra.mxu0 %v1547
        %1616 = vmatpush.bf16.msra.mxu0 %v1545
        %1617 = vmatmul.bf16.gmra.mxu0 %v1393
        %v1618 = vpop.f32.mrf.mxu0
        %v1619 = vadd.f32 %v1445, %v1618
        %v1620 = vpop.f32.mrf.mxu0
        %v1621 = vadd.f32 %v1445, %v1620
        %1622 = vmatmul.bf16.gmra.mxu0 %v1395
        %v1623 = vpop.f32.mrf.mxu0
        %v1624 = vadd.f32 %v1445, %v1623
        %v1625 = vpop.f32.mrf.mxu0
        %v1626 = vadd.f32 %v1445, %v1625
        %1627 = vmatmul.bf16.gmra.mxu0 %v1397
        %v1628 = vpop.f32.mrf.mxu0
        %v1629 = vadd.f32 %v1445, %v1628
        %v1630 = vpop.f32.mrf.mxu0
        %v1631 = vadd.f32 %v1445, %v1630
        %1632 = vmatmul.bf16.gmra.mxu0 %v1399
        %v1633 = vpop.f32.mrf.mxu0
        %v1634 = vadd.f32 %v1445, %v1633
        %v1635 = vpop.f32.mrf.mxu0
        %v1636 = vadd.f32 %v1445, %v1635
        %1637 = vmatmul.bf16.gmra.mxu0 %v1401
        %v1638 = vpop.f32.mrf.mxu0
        %v1639 = vadd.f32 %v1445, %v1638
        %v1640 = vpop.f32.mrf.mxu0
        %v1641 = vadd.f32 %v1445, %v1640
        %1642 = vmatmul.bf16.gmra.mxu0 %v1403
        %v1643 = vpop.f32.mrf.mxu0
        %v1644 = vadd.f32 %v1445, %v1643
        %v1645 = vpop.f32.mrf.mxu0
        %v1646 = vadd.f32 %v1445, %v1645
        %1647 = vmatmul.bf16.gmra.mxu0 %v1405
        %v1648 = vpop.f32.mrf.mxu0
        %v1649 = vadd.f32 %v1445, %v1648
        %v1650 = vpop.f32.mrf.mxu0
        %v1651 = vadd.f32 %v1445, %v1650
        %1652 = vmatmul.bf16.gmra.mxu0 %v1407
        %v1653 = vpop.f32.mrf.mxu0
        %v1654 = vadd.f32 %v1445, %v1653
        %v1655 = vpop.f32.mrf.mxu0
        %v1656 = vadd.f32 %v1445, %v1655
        %1657 = vdwg.mxu0
        %1658 = vmatpush.bf16.msra.mxu0 %v1575
        %1659 = vmatpush.bf16.msra.mxu0 %v1573
        %1660 = vmatpush.bf16.msra.mxu0 %v1571
        %1661 = vmatpush.bf16.msra.mxu0 %v1569
        %1662 = vmatpush.bf16.msra.mxu0 %v1567
        %1663 = vmatpush.bf16.msra.mxu0 %v1565
        %1664 = vmatpush.bf16.msra.mxu0 %v1563
        %1665 = vmatpush.bf16.msra.mxu0 %v1561
        %1666 = vmatmul.bf16.gmra.mxu0 %v1394
        %v1667 = vpop.f32.mrf.mxu0
        %v1668 = vadd.f32 %v1619, %v1667
        %v1669 = vpop.f32.mrf.mxu0
        %v1670 = vadd.f32 %v1621, %v1669
        %1671 = vmatmul.bf16.gmra.mxu0 %v1396
        %v1672 = vpop.f32.mrf.mxu0
        %v1673 = vadd.f32 %v1624, %v1672
        %v1674 = vpop.f32.mrf.mxu0
        %v1675 = vadd.f32 %v1626, %v1674
        %1676 = vmatmul.bf16.gmra.mxu0 %v1398
        %v1677 = vpop.f32.mrf.mxu0
        %v1678 = vadd.f32 %v1629, %v1677
        %v1679 = vpop.f32.mrf.mxu0
        %v1680 = vadd.f32 %v1631, %v1679
        %1681 = vmatmul.bf16.gmra.mxu0 %v1400
        %v1682 = vpop.f32.mrf.mxu0
        %v1683 = vadd.f32 %v1634, %v1682
        %v1684 = vpop.f32.mrf.mxu0
        %v1685 = vadd.f32 %v1636, %v1684
        %1686 = vmatmul.bf16.gmra.mxu0 %v1402
        %v1687 = vpop.f32.mrf.mxu0
        %v1688 = vadd.f32 %v1639, %v1687
        %v1689 = vpop.f32.mrf.mxu0
        %v1690 = vadd.f32 %v1641, %v1689
        %1691 = vmatmul.bf16.gmra.mxu0 %v1404
        %v1692 = vpop.f32.mrf.mxu0
        %v1693 = vadd.f32 %v1644, %v1692
        %v1694 = vpop.f32.mrf.mxu0
        %v1695 = vadd.f32 %v1646, %v1694
        %1696 = vmatmul.bf16.gmra.mxu0 %v1406
        %v1697 = vpop.f32.mrf.mxu0
        %v1698 = vadd.f32 %v1649, %v1697
        %v1699 = vpop.f32.mrf.mxu0
        %v1700 = vadd.f32 %v1651, %v1699
        %1701 = vmatmul.bf16.gmra.mxu0 %v1408
        %v1702 = vpop.f32.mrf.mxu0
        %v1703 = vadd.f32 %v1654, %v1702
        %v1704 = vpop.f32.mrf.mxu0
        %v1705 = vadd.f32 %v1656, %v1704
        %1706 = vdwg.mxu0
        %1707 = vmatpush.bf16.msra.mxu0 %v1560
        %1708 = vmatpush.bf16.msra.mxu0 %v1558
        %1709 = vmatpush.bf16.msra.mxu0 %v1556
        %1710 = vmatpush.bf16.msra.mxu0 %v1554
        %1711 = vmatpush.bf16.msra.mxu0 %v1552
        %1712 = vmatpush.bf16.msra.mxu0 %v1550
        %1713 = vmatpush.bf16.msra.mxu0 %v1548
        %1714 = vmatpush.bf16.msra.mxu0 %v1546
        %1715 = vmatmul.bf16.gmra.mxu0 %v1393
        %v1716 = vpop.f32.mrf.mxu0
        %v1717 = vadd.f32 %v1446, %v1716
        %v1718 = vpop.f32.mrf.mxu0
        %v1719 = vadd.f32 %v1446, %v1718
        %1720 = vmatmul.bf16.gmra.mxu0 %v1395
        %v1721 = vpop.f32.mrf.mxu0
        %v1722 = vadd.f32 %v1446, %v1721
        %v1723 = vpop.f32.mrf.mxu0
        %v1724 = vadd.f32 %v1446, %v1723
        %1725 = vmatmul.bf16.gmra.mxu0 %v1397
        %v1726 = vpop.f32.mrf.mxu0
        %v1727 = vadd.f32 %v1446, %v1726
        %v1728 = vpop.f32.mrf.mxu0
        %v1729 = vadd.f32 %v1446, %v1728
        %1730 = vmatmul.bf16.gmra.mxu0 %v1399
        %v1731 = vpop.f32.mrf.mxu0
        %v1732 = vadd.f32 %v1446, %v1731
        %v1733 = vpop.f32.mrf.mxu0
        %v1734 = vadd.f32 %v1446, %v1733
        %1735 = vmatmul.bf16.gmra.mxu0 %v1401
        %v1736 = vpop.f32.mrf.mxu0
        %v1737 = vadd.f32 %v1446, %v1736
        %v1738 = vpop.f32.mrf.mxu0
        %v1739 = vadd.f32 %v1446, %v1738
        %1740 = vmatmul.bf16.gmra.mxu0 %v1403
        %v1741 = vpop.f32.mrf.mxu0
        %v1742 = vadd.f32 %v1446, %v1741
        %v1743 = vpop.f32.mrf.mxu0
        %v1744 = vadd.f32 %v1446, %v1743
        %1745 = vmatmul.bf16.gmra.mxu0 %v1405
        %v1746 = vpop.f32.mrf.mxu0
        %v1747 = vadd.f32 %v1446, %v1746
        %v1748 = vpop.f32.mrf.mxu0
        %v1749 = vadd.f32 %v1446, %v1748
        %1750 = vmatmul.bf16.gmra.mxu0 %v1407
        %v1751 = vpop.f32.mrf.mxu0
        %v1752 = vadd.f32 %v1446, %v1751
        %v1753 = vpop.f32.mrf.mxu0
        %v1754 = vadd.f32 %v1446, %v1753
        %1755 = vdwg.mxu0
        %1756 = vmatpush.bf16.msra.mxu0 %v1576
        %1757 = vmatpush.bf16.msra.mxu0 %v1574
        %1758 = vmatpush.bf16.msra.mxu0 %v1572
        %1759 = vmatpush.bf16.msra.mxu0 %v1570
        %1760 = vmatpush.bf16.msra.mxu0 %v1568
        %1761 = vmatpush.bf16.msra.mxu0 %v1566
        %1762 = vmatpush.bf16.msra.mxu0 %v1564
        %1763 = vmatpush.bf16.msra.mxu0 %v1562
        %1764 = vmatmul.bf16.gmra.mxu0 %v1394
        %v1765 = vpop.f32.mrf.mxu0
        %v1766 = vadd.f32 %v1717, %v1765
        %v1767 = vpop.f32.mrf.mxu0
        %v1768 = vadd.f32 %v1719, %v1767
        %1769 = vmatmul.bf16.gmra.mxu0 %v1396
        %v1770 = vpop.f32.mrf.mxu0
        %v1771 = vadd.f32 %v1722, %v1770
        %v1772 = vpop.f32.mrf.mxu0
        %v1773 = vadd.f32 %v1724, %v1772
        %1774 = vmatmul.bf16.gmra.mxu0 %v1398
        %v1775 = vpop.f32.mrf.mxu0
        %v1776 = vadd.f32 %v1727, %v1775
        %v1777 = vpop.f32.mrf.mxu0
        %v1778 = vadd.f32 %v1729, %v1777
        %1779 = vmatmul.bf16.gmra.mxu0 %v1400
        %v1780 = vpop.f32.mrf.mxu0
        %v1781 = vadd.f32 %v1732, %v1780
        %v1782 = vpop.f32.mrf.mxu0
        %v1783 = vadd.f32 %v1734, %v1782
        %1784 = vmatmul.bf16.gmra.mxu0 %v1402
        %v1785 = vpop.f32.mrf.mxu0
        %v1786 = vadd.f32 %v1737, %v1785
        %v1787 = vpop.f32.mrf.mxu0
        %v1788 = vadd.f32 %v1739, %v1787
        %1789 = vmatmul.bf16.gmra.mxu0 %v1404
        %v1790 = vpop.f32.mrf.mxu0
        %v1791 = vadd.f32 %v1742, %v1790
        %v1792 = vpop.f32.mrf.mxu0
        %v1793 = vadd.f32 %v1744, %v1792
        %1794 = vmatmul.bf16.gmra.mxu0 %v1406
        %v1795 = vpop.f32.mrf.mxu0
        %v1796 = vadd.f32 %v1747, %v1795
        %v1797 = vpop.f32.mrf.mxu0
        %v1798 = vadd.f32 %v1749, %v1797
        %1799 = vmatmul.bf16.gmra.mxu0 %v1408
        %v1800 = vpop.f32.mrf.mxu0
        %v1801 = vadd.f32 %v1752, %v1800
        %v1802 = vpop.f32.mrf.mxu0
        %v1803 = vadd.f32 %v1754, %v1802
        %1804 = vdwg.mxu0
        %v1805 = vadd.f32 %v1668, %v1361
        %v1806 = vadd.f32 %v1766, %v1362
        %v1807 = vadd.f32 %v1670, %v1363
        %v1808 = vadd.f32 %v1768, %v1364
        %v1809 = vadd.f32 %v1673, %v1365
        %v1810 = vadd.f32 %v1771, %v1366
        %v1811 = vadd.f32 %v1675, %v1367
        %v1812 = vadd.f32 %v1773, %v1368
        %v1813 = vadd.f32 %v1678, %v1369
        %v1814 = vadd.f32 %v1776, %v1370
        %v1815 = vadd.f32 %v1680, %v1371
        %v1816 = vadd.f32 %v1778, %v1372
        %v1817 = vadd.f32 %v1683, %v1373
        %v1818 = vadd.f32 %v1781, %v1374
        %v1819 = vadd.f32 %v1685, %v1375
        %v1820 = vadd.f32 %v1783, %v1376
        %v1821 = vadd.f32 %v1688, %v1377
        %v1822 = vadd.f32 %v1786, %v1378
        %v1823 = vadd.f32 %v1690, %v1379
        %v1824 = vadd.f32 %v1788, %v1380
        %v1825 = vadd.f32 %v1693, %v1381
        %v1826 = vadd.f32 %v1791, %v1382
        %v1827 = vadd.f32 %v1695, %v1383
        %v1828 = vadd.f32 %v1793, %v1384
        %v1829 = vadd.f32 %v1698, %v1385
        %v1830 = vadd.f32 %v1796, %v1386
        %v1831 = vadd.f32 %v1700, %v1387
        %v1832 = vadd.f32 %v1798, %v1388
        %v1833 = vadd.f32 %v1703, %v1389
        %v1834 = vadd.f32 %v1801, %v1390
        %v1835 = vadd.f32 %v1705, %v1391
        %v1836 = vadd.f32 %v1803, %v1392
        %v1837 = vmax.f32 %v1805, 0.0
        %v1838 = vmax.f32 %v1806, 0.0
        %v1839 = vmax.f32 %v1807, 0.0
        %v1840 = vmax.f32 %v1808, 0.0
        %v1841 = vmax.f32 %v1809, 0.0
        %v1842 = vmax.f32 %v1810, 0.0
        %v1843 = vmax.f32 %v1811, 0.0
        %v1844 = vmax.f32 %v1812, 0.0
        %v1845 = vmax.f32 %v1813, 0.0
        %v1846 = vmax.f32 %v1814, 0.0
        %v1847 = vmax.f32 %v1815, 0.0
        %v1848 = vmax.f32 %v1816, 0.0
        %v1849 = vmax.f32 %v1817, 0.0
        %v1850 = vmax.f32 %v1818, 0.0
        %v1851 = vmax.f32 %v1819, 0.0
        %v1852 = vmax.f32 %v1820, 0.0
        %v1853 = vmax.f32 %v1821, 0.0
        %v1854 = vmax.f32 %v1822, 0.0
        %v1855 = vmax.f32 %v1823, 0.0
        %v1856 = vmax.f32 %v1824, 0.0
        %v1857 = vmax.f32 %v1825, 0.0
        %v1858 = vmax.f32 %v1826, 0.0
        %v1859 = vmax.f32 %v1827, 0.0
        %v1860 = vmax.f32 %v1828, 0.0
        %v1861 = vmax.f32 %v1829, 0.0
        %v1862 = vmax.f32 %v1830, 0.0
        %v1863 = vmax.f32 %v1831, 0.0
        %v1864 = vmax.f32 %v1832, 0.0
        %v1865 = vmax.f32 %v1833, 0.0
        %v1866 = vmax.f32 %v1834, 0.0
        %v1867 = vmax.f32 %v1835, 0.0
        %v1868 = vmax.f32 %v1836, 0.0
        %1869 = vst [vmem:[#allocation2] sm:$0xff] %v1837
        %1870 = vst [vmem:[#allocation2 + $0x8] sm:$0xff] %v1838
        %1871 = vst [vmem:[#allocation2 + $0x10] sm:$0xff] %v1839
        %1872 = vst [vmem:[#allocation2 + $0x18] sm:$0xff] %v1840
        %1873 = vst [vmem:[#allocation2 + $0x20] sm:$0xff] %v1841
        %1874 = vst [vmem:[#allocation2 + $0x28] sm:$0xff] %v1842
        %1875 = vst [vmem:[#allocation2 + $0x30] sm:$0xff] %v1843
        %1876 = vst [vmem:[#allocation2 + $0x38] sm:$0xff] %v1844
        %1877 = vst [vmem:[#allocation2 + $0x40] sm:$0xff] %v1845
        %1878 = vst [vmem:[#allocation2 + $0x48] sm:$0xff] %v1846
        %1879 = vst [vmem:[#allocation2 + $0x50] sm:$0xff] %v1847
        %1880 = vst [vmem:[#allocation2 + $0x58] sm:$0xff] %v1848
        %1881 = vst [vmem:[#allocation2 + $0x60] sm:$0xff] %v1849
        %1882 = vst [vmem:[#allocation2 + $0x68] sm:$0xff] %v1850
        %1883 = vst [vmem:[#allocation2 + $0x70] sm:$0xff] %v1851
        %1884 = vst [vmem:[#allocation2 + $0x78] sm:$0xff] %v1852
        %1885 = vst [vmem:[#allocation2 + $0x80] sm:$0xff] %v1853
        %1886 = vst [vmem:[#allocation2 + $0x88] sm:$0xff] %v1854
        %1887 = vst [vmem:[#allocation2 + $0x90] sm:$0xff] %v1855
        %1888 = vst [vmem:[#allocation2 + $0x98] sm:$0xff] %v1856
        %1889 = vst [vmem:[#allocation2 + $0xa0] sm:$0xff] %v1857
        %1890 = vst [vmem:[#allocation2 + $0xa8] sm:$0xff] %v1858
        %1891 = vst [vmem:[#allocation2 + $0xb0] sm:$0xff] %v1859
        %1892 = vst [vmem:[#allocation2 + $0xb8] sm:$0xff] %v1860
        %1893 = vst [vmem:[#allocation2 + $0xc0] sm:$0xff] %v1861
        %1894 = vst [vmem:[#allocation2 + $0xc8] sm:$0xff] %v1862
        %1895 = vst [vmem:[#allocation2 + $0xd0] sm:$0xff] %v1863
        %1896 = vst [vmem:[#allocation2 + $0xd8] sm:$0xff] %v1864
        %1897 = vst [vmem:[#allocation2 + $0xe0] sm:$0xff] %v1865
        %1898 = vst [vmem:[#allocation2 + $0xe8] sm:$0xff] %v1866
        %1899 = vst [vmem:[#allocation2 + $0xf0] sm:$0xff] %v1867
        %1900 = vst [vmem:[#allocation2 + $0xf8] sm:$0xff] %v1868
        %v1901 = vld [vmem:[#allocation2] sm:$0xff]
        %v1902 = vld [vmem:[#allocation2 + $0x8] sm:$0xff]
        %v1903 = vld [vmem:[#allocation2 + $0x10] sm:$0xff]
        %v1904 = vld [vmem:[#allocation2 + $0x18] sm:$0xff]
        %v1905 = vld [vmem:[#allocation2 + $0x20] sm:$0xff]
        %v1906 = vld [vmem:[#allocation2 + $0x28] sm:$0xff]
        %v1907 = vld [vmem:[#allocation2 + $0x30] sm:$0xff]
        %v1908 = vld [vmem:[#allocation2 + $0x38] sm:$0xff]
        %v1909 = vld [vmem:[#allocation2 + $0x40] sm:$0xff]
        %v1910 = vld [vmem:[#allocation2 + $0x48] sm:$0xff]
        %v1911 = vld [vmem:[#allocation2 + $0x50] sm:$0xff]
        %v1912 = vld [vmem:[#allocation2 + $0x58] sm:$0xff]
        %v1913 = vld [vmem:[#allocation2 + $0x60] sm:$0xff]
        %v1914 = vld [vmem:[#allocation2 + $0x68] sm:$0xff]
        %v1915 = vld [vmem:[#allocation2 + $0x70] sm:$0xff]
        %v1916 = vld [vmem:[#allocation2 + $0x78] sm:$0xff]
        %v1917 = vld [vmem:[#allocation2 + $0x80] sm:$0xff]
        %v1918 = vld [vmem:[#allocation2 + $0x88] sm:$0xff]
        %v1919 = vld [vmem:[#allocation2 + $0x90] sm:$0xff]
        %v1920 = vld [vmem:[#allocation2 + $0x98] sm:$0xff]
        %v1921 = vld [vmem:[#allocation2 + $0xa0] sm:$0xff]
        %v1922 = vld [vmem:[#allocation2 + $0xa8] sm:$0xff]
        %v1923 = vld [vmem:[#allocation2 + $0xb0] sm:$0xff]
        %v1924 = vld [vmem:[#allocation2 + $0xb8] sm:$0xff]
        %v1925 = vld [vmem:[#allocation2 + $0xc0] sm:$0xff]
        %v1926 = vld [vmem:[#allocation2 + $0xc8] sm:$0xff]
        %v1927 = vld [vmem:[#allocation2 + $0xd0] sm:$0xff]
        %v1928 = vld [vmem:[#allocation2 + $0xd8] sm:$0xff]
        %v1929 = vld [vmem:[#allocation2 + $0xe0] sm:$0xff]
        %v1930 = vld [vmem:[#allocation2 + $0xe8] sm:$0xff]
        %v1931 = vld [vmem:[#allocation2 + $0xf0] sm:$0xff]
        %v1932 = vld [vmem:[#allocation2 + $0xf8] sm:$0xff]
        %v1933 = vpack.c.bf16 %v1903, %v1901
        %v1934 = vpack.c.bf16 %v1904, %v1902
        %v1935 = vpack.c.bf16 %v1907, %v1905
        %v1936 = vpack.c.bf16 %v1908, %v1906
        %v1937 = vpack.c.bf16 %v1911, %v1909
        %v1938 = vpack.c.bf16 %v1912, %v1910
        %v1939 = vpack.c.bf16 %v1915, %v1913
        %v1940 = vpack.c.bf16 %v1916, %v1914
        %v1941 = vpack.c.bf16 %v1919, %v1917
        %v1942 = vpack.c.bf16 %v1920, %v1918
        %v1943 = vpack.c.bf16 %v1923, %v1921
        %v1944 = vpack.c.bf16 %v1924, %v1922
        %v1945 = vpack.c.bf16 %v1927, %v1925
        %v1946 = vpack.c.bf16 %v1928, %v1926
        %v1947 = vpack.c.bf16 %v1931, %v1929
        %v1948 = vpack.c.bf16 %v1932, %v1930
        %s1949 = scalar_lea.vmem [#allocation10], 512
        %v1950 = vld [vmem:[%s1949] sm:$0xff]
        %v1951 = vld [vmem:[%s1949 + $0x8] sm:$0xff]
        %v1952 = vld [vmem:[%s1949 + $0x10] sm:$0xff]
        %v1953 = vld [vmem:[%s1949 + $0x18] sm:$0xff]
        %v1954 = vld [vmem:[%s1949 + $0x20] sm:$0xff]
        %v1955 = vld [vmem:[%s1949 + $0x28] sm:$0xff]
        %v1956 = vld [vmem:[%s1949 + $0x30] sm:$0xff]
        %v1957 = vld [vmem:[%s1949 + $0x38] sm:$0xff]
        %v1958 = vld [vmem:[%s1949 + $0x40] sm:$0xff]
        %v1959 = vld [vmem:[%s1949 + $0x48] sm:$0xff]
        %v1960 = vld [vmem:[%s1949 + $0x50] sm:$0xff]
        %v1961 = vld [vmem:[%s1949 + $0x58] sm:$0xff]
        %v1962 = vld [vmem:[%s1949 + $0x60] sm:$0xff]
        %v1963 = vld [vmem:[%s1949 + $0x68] sm:$0xff]
        %v1964 = vld [vmem:[%s1949 + $0x70] sm:$0xff]
        %v1965 = vld [vmem:[%s1949 + $0x78] sm:$0xff]
        %v1966 = vld [vmem:[%s1949 + $0x80] sm:$0xff]
        %v1967 = vld [vmem:[%s1949 + $0x88] sm:$0xff]
        %v1968 = vld [vmem:[%s1949 + $0x90] sm:$0xff]
        %v1969 = vld [vmem:[%s1949 + $0x98] sm:$0xff]
        %v1970 = vld [vmem:[%s1949 + $0xa0] sm:$0xff]
        %v1971 = vld [vmem:[%s1949 + $0xa8] sm:$0xff]
        %v1972 = vld [vmem:[%s1949 + $0xb0] sm:$0xff]
        %v1973 = vld [vmem:[%s1949 + $0xb8] sm:$0xff]
        %v1974 = vld [vmem:[%s1949 + $0xc0] sm:$0xff]
        %v1975 = vld [vmem:[%s1949 + $0xc8] sm:$0xff]
        %v1976 = vld [vmem:[%s1949 + $0xd0] sm:$0xff]
        %v1977 = vld [vmem:[%s1949 + $0xd8] sm:$0xff]
        %v1978 = vld [vmem:[%s1949 + $0xe0] sm:$0xff]
        %v1979 = vld [vmem:[%s1949 + $0xe8] sm:$0xff]
        %v1980 = vld [vmem:[%s1949 + $0xf0] sm:$0xff]
        %v1981 = vld [vmem:[%s1949 + $0xf8] sm:$0xff]
        %s1982 = scalar_lea.vmem [#allocation12], 4
        %v1983 = vld [vmem:[%s1982] sm:$0x3]
        %v1985 = vperm.slane %v1983, 0
        %v1986 = vperm.slane %v1983, 1
        %v2021 = vunpack.c.l.b16 %v1950
        %v2022 = vunpack.c.h.b16 %v1950
        %v2023 = vunpack.c.l.b16 %v1951
        %v2024 = vunpack.c.h.b16 %v1951
        %v2025 = vunpack.c.l.b16 %v1952
        %v2026 = vunpack.c.h.b16 %v1952
        %v2027 = vunpack.c.l.b16 %v1953
        %v2028 = vunpack.c.h.b16 %v1953
        %v2029 = vunpack.c.l.b16 %v1954
        %v2030 = vunpack.c.h.b16 %v1954
        %v2031 = vunpack.c.l.b16 %v1955
        %v2032 = vunpack.c.h.b16 %v1955
        %v2033 = vunpack.c.l.b16 %v1956
        %v2034 = vunpack.c.h.b16 %v1956
        %v2035 = vunpack.c.l.b16 %v1957
        %v2036 = vunpack.c.h.b16 %v1957
        %v2037 = vunpack.c.l.b16 %v1958
        %v2038 = vunpack.c.h.b16 %v1958
        %v2039 = vunpack.c.l.b16 %v1959
        %v2040 = vunpack.c.h.b16 %v1959
        %v2041 = vunpack.c.l.b16 %v1960
        %v2042 = vunpack.c.h.b16 %v1960
        %v2043 = vunpack.c.l.b16 %v1961
        %v2044 = vunpack.c.h.b16 %v1961
        %v2045 = vunpack.c.l.b16 %v1962
        %v2046 = vunpack.c.h.b16 %v1962
        %v2047 = vunpack.c.l.b16 %v1963
        %v2048 = vunpack.c.h.b16 %v1963
        %v2049 = vunpack.c.l.b16 %v1964
        %v2050 = vunpack.c.h.b16 %v1964
        %v2051 = vunpack.c.l.b16 %v1965
        %v2052 = vunpack.c.h.b16 %v1965
        %v2053 = vunpack.c.l.b16 %v1966
        %v2054 = vunpack.c.h.b16 %v1966
        %v2055 = vunpack.c.l.b16 %v1967
        %v2056 = vunpack.c.h.b16 %v1967
        %v2057 = vunpack.c.l.b16 %v1968
        %v2058 = vunpack.c.h.b16 %v1968
        %v2059 = vunpack.c.l.b16 %v1969
        %v2060 = vunpack.c.h.b16 %v1969
        %v2061 = vunpack.c.l.b16 %v1970
        %v2062 = vunpack.c.h.b16 %v1970
        %v2063 = vunpack.c.l.b16 %v1971
        %v2064 = vunpack.c.h.b16 %v1971
        %v2065 = vunpack.c.l.b16 %v1972
        %v2066 = vunpack.c.h.b16 %v1972
        %v2067 = vunpack.c.l.b16 %v1973
        %v2068 = vunpack.c.h.b16 %v1973
        %v2069 = vunpack.c.l.b16 %v1974
        %v2070 = vunpack.c.h.b16 %v1974
        %v2071 = vunpack.c.l.b16 %v1975
        %v2072 = vunpack.c.h.b16 %v1975
        %v2073 = vunpack.c.l.b16 %v1976
        %v2074 = vunpack.c.h.b16 %v1976
        %v2075 = vunpack.c.l.b16 %v1977
        %v2076 = vunpack.c.h.b16 %v1977
        %v2077 = vunpack.c.l.b16 %v1978
        %v2078 = vunpack.c.h.b16 %v1978
        %v2079 = vunpack.c.l.b16 %v1979
        %v2080 = vunpack.c.h.b16 %v1979
        %v2081 = vunpack.c.l.b16 %v1980
        %v2082 = vunpack.c.h.b16 %v1980
        %v2083 = vunpack.c.l.b16 %v1981
        %v2084 = vunpack.c.h.b16 %v1981
        %v2085 = vpack.c.b16 %v2023, %v2021
        %v2086 = vpack.c.b16 %v2024, %v2022
        %v2087 = vpack.c.b16 %v2027, %v2025
        %v2088 = vpack.c.b16 %v2028, %v2026
        %v2089 = vpack.c.b16 %v2031, %v2029
        %v2090 = vpack.c.b16 %v2032, %v2030
        %v2091 = vpack.c.b16 %v2035, %v2033
        %v2092 = vpack.c.b16 %v2036, %v2034
        %v2093 = vpack.c.b16 %v2039, %v2037
        %v2094 = vpack.c.b16 %v2040, %v2038
        %v2095 = vpack.c.b16 %v2043, %v2041
        %v2096 = vpack.c.b16 %v2044, %v2042
        %v2097 = vpack.c.b16 %v2047, %v2045
        %v2098 = vpack.c.b16 %v2048, %v2046
        %v2099 = vpack.c.b16 %v2051, %v2049
        %v2100 = vpack.c.b16 %v2052, %v2050
        %v2101 = vpack.c.b16 %v2055, %v2053
        %v2102 = vpack.c.b16 %v2056, %v2054
        %v2103 = vpack.c.b16 %v2059, %v2057
        %v2104 = vpack.c.b16 %v2060, %v2058
        %v2105 = vpack.c.b16 %v2063, %v2061
        %v2106 = vpack.c.b16 %v2064, %v2062
        %v2107 = vpack.c.b16 %v2067, %v2065
        %v2108 = vpack.c.b16 %v2068, %v2066
        %v2109 = vpack.c.b16 %v2071, %v2069
        %v2110 = vpack.c.b16 %v2072, %v2070
        %v2111 = vpack.c.b16 %v2075, %v2073
        %v2112 = vpack.c.b16 %v2076, %v2074
        %v2113 = vpack.c.b16 %v2079, %v2077
        %v2114 = vpack.c.b16 %v2080, %v2078
        %v2115 = vpack.c.b16 %v2083, %v2081
        %v2116 = vpack.c.b16 %v2084, %v2082
        %2149 = vmatpush.bf16.msra.mxu0 %v2099
        %2150 = vmatpush.bf16.msra.mxu0 %v2097
        %2151 = vmatpush.bf16.msra.mxu0 %v2095
        %2152 = vmatpush.bf16.msra.mxu0 %v2093
        %2153 = vmatpush.bf16.msra.mxu0 %v2091
        %2154 = vmatpush.bf16.msra.mxu0 %v2089
        %2155 = vmatpush.bf16.msra.mxu0 %v2087
        %2156 = vmatpush.bf16.msra.mxu0 %v2085
        %2157 = vmatmul.bf16.gmra.mxu0 %v1933
        %v2158 = vpop.f32.mrf.mxu0
        %v2159 = vadd.f32 %v1985, %v2158
        %v2160 = vpop.f32.mrf.mxu0
        %v2161 = vadd.f32 %v1985, %v2160
        %2162 = vmatmul.bf16.gmra.mxu0 %v1935
        %v2163 = vpop.f32.mrf.mxu0
        %v2164 = vadd.f32 %v1985, %v2163
        %v2165 = vpop.f32.mrf.mxu0
        %v2166 = vadd.f32 %v1985, %v2165
        %2167 = vmatmul.bf16.gmra.mxu0 %v1937
        %v2168 = vpop.f32.mrf.mxu0
        %v2169 = vadd.f32 %v1985, %v2168
        %v2170 = vpop.f32.mrf.mxu0
        %v2171 = vadd.f32 %v1985, %v2170
        %2172 = vmatmul.bf16.gmra.mxu0 %v1939
        %v2173 = vpop.f32.mrf.mxu0
        %v2174 = vadd.f32 %v1985, %v2173
        %v2175 = vpop.f32.mrf.mxu0
        %v2176 = vadd.f32 %v1985, %v2175
        %2177 = vmatmul.bf16.gmra.mxu0 %v1941
        %v2178 = vpop.f32.mrf.mxu0
        %v2179 = vadd.f32 %v1985, %v2178
        %v2180 = vpop.f32.mrf.mxu0
        %v2181 = vadd.f32 %v1985, %v2180
        %2182 = vmatmul.bf16.gmra.mxu0 %v1943
        %v2183 = vpop.f32.mrf.mxu0
        %v2184 = vadd.f32 %v1985, %v2183
        %v2185 = vpop.f32.mrf.mxu0
        %v2186 = vadd.f32 %v1985, %v2185
        %2187 = vmatmul.bf16.gmra.mxu0 %v1945
        %v2188 = vpop.f32.mrf.mxu0
        %v2189 = vadd.f32 %v1985, %v2188
        %v2190 = vpop.f32.mrf.mxu0
        %v2191 = vadd.f32 %v1985, %v2190
        %2192 = vmatmul.bf16.gmra.mxu0 %v1947
        %v2193 = vpop.f32.mrf.mxu0
        %v2194 = vadd.f32 %v1985, %v2193
        %v2195 = vpop.f32.mrf.mxu0
        %v2196 = vadd.f32 %v1985, %v2195
        %2197 = vdwg.mxu0
        %2198 = vmatpush.bf16.msra.mxu0 %v2115
        %2199 = vmatpush.bf16.msra.mxu0 %v2113
        %2200 = vmatpush.bf16.msra.mxu0 %v2111
        %2201 = vmatpush.bf16.msra.mxu0 %v2109
        %2202 = vmatpush.bf16.msra.mxu0 %v2107
        %2203 = vmatpush.bf16.msra.mxu0 %v2105
        %2204 = vmatpush.bf16.msra.mxu0 %v2103
        %2205 = vmatpush.bf16.msra.mxu0 %v2101
        %2206 = vmatmul.bf16.gmra.mxu0 %v1934
        %v2207 = vpop.f32.mrf.mxu0
        %v2208 = vadd.f32 %v2159, %v2207
        %v2209 = vpop.f32.mrf.mxu0
        %v2210 = vadd.f32 %v2161, %v2209
        %2211 = vmatmul.bf16.gmra.mxu0 %v1936
        %v2212 = vpop.f32.mrf.mxu0
        %v2213 = vadd.f32 %v2164, %v2212
        %v2214 = vpop.f32.mrf.mxu0
        %v2215 = vadd.f32 %v2166, %v2214
        %2216 = vmatmul.bf16.gmra.mxu0 %v1938
        %v2217 = vpop.f32.mrf.mxu0
        %v2218 = vadd.f32 %v2169, %v2217
        %v2219 = vpop.f32.mrf.mxu0
        %v2220 = vadd.f32 %v2171, %v2219
        %2221 = vmatmul.bf16.gmra.mxu0 %v1940
        %v2222 = vpop.f32.mrf.mxu0
        %v2223 = vadd.f32 %v2174, %v2222
        %v2224 = vpop.f32.mrf.mxu0
        %v2225 = vadd.f32 %v2176, %v2224
        %2226 = vmatmul.bf16.gmra.mxu0 %v1942
        %v2227 = vpop.f32.mrf.mxu0
        %v2228 = vadd.f32 %v2179, %v2227
        %v2229 = vpop.f32.mrf.mxu0
        %v2230 = vadd.f32 %v2181, %v2229
        %2231 = vmatmul.bf16.gmra.mxu0 %v1944
        %v2232 = vpop.f32.mrf.mxu0
        %v2233 = vadd.f32 %v2184, %v2232
        %v2234 = vpop.f32.mrf.mxu0
        %v2235 = vadd.f32 %v2186, %v2234
        %2236 = vmatmul.bf16.gmra.mxu0 %v1946
        %v2237 = vpop.f32.mrf.mxu0
        %v2238 = vadd.f32 %v2189, %v2237
        %v2239 = vpop.f32.mrf.mxu0
        %v2240 = vadd.f32 %v2191, %v2239
        %2241 = vmatmul.bf16.gmra.mxu0 %v1948
        %v2242 = vpop.f32.mrf.mxu0
        %v2243 = vadd.f32 %v2194, %v2242
        %v2244 = vpop.f32.mrf.mxu0
        %v2245 = vadd.f32 %v2196, %v2244
        %2246 = vdwg.mxu0
        %2247 = vmatpush.bf16.msra.mxu0 %v2100
        %2248 = vmatpush.bf16.msra.mxu0 %v2098
        %2249 = vmatpush.bf16.msra.mxu0 %v2096
        %2250 = vmatpush.bf16.msra.mxu0 %v2094
        %2251 = vmatpush.bf16.msra.mxu0 %v2092
        %2252 = vmatpush.bf16.msra.mxu0 %v2090
        %2253 = vmatpush.bf16.msra.mxu0 %v2088
        %2254 = vmatpush.bf16.msra.mxu0 %v2086
        %2255 = vmatmul.bf16.gmra.mxu0 %v1933
        %v2256 = vpop.f32.mrf.mxu0
        %v2257 = vadd.f32 %v1986, %v2256
        %v2258 = vpop.f32.mrf.mxu0
        %v2259 = vadd.f32 %v1986, %v2258
        %2260 = vmatmul.bf16.gmra.mxu0 %v1935
        %v2261 = vpop.f32.mrf.mxu0
        %v2262 = vadd.f32 %v1986, %v2261
        %v2263 = vpop.f32.mrf.mxu0
        %v2264 = vadd.f32 %v1986, %v2263
        %2265 = vmatmul.bf16.gmra.mxu0 %v1937
        %v2266 = vpop.f32.mrf.mxu0
        %v2267 = vadd.f32 %v1986, %v2266
        %v2268 = vpop.f32.mrf.mxu0
        %v2269 = vadd.f32 %v1986, %v2268
        %2270 = vmatmul.bf16.gmra.mxu0 %v1939
        %v2271 = vpop.f32.mrf.mxu0
        %v2272 = vadd.f32 %v1986, %v2271
        %v2273 = vpop.f32.mrf.mxu0
        %v2274 = vadd.f32 %v1986, %v2273
        %2275 = vmatmul.bf16.gmra.mxu0 %v1941
        %v2276 = vpop.f32.mrf.mxu0
        %v2277 = vadd.f32 %v1986, %v2276
        %v2278 = vpop.f32.mrf.mxu0
        %v2279 = vadd.f32 %v1986, %v2278
        %2280 = vmatmul.bf16.gmra.mxu0 %v1943
        %v2281 = vpop.f32.mrf.mxu0
        %v2282 = vadd.f32 %v1986, %v2281
        %v2283 = vpop.f32.mrf.mxu0
        %v2284 = vadd.f32 %v1986, %v2283
        %2285 = vmatmul.bf16.gmra.mxu0 %v1945
        %v2286 = vpop.f32.mrf.mxu0
        %v2287 = vadd.f32 %v1986, %v2286
        %v2288 = vpop.f32.mrf.mxu0
        %v2289 = vadd.f32 %v1986, %v2288
        %2290 = vmatmul.bf16.gmra.mxu0 %v1947
        %v2291 = vpop.f32.mrf.mxu0
        %v2292 = vadd.f32 %v1986, %v2291
        %v2293 = vpop.f32.mrf.mxu0
        %v2294 = vadd.f32 %v1986, %v2293
        %2295 = vdwg.mxu0
        %2296 = vmatpush.bf16.msra.mxu0 %v2116
        %2297 = vmatpush.bf16.msra.mxu0 %v2114
        %2298 = vmatpush.bf16.msra.mxu0 %v2112
        %2299 = vmatpush.bf16.msra.mxu0 %v2110
        %2300 = vmatpush.bf16.msra.mxu0 %v2108
        %2301 = vmatpush.bf16.msra.mxu0 %v2106
        %2302 = vmatpush.bf16.msra.mxu0 %v2104
        %2303 = vmatpush.bf16.msra.mxu0 %v2102
        %2304 = vmatmul.bf16.gmra.mxu0 %v1934
        %v2305 = vpop.f32.mrf.mxu0
        %v2306 = vadd.f32 %v2257, %v2305
        %v2307 = vpop.f32.mrf.mxu0
        %v2308 = vadd.f32 %v2259, %v2307
        %2309 = vmatmul.bf16.gmra.mxu0 %v1936
        %v2310 = vpop.f32.mrf.mxu0
        %v2311 = vadd.f32 %v2262, %v2310
        %v2312 = vpop.f32.mrf.mxu0
        %v2313 = vadd.f32 %v2264, %v2312
        %2314 = vmatmul.bf16.gmra.mxu0 %v1938
        %v2315 = vpop.f32.mrf.mxu0
        %v2316 = vadd.f32 %v2267, %v2315
        %v2317 = vpop.f32.mrf.mxu0
        %v2318 = vadd.f32 %v2269, %v2317
        %2319 = vmatmul.bf16.gmra.mxu0 %v1940
        %v2320 = vpop.f32.mrf.mxu0
        %v2321 = vadd.f32 %v2272, %v2320
        %v2322 = vpop.f32.mrf.mxu0
        %v2323 = vadd.f32 %v2274, %v2322
        %2324 = vmatmul.bf16.gmra.mxu0 %v1942
        %v2325 = vpop.f32.mrf.mxu0
        %v2326 = vadd.f32 %v2277, %v2325
        %v2327 = vpop.f32.mrf.mxu0
        %v2328 = vadd.f32 %v2279, %v2327
        %2329 = vmatmul.bf16.gmra.mxu0 %v1944
        %v2330 = vpop.f32.mrf.mxu0
        %v2331 = vadd.f32 %v2282, %v2330
        %v2332 = vpop.f32.mrf.mxu0
        %v2333 = vadd.f32 %v2284, %v2332
        %2334 = vmatmul.bf16.gmra.mxu0 %v1946
        %v2335 = vpop.f32.mrf.mxu0
        %v2336 = vadd.f32 %v2287, %v2335
        %v2337 = vpop.f32.mrf.mxu0
        %v2338 = vadd.f32 %v2289, %v2337
        %2339 = vmatmul.bf16.gmra.mxu0 %v1948
        %v2340 = vpop.f32.mrf.mxu0
        %v2341 = vadd.f32 %v2292, %v2340
        %v2342 = vpop.f32.mrf.mxu0
        %v2343 = vadd.f32 %v2294, %v2342
        %2344 = vdwg.mxu0
        %v2345 = vadd.f32 %v2208, %v1901
        %v2346 = vadd.f32 %v2306, %v1902
        %v2347 = vadd.f32 %v2210, %v1903
        %v2348 = vadd.f32 %v2308, %v1904
        %v2349 = vadd.f32 %v2213, %v1905
        %v2350 = vadd.f32 %v2311, %v1906
        %v2351 = vadd.f32 %v2215, %v1907
        %v2352 = vadd.f32 %v2313, %v1908
        %v2353 = vadd.f32 %v2218, %v1909
        %v2354 = vadd.f32 %v2316, %v1910
        %v2355 = vadd.f32 %v2220, %v1911
        %v2356 = vadd.f32 %v2318, %v1912
        %v2357 = vadd.f32 %v2223, %v1913
        %v2358 = vadd.f32 %v2321, %v1914
        %v2359 = vadd.f32 %v2225, %v1915
        %v2360 = vadd.f32 %v2323, %v1916
        %v2361 = vadd.f32 %v2228, %v1917
        %v2362 = vadd.f32 %v2326, %v1918
        %v2363 = vadd.f32 %v2230, %v1919
        %v2364 = vadd.f32 %v2328, %v1920
        %v2365 = vadd.f32 %v2233, %v1921
        %v2366 = vadd.f32 %v2331, %v1922
        %v2367 = vadd.f32 %v2235, %v1923
        %v2368 = vadd.f32 %v2333, %v1924
        %v2369 = vadd.f32 %v2238, %v1925
        %v2370 = vadd.f32 %v2336, %v1926
        %v2371 = vadd.f32 %v2240, %v1927
        %v2372 = vadd.f32 %v2338, %v1928
        %v2373 = vadd.f32 %v2243, %v1929
        %v2374 = vadd.f32 %v2341, %v1930
        %v2375 = vadd.f32 %v2245, %v1931
        %v2376 = vadd.f32 %v2343, %v1932
        %v2377 = vmax.f32 %v2345, 0.0
        %v2378 = vmax.f32 %v2346, 0.0
        %v2379 = vmax.f32 %v2347, 0.0
        %v2380 = vmax.f32 %v2348, 0.0
        %v2381 = vmax.f32 %v2349, 0.0
        %v2382 = vmax.f32 %v2350, 0.0
        %v2383 = vmax.f32 %v2351, 0.0
        %v2384 = vmax.f32 %v2352, 0.0
        %v2385 = vmax.f32 %v2353, 0.0
        %v2386 = vmax.f32 %v2354, 0.0
        %v2387 = vmax.f32 %v2355, 0.0
        %v2388 = vmax.f32 %v2356, 0.0
        %v2389 = vmax.f32 %v2357, 0.0
        %v2390 = vmax.f32 %v2358, 0.0
        %v2391 = vmax.f32 %v2359, 0.0
        %v2392 = vmax.f32 %v2360, 0.0
        %v2393 = vmax.f32 %v2361, 0.0
        %v2394 = vmax.f32 %v2362, 0.0
        %v2395 = vmax.f32 %v2363, 0.0
        %v2396 = vmax.f32 %v2364, 0.0
        %v2397 = vmax.f32 %v2365, 0.0
        %v2398 = vmax.f32 %v2366, 0.0
        %v2399 = vmax.f32 %v2367, 0.0
        %v2400 = vmax.f32 %v2368, 0.0
        %v2401 = vmax.f32 %v2369, 0.0
        %v2402 = vmax.f32 %v2370, 0.0
        %v2403 = vmax.f32 %v2371, 0.0
        %v2404 = vmax.f32 %v2372, 0.0
        %v2405 = vmax.f32 %v2373, 0.0
        %v2406 = vmax.f32 %v2374, 0.0
        %v2407 = vmax.f32 %v2375, 0.0
        %v2408 = vmax.f32 %v2376, 0.0
        %2409 = vst [vmem:[#allocation2] sm:$0xff] %v2377
        %2410 = vst [vmem:[#allocation2 + $0x8] sm:$0xff] %v2378
        %2411 = vst [vmem:[#allocation2 + $0x10] sm:$0xff] %v2379
        %2412 = vst [vmem:[#allocation2 + $0x18] sm:$0xff] %v2380
        %2413 = vst [vmem:[#allocation2 + $0x20] sm:$0xff] %v2381
        %2414 = vst [vmem:[#allocation2 + $0x28] sm:$0xff] %v2382
        %2415 = vst [vmem:[#allocation2 + $0x30] sm:$0xff] %v2383
        %2416 = vst [vmem:[#allocation2 + $0x38] sm:$0xff] %v2384
        %2417 = vst [vmem:[#allocation2 + $0x40] sm:$0xff] %v2385
        %2418 = vst [vmem:[#allocation2 + $0x48] sm:$0xff] %v2386
        %2419 = vst [vmem:[#allocation2 + $0x50] sm:$0xff] %v2387
        %2420 = vst [vmem:[#allocation2 + $0x58] sm:$0xff] %v2388
        %2421 = vst [vmem:[#allocation2 + $0x60] sm:$0xff] %v2389
        %2422 = vst [vmem:[#allocation2 + $0x68] sm:$0xff] %v2390
        %2423 = vst [vmem:[#allocation2 + $0x70] sm:$0xff] %v2391
        %2424 = vst [vmem:[#allocation2 + $0x78] sm:$0xff] %v2392
        %2425 = vst [vmem:[#allocation2 + $0x80] sm:$0xff] %v2393
        %2426 = vst [vmem:[#allocation2 + $0x88] sm:$0xff] %v2394
        %2427 = vst [vmem:[#allocation2 + $0x90] sm:$0xff] %v2395
        %2428 = vst [vmem:[#allocation2 + $0x98] sm:$0xff] %v2396
        %2429 = vst [vmem:[#allocation2 + $0xa0] sm:$0xff] %v2397
        %2430 = vst [vmem:[#allocation2 + $0xa8] sm:$0xff] %v2398
        %2431 = vst [vmem:[#allocation2 + $0xb0] sm:$0xff] %v2399
        %2432 = vst [vmem:[#allocation2 + $0xb8] sm:$0xff] %v2400
        %2433 = vst [vmem:[#allocation2 + $0xc0] sm:$0xff] %v2401
        %2434 = vst [vmem:[#allocation2 + $0xc8] sm:$0xff] %v2402
        %2435 = vst [vmem:[#allocation2 + $0xd0] sm:$0xff] %v2403
        %2436 = vst [vmem:[#allocation2 + $0xd8] sm:$0xff] %v2404
        %2437 = vst [vmem:[#allocation2 + $0xe0] sm:$0xff] %v2405
        %2438 = vst [vmem:[#allocation2 + $0xe8] sm:$0xff] %v2406
        %2439 = vst [vmem:[#allocation2 + $0xf0] sm:$0xff] %v2407
        %2440 = vst [vmem:[#allocation2 + $0xf8] sm:$0xff] %v2408
        %v2441 = vld [vmem:[#allocation2] sm:$0xff]
        %v2442 = vld [vmem:[#allocation2 + $0x8] sm:$0xff]
        %v2443 = vld [vmem:[#allocation2 + $0x10] sm:$0xff]
        %v2444 = vld [vmem:[#allocation2 + $0x18] sm:$0xff]
        %v2445 = vld [vmem:[#allocation2 + $0x20] sm:$0xff]
        %v2446 = vld [vmem:[#allocation2 + $0x28] sm:$0xff]
        %v2447 = vld [vmem:[#allocation2 + $0x30] sm:$0xff]
        %v2448 = vld [vmem:[#allocation2 + $0x38] sm:$0xff]
        %v2449 = vld [vmem:[#allocation2 + $0x40] sm:$0xff]
        %v2450 = vld [vmem:[#allocation2 + $0x48] sm:$0xff]
        %v2451 = vld [vmem:[#allocation2 + $0x50] sm:$0xff]
        %v2452 = vld [vmem:[#allocation2 + $0x58] sm:$0xff]
        %v2453 = vld [vmem:[#allocation2 + $0x60] sm:$0xff]
        %v2454 = vld [vmem:[#allocation2 + $0x68] sm:$0xff]
        %v2455 = vld [vmem:[#allocation2 + $0x70] sm:$0xff]
        %v2456 = vld [vmem:[#allocation2 + $0x78] sm:$0xff]
        %v2457 = vld [vmem:[#allocation2 + $0x80] sm:$0xff]
        %v2458 = vld [vmem:[#allocation2 + $0x88] sm:$0xff]
        %v2459 = vld [vmem:[#allocation2 + $0x90] sm:$0xff]
        %v2460 = vld [vmem:[#allocation2 + $0x98] sm:$0xff]
        %v2461 = vld [vmem:[#allocation2 + $0xa0] sm:$0xff]
        %v2462 = vld [vmem:[#allocation2 + $0xa8] sm:$0xff]
        %v2463 = vld [vmem:[#allocation2 + $0xb0] sm:$0xff]
        %v2464 = vld [vmem:[#allocation2 + $0xb8] sm:$0xff]
        %v2465 = vld [vmem:[#allocation2 + $0xc0] sm:$0xff]
        %v2466 = vld [vmem:[#allocation2 + $0xc8] sm:$0xff]
        %v2467 = vld [vmem:[#allocation2 + $0xd0] sm:$0xff]
        %v2468 = vld [vmem:[#allocation2 + $0xd8] sm:$0xff]
        %v2469 = vld [vmem:[#allocation2 + $0xe0] sm:$0xff]
        %v2470 = vld [vmem:[#allocation2 + $0xe8] sm:$0xff]
        %v2471 = vld [vmem:[#allocation2 + $0xf0] sm:$0xff]
        %v2472 = vld [vmem:[#allocation2 + $0xf8] sm:$0xff]
        %v2473 = vpack.c.bf16 %v2443, %v2441
        %v2474 = vpack.c.bf16 %v2444, %v2442
        %v2475 = vpack.c.bf16 %v2447, %v2445
        %v2476 = vpack.c.bf16 %v2448, %v2446
        %v2477 = vpack.c.bf16 %v2451, %v2449
        %v2478 = vpack.c.bf16 %v2452, %v2450
        %v2479 = vpack.c.bf16 %v2455, %v2453
        %v2480 = vpack.c.bf16 %v2456, %v2454
        %v2481 = vpack.c.bf16 %v2459, %v2457
        %v2482 = vpack.c.bf16 %v2460, %v2458
        %v2483 = vpack.c.bf16 %v2463, %v2461
        %v2484 = vpack.c.bf16 %v2464, %v2462
        %v2485 = vpack.c.bf16 %v2467, %v2465
        %v2486 = vpack.c.bf16 %v2468, %v2466
        %v2487 = vpack.c.bf16 %v2471, %v2469
        %v2488 = vpack.c.bf16 %v2472, %v2470
        %s2489 = scalar_lea.vmem [#allocation10], 768
        %v2490 = vld [vmem:[%s2489] sm:$0xff]
        %v2491 = vld [vmem:[%s2489 + $0x8] sm:$0xff]
        %v2492 = vld [vmem:[%s2489 + $0x10] sm:$0xff]
        %v2493 = vld [vmem:[%s2489 + $0x18] sm:$0xff]
        %v2494 = vld [vmem:[%s2489 + $0x20] sm:$0xff]
        %v2495 = vld [vmem:[%s2489 + $0x28] sm:$0xff]
        %v2496 = vld [vmem:[%s2489 + $0x30] sm:$0xff]
        %v2497 = vld [vmem:[%s2489 + $0x38] sm:$0xff]
        %v2498 = vld [vmem:[%s2489 + $0x40] sm:$0xff]
        %v2499 = vld [vmem:[%s2489 + $0x48] sm:$0xff]
        %v2500 = vld [vmem:[%s2489 + $0x50] sm:$0xff]
        %v2501 = vld [vmem:[%s2489 + $0x58] sm:$0xff]
        %v2502 = vld [vmem:[%s2489 + $0x60] sm:$0xff]
        %v2503 = vld [vmem:[%s2489 + $0x68] sm:$0xff]
        %v2504 = vld [vmem:[%s2489 + $0x70] sm:$0xff]
        %v2505 = vld [vmem:[%s2489 + $0x78] sm:$0xff]
        %v2506 = vld [vmem:[%s2489 + $0x80] sm:$0xff]
        %v2507 = vld [vmem:[%s2489 + $0x88] sm:$0xff]
        %v2508 = vld [vmem:[%s2489 + $0x90] sm:$0xff]
        %v2509 = vld [vmem:[%s2489 + $0x98] sm:$0xff]
        %v2510 = vld [vmem:[%s2489 + $0xa0] sm:$0xff]
        %v2511 = vld [vmem:[%s2489 + $0xa8] sm:$0xff]
        %v2512 = vld [vmem:[%s2489 + $0xb0] sm:$0xff]
        %v2513 = vld [vmem:[%s2489 + $0xb8] sm:$0xff]
        %v2514 = vld [vmem:[%s2489 + $0xc0] sm:$0xff]
        %v2515 = vld [vmem:[%s2489 + $0xc8] sm:$0xff]
        %v2516 = vld [vmem:[%s2489 + $0xd0] sm:$0xff]
        %v2517 = vld [vmem:[%s2489 + $0xd8] sm:$0xff]
        %v2518 = vld [vmem:[%s2489 + $0xe0] sm:$0xff]
        %v2519 = vld [vmem:[%s2489 + $0xe8] sm:$0xff]
        %v2520 = vld [vmem:[%s2489 + $0xf0] sm:$0xff]
        %v2521 = vld [vmem:[%s2489 + $0xf8] sm:$0xff]
        %s2522 = scalar_lea.vmem [#allocation12], 6
        %v2523 = vld [vmem:[%s2522] sm:$0x3]
        %v2525 = vperm.slane %v2523, 0
        %v2526 = vperm.slane %v2523, 1
        %v2561 = vunpack.c.l.b16 %v2490
        %v2562 = vunpack.c.h.b16 %v2490
        %v2563 = vunpack.c.l.b16 %v2491
        %v2564 = vunpack.c.h.b16 %v2491
        %v2565 = vunpack.c.l.b16 %v2492
        %v2566 = vunpack.c.h.b16 %v2492
        %v2567 = vunpack.c.l.b16 %v2493
        %v2568 = vunpack.c.h.b16 %v2493
        %v2569 = vunpack.c.l.b16 %v2494
        %v2570 = vunpack.c.h.b16 %v2494
        %v2571 = vunpack.c.l.b16 %v2495
        %v2572 = vunpack.c.h.b16 %v2495
        %v2573 = vunpack.c.l.b16 %v2496
        %v2574 = vunpack.c.h.b16 %v2496
        %v2575 = vunpack.c.l.b16 %v2497
        %v2576 = vunpack.c.h.b16 %v2497
        %v2577 = vunpack.c.l.b16 %v2498
        %v2578 = vunpack.c.h.b16 %v2498
        %v2579 = vunpack.c.l.b16 %v2499
        %v2580 = vunpack.c.h.b16 %v2499
        %v2581 = vunpack.c.l.b16 %v2500
        %v2582 = vunpack.c.h.b16 %v2500
        %v2583 = vunpack.c.l.b16 %v2501
        %v2584 = vunpack.c.h.b16 %v2501
        %v2585 = vunpack.c.l.b16 %v2502
        %v2586 = vunpack.c.h.b16 %v2502
        %v2587 = vunpack.c.l.b16 %v2503
        %v2588 = vunpack.c.h.b16 %v2503
        %v2589 = vunpack.c.l.b16 %v2504
        %v2590 = vunpack.c.h.b16 %v2504
        %v2591 = vunpack.c.l.b16 %v2505
        %v2592 = vunpack.c.h.b16 %v2505
        %v2593 = vunpack.c.l.b16 %v2506
        %v2594 = vunpack.c.h.b16 %v2506
        %v2595 = vunpack.c.l.b16 %v2507
        %v2596 = vunpack.c.h.b16 %v2507
        %v2597 = vunpack.c.l.b16 %v2508
        %v2598 = vunpack.c.h.b16 %v2508
        %v2599 = vunpack.c.l.b16 %v2509
        %v2600 = vunpack.c.h.b16 %v2509
        %v2601 = vunpack.c.l.b16 %v2510
        %v2602 = vunpack.c.h.b16 %v2510
        %v2603 = vunpack.c.l.b16 %v2511
        %v2604 = vunpack.c.h.b16 %v2511
        %v2605 = vunpack.c.l.b16 %v2512
        %v2606 = vunpack.c.h.b16 %v2512
        %v2607 = vunpack.c.l.b16 %v2513
        %v2608 = vunpack.c.h.b16 %v2513
        %v2609 = vunpack.c.l.b16 %v2514
        %v2610 = vunpack.c.h.b16 %v2514
        %v2611 = vunpack.c.l.b16 %v2515
        %v2612 = vunpack.c.h.b16 %v2515
        %v2613 = vunpack.c.l.b16 %v2516
        %v2614 = vunpack.c.h.b16 %v2516
        %v2615 = vunpack.c.l.b16 %v2517
        %v2616 = vunpack.c.h.b16 %v2517
        %v2617 = vunpack.c.l.b16 %v2518
        %v2618 = vunpack.c.h.b16 %v2518
        %v2619 = vunpack.c.l.b16 %v2519
        %v2620 = vunpack.c.h.b16 %v2519
        %v2621 = vunpack.c.l.b16 %v2520
        %v2622 = vunpack.c.h.b16 %v2520
        %v2623 = vunpack.c.l.b16 %v2521
        %v2624 = vunpack.c.h.b16 %v2521
        %v2625 = vpack.c.b16 %v2563, %v2561
        %v2626 = vpack.c.b16 %v2564, %v2562
        %v2627 = vpack.c.b16 %v2567, %v2565
        %v2628 = vpack.c.b16 %v2568, %v2566
        %v2629 = vpack.c.b16 %v2571, %v2569
        %v2630 = vpack.c.b16 %v2572, %v2570
        %v2631 = vpack.c.b16 %v2575, %v2573
        %v2632 = vpack.c.b16 %v2576, %v2574
        %v2633 = vpack.c.b16 %v2579, %v2577
        %v2634 = vpack.c.b16 %v2580, %v2578
        %v2635 = vpack.c.b16 %v2583, %v2581
        %v2636 = vpack.c.b16 %v2584, %v2582
        %v2637 = vpack.c.b16 %v2587, %v2585
        %v2638 = vpack.c.b16 %v2588, %v2586
        %v2639 = vpack.c.b16 %v2591, %v2589
        %v2640 = vpack.c.b16 %v2592, %v2590
        %v2641 = vpack.c.b16 %v2595, %v2593
        %v2642 = vpack.c.b16 %v2596, %v2594
        %v2643 = vpack.c.b16 %v2599, %v2597
        %v2644 = vpack.c.b16 %v2600, %v2598
        %v2645 = vpack.c.b16 %v2603, %v2601
        %v2646 = vpack.c.b16 %v2604, %v2602
        %v2647 = vpack.c.b16 %v2607, %v2605
        %v2648 = vpack.c.b16 %v2608, %v2606
        %v2649 = vpack.c.b16 %v2611, %v2609
        %v2650 = vpack.c.b16 %v2612, %v2610
        %v2651 = vpack.c.b16 %v2615, %v2613
        %v2652 = vpack.c.b16 %v2616, %v2614
        %v2653 = vpack.c.b16 %v2619, %v2617
        %v2654 = vpack.c.b16 %v2620, %v2618
        %v2655 = vpack.c.b16 %v2623, %v2621
        %v2656 = vpack.c.b16 %v2624, %v2622
        %2689 = vmatpush.bf16.msra.mxu0 %v2639
        %2690 = vmatpush.bf16.msra.mxu0 %v2637
        %2691 = vmatpush.bf16.msra.mxu0 %v2635
        %2692 = vmatpush.bf16.msra.mxu0 %v2633
        %2693 = vmatpush.bf16.msra.mxu0 %v2631
        %2694 = vmatpush.bf16.msra.mxu0 %v2629
        %2695 = vmatpush.bf16.msra.mxu0 %v2627
        %2696 = vmatpush.bf16.msra.mxu0 %v2625
        %2697 = vmatmul.bf16.gmra.mxu0 %v2473
        %v2698 = vpop.f32.mrf.mxu0
        %v2699 = vadd.f32 %v2525, %v2698
        %v2700 = vpop.f32.mrf.mxu0
        %v2701 = vadd.f32 %v2525, %v2700
        %2702 = vmatmul.bf16.gmra.mxu0 %v2475
        %v2703 = vpop.f32.mrf.mxu0
        %v2704 = vadd.f32 %v2525, %v2703
        %v2705 = vpop.f32.mrf.mxu0
        %v2706 = vadd.f32 %v2525, %v2705
        %2707 = vmatmul.bf16.gmra.mxu0 %v2477
        %v2708 = vpop.f32.mrf.mxu0
        %v2709 = vadd.f32 %v2525, %v2708
        %v2710 = vpop.f32.mrf.mxu0
        %v2711 = vadd.f32 %v2525, %v2710
        %2712 = vmatmul.bf16.gmra.mxu0 %v2479
        %v2713 = vpop.f32.mrf.mxu0
        %v2714 = vadd.f32 %v2525, %v2713
        %v2715 = vpop.f32.mrf.mxu0
        %v2716 = vadd.f32 %v2525, %v2715
        %2717 = vmatmul.bf16.gmra.mxu0 %v2481
        %v2718 = vpop.f32.mrf.mxu0
        %v2719 = vadd.f32 %v2525, %v2718
        %v2720 = vpop.f32.mrf.mxu0
        %v2721 = vadd.f32 %v2525, %v2720
        %2722 = vmatmul.bf16.gmra.mxu0 %v2483
        %v2723 = vpop.f32.mrf.mxu0
        %v2724 = vadd.f32 %v2525, %v2723
        %v2725 = vpop.f32.mrf.mxu0
        %v2726 = vadd.f32 %v2525, %v2725
        %2727 = vmatmul.bf16.gmra.mxu0 %v2485
        %v2728 = vpop.f32.mrf.mxu0
        %v2729 = vadd.f32 %v2525, %v2728
        %v2730 = vpop.f32.mrf.mxu0
        %v2731 = vadd.f32 %v2525, %v2730
        %2732 = vmatmul.bf16.gmra.mxu0 %v2487
        %v2733 = vpop.f32.mrf.mxu0
        %v2734 = vadd.f32 %v2525, %v2733
        %v2735 = vpop.f32.mrf.mxu0
        %v2736 = vadd.f32 %v2525, %v2735
        %2737 = vdwg.mxu0
        %2738 = vmatpush.bf16.msra.mxu0 %v2655
        %2739 = vmatpush.bf16.msra.mxu0 %v2653
        %2740 = vmatpush.bf16.msra.mxu0 %v2651
        %2741 = vmatpush.bf16.msra.mxu0 %v2649
        %2742 = vmatpush.bf16.msra.mxu0 %v2647
        %2743 = vmatpush.bf16.msra.mxu0 %v2645
        %2744 = vmatpush.bf16.msra.mxu0 %v2643
        %2745 = vmatpush.bf16.msra.mxu0 %v2641
        %2746 = vmatmul.bf16.gmra.mxu0 %v2474
        %v2747 = vpop.f32.mrf.mxu0
        %v2748 = vadd.f32 %v2699, %v2747
        %v2749 = vpop.f32.mrf.mxu0
        %v2750 = vadd.f32 %v2701, %v2749
        %2751 = vmatmul.bf16.gmra.mxu0 %v2476
        %v2752 = vpop.f32.mrf.mxu0
        %v2753 = vadd.f32 %v2704, %v2752
        %v2754 = vpop.f32.mrf.mxu0
        %v2755 = vadd.f32 %v2706, %v2754
        %2756 = vmatmul.bf16.gmra.mxu0 %v2478
        %v2757 = vpop.f32.mrf.mxu0
        %v2758 = vadd.f32 %v2709, %v2757
        %v2759 = vpop.f32.mrf.mxu0
        %v2760 = vadd.f32 %v2711, %v2759
        %2761 = vmatmul.bf16.gmra.mxu0 %v2480
        %v2762 = vpop.f32.mrf.mxu0
        %v2763 = vadd.f32 %v2714, %v2762
        %v2764 = vpop.f32.mrf.mxu0
        %v2765 = vadd.f32 %v2716, %v2764
        %2766 = vmatmul.bf16.gmra.mxu0 %v2482
        %v2767 = vpop.f32.mrf.mxu0
        %v2768 = vadd.f32 %v2719, %v2767
        %v2769 = vpop.f32.mrf.mxu0
        %v2770 = vadd.f32 %v2721, %v2769
        %2771 = vmatmul.bf16.gmra.mxu0 %v2484
        %v2772 = vpop.f32.mrf.mxu0
        %v2773 = vadd.f32 %v2724, %v2772
        %v2774 = vpop.f32.mrf.mxu0
        %v2775 = vadd.f32 %v2726, %v2774
        %2776 = vmatmul.bf16.gmra.mxu0 %v2486
        %v2777 = vpop.f32.mrf.mxu0
        %v2778 = vadd.f32 %v2729, %v2777
        %v2779 = vpop.f32.mrf.mxu0
        %v2780 = vadd.f32 %v2731, %v2779
        %2781 = vmatmul.bf16.gmra.mxu0 %v2488
        %v2782 = vpop.f32.mrf.mxu0
        %v2783 = vadd.f32 %v2734, %v2782
        %v2784 = vpop.f32.mrf.mxu0
        %v2785 = vadd.f32 %v2736, %v2784
        %2786 = vdwg.mxu0
        %2787 = vmatpush.bf16.msra.mxu0 %v2640
        %2788 = vmatpush.bf16.msra.mxu0 %v2638
        %2789 = vmatpush.bf16.msra.mxu0 %v2636
        %2790 = vmatpush.bf16.msra.mxu0 %v2634
        %2791 = vmatpush.bf16.msra.mxu0 %v2632
        %2792 = vmatpush.bf16.msra.mxu0 %v2630
        %2793 = vmatpush.bf16.msra.mxu0 %v2628
        %2794 = vmatpush.bf16.msra.mxu0 %v2626
        %2795 = vmatmul.bf16.gmra.mxu0 %v2473
        %v2796 = vpop.f32.mrf.mxu0
        %v2797 = vadd.f32 %v2526, %v2796
        %v2798 = vpop.f32.mrf.mxu0
        %v2799 = vadd.f32 %v2526, %v2798
        %2800 = vmatmul.bf16.gmra.mxu0 %v2475
        %v2801 = vpop.f32.mrf.mxu0
        %v2802 = vadd.f32 %v2526, %v2801
        %v2803 = vpop.f32.mrf.mxu0
        %v2804 = vadd.f32 %v2526, %v2803
        %2805 = vmatmul.bf16.gmra.mxu0 %v2477
        %v2806 = vpop.f32.mrf.mxu0
        %v2807 = vadd.f32 %v2526, %v2806
        %v2808 = vpop.f32.mrf.mxu0
        %v2809 = vadd.f32 %v2526, %v2808
        %2810 = vmatmul.bf16.gmra.mxu0 %v2479
        %v2811 = vpop.f32.mrf.mxu0
        %v2812 = vadd.f32 %v2526, %v2811
        %v2813 = vpop.f32.mrf.mxu0
        %v2814 = vadd.f32 %v2526, %v2813
        %2815 = vmatmul.bf16.gmra.mxu0 %v2481
        %v2816 = vpop.f32.mrf.mxu0
        %v2817 = vadd.f32 %v2526, %v2816
        %v2818 = vpop.f32.mrf.mxu0
        %v2819 = vadd.f32 %v2526, %v2818
        %2820 = vmatmul.bf16.gmra.mxu0 %v2483
        %v2821 = vpop.f32.mrf.mxu0
        %v2822 = vadd.f32 %v2526, %v2821
        %v2823 = vpop.f32.mrf.mxu0
        %v2824 = vadd.f32 %v2526, %v2823
        %2825 = vmatmul.bf16.gmra.mxu0 %v2485
        %v2826 = vpop.f32.mrf.mxu0
        %v2827 = vadd.f32 %v2526, %v2826
        %v2828 = vpop.f32.mrf.mxu0
        %v2829 = vadd.f32 %v2526, %v2828
        %2830 = vmatmul.bf16.gmra.mxu0 %v2487
        %v2831 = vpop.f32.mrf.mxu0
        %v2832 = vadd.f32 %v2526, %v2831
        %v2833 = vpop.f32.mrf.mxu0
        %v2834 = vadd.f32 %v2526, %v2833
        %2835 = vdwg.mxu0
        %2836 = vmatpush.bf16.msra.mxu0 %v2656
        %2837 = vmatpush.bf16.msra.mxu0 %v2654
        %2838 = vmatpush.bf16.msra.mxu0 %v2652
        %2839 = vmatpush.bf16.msra.mxu0 %v2650
        %2840 = vmatpush.bf16.msra.mxu0 %v2648
        %2841 = vmatpush.bf16.msra.mxu0 %v2646
        %2842 = vmatpush.bf16.msra.mxu0 %v2644
        %2843 = vmatpush.bf16.msra.mxu0 %v2642
        %2844 = vmatmul.bf16.gmra.mxu0 %v2474
        %v2845 = vpop.f32.mrf.mxu0
        %v2846 = vadd.f32 %v2797, %v2845
        %v2847 = vpop.f32.mrf.mxu0
        %v2848 = vadd.f32 %v2799, %v2847
        %2849 = vmatmul.bf16.gmra.mxu0 %v2476
        %v2850 = vpop.f32.mrf.mxu0
        %v2851 = vadd.f32 %v2802, %v2850
        %v2852 = vpop.f32.mrf.mxu0
        %v2853 = vadd.f32 %v2804, %v2852
        %2854 = vmatmul.bf16.gmra.mxu0 %v2478
        %v2855 = vpop.f32.mrf.mxu0
        %v2856 = vadd.f32 %v2807, %v2855
        %v2857 = vpop.f32.mrf.mxu0
        %v2858 = vadd.f32 %v2809, %v2857
        %2859 = vmatmul.bf16.gmra.mxu0 %v2480
        %v2860 = vpop.f32.mrf.mxu0
        %v2861 = vadd.f32 %v2812, %v2860
        %v2862 = vpop.f32.mrf.mxu0
        %v2863 = vadd.f32 %v2814, %v2862
        %2864 = vmatmul.bf16.gmra.mxu0 %v2482
        %v2865 = vpop.f32.mrf.mxu0
        %v2866 = vadd.f32 %v2817, %v2865
        %v2867 = vpop.f32.mrf.mxu0
        %v2868 = vadd.f32 %v2819, %v2867
        %2869 = vmatmul.bf16.gmra.mxu0 %v2484
        %v2870 = vpop.f32.mrf.mxu0
        %v2871 = vadd.f32 %v2822, %v2870
        %v2872 = vpop.f32.mrf.mxu0
        %v2873 = vadd.f32 %v2824, %v2872
        %2874 = vmatmul.bf16.gmra.mxu0 %v2486
        %v2875 = vpop.f32.mrf.mxu0
        %v2876 = vadd.f32 %v2827, %v2875
        %v2877 = vpop.f32.mrf.mxu0
        %v2878 = vadd.f32 %v2829, %v2877
        %2879 = vmatmul.bf16.gmra.mxu0 %v2488
        %v2880 = vpop.f32.mrf.mxu0
        %v2881 = vadd.f32 %v2832, %v2880
        %v2882 = vpop.f32.mrf.mxu0
        %v2883 = vadd.f32 %v2834, %v2882
        %2884 = vdwg.mxu0
        %v2885 = vadd.f32 %v2748, %v2441
        %v2886 = vadd.f32 %v2846, %v2442
        %v2887 = vadd.f32 %v2750, %v2443
        %v2888 = vadd.f32 %v2848, %v2444
        %v2889 = vadd.f32 %v2753, %v2445
        %v2890 = vadd.f32 %v2851, %v2446
        %v2891 = vadd.f32 %v2755, %v2447
        %v2892 = vadd.f32 %v2853, %v2448
        %v2893 = vadd.f32 %v2758, %v2449
        %v2894 = vadd.f32 %v2856, %v2450
        %v2895 = vadd.f32 %v2760, %v2451
        %v2896 = vadd.f32 %v2858, %v2452
        %v2897 = vadd.f32 %v2763, %v2453
        %v2898 = vadd.f32 %v2861, %v2454
        %v2899 = vadd.f32 %v2765, %v2455
        %v2900 = vadd.f32 %v2863, %v2456
        %v2901 = vadd.f32 %v2768, %v2457
        %v2902 = vadd.f32 %v2866, %v2458
        %v2903 = vadd.f32 %v2770, %v2459
        %v2904 = vadd.f32 %v2868, %v2460
        %v2905 = vadd.f32 %v2773, %v2461
        %v2906 = vadd.f32 %v2871, %v2462
        %v2907 = vadd.f32 %v2775, %v2463
        %v2908 = vadd.f32 %v2873, %v2464
        %v2909 = vadd.f32 %v2778, %v2465
        %v2910 = vadd.f32 %v2876, %v2466
        %v2911 = vadd.f32 %v2780, %v2467
        %v2912 = vadd.f32 %v2878, %v2468
        %v2913 = vadd.f32 %v2783, %v2469
        %v2914 = vadd.f32 %v2881, %v2470
        %v2915 = vadd.f32 %v2785, %v2471
        %v2916 = vadd.f32 %v2883, %v2472
        %v2917 = vmax.f32 %v2885, 0.0
        %v2918 = vmax.f32 %v2886, 0.0
        %v2919 = vmax.f32 %v2887, 0.0
        %v2920 = vmax.f32 %v2888, 0.0
        %v2921 = vmax.f32 %v2889, 0.0
        %v2922 = vmax.f32 %v2890, 0.0
        %v2923 = vmax.f32 %v2891, 0.0
        %v2924 = vmax.f32 %v2892, 0.0
        %v2925 = vmax.f32 %v2893, 0.0
        %v2926 = vmax.f32 %v2894, 0.0
        %v2927 = vmax.f32 %v2895, 0.0
        %v2928 = vmax.f32 %v2896, 0.0
        %v2929 = vmax.f32 %v2897, 0.0
        %v2930 = vmax.f32 %v2898, 0.0
        %v2931 = vmax.f32 %v2899, 0.0
        %v2932 = vmax.f32 %v2900, 0.0
        %v2933 = vmax.f32 %v2901, 0.0
        %v2934 = vmax.f32 %v2902, 0.0
        %v2935 = vmax.f32 %v2903, 0.0
        %v2936 = vmax.f32 %v2904, 0.0
        %v2937 = vmax.f32 %v2905, 0.0
        %v2938 = vmax.f32 %v2906, 0.0
        %v2939 = vmax.f32 %v2907, 0.0
        %v2940 = vmax.f32 %v2908, 0.0
        %v2941 = vmax.f32 %v2909, 0.0
        %v2942 = vmax.f32 %v2910, 0.0
        %v2943 = vmax.f32 %v2911, 0.0
        %v2944 = vmax.f32 %v2912, 0.0
        %v2945 = vmax.f32 %v2913, 0.0
        %v2946 = vmax.f32 %v2914, 0.0
        %v2947 = vmax.f32 %v2915, 0.0
        %v2948 = vmax.f32 %v2916, 0.0
        %2949 = vst [vmem:[#allocation2] sm:$0xff] %v2917
        %2950 = vst [vmem:[#allocation2 + $0x8] sm:$0xff] %v2918
        %2951 = vst [vmem:[#allocation2 + $0x10] sm:$0xff] %v2919
        %2952 = vst [vmem:[#allocation2 + $0x18] sm:$0xff] %v2920
        %2953 = vst [vmem:[#allocation2 + $0x20] sm:$0xff] %v2921
        %2954 = vst [vmem:[#allocation2 + $0x28] sm:$0xff] %v2922
        %2955 = vst [vmem:[#allocation2 + $0x30] sm:$0xff] %v2923
        %2956 = vst [vmem:[#allocation2 + $0x38] sm:$0xff] %v2924
        %2957 = vst [vmem:[#allocation2 + $0x40] sm:$0xff] %v2925
        %2958 = vst [vmem:[#allocation2 + $0x48] sm:$0xff] %v2926
        %2959 = vst [vmem:[#allocation2 + $0x50] sm:$0xff] %v2927
        %2960 = vst [vmem:[#allocation2 + $0x58] sm:$0xff] %v2928
        %2961 = vst [vmem:[#allocation2 + $0x60] sm:$0xff] %v2929
        %2962 = vst [vmem:[#allocation2 + $0x68] sm:$0xff] %v2930
        %2963 = vst [vmem:[#allocation2 + $0x70] sm:$0xff] %v2931
        %2964 = vst [vmem:[#allocation2 + $0x78] sm:$0xff] %v2932
        %2965 = vst [vmem:[#allocation2 + $0x80] sm:$0xff] %v2933
        %2966 = vst [vmem:[#allocation2 + $0x88] sm:$0xff] %v2934
        %2967 = vst [vmem:[#allocation2 + $0x90] sm:$0xff] %v2935
        %2968 = vst [vmem:[#allocation2 + $0x98] sm:$0xff] %v2936
        %2969 = vst [vmem:[#allocation2 + $0xa0] sm:$0xff] %v2937
        %2970 = vst [vmem:[#allocation2 + $0xa8] sm:$0xff] %v2938
        %2971 = vst [vmem:[#allocation2 + $0xb0] sm:$0xff] %v2939
        %2972 = vst [vmem:[#allocation2 + $0xb8] sm:$0xff] %v2940
        %2973 = vst [vmem:[#allocation2 + $0xc0] sm:$0xff] %v2941
        %2974 = vst [vmem:[#allocation2 + $0xc8] sm:$0xff] %v2942
        %2975 = vst [vmem:[#allocation2 + $0xd0] sm:$0xff] %v2943
        %2976 = vst [vmem:[#allocation2 + $0xd8] sm:$0xff] %v2944
        %2977 = vst [vmem:[#allocation2 + $0xe0] sm:$0xff] %v2945
        %2978 = vst [vmem:[#allocation2 + $0xe8] sm:$0xff] %v2946
        %2979 = vst [vmem:[#allocation2 + $0xf0] sm:$0xff] %v2947
        %2980 = vst [vmem:[#allocation2 + $0xf8] sm:$0xff] %v2948
        %v2981 = vld [vmem:[#allocation2] sm:$0xff]
        %v2982 = vld [vmem:[#allocation2 + $0x8] sm:$0xff]
        %v2983 = vld [vmem:[#allocation2 + $0x10] sm:$0xff]
        %v2984 = vld [vmem:[#allocation2 + $0x18] sm:$0xff]
        %v2985 = vld [vmem:[#allocation2 + $0x20] sm:$0xff]
        %v2986 = vld [vmem:[#allocation2 + $0x28] sm:$0xff]
        %v2987 = vld [vmem:[#allocation2 + $0x30] sm:$0xff]
        %v2988 = vld [vmem:[#allocation2 + $0x38] sm:$0xff]
        %v2989 = vld [vmem:[#allocation2 + $0x40] sm:$0xff]
        %v2990 = vld [vmem:[#allocation2 + $0x48] sm:$0xff]
        %v2991 = vld [vmem:[#allocation2 + $0x50] sm:$0xff]
        %v2992 = vld [vmem:[#allocation2 + $0x58] sm:$0xff]
        %v2993 = vld [vmem:[#allocation2 + $0x60] sm:$0xff]
        %v2994 = vld [vmem:[#allocation2 + $0x68] sm:$0xff]
        %v2995 = vld [vmem:[#allocation2 + $0x70] sm:$0xff]
        %v2996 = vld [vmem:[#allocation2 + $0x78] sm:$0xff]
        %v2997 = vld [vmem:[#allocation2 + $0x80] sm:$0xff]
        %v2998 = vld [vmem:[#allocation2 + $0x88] sm:$0xff]
        %v2999 = vld [vmem:[#allocation2 + $0x90] sm:$0xff]
        %v3000 = vld [vmem:[#allocation2 + $0x98] sm:$0xff]
        %v3001 = vld [vmem:[#allocation2 + $0xa0] sm:$0xff]
        %v3002 = vld [vmem:[#allocation2 + $0xa8] sm:$0xff]
        %v3003 = vld [vmem:[#allocation2 + $0xb0] sm:$0xff]
        %v3004 = vld [vmem:[#allocation2 + $0xb8] sm:$0xff]
        %v3005 = vld [vmem:[#allocation2 + $0xc0] sm:$0xff]
        %v3006 = vld [vmem:[#allocation2 + $0xc8] sm:$0xff]
        %v3007 = vld [vmem:[#allocation2 + $0xd0] sm:$0xff]
        %v3008 = vld [vmem:[#allocation2 + $0xd8] sm:$0xff]
        %v3009 = vld [vmem:[#allocation2 + $0xe0] sm:$0xff]
        %v3010 = vld [vmem:[#allocation2 + $0xe8] sm:$0xff]
        %v3011 = vld [vmem:[#allocation2 + $0xf0] sm:$0xff]
        %v3012 = vld [vmem:[#allocation2 + $0xf8] sm:$0xff]
        %v3013 = vpack.c.bf16 %v2983, %v2981
        %v3014 = vpack.c.bf16 %v2984, %v2982
        %v3015 = vpack.c.bf16 %v2987, %v2985
        %v3016 = vpack.c.bf16 %v2988, %v2986
        %v3017 = vpack.c.bf16 %v2991, %v2989
        %v3018 = vpack.c.bf16 %v2992, %v2990
        %v3019 = vpack.c.bf16 %v2995, %v2993
        %v3020 = vpack.c.bf16 %v2996, %v2994
        %v3021 = vpack.c.bf16 %v2999, %v2997
        %v3022 = vpack.c.bf16 %v3000, %v2998
        %v3023 = vpack.c.bf16 %v3003, %v3001
        %v3024 = vpack.c.bf16 %v3004, %v3002
        %v3025 = vpack.c.bf16 %v3007, %v3005
        %v3026 = vpack.c.bf16 %v3008, %v3006
        %v3027 = vpack.c.bf16 %v3011, %v3009
        %v3028 = vpack.c.bf16 %v3012, %v3010
        %s3029 = scalar_lea.vmem [#allocation10], 1024
        %v3030 = vld [vmem:[%s3029] sm:$0xff]
        %v3031 = vld [vmem:[%s3029 + $0x8] sm:$0xff]
        %v3032 = vld [vmem:[%s3029 + $0x10] sm:$0xff]
        %v3033 = vld [vmem:[%s3029 + $0x18] sm:$0xff]
        %v3034 = vld [vmem:[%s3029 + $0x20] sm:$0xff]
        %v3035 = vld [vmem:[%s3029 + $0x28] sm:$0xff]
        %v3036 = vld [vmem:[%s3029 + $0x30] sm:$0xff]
        %v3037 = vld [vmem:[%s3029 + $0x38] sm:$0xff]
        %v3038 = vld [vmem:[%s3029 + $0x40] sm:$0xff]
        %v3039 = vld [vmem:[%s3029 + $0x48] sm:$0xff]
        %v3040 = vld [vmem:[%s3029 + $0x50] sm:$0xff]
        %v3041 = vld [vmem:[%s3029 + $0x58] sm:$0xff]
        %v3042 = vld [vmem:[%s3029 + $0x60] sm:$0xff]
        %v3043 = vld [vmem:[%s3029 + $0x68] sm:$0xff]
        %v3044 = vld [vmem:[%s3029 + $0x70] sm:$0xff]
        %v3045 = vld [vmem:[%s3029 + $0x78] sm:$0xff]
        %v3046 = vld [vmem:[%s3029 + $0x80] sm:$0xff]
        %v3047 = vld [vmem:[%s3029 + $0x88] sm:$0xff]
        %v3048 = vld [vmem:[%s3029 + $0x90] sm:$0xff]
        %v3049 = vld [vmem:[%s3029 + $0x98] sm:$0xff]
        %v3050 = vld [vmem:[%s3029 + $0xa0] sm:$0xff]
        %v3051 = vld [vmem:[%s3029 + $0xa8] sm:$0xff]
        %v3052 = vld [vmem:[%s3029 + $0xb0] sm:$0xff]
        %v3053 = vld [vmem:[%s3029 + $0xb8] sm:$0xff]
        %v3054 = vld [vmem:[%s3029 + $0xc0] sm:$0xff]
        %v3055 = vld [vmem:[%s3029 + $0xc8] sm:$0xff]
        %v3056 = vld [vmem:[%s3029 + $0xd0] sm:$0xff]
        %v3057 = vld [vmem:[%s3029 + $0xd8] sm:$0xff]
        %v3058 = vld [vmem:[%s3029 + $0xe0] sm:$0xff]
        %v3059 = vld [vmem:[%s3029 + $0xe8] sm:$0xff]
        %v3060 = vld [vmem:[%s3029 + $0xf0] sm:$0xff]
        %v3061 = vld [vmem:[%s3029 + $0xf8] sm:$0xff]
        %s3062 = scalar_lea.vmem [#allocation12], 8
        %v3063 = vld [vmem:[%s3062] sm:$0x3]
        %v3065 = vperm.slane %v3063, 0
        %v3066 = vperm.slane %v3063, 1
        %v3101 = vunpack.c.l.b16 %v3030
        %v3102 = vunpack.c.h.b16 %v3030
        %v3103 = vunpack.c.l.b16 %v3031
        %v3104 = vunpack.c.h.b16 %v3031
        %v3105 = vunpack.c.l.b16 %v3032
        %v3106 = vunpack.c.h.b16 %v3032
        %v3107 = vunpack.c.l.b16 %v3033
        %v3108 = vunpack.c.h.b16 %v3033
        %v3109 = vunpack.c.l.b16 %v3034
        %v3110 = vunpack.c.h.b16 %v3034
        %v3111 = vunpack.c.l.b16 %v3035
        %v3112 = vunpack.c.h.b16 %v3035
        %v3113 = vunpack.c.l.b16 %v3036
        %v3114 = vunpack.c.h.b16 %v3036
        %v3115 = vunpack.c.l.b16 %v3037
        %v3116 = vunpack.c.h.b16 %v3037
        %v3117 = vunpack.c.l.b16 %v3038
        %v3118 = vunpack.c.h.b16 %v3038
        %v3119 = vunpack.c.l.b16 %v3039
        %v3120 = vunpack.c.h.b16 %v3039
        %v3121 = vunpack.c.l.b16 %v3040
        %v3122 = vunpack.c.h.b16 %v3040
        %v3123 = vunpack.c.l.b16 %v3041
        %v3124 = vunpack.c.h.b16 %v3041
        %v3125 = vunpack.c.l.b16 %v3042
        %v3126 = vunpack.c.h.b16 %v3042
        %v3127 = vunpack.c.l.b16 %v3043
        %v3128 = vunpack.c.h.b16 %v3043
        %v3129 = vunpack.c.l.b16 %v3044
        %v3130 = vunpack.c.h.b16 %v3044
        %v3131 = vunpack.c.l.b16 %v3045
        %v3132 = vunpack.c.h.b16 %v3045
        %v3133 = vunpack.c.l.b16 %v3046
        %v3134 = vunpack.c.h.b16 %v3046
        %v3135 = vunpack.c.l.b16 %v3047
        %v3136 = vunpack.c.h.b16 %v3047
        %v3137 = vunpack.c.l.b16 %v3048
        %v3138 = vunpack.c.h.b16 %v3048
        %v3139 = vunpack.c.l.b16 %v3049
        %v3140 = vunpack.c.h.b16 %v3049
        %v3141 = vunpack.c.l.b16 %v3050
        %v3142 = vunpack.c.h.b16 %v3050
        %v3143 = vunpack.c.l.b16 %v3051
        %v3144 = vunpack.c.h.b16 %v3051
        %v3145 = vunpack.c.l.b16 %v3052
        %v3146 = vunpack.c.h.b16 %v3052
        %v3147 = vunpack.c.l.b16 %v3053
        %v3148 = vunpack.c.h.b16 %v3053
        %v3149 = vunpack.c.l.b16 %v3054
        %v3150 = vunpack.c.h.b16 %v3054
        %v3151 = vunpack.c.l.b16 %v3055
        %v3152 = vunpack.c.h.b16 %v3055
        %v3153 = vunpack.c.l.b16 %v3056
        %v3154 = vunpack.c.h.b16 %v3056
        %v3155 = vunpack.c.l.b16 %v3057
        %v3156 = vunpack.c.h.b16 %v3057
        %v3157 = vunpack.c.l.b16 %v3058
        %v3158 = vunpack.c.h.b16 %v3058
        %v3159 = vunpack.c.l.b16 %v3059
        %v3160 = vunpack.c.h.b16 %v3059
        %v3161 = vunpack.c.l.b16 %v3060
        %v3162 = vunpack.c.h.b16 %v3060
        %v3163 = vunpack.c.l.b16 %v3061
        %v3164 = vunpack.c.h.b16 %v3061
        %v3165 = vpack.c.b16 %v3103, %v3101
        %v3166 = vpack.c.b16 %v3104, %v3102
        %v3167 = vpack.c.b16 %v3107, %v3105
        %v3168 = vpack.c.b16 %v3108, %v3106
        %v3169 = vpack.c.b16 %v3111, %v3109
        %v3170 = vpack.c.b16 %v3112, %v3110
        %v3171 = vpack.c.b16 %v3115, %v3113
        %v3172 = vpack.c.b16 %v3116, %v3114
        %v3173 = vpack.c.b16 %v3119, %v3117
        %v3174 = vpack.c.b16 %v3120, %v3118
        %v3175 = vpack.c.b16 %v3123, %v3121
        %v3176 = vpack.c.b16 %v3124, %v3122
        %v3177 = vpack.c.b16 %v3127, %v3125
        %v3178 = vpack.c.b16 %v3128, %v3126
        %v3179 = vpack.c.b16 %v3131, %v3129
        %v3180 = vpack.c.b16 %v3132, %v3130
        %v3181 = vpack.c.b16 %v3135, %v3133
        %v3182 = vpack.c.b16 %v3136, %v3134
        %v3183 = vpack.c.b16 %v3139, %v3137
        %v3184 = vpack.c.b16 %v3140, %v3138
        %v3185 = vpack.c.b16 %v3143, %v3141
        %v3186 = vpack.c.b16 %v3144, %v3142
        %v3187 = vpack.c.b16 %v3147, %v3145
        %v3188 = vpack.c.b16 %v3148, %v3146
        %v3189 = vpack.c.b16 %v3151, %v3149
        %v3190 = vpack.c.b16 %v3152, %v3150
        %v3191 = vpack.c.b16 %v3155, %v3153
        %v3192 = vpack.c.b16 %v3156, %v3154
        %v3193 = vpack.c.b16 %v3159, %v3157
        %v3194 = vpack.c.b16 %v3160, %v3158
        %v3195 = vpack.c.b16 %v3163, %v3161
        %v3196 = vpack.c.b16 %v3164, %v3162
        %3229 = vmatpush.bf16.msra.mxu0 %v3179
        %3230 = vmatpush.bf16.msra.mxu0 %v3177
        %3231 = vmatpush.bf16.msra.mxu0 %v3175
        %3232 = vmatpush.bf16.msra.mxu0 %v3173
        %3233 = vmatpush.bf16.msra.mxu0 %v3171
        %3234 = vmatpush.bf16.msra.mxu0 %v3169
        %3235 = vmatpush.bf16.msra.mxu0 %v3167
        %3236 = vmatpush.bf16.msra.mxu0 %v3165
        %3237 = vmatmul.bf16.gmra.mxu0 %v3013
        %v3238 = vpop.f32.mrf.mxu0
        %v3239 = vadd.f32 %v3065, %v3238
        %v3240 = vpop.f32.mrf.mxu0
        %v3241 = vadd.f32 %v3065, %v3240
        %3242 = vmatmul.bf16.gmra.mxu0 %v3015
        %v3243 = vpop.f32.mrf.mxu0
        %v3244 = vadd.f32 %v3065, %v3243
        %v3245 = vpop.f32.mrf.mxu0
        %v3246 = vadd.f32 %v3065, %v3245
        %3247 = vmatmul.bf16.gmra.mxu0 %v3017
        %v3248 = vpop.f32.mrf.mxu0
        %v3249 = vadd.f32 %v3065, %v3248
        %v3250 = vpop.f32.mrf.mxu0
        %v3251 = vadd.f32 %v3065, %v3250
        %3252 = vmatmul.bf16.gmra.mxu0 %v3019
        %v3253 = vpop.f32.mrf.mxu0
        %v3254 = vadd.f32 %v3065, %v3253
        %v3255 = vpop.f32.mrf.mxu0
        %v3256 = vadd.f32 %v3065, %v3255
        %3257 = vmatmul.bf16.gmra.mxu0 %v3021
        %v3258 = vpop.f32.mrf.mxu0
        %v3259 = vadd.f32 %v3065, %v3258
        %v3260 = vpop.f32.mrf.mxu0
        %v3261 = vadd.f32 %v3065, %v3260
        %3262 = vmatmul.bf16.gmra.mxu0 %v3023
        %v3263 = vpop.f32.mrf.mxu0
        %v3264 = vadd.f32 %v3065, %v3263
        %v3265 = vpop.f32.mrf.mxu0
        %v3266 = vadd.f32 %v3065, %v3265
        %3267 = vmatmul.bf16.gmra.mxu0 %v3025
        %v3268 = vpop.f32.mrf.mxu0
        %v3269 = vadd.f32 %v3065, %v3268
        %v3270 = vpop.f32.mrf.mxu0
        %v3271 = vadd.f32 %v3065, %v3270
        %3272 = vmatmul.bf16.gmra.mxu0 %v3027
        %v3273 = vpop.f32.mrf.mxu0
        %v3274 = vadd.f32 %v3065, %v3273
        %v3275 = vpop.f32.mrf.mxu0
        %v3276 = vadd.f32 %v3065, %v3275
        %3277 = vdwg.mxu0
        %3278 = vmatpush.bf16.msra.mxu0 %v3195
        %3279 = vmatpush.bf16.msra.mxu0 %v3193
        %3280 = vmatpush.bf16.msra.mxu0 %v3191
        %3281 = vmatpush.bf16.msra.mxu0 %v3189
        %3282 = vmatpush.bf16.msra.mxu0 %v3187
        %3283 = vmatpush.bf16.msra.mxu0 %v3185
        %3284 = vmatpush.bf16.msra.mxu0 %v3183
        %3285 = vmatpush.bf16.msra.mxu0 %v3181
        %3286 = vmatmul.bf16.gmra.mxu0 %v3014
        %v3287 = vpop.f32.mrf.mxu0
        %v3288 = vadd.f32 %v3239, %v3287
        %v3289 = vpop.f32.mrf.mxu0
        %v3290 = vadd.f32 %v3241, %v3289
        %3291 = vmatmul.bf16.gmra.mxu0 %v3016
        %v3292 = vpop.f32.mrf.mxu0
        %v3293 = vadd.f32 %v3244, %v3292
        %v3294 = vpop.f32.mrf.mxu0
        %v3295 = vadd.f32 %v3246, %v3294
        %3296 = vmatmul.bf16.gmra.mxu0 %v3018
        %v3297 = vpop.f32.mrf.mxu0
        %v3298 = vadd.f32 %v3249, %v3297
        %v3299 = vpop.f32.mrf.mxu0
        %v3300 = vadd.f32 %v3251, %v3299
        %3301 = vmatmul.bf16.gmra.mxu0 %v3020
        %v3302 = vpop.f32.mrf.mxu0
        %v3303 = vadd.f32 %v3254, %v3302
        %v3304 = vpop.f32.mrf.mxu0
        %v3305 = vadd.f32 %v3256, %v3304
        %3306 = vmatmul.bf16.gmra.mxu0 %v3022
        %v3307 = vpop.f32.mrf.mxu0
        %v3308 = vadd.f32 %v3259, %v3307
        %v3309 = vpop.f32.mrf.mxu0
        %v3310 = vadd.f32 %v3261, %v3309
        %3311 = vmatmul.bf16.gmra.mxu0 %v3024
        %v3312 = vpop.f32.mrf.mxu0
        %v3313 = vadd.f32 %v3264, %v3312
        %v3314 = vpop.f32.mrf.mxu0
        %v3315 = vadd.f32 %v3266, %v3314
        %3316 = vmatmul.bf16.gmra.mxu0 %v3026
        %v3317 = vpop.f32.mrf.mxu0
        %v3318 = vadd.f32 %v3269, %v3317
        %v3319 = vpop.f32.mrf.mxu0
        %v3320 = vadd.f32 %v3271, %v3319
        %3321 = vmatmul.bf16.gmra.mxu0 %v3028
        %v3322 = vpop.f32.mrf.mxu0
        %v3323 = vadd.f32 %v3274, %v3322
        %v3324 = vpop.f32.mrf.mxu0
        %v3325 = vadd.f32 %v3276, %v3324
        %3326 = vdwg.mxu0
        %3327 = vmatpush.bf16.msra.mxu0 %v3180
        %3328 = vmatpush.bf16.msra.mxu0 %v3178
        %3329 = vmatpush.bf16.msra.mxu0 %v3176
        %3330 = vmatpush.bf16.msra.mxu0 %v3174
        %3331 = vmatpush.bf16.msra.mxu0 %v3172
        %3332 = vmatpush.bf16.msra.mxu0 %v3170
        %3333 = vmatpush.bf16.msra.mxu0 %v3168
        %3334 = vmatpush.bf16.msra.mxu0 %v3166
        %3335 = vmatmul.bf16.gmra.mxu0 %v3013
        %v3336 = vpop.f32.mrf.mxu0
        %v3337 = vadd.f32 %v3066, %v3336
        %v3338 = vpop.f32.mrf.mxu0
        %v3339 = vadd.f32 %v3066, %v3338
        %3340 = vmatmul.bf16.gmra.mxu0 %v3015
        %v3341 = vpop.f32.mrf.mxu0
        %v3342 = vadd.f32 %v3066, %v3341
        %v3343 = vpop.f32.mrf.mxu0
        %v3344 = vadd.f32 %v3066, %v3343
        %3345 = vmatmul.bf16.gmra.mxu0 %v3017
        %v3346 = vpop.f32.mrf.mxu0
        %v3347 = vadd.f32 %v3066, %v3346
        %v3348 = vpop.f32.mrf.mxu0
        %v3349 = vadd.f32 %v3066, %v3348
        %3350 = vmatmul.bf16.gmra.mxu0 %v3019
        %v3351 = vpop.f32.mrf.mxu0
        %v3352 = vadd.f32 %v3066, %v3351
        %v3353 = vpop.f32.mrf.mxu0
        %v3354 = vadd.f32 %v3066, %v3353
        %3355 = vmatmul.bf16.gmra.mxu0 %v3021
        %v3356 = vpop.f32.mrf.mxu0
        %v3357 = vadd.f32 %v3066, %v3356
        %v3358 = vpop.f32.mrf.mxu0
        %v3359 = vadd.f32 %v3066, %v3358
        %3360 = vmatmul.bf16.gmra.mxu0 %v3023
        %v3361 = vpop.f32.mrf.mxu0
        %v3362 = vadd.f32 %v3066, %v3361
        %v3363 = vpop.f32.mrf.mxu0
        %v3364 = vadd.f32 %v3066, %v3363
        %3365 = vmatmul.bf16.gmra.mxu0 %v3025
        %v3366 = vpop.f32.mrf.mxu0
        %v3367 = vadd.f32 %v3066, %v3366
        %v3368 = vpop.f32.mrf.mxu0
        %v3369 = vadd.f32 %v3066, %v3368
        %3370 = vmatmul.bf16.gmra.mxu0 %v3027
        %v3371 = vpop.f32.mrf.mxu0
        %v3372 = vadd.f32 %v3066, %v3371
        %v3373 = vpop.f32.mrf.mxu0
        %v3374 = vadd.f32 %v3066, %v3373
        %3375 = vdwg.mxu0
        %3376 = vmatpush.bf16.msra.mxu0 %v3196
        %3377 = vmatpush.bf16.msra.mxu0 %v3194
        %3378 = vmatpush.bf16.msra.mxu0 %v3192
        %3379 = vmatpush.bf16.msra.mxu0 %v3190
        %3380 = vmatpush.bf16.msra.mxu0 %v3188
        %3381 = vmatpush.bf16.msra.mxu0 %v3186
        %3382 = vmatpush.bf16.msra.mxu0 %v3184
        %3383 = vmatpush.bf16.msra.mxu0 %v3182
        %3384 = vmatmul.bf16.gmra.mxu0 %v3014
        %v3385 = vpop.f32.mrf.mxu0
        %v3386 = vadd.f32 %v3337, %v3385
        %v3387 = vpop.f32.mrf.mxu0
        %v3388 = vadd.f32 %v3339, %v3387
        %3389 = vmatmul.bf16.gmra.mxu0 %v3016
        %v3390 = vpop.f32.mrf.mxu0
        %v3391 = vadd.f32 %v3342, %v3390
        %v3392 = vpop.f32.mrf.mxu0
        %v3393 = vadd.f32 %v3344, %v3392
        %3394 = vmatmul.bf16.gmra.mxu0 %v3018
        %v3395 = vpop.f32.mrf.mxu0
        %v3396 = vadd.f32 %v3347, %v3395
        %v3397 = vpop.f32.mrf.mxu0
        %v3398 = vadd.f32 %v3349, %v3397
        %3399 = vmatmul.bf16.gmra.mxu0 %v3020
        %v3400 = vpop.f32.mrf.mxu0
        %v3401 = vadd.f32 %v3352, %v3400
        %v3402 = vpop.f32.mrf.mxu0
        %v3403 = vadd.f32 %v3354, %v3402
        %3404 = vmatmul.bf16.gmra.mxu0 %v3022
        %v3405 = vpop.f32.mrf.mxu0
        %v3406 = vadd.f32 %v3357, %v3405
        %v3407 = vpop.f32.mrf.mxu0
        %v3408 = vadd.f32 %v3359, %v3407
        %3409 = vmatmul.bf16.gmra.mxu0 %v3024
        %v3410 = vpop.f32.mrf.mxu0
        %v3411 = vadd.f32 %v3362, %v3410
        %v3412 = vpop.f32.mrf.mxu0
        %v3413 = vadd.f32 %v3364, %v3412
        %3414 = vmatmul.bf16.gmra.mxu0 %v3026
        %v3415 = vpop.f32.mrf.mxu0
        %v3416 = vadd.f32 %v3367, %v3415
        %v3417 = vpop.f32.mrf.mxu0
        %v3418 = vadd.f32 %v3369, %v3417
        %3419 = vmatmul.bf16.gmra.mxu0 %v3028
        %v3420 = vpop.f32.mrf.mxu0
        %v3421 = vadd.f32 %v3372, %v3420
        %v3422 = vpop.f32.mrf.mxu0
        %v3423 = vadd.f32 %v3374, %v3422
        %3424 = vdwg.mxu0
        %v3425 = vadd.f32 %v3288, %v2981
        %v3426 = vadd.f32 %v3386, %v2982
        %v3427 = vadd.f32 %v3290, %v2983
        %v3428 = vadd.f32 %v3388, %v2984
        %v3429 = vadd.f32 %v3293, %v2985
        %v3430 = vadd.f32 %v3391, %v2986
        %v3431 = vadd.f32 %v3295, %v2987
        %v3432 = vadd.f32 %v3393, %v2988
        %v3433 = vadd.f32 %v3298, %v2989
        %v3434 = vadd.f32 %v3396, %v2990
        %v3435 = vadd.f32 %v3300, %v2991
        %v3436 = vadd.f32 %v3398, %v2992
        %v3437 = vadd.f32 %v3303, %v2993
        %v3438 = vadd.f32 %v3401, %v2994
        %v3439 = vadd.f32 %v3305, %v2995
        %v3440 = vadd.f32 %v3403, %v2996
        %v3441 = vadd.f32 %v3308, %v2997
        %v3442 = vadd.f32 %v3406, %v2998
        %v3443 = vadd.f32 %v3310, %v2999
        %v3444 = vadd.f32 %v3408, %v3000
        %v3445 = vadd.f32 %v3313, %v3001
        %v3446 = vadd.f32 %v3411, %v3002
        %v3447 = vadd.f32 %v3315, %v3003
        %v3448 = vadd.f32 %v3413, %v3004
        %v3449 = vadd.f32 %v3318, %v3005
        %v3450 = vadd.f32 %v3416, %v3006
        %v3451 = vadd.f32 %v3320, %v3007
        %v3452 = vadd.f32 %v3418, %v3008
        %v3453 = vadd.f32 %v3323, %v3009
        %v3454 = vadd.f32 %v3421, %v3010
        %v3455 = vadd.f32 %v3325, %v3011
        %v3456 = vadd.f32 %v3423, %v3012
        %v3457 = vmax.f32 %v3425, 0.0
        %v3458 = vmax.f32 %v3426, 0.0
        %v3459 = vmax.f32 %v3427, 0.0
        %v3460 = vmax.f32 %v3428, 0.0
        %v3461 = vmax.f32 %v3429, 0.0
        %v3462 = vmax.f32 %v3430, 0.0
        %v3463 = vmax.f32 %v3431, 0.0
        %v3464 = vmax.f32 %v3432, 0.0
        %v3465 = vmax.f32 %v3433, 0.0
        %v3466 = vmax.f32 %v3434, 0.0
        %v3467 = vmax.f32 %v3435, 0.0
        %v3468 = vmax.f32 %v3436, 0.0
        %v3469 = vmax.f32 %v3437, 0.0
        %v3470 = vmax.f32 %v3438, 0.0
        %v3471 = vmax.f32 %v3439, 0.0
        %v3472 = vmax.f32 %v3440, 0.0
        %v3473 = vmax.f32 %v3441, 0.0
        %v3474 = vmax.f32 %v3442, 0.0
        %v3475 = vmax.f32 %v3443, 0.0
        %v3476 = vmax.f32 %v3444, 0.0
        %v3477 = vmax.f32 %v3445, 0.0
        %v3478 = vmax.f32 %v3446, 0.0
        %v3479 = vmax.f32 %v3447, 0.0
        %v3480 = vmax.f32 %v3448, 0.0
        %v3481 = vmax.f32 %v3449, 0.0
        %v3482 = vmax.f32 %v3450, 0.0
        %v3483 = vmax.f32 %v3451, 0.0
        %v3484 = vmax.f32 %v3452, 0.0
        %v3485 = vmax.f32 %v3453, 0.0
        %v3486 = vmax.f32 %v3454, 0.0
        %v3487 = vmax.f32 %v3455, 0.0
        %v3488 = vmax.f32 %v3456, 0.0
        %3489 = vst [vmem:[#allocation2] sm:$0xff] %v3457
        %3490 = vst [vmem:[#allocation2 + $0x8] sm:$0xff] %v3458
        %3491 = vst [vmem:[#allocation2 + $0x10] sm:$0xff] %v3459
        %3492 = vst [vmem:[#allocation2 + $0x18] sm:$0xff] %v3460
        %3493 = vst [vmem:[#allocation2 + $0x20] sm:$0xff] %v3461
        %3494 = vst [vmem:[#allocation2 + $0x28] sm:$0xff] %v3462
        %3495 = vst [vmem:[#allocation2 + $0x30] sm:$0xff] %v3463
        %3496 = vst [vmem:[#allocation2 + $0x38] sm:$0xff] %v3464
        %3497 = vst [vmem:[#allocation2 + $0x40] sm:$0xff] %v3465
        %3498 = vst [vmem:[#allocation2 + $0x48] sm:$0xff] %v3466
        %3499 = vst [vmem:[#allocation2 + $0x50] sm:$0xff] %v3467
        %3500 = vst [vmem:[#allocation2 + $0x58] sm:$0xff] %v3468
        %3501 = vst [vmem:[#allocation2 + $0x60] sm:$0xff] %v3469
        %3502 = vst [vmem:[#allocation2 + $0x68] sm:$0xff] %v3470
        %3503 = vst [vmem:[#allocation2 + $0x70] sm:$0xff] %v3471
        %3504 = vst [vmem:[#allocation2 + $0x78] sm:$0xff] %v3472
        %3505 = vst [vmem:[#allocation2 + $0x80] sm:$0xff] %v3473
        %3506 = vst [vmem:[#allocation2 + $0x88] sm:$0xff] %v3474
        %3507 = vst [vmem:[#allocation2 + $0x90] sm:$0xff] %v3475
        %3508 = vst [vmem:[#allocation2 + $0x98] sm:$0xff] %v3476
        %3509 = vst [vmem:[#allocation2 + $0xa0] sm:$0xff] %v3477
        %3510 = vst [vmem:[#allocation2 + $0xa8] sm:$0xff] %v3478
        %3511 = vst [vmem:[#allocation2 + $0xb0] sm:$0xff] %v3479
        %3512 = vst [vmem:[#allocation2 + $0xb8] sm:$0xff] %v3480
        %3513 = vst [vmem:[#allocation2 + $0xc0] sm:$0xff] %v3481
        %3514 = vst [vmem:[#allocation2 + $0xc8] sm:$0xff] %v3482
        %3515 = vst [vmem:[#allocation2 + $0xd0] sm:$0xff] %v3483
        %3516 = vst [vmem:[#allocation2 + $0xd8] sm:$0xff] %v3484
        %3517 = vst [vmem:[#allocation2 + $0xe0] sm:$0xff] %v3485
        %3518 = vst [vmem:[#allocation2 + $0xe8] sm:$0xff] %v3486
        %3519 = vst [vmem:[#allocation2 + $0xf0] sm:$0xff] %v3487
        %3520 = vst [vmem:[#allocation2 + $0xf8] sm:$0xff] %v3488
        %v3521 = vld [vmem:[#allocation2] sm:$0xff]
        %v3522 = vld [vmem:[#allocation2 + $0x8] sm:$0xff]
        %v3523 = vld [vmem:[#allocation2 + $0x10] sm:$0xff]
        %v3524 = vld [vmem:[#allocation2 + $0x18] sm:$0xff]
        %v3525 = vld [vmem:[#allocation2 + $0x20] sm:$0xff]
        %v3526 = vld [vmem:[#allocation2 + $0x28] sm:$0xff]
        %v3527 = vld [vmem:[#allocation2 + $0x30] sm:$0xff]
        %v3528 = vld [vmem:[#allocation2 + $0x38] sm:$0xff]
        %v3529 = vld [vmem:[#allocation2 + $0x40] sm:$0xff]
        %v3530 = vld [vmem:[#allocation2 + $0x48] sm:$0xff]
        %v3531 = vld [vmem:[#allocation2 + $0x50] sm:$0xff]
        %v3532 = vld [vmem:[#allocation2 + $0x58] sm:$0xff]
        %v3533 = vld [vmem:[#allocation2 + $0x60] sm:$0xff]
        %v3534 = vld [vmem:[#allocation2 + $0x68] sm:$0xff]
        %v3535 = vld [vmem:[#allocation2 + $0x70] sm:$0xff]
        %v3536 = vld [vmem:[#allocation2 + $0x78] sm:$0xff]
        %v3537 = vld [vmem:[#allocation2 + $0x80] sm:$0xff]
        %v3538 = vld [vmem:[#allocation2 + $0x88] sm:$0xff]
        %v3539 = vld [vmem:[#allocation2 + $0x90] sm:$0xff]
        %v3540 = vld [vmem:[#allocation2 + $0x98] sm:$0xff]
        %v3541 = vld [vmem:[#allocation2 + $0xa0] sm:$0xff]
        %v3542 = vld [vmem:[#allocation2 + $0xa8] sm:$0xff]
        %v3543 = vld [vmem:[#allocation2 + $0xb0] sm:$0xff]
        %v3544 = vld [vmem:[#allocation2 + $0xb8] sm:$0xff]
        %v3545 = vld [vmem:[#allocation2 + $0xc0] sm:$0xff]
        %v3546 = vld [vmem:[#allocation2 + $0xc8] sm:$0xff]
        %v3547 = vld [vmem:[#allocation2 + $0xd0] sm:$0xff]
        %v3548 = vld [vmem:[#allocation2 + $0xd8] sm:$0xff]
        %v3549 = vld [vmem:[#allocation2 + $0xe0] sm:$0xff]
        %v3550 = vld [vmem:[#allocation2 + $0xe8] sm:$0xff]
        %v3551 = vld [vmem:[#allocation2 + $0xf0] sm:$0xff]
        %v3552 = vld [vmem:[#allocation2 + $0xf8] sm:$0xff]
        %v3553 = vpack.c.bf16 %v3523, %v3521
        %v3554 = vpack.c.bf16 %v3524, %v3522
        %v3555 = vpack.c.bf16 %v3527, %v3525
        %v3556 = vpack.c.bf16 %v3528, %v3526
        %v3557 = vpack.c.bf16 %v3531, %v3529
        %v3558 = vpack.c.bf16 %v3532, %v3530
        %v3559 = vpack.c.bf16 %v3535, %v3533
        %v3560 = vpack.c.bf16 %v3536, %v3534
        %v3561 = vpack.c.bf16 %v3539, %v3537
        %v3562 = vpack.c.bf16 %v3540, %v3538
        %v3563 = vpack.c.bf16 %v3543, %v3541
        %v3564 = vpack.c.bf16 %v3544, %v3542
        %v3565 = vpack.c.bf16 %v3547, %v3545
        %v3566 = vpack.c.bf16 %v3548, %v3546
        %v3567 = vpack.c.bf16 %v3551, %v3549
        %v3568 = vpack.c.bf16 %v3552, %v3550
        %s3569 = scalar_lea.vmem [#allocation10], 1280
        %v3570 = vld [vmem:[%s3569] sm:$0xff]
        %v3571 = vld [vmem:[%s3569 + $0x8] sm:$0xff]
        %v3572 = vld [vmem:[%s3569 + $0x10] sm:$0xff]
        %v3573 = vld [vmem:[%s3569 + $0x18] sm:$0xff]
        %v3574 = vld [vmem:[%s3569 + $0x20] sm:$0xff]
        %v3575 = vld [vmem:[%s3569 + $0x28] sm:$0xff]
        %v3576 = vld [vmem:[%s3569 + $0x30] sm:$0xff]
        %v3577 = vld [vmem:[%s3569 + $0x38] sm:$0xff]
        %v3578 = vld [vmem:[%s3569 + $0x40] sm:$0xff]
        %v3579 = vld [vmem:[%s3569 + $0x48] sm:$0xff]
        %v3580 = vld [vmem:[%s3569 + $0x50] sm:$0xff]
        %v3581 = vld [vmem:[%s3569 + $0x58] sm:$0xff]
        %v3582 = vld [vmem:[%s3569 + $0x60] sm:$0xff]
        %v3583 = vld [vmem:[%s3569 + $0x68] sm:$0xff]
        %v3584 = vld [vmem:[%s3569 + $0x70] sm:$0xff]
        %v3585 = vld [vmem:[%s3569 + $0x78] sm:$0xff]
        %v3586 = vld [vmem:[%s3569 + $0x80] sm:$0xff]
        %v3587 = vld [vmem:[%s3569 + $0x88] sm:$0xff]
        %v3588 = vld [vmem:[%s3569 + $0x90] sm:$0xff]
        %v3589 = vld [vmem:[%s3569 + $0x98] sm:$0xff]
        %v3590 = vld [vmem:[%s3569 + $0xa0] sm:$0xff]
        %v3591 = vld [vmem:[%s3569 + $0xa8] sm:$0xff]
        %v3592 = vld [vmem:[%s3569 + $0xb0] sm:$0xff]
        %v3593 = vld [vmem:[%s3569 + $0xb8] sm:$0xff]
        %v3594 = vld [vmem:[%s3569 + $0xc0] sm:$0xff]
        %v3595 = vld [vmem:[%s3569 + $0xc8] sm:$0xff]
        %v3596 = vld [vmem:[%s3569 + $0xd0] sm:$0xff]
        %v3597 = vld [vmem:[%s3569 + $0xd8] sm:$0xff]
        %v3598 = vld [vmem:[%s3569 + $0xe0] sm:$0xff]
        %v3599 = vld [vmem:[%s3569 + $0xe8] sm:$0xff]
        %v3600 = vld [vmem:[%s3569 + $0xf0] sm:$0xff]
        %v3601 = vld [vmem:[%s3569 + $0xf8] sm:$0xff]
        %s3602 = scalar_lea.vmem [#allocation12], 10
        %v3603 = vld [vmem:[%s3602] sm:$0x3]
        %v3605 = vperm.slane %v3603, 0
        %v3606 = vperm.slane %v3603, 1
        %v3641 = vunpack.c.l.b16 %v3570
        %v3642 = vunpack.c.h.b16 %v3570
        %v3643 = vunpack.c.l.b16 %v3571
        %v3644 = vunpack.c.h.b16 %v3571
        %v3645 = vunpack.c.l.b16 %v3572
        %v3646 = vunpack.c.h.b16 %v3572
        %v3647 = vunpack.c.l.b16 %v3573
        %v3648 = vunpack.c.h.b16 %v3573
        %v3649 = vunpack.c.l.b16 %v3574
        %v3650 = vunpack.c.h.b16 %v3574
        %v3651 = vunpack.c.l.b16 %v3575
        %v3652 = vunpack.c.h.b16 %v3575
        %v3653 = vunpack.c.l.b16 %v3576
        %v3654 = vunpack.c.h.b16 %v3576
        %v3655 = vunpack.c.l.b16 %v3577
        %v3656 = vunpack.c.h.b16 %v3577
        %v3657 = vunpack.c.l.b16 %v3578
        %v3658 = vunpack.c.h.b16 %v3578
        %v3659 = vunpack.c.l.b16 %v3579
        %v3660 = vunpack.c.h.b16 %v3579
        %v3661 = vunpack.c.l.b16 %v3580
        %v3662 = vunpack.c.h.b16 %v3580
        %v3663 = vunpack.c.l.b16 %v3581
        %v3664 = vunpack.c.h.b16 %v3581
        %v3665 = vunpack.c.l.b16 %v3582
        %v3666 = vunpack.c.h.b16 %v3582
        %v3667 = vunpack.c.l.b16 %v3583
        %v3668 = vunpack.c.h.b16 %v3583
        %v3669 = vunpack.c.l.b16 %v3584
        %v3670 = vunpack.c.h.b16 %v3584
        %v3671 = vunpack.c.l.b16 %v3585
        %v3672 = vunpack.c.h.b16 %v3585
        %v3673 = vunpack.c.l.b16 %v3586
        %v3674 = vunpack.c.h.b16 %v3586
        %v3675 = vunpack.c.l.b16 %v3587
        %v3676 = vunpack.c.h.b16 %v3587
        %v3677 = vunpack.c.l.b16 %v3588
        %v3678 = vunpack.c.h.b16 %v3588
        %v3679 = vunpack.c.l.b16 %v3589
        %v3680 = vunpack.c.h.b16 %v3589
        %v3681 = vunpack.c.l.b16 %v3590
        %v3682 = vunpack.c.h.b16 %v3590
        %v3683 = vunpack.c.l.b16 %v3591
        %v3684 = vunpack.c.h.b16 %v3591
        %v3685 = vunpack.c.l.b16 %v3592
        %v3686 = vunpack.c.h.b16 %v3592
        %v3687 = vunpack.c.l.b16 %v3593
        %v3688 = vunpack.c.h.b16 %v3593
        %v3689 = vunpack.c.l.b16 %v3594
        %v3690 = vunpack.c.h.b16 %v3594
        %v3691 = vunpack.c.l.b16 %v3595
        %v3692 = vunpack.c.h.b16 %v3595
        %v3693 = vunpack.c.l.b16 %v3596
        %v3694 = vunpack.c.h.b16 %v3596
        %v3695 = vunpack.c.l.b16 %v3597
        %v3696 = vunpack.c.h.b16 %v3597
        %v3697 = vunpack.c.l.b16 %v3598
        %v3698 = vunpack.c.h.b16 %v3598
        %v3699 = vunpack.c.l.b16 %v3599
        %v3700 = vunpack.c.h.b16 %v3599
        %v3701 = vunpack.c.l.b16 %v3600
        %v3702 = vunpack.c.h.b16 %v3600
        %v3703 = vunpack.c.l.b16 %v3601
        %v3704 = vunpack.c.h.b16 %v3601
        %v3705 = vpack.c.b16 %v3643, %v3641
        %v3706 = vpack.c.b16 %v3644, %v3642
        %v3707 = vpack.c.b16 %v3647, %v3645
        %v3708 = vpack.c.b16 %v3648, %v3646
        %v3709 = vpack.c.b16 %v3651, %v3649
        %v3710 = vpack.c.b16 %v3652, %v3650
        %v3711 = vpack.c.b16 %v3655, %v3653
        %v3712 = vpack.c.b16 %v3656, %v3654
        %v3713 = vpack.c.b16 %v3659, %v3657
        %v3714 = vpack.c.b16 %v3660, %v3658
        %v3715 = vpack.c.b16 %v3663, %v3661
        %v3716 = vpack.c.b16 %v3664, %v3662
        %v3717 = vpack.c.b16 %v3667, %v3665
        %v3718 = vpack.c.b16 %v3668, %v3666
        %v3719 = vpack.c.b16 %v3671, %v3669
        %v3720 = vpack.c.b16 %v3672, %v3670
        %v3721 = vpack.c.b16 %v3675, %v3673
        %v3722 = vpack.c.b16 %v3676, %v3674
        %v3723 = vpack.c.b16 %v3679, %v3677
        %v3724 = vpack.c.b16 %v3680, %v3678
        %v3725 = vpack.c.b16 %v3683, %v3681
        %v3726 = vpack.c.b16 %v3684, %v3682
        %v3727 = vpack.c.b16 %v3687, %v3685
        %v3728 = vpack.c.b16 %v3688, %v3686
        %v3729 = vpack.c.b16 %v3691, %v3689
        %v3730 = vpack.c.b16 %v3692, %v3690
        %v3731 = vpack.c.b16 %v3695, %v3693
        %v3732 = vpack.c.b16 %v3696, %v3694
        %v3733 = vpack.c.b16 %v3699, %v3697
        %v3734 = vpack.c.b16 %v3700, %v3698
        %v3735 = vpack.c.b16 %v3703, %v3701
        %v3736 = vpack.c.b16 %v3704, %v3702
        %3769 = vmatpush.bf16.msra.mxu0 %v3719
        %3770 = vmatpush.bf16.msra.mxu0 %v3717
        %3771 = vmatpush.bf16.msra.mxu0 %v3715
        %3772 = vmatpush.bf16.msra.mxu0 %v3713
        %3773 = vmatpush.bf16.msra.mxu0 %v3711
        %3774 = vmatpush.bf16.msra.mxu0 %v3709
        %3775 = vmatpush.bf16.msra.mxu0 %v3707
        %3776 = vmatpush.bf16.msra.mxu0 %v3705
        %3777 = vmatmul.bf16.gmra.mxu0 %v3553
        %v3778 = vpop.f32.mrf.mxu0
        %v3779 = vadd.f32 %v3605, %v3778
        %v3780 = vpop.f32.mrf.mxu0
        %v3781 = vadd.f32 %v3605, %v3780
        %3782 = vmatmul.bf16.gmra.mxu0 %v3555
        %v3783 = vpop.f32.mrf.mxu0
        %v3784 = vadd.f32 %v3605, %v3783
        %v3785 = vpop.f32.mrf.mxu0
        %v3786 = vadd.f32 %v3605, %v3785
        %3787 = vmatmul.bf16.gmra.mxu0 %v3557
        %v3788 = vpop.f32.mrf.mxu0
        %v3789 = vadd.f32 %v3605, %v3788
        %v3790 = vpop.f32.mrf.mxu0
        %v3791 = vadd.f32 %v3605, %v3790
        %3792 = vmatmul.bf16.gmra.mxu0 %v3559
        %v3793 = vpop.f32.mrf.mxu0
        %v3794 = vadd.f32 %v3605, %v3793
        %v3795 = vpop.f32.mrf.mxu0
        %v3796 = vadd.f32 %v3605, %v3795
        %3797 = vmatmul.bf16.gmra.mxu0 %v3561
        %v3798 = vpop.f32.mrf.mxu0
        %v3799 = vadd.f32 %v3605, %v3798
        %v3800 = vpop.f32.mrf.mxu0
        %v3801 = vadd.f32 %v3605, %v3800
        %3802 = vmatmul.bf16.gmra.mxu0 %v3563
        %v3803 = vpop.f32.mrf.mxu0
        %v3804 = vadd.f32 %v3605, %v3803
        %v3805 = vpop.f32.mrf.mxu0
        %v3806 = vadd.f32 %v3605, %v3805
        %3807 = vmatmul.bf16.gmra.mxu0 %v3565
        %v3808 = vpop.f32.mrf.mxu0
        %v3809 = vadd.f32 %v3605, %v3808
        %v3810 = vpop.f32.mrf.mxu0
        %v3811 = vadd.f32 %v3605, %v3810
        %3812 = vmatmul.bf16.gmra.mxu0 %v3567
        %v3813 = vpop.f32.mrf.mxu0
        %v3814 = vadd.f32 %v3605, %v3813
        %v3815 = vpop.f32.mrf.mxu0
        %v3816 = vadd.f32 %v3605, %v3815
        %3817 = vdwg.mxu0
        %3818 = vmatpush.bf16.msra.mxu0 %v3735
        %3819 = vmatpush.bf16.msra.mxu0 %v3733
        %3820 = vmatpush.bf16.msra.mxu0 %v3731
        %3821 = vmatpush.bf16.msra.mxu0 %v3729
        %3822 = vmatpush.bf16.msra.mxu0 %v3727
        %3823 = vmatpush.bf16.msra.mxu0 %v3725
        %3824 = vmatpush.bf16.msra.mxu0 %v3723
        %3825 = vmatpush.bf16.msra.mxu0 %v3721
        %3826 = vmatmul.bf16.gmra.mxu0 %v3554
        %v3827 = vpop.f32.mrf.mxu0
        %v3828 = vadd.f32 %v3779, %v3827
        %v3829 = vpop.f32.mrf.mxu0
        %v3830 = vadd.f32 %v3781, %v3829
        %3831 = vmatmul.bf16.gmra.mxu0 %v3556
        %v3832 = vpop.f32.mrf.mxu0
        %v3833 = vadd.f32 %v3784, %v3832
        %v3834 = vpop.f32.mrf.mxu0
        %v3835 = vadd.f32 %v3786, %v3834
        %3836 = vmatmul.bf16.gmra.mxu0 %v3558
        %v3837 = vpop.f32.mrf.mxu0
        %v3838 = vadd.f32 %v3789, %v3837
        %v3839 = vpop.f32.mrf.mxu0
        %v3840 = vadd.f32 %v3791, %v3839
        %3841 = vmatmul.bf16.gmra.mxu0 %v3560
        %v3842 = vpop.f32.mrf.mxu0
        %v3843 = vadd.f32 %v3794, %v3842
        %v3844 = vpop.f32.mrf.mxu0
        %v3845 = vadd.f32 %v3796, %v3844
        %3846 = vmatmul.bf16.gmra.mxu0 %v3562
        %v3847 = vpop.f32.mrf.mxu0
        %v3848 = vadd.f32 %v3799, %v3847
        %v3849 = vpop.f32.mrf.mxu0
        %v3850 = vadd.f32 %v3801, %v3849
        %3851 = vmatmul.bf16.gmra.mxu0 %v3564
        %v3852 = vpop.f32.mrf.mxu0
        %v3853 = vadd.f32 %v3804, %v3852
        %v3854 = vpop.f32.mrf.mxu0
        %v3855 = vadd.f32 %v3806, %v3854
        %3856 = vmatmul.bf16.gmra.mxu0 %v3566
        %v3857 = vpop.f32.mrf.mxu0
        %v3858 = vadd.f32 %v3809, %v3857
        %v3859 = vpop.f32.mrf.mxu0
        %v3860 = vadd.f32 %v3811, %v3859
        %3861 = vmatmul.bf16.gmra.mxu0 %v3568
        %v3862 = vpop.f32.mrf.mxu0
        %v3863 = vadd.f32 %v3814, %v3862
        %v3864 = vpop.f32.mrf.mxu0
        %v3865 = vadd.f32 %v3816, %v3864
        %3866 = vdwg.mxu0
        %3867 = vmatpush.bf16.msra.mxu0 %v3720
        %3868 = vmatpush.bf16.msra.mxu0 %v3718
        %3869 = vmatpush.bf16.msra.mxu0 %v3716
        %3870 = vmatpush.bf16.msra.mxu0 %v3714
        %3871 = vmatpush.bf16.msra.mxu0 %v3712
        %3872 = vmatpush.bf16.msra.mxu0 %v3710
        %3873 = vmatpush.bf16.msra.mxu0 %v3708
        %3874 = vmatpush.bf16.msra.mxu0 %v3706
        %3875 = vmatmul.bf16.gmra.mxu0 %v3553
        %v3876 = vpop.f32.mrf.mxu0
        %v3877 = vadd.f32 %v3606, %v3876
        %v3878 = vpop.f32.mrf.mxu0
        %v3879 = vadd.f32 %v3606, %v3878
        %3880 = vmatmul.bf16.gmra.mxu0 %v3555
        %v3881 = vpop.f32.mrf.mxu0
        %v3882 = vadd.f32 %v3606, %v3881
        %v3883 = vpop.f32.mrf.mxu0
        %v3884 = vadd.f32 %v3606, %v3883
        %3885 = vmatmul.bf16.gmra.mxu0 %v3557
        %v3886 = vpop.f32.mrf.mxu0
        %v3887 = vadd.f32 %v3606, %v3886
        %v3888 = vpop.f32.mrf.mxu0
        %v3889 = vadd.f32 %v3606, %v3888
        %3890 = vmatmul.bf16.gmra.mxu0 %v3559
        %v3891 = vpop.f32.mrf.mxu0
        %v3892 = vadd.f32 %v3606, %v3891
        %v3893 = vpop.f32.mrf.mxu0
        %v3894 = vadd.f32 %v3606, %v3893
        %3895 = vmatmul.bf16.gmra.mxu0 %v3561
        %v3896 = vpop.f32.mrf.mxu0
        %v3897 = vadd.f32 %v3606, %v3896
        %v3898 = vpop.f32.mrf.mxu0
        %v3899 = vadd.f32 %v3606, %v3898
        %3900 = vmatmul.bf16.gmra.mxu0 %v3563
        %v3901 = vpop.f32.mrf.mxu0
        %v3902 = vadd.f32 %v3606, %v3901
        %v3903 = vpop.f32.mrf.mxu0
        %v3904 = vadd.f32 %v3606, %v3903
        %3905 = vmatmul.bf16.gmra.mxu0 %v3565
        %v3906 = vpop.f32.mrf.mxu0
        %v3907 = vadd.f32 %v3606, %v3906
        %v3908 = vpop.f32.mrf.mxu0
        %v3909 = vadd.f32 %v3606, %v3908
        %3910 = vmatmul.bf16.gmra.mxu0 %v3567
        %v3911 = vpop.f32.mrf.mxu0
        %v3912 = vadd.f32 %v3606, %v3911
        %v3913 = vpop.f32.mrf.mxu0
        %v3914 = vadd.f32 %v3606, %v3913
        %3915 = vdwg.mxu0
        %3916 = vmatpush.bf16.msra.mxu0 %v3736
        %3917 = vmatpush.bf16.msra.mxu0 %v3734
        %3918 = vmatpush.bf16.msra.mxu0 %v3732
        %3919 = vmatpush.bf16.msra.mxu0 %v3730
        %3920 = vmatpush.bf16.msra.mxu0 %v3728
        %3921 = vmatpush.bf16.msra.mxu0 %v3726
        %3922 = vmatpush.bf16.msra.mxu0 %v3724
        %3923 = vmatpush.bf16.msra.mxu0 %v3722
        %3924 = vmatmul.bf16.gmra.mxu0 %v3554
        %v3925 = vpop.f32.mrf.mxu0
        %v3926 = vadd.f32 %v3877, %v3925
        %v3927 = vpop.f32.mrf.mxu0
        %v3928 = vadd.f32 %v3879, %v3927
        %3929 = vmatmul.bf16.gmra.mxu0 %v3556
        %v3930 = vpop.f32.mrf.mxu0
        %v3931 = vadd.f32 %v3882, %v3930
        %v3932 = vpop.f32.mrf.mxu0
        %v3933 = vadd.f32 %v3884, %v3932
        %3934 = vmatmul.bf16.gmra.mxu0 %v3558
        %v3935 = vpop.f32.mrf.mxu0
        %v3936 = vadd.f32 %v3887, %v3935
        %v3937 = vpop.f32.mrf.mxu0
        %v3938 = vadd.f32 %v3889, %v3937
        %3939 = vmatmul.bf16.gmra.mxu0 %v3560
        %v3940 = vpop.f32.mrf.mxu0
        %v3941 = vadd.f32 %v3892, %v3940
        %v3942 = vpop.f32.mrf.mxu0
        %v3943 = vadd.f32 %v3894, %v3942
        %3944 = vmatmul.bf16.gmra.mxu0 %v3562
        %v3945 = vpop.f32.mrf.mxu0
        %v3946 = vadd.f32 %v3897, %v3945
        %v3947 = vpop.f32.mrf.mxu0
        %v3948 = vadd.f32 %v3899, %v3947
        %3949 = vmatmul.bf16.gmra.mxu0 %v3564
        %v3950 = vpop.f32.mrf.mxu0
        %v3951 = vadd.f32 %v3902, %v3950
        %v3952 = vpop.f32.mrf.mxu0
        %v3953 = vadd.f32 %v3904, %v3952
        %3954 = vmatmul.bf16.gmra.mxu0 %v3566
        %v3955 = vpop.f32.mrf.mxu0
        %v3956 = vadd.f32 %v3907, %v3955
        %v3957 = vpop.f32.mrf.mxu0
        %v3958 = vadd.f32 %v3909, %v3957
        %3959 = vmatmul.bf16.gmra.mxu0 %v3568
        %v3960 = vpop.f32.mrf.mxu0
        %v3961 = vadd.f32 %v3912, %v3960
        %v3962 = vpop.f32.mrf.mxu0
        %v3963 = vadd.f32 %v3914, %v3962
        %3964 = vdwg.mxu0
        %v3965 = vadd.f32 %v3828, %v3521
        %v3966 = vadd.f32 %v3926, %v3522
        %v3967 = vadd.f32 %v3830, %v3523
        %v3968 = vadd.f32 %v3928, %v3524
        %v3969 = vadd.f32 %v3833, %v3525
        %v3970 = vadd.f32 %v3931, %v3526
        %v3971 = vadd.f32 %v3835, %v3527
        %v3972 = vadd.f32 %v3933, %v3528
        %v3973 = vadd.f32 %v3838, %v3529
        %v3974 = vadd.f32 %v3936, %v3530
        %v3975 = vadd.f32 %v3840, %v3531
        %v3976 = vadd.f32 %v3938, %v3532
        %v3977 = vadd.f32 %v3843, %v3533
        %v3978 = vadd.f32 %v3941, %v3534
        %v3979 = vadd.f32 %v3845, %v3535
        %v3980 = vadd.f32 %v3943, %v3536
        %v3981 = vadd.f32 %v3848, %v3537
        %v3982 = vadd.f32 %v3946, %v3538
        %v3983 = vadd.f32 %v3850, %v3539
        %v3984 = vadd.f32 %v3948, %v3540
        %v3985 = vadd.f32 %v3853, %v3541
        %v3986 = vadd.f32 %v3951, %v3542
        %v3987 = vadd.f32 %v3855, %v3543
        %v3988 = vadd.f32 %v3953, %v3544
        %v3989 = vadd.f32 %v3858, %v3545
        %v3990 = vadd.f32 %v3956, %v3546
        %v3991 = vadd.f32 %v3860, %v3547
        %v3992 = vadd.f32 %v3958, %v3548
        %v3993 = vadd.f32 %v3863, %v3549
        %v3994 = vadd.f32 %v3961, %v3550
        %v3995 = vadd.f32 %v3865, %v3551
        %v3996 = vadd.f32 %v3963, %v3552
        %v3997 = vmax.f32 %v3965, 0.0
        %v3998 = vmax.f32 %v3966, 0.0
        %v3999 = vmax.f32 %v3967, 0.0
        %v4000 = vmax.f32 %v3968, 0.0
        %v4001 = vmax.f32 %v3969, 0.0
        %v4002 = vmax.f32 %v3970, 0.0
        %v4003 = vmax.f32 %v3971, 0.0
        %v4004 = vmax.f32 %v3972, 0.0
        %v4005 = vmax.f32 %v3973, 0.0
        %v4006 = vmax.f32 %v3974, 0.0
        %v4007 = vmax.f32 %v3975, 0.0
        %v4008 = vmax.f32 %v3976, 0.0
        %v4009 = vmax.f32 %v3977, 0.0
        %v4010 = vmax.f32 %v3978, 0.0
        %v4011 = vmax.f32 %v3979, 0.0
        %v4012 = vmax.f32 %v3980, 0.0
        %v4013 = vmax.f32 %v3981, 0.0
        %v4014 = vmax.f32 %v3982, 0.0
        %v4015 = vmax.f32 %v3983, 0.0
        %v4016 = vmax.f32 %v3984, 0.0
        %v4017 = vmax.f32 %v3985, 0.0
        %v4018 = vmax.f32 %v3986, 0.0
        %v4019 = vmax.f32 %v3987, 0.0
        %v4020 = vmax.f32 %v3988, 0.0
        %v4021 = vmax.f32 %v3989, 0.0
        %v4022 = vmax.f32 %v3990, 0.0
        %v4023 = vmax.f32 %v3991, 0.0
        %v4024 = vmax.f32 %v3992, 0.0
        %v4025 = vmax.f32 %v3993, 0.0
        %v4026 = vmax.f32 %v3994, 0.0
        %v4027 = vmax.f32 %v3995, 0.0
        %v4028 = vmax.f32 %v3996, 0.0
        %4029 = vst [vmem:[#allocation2] sm:$0xff] %v3997
        %4030 = vst [vmem:[#allocation2 + $0x8] sm:$0xff] %v3998
        %4031 = vst [vmem:[#allocation2 + $0x10] sm:$0xff] %v3999
        %4032 = vst [vmem:[#allocation2 + $0x18] sm:$0xff] %v4000
        %4033 = vst [vmem:[#allocation2 + $0x20] sm:$0xff] %v4001
        %4034 = vst [vmem:[#allocation2 + $0x28] sm:$0xff] %v4002
        %4035 = vst [vmem:[#allocation2 + $0x30] sm:$0xff] %v4003
        %4036 = vst [vmem:[#allocation2 + $0x38] sm:$0xff] %v4004
        %4037 = vst [vmem:[#allocation2 + $0x40] sm:$0xff] %v4005
        %4038 = vst [vmem:[#allocation2 + $0x48] sm:$0xff] %v4006
        %4039 = vst [vmem:[#allocation2 + $0x50] sm:$0xff] %v4007
        %4040 = vst [vmem:[#allocation2 + $0x58] sm:$0xff] %v4008
        %4041 = vst [vmem:[#allocation2 + $0x60] sm:$0xff] %v4009
        %4042 = vst [vmem:[#allocation2 + $0x68] sm:$0xff] %v4010
        %4043 = vst [vmem:[#allocation2 + $0x70] sm:$0xff] %v4011
        %4044 = vst [vmem:[#allocation2 + $0x78] sm:$0xff] %v4012
        %4045 = vst [vmem:[#allocation2 + $0x80] sm:$0xff] %v4013
        %4046 = vst [vmem:[#allocation2 + $0x88] sm:$0xff] %v4014
        %4047 = vst [vmem:[#allocation2 + $0x90] sm:$0xff] %v4015
        %4048 = vst [vmem:[#allocation2 + $0x98] sm:$0xff] %v4016
        %4049 = vst [vmem:[#allocation2 + $0xa0] sm:$0xff] %v4017
        %4050 = vst [vmem:[#allocation2 + $0xa8] sm:$0xff] %v4018
        %4051 = vst [vmem:[#allocation2 + $0xb0] sm:$0xff] %v4019
        %4052 = vst [vmem:[#allocation2 + $0xb8] sm:$0xff] %v4020
        %4053 = vst [vmem:[#allocation2 + $0xc0] sm:$0xff] %v4021
        %4054 = vst [vmem:[#allocation2 + $0xc8] sm:$0xff] %v4022
        %4055 = vst [vmem:[#allocation2 + $0xd0] sm:$0xff] %v4023
        %4056 = vst [vmem:[#allocation2 + $0xd8] sm:$0xff] %v4024
        %4057 = vst [vmem:[#allocation2 + $0xe0] sm:$0xff] %v4025
        %4058 = vst [vmem:[#allocation2 + $0xe8] sm:$0xff] %v4026
        %4059 = vst [vmem:[#allocation2 + $0xf0] sm:$0xff] %v4027
        %4060 = vst [vmem:[#allocation2 + $0xf8] sm:$0xff] %v4028
        %v4061 = vld [vmem:[#allocation2] sm:$0xff]
        %v4062 = vld [vmem:[#allocation2 + $0x8] sm:$0xff]
        %v4063 = vld [vmem:[#allocation2 + $0x10] sm:$0xff]
        %v4064 = vld [vmem:[#allocation2 + $0x18] sm:$0xff]
        %v4065 = vld [vmem:[#allocation2 + $0x20] sm:$0xff]
        %v4066 = vld [vmem:[#allocation2 + $0x28] sm:$0xff]
        %v4067 = vld [vmem:[#allocation2 + $0x30] sm:$0xff]
        %v4068 = vld [vmem:[#allocation2 + $0x38] sm:$0xff]
        %v4069 = vld [vmem:[#allocation2 + $0x40] sm:$0xff]
        %v4070 = vld [vmem:[#allocation2 + $0x48] sm:$0xff]
        %v4071 = vld [vmem:[#allocation2 + $0x50] sm:$0xff]
        %v4072 = vld [vmem:[#allocation2 + $0x58] sm:$0xff]
        %v4073 = vld [vmem:[#allocation2 + $0x60] sm:$0xff]
        %v4074 = vld [vmem:[#allocation2 + $0x68] sm:$0xff]
        %v4075 = vld [vmem:[#allocation2 + $0x70] sm:$0xff]
        %v4076 = vld [vmem:[#allocation2 + $0x78] sm:$0xff]
        %v4077 = vld [vmem:[#allocation2 + $0x80] sm:$0xff]
        %v4078 = vld [vmem:[#allocation2 + $0x88] sm:$0xff]
        %v4079 = vld [vmem:[#allocation2 + $0x90] sm:$0xff]
        %v4080 = vld [vmem:[#allocation2 + $0x98] sm:$0xff]
        %v4081 = vld [vmem:[#allocation2 + $0xa0] sm:$0xff]
        %v4082 = vld [vmem:[#allocation2 + $0xa8] sm:$0xff]
        %v4083 = vld [vmem:[#allocation2 + $0xb0] sm:$0xff]
        %v4084 = vld [vmem:[#allocation2 + $0xb8] sm:$0xff]
        %v4085 = vld [vmem:[#allocation2 + $0xc0] sm:$0xff]
        %v4086 = vld [vmem:[#allocation2 + $0xc8] sm:$0xff]
        %v4087 = vld [vmem:[#allocation2 + $0xd0] sm:$0xff]
        %v4088 = vld [vmem:[#allocation2 + $0xd8] sm:$0xff]
        %v4089 = vld [vmem:[#allocation2 + $0xe0] sm:$0xff]
        %v4090 = vld [vmem:[#allocation2 + $0xe8] sm:$0xff]
        %v4091 = vld [vmem:[#allocation2 + $0xf0] sm:$0xff]
        %v4092 = vld [vmem:[#allocation2 + $0xf8] sm:$0xff]
        %v4093 = vpack.c.bf16 %v4063, %v4061
        %v4094 = vpack.c.bf16 %v4064, %v4062
        %v4095 = vpack.c.bf16 %v4067, %v4065
        %v4096 = vpack.c.bf16 %v4068, %v4066
        %v4097 = vpack.c.bf16 %v4071, %v4069
        %v4098 = vpack.c.bf16 %v4072, %v4070
        %v4099 = vpack.c.bf16 %v4075, %v4073
        %v4100 = vpack.c.bf16 %v4076, %v4074
        %v4101 = vpack.c.bf16 %v4079, %v4077
        %v4102 = vpack.c.bf16 %v4080, %v4078
        %v4103 = vpack.c.bf16 %v4083, %v4081
        %v4104 = vpack.c.bf16 %v4084, %v4082
        %v4105 = vpack.c.bf16 %v4087, %v4085
        %v4106 = vpack.c.bf16 %v4088, %v4086
        %v4107 = vpack.c.bf16 %v4091, %v4089
        %v4108 = vpack.c.bf16 %v4092, %v4090
        %s4109 = scalar_lea.vmem [#allocation10], 1536
        %v4110 = vld [vmem:[%s4109] sm:$0xff]
        %v4111 = vld [vmem:[%s4109 + $0x8] sm:$0xff]
        %v4112 = vld [vmem:[%s4109 + $0x10] sm:$0xff]
        %v4113 = vld [vmem:[%s4109 + $0x18] sm:$0xff]
        %v4114 = vld [vmem:[%s4109 + $0x20] sm:$0xff]
        %v4115 = vld [vmem:[%s4109 + $0x28] sm:$0xff]
        %v4116 = vld [vmem:[%s4109 + $0x30] sm:$0xff]
        %v4117 = vld [vmem:[%s4109 + $0x38] sm:$0xff]
        %v4118 = vld [vmem:[%s4109 + $0x40] sm:$0xff]
        %v4119 = vld [vmem:[%s4109 + $0x48] sm:$0xff]
        %v4120 = vld [vmem:[%s4109 + $0x50] sm:$0xff]
        %v4121 = vld [vmem:[%s4109 + $0x58] sm:$0xff]
        %v4122 = vld [vmem:[%s4109 + $0x60] sm:$0xff]
        %v4123 = vld [vmem:[%s4109 + $0x68] sm:$0xff]
        %v4124 = vld [vmem:[%s4109 + $0x70] sm:$0xff]
        %v4125 = vld [vmem:[%s4109 + $0x78] sm:$0xff]
        %v4126 = vld [vmem:[%s4109 + $0x80] sm:$0xff]
        %v4127 = vld [vmem:[%s4109 + $0x88] sm:$0xff]
        %v4128 = vld [vmem:[%s4109 + $0x90] sm:$0xff]
        %v4129 = vld [vmem:[%s4109 + $0x98] sm:$0xff]
        %v4130 = vld [vmem:[%s4109 + $0xa0] sm:$0xff]
        %v4131 = vld [vmem:[%s4109 + $0xa8] sm:$0xff]
        %v4132 = vld [vmem:[%s4109 + $0xb0] sm:$0xff]
        %v4133 = vld [vmem:[%s4109 + $0xb8] sm:$0xff]
        %v4134 = vld [vmem:[%s4109 + $0xc0] sm:$0xff]
        %v4135 = vld [vmem:[%s4109 + $0xc8] sm:$0xff]
        %v4136 = vld [vmem:[%s4109 + $0xd0] sm:$0xff]
        %v4137 = vld [vmem:[%s4109 + $0xd8] sm:$0xff]
        %v4138 = vld [vmem:[%s4109 + $0xe0] sm:$0xff]
        %v4139 = vld [vmem:[%s4109 + $0xe8] sm:$0xff]
        %v4140 = vld [vmem:[%s4109 + $0xf0] sm:$0xff]
        %v4141 = vld [vmem:[%s4109 + $0xf8] sm:$0xff]
        %s4142 = scalar_lea.vmem [#allocation12], 12
        %v4143 = vld [vmem:[%s4142] sm:$0x3]
        %v4145 = vperm.slane %v4143, 0
        %v4146 = vperm.slane %v4143, 1
        %v4181 = vunpack.c.l.b16 %v4110
        %v4182 = vunpack.c.h.b16 %v4110
        %v4183 = vunpack.c.l.b16 %v4111
        %v4184 = vunpack.c.h.b16 %v4111
        %v4185 = vunpack.c.l.b16 %v4112
        %v4186 = vunpack.c.h.b16 %v4112
        %v4187 = vunpack.c.l.b16 %v4113
        %v4188 = vunpack.c.h.b16 %v4113
        %v4189 = vunpack.c.l.b16 %v4114
        %v4190 = vunpack.c.h.b16 %v4114
        %v4191 = vunpack.c.l.b16 %v4115
        %v4192 = vunpack.c.h.b16 %v4115
        %v4193 = vunpack.c.l.b16 %v4116
        %v4194 = vunpack.c.h.b16 %v4116
        %v4195 = vunpack.c.l.b16 %v4117
        %v4196 = vunpack.c.h.b16 %v4117
        %v4197 = vunpack.c.l.b16 %v4118
        %v4198 = vunpack.c.h.b16 %v4118
        %v4199 = vunpack.c.l.b16 %v4119
        %v4200 = vunpack.c.h.b16 %v4119
        %v4201 = vunpack.c.l.b16 %v4120
        %v4202 = vunpack.c.h.b16 %v4120
        %v4203 = vunpack.c.l.b16 %v4121
        %v4204 = vunpack.c.h.b16 %v4121
        %v4205 = vunpack.c.l.b16 %v4122
        %v4206 = vunpack.c.h.b16 %v4122
        %v4207 = vunpack.c.l.b16 %v4123
        %v4208 = vunpack.c.h.b16 %v4123
        %v4209 = vunpack.c.l.b16 %v4124
        %v4210 = vunpack.c.h.b16 %v4124
        %v4211 = vunpack.c.l.b16 %v4125
        %v4212 = vunpack.c.h.b16 %v4125
        %v4213 = vunpack.c.l.b16 %v4126
        %v4214 = vunpack.c.h.b16 %v4126
        %v4215 = vunpack.c.l.b16 %v4127
        %v4216 = vunpack.c.h.b16 %v4127
        %v4217 = vunpack.c.l.b16 %v4128
        %v4218 = vunpack.c.h.b16 %v4128
        %v4219 = vunpack.c.l.b16 %v4129
        %v4220 = vunpack.c.h.b16 %v4129
        %v4221 = vunpack.c.l.b16 %v4130
        %v4222 = vunpack.c.h.b16 %v4130
        %v4223 = vunpack.c.l.b16 %v4131
        %v4224 = vunpack.c.h.b16 %v4131
        %v4225 = vunpack.c.l.b16 %v4132
        %v4226 = vunpack.c.h.b16 %v4132
        %v4227 = vunpack.c.l.b16 %v4133
        %v4228 = vunpack.c.h.b16 %v4133
        %v4229 = vunpack.c.l.b16 %v4134
        %v4230 = vunpack.c.h.b16 %v4134
        %v4231 = vunpack.c.l.b16 %v4135
        %v4232 = vunpack.c.h.b16 %v4135
        %v4233 = vunpack.c.l.b16 %v4136
        %v4234 = vunpack.c.h.b16 %v4136
        %v4235 = vunpack.c.l.b16 %v4137
        %v4236 = vunpack.c.h.b16 %v4137
        %v4237 = vunpack.c.l.b16 %v4138
        %v4238 = vunpack.c.h.b16 %v4138
        %v4239 = vunpack.c.l.b16 %v4139
        %v4240 = vunpack.c.h.b16 %v4139
        %v4241 = vunpack.c.l.b16 %v4140
        %v4242 = vunpack.c.h.b16 %v4140
        %v4243 = vunpack.c.l.b16 %v4141
        %v4244 = vunpack.c.h.b16 %v4141
        %v4245 = vpack.c.b16 %v4183, %v4181
        %v4246 = vpack.c.b16 %v4184, %v4182
        %v4247 = vpack.c.b16 %v4187, %v4185
        %v4248 = vpack.c.b16 %v4188, %v4186
        %v4249 = vpack.c.b16 %v4191, %v4189
        %v4250 = vpack.c.b16 %v4192, %v4190
        %v4251 = vpack.c.b16 %v4195, %v4193
        %v4252 = vpack.c.b16 %v4196, %v4194
        %v4253 = vpack.c.b16 %v4199, %v4197
        %v4254 = vpack.c.b16 %v4200, %v4198
        %v4255 = vpack.c.b16 %v4203, %v4201
        %v4256 = vpack.c.b16 %v4204, %v4202
        %v4257 = vpack.c.b16 %v4207, %v4205
        %v4258 = vpack.c.b16 %v4208, %v4206
        %v4259 = vpack.c.b16 %v4211, %v4209
        %v4260 = vpack.c.b16 %v4212, %v4210
        %v4261 = vpack.c.b16 %v4215, %v4213
        %v4262 = vpack.c.b16 %v4216, %v4214
        %v4263 = vpack.c.b16 %v4219, %v4217
        %v4264 = vpack.c.b16 %v4220, %v4218
        %v4265 = vpack.c.b16 %v4223, %v4221
        %v4266 = vpack.c.b16 %v4224, %v4222
        %v4267 = vpack.c.b16 %v4227, %v4225
        %v4268 = vpack.c.b16 %v4228, %v4226
        %v4269 = vpack.c.b16 %v4231, %v4229
        %v4270 = vpack.c.b16 %v4232, %v4230
        %v4271 = vpack.c.b16 %v4235, %v4233
        %v4272 = vpack.c.b16 %v4236, %v4234
        %v4273 = vpack.c.b16 %v4239, %v4237
        %v4274 = vpack.c.b16 %v4240, %v4238
        %v4275 = vpack.c.b16 %v4243, %v4241
        %v4276 = vpack.c.b16 %v4244, %v4242
        %4309 = vmatpush.bf16.msra.mxu0 %v4259
        %4310 = vmatpush.bf16.msra.mxu0 %v4257
        %4311 = vmatpush.bf16.msra.mxu0 %v4255
        %4312 = vmatpush.bf16.msra.mxu0 %v4253
        %4313 = vmatpush.bf16.msra.mxu0 %v4251
        %4314 = vmatpush.bf16.msra.mxu0 %v4249
        %4315 = vmatpush.bf16.msra.mxu0 %v4247
        %4316 = vmatpush.bf16.msra.mxu0 %v4245
        %4317 = vmatmul.bf16.gmra.mxu0 %v4093
        %v4318 = vpop.f32.mrf.mxu0
        %v4319 = vadd.f32 %v4145, %v4318
        %v4320 = vpop.f32.mrf.mxu0
        %v4321 = vadd.f32 %v4145, %v4320
        %4322 = vmatmul.bf16.gmra.mxu0 %v4095
        %v4323 = vpop.f32.mrf.mxu0
        %v4324 = vadd.f32 %v4145, %v4323
        %v4325 = vpop.f32.mrf.mxu0
        %v4326 = vadd.f32 %v4145, %v4325
        %4327 = vmatmul.bf16.gmra.mxu0 %v4097
        %v4328 = vpop.f32.mrf.mxu0
        %v4329 = vadd.f32 %v4145, %v4328
        %v4330 = vpop.f32.mrf.mxu0
        %v4331 = vadd.f32 %v4145, %v4330
        %4332 = vmatmul.bf16.gmra.mxu0 %v4099
        %v4333 = vpop.f32.mrf.mxu0
        %v4334 = vadd.f32 %v4145, %v4333
        %v4335 = vpop.f32.mrf.mxu0
        %v4336 = vadd.f32 %v4145, %v4335
        %4337 = vmatmul.bf16.gmra.mxu0 %v4101
        %v4338 = vpop.f32.mrf.mxu0
        %v4339 = vadd.f32 %v4145, %v4338
        %v4340 = vpop.f32.mrf.mxu0
        %v4341 = vadd.f32 %v4145, %v4340
        %4342 = vmatmul.bf16.gmra.mxu0 %v4103
        %v4343 = vpop.f32.mrf.mxu0
        %v4344 = vadd.f32 %v4145, %v4343
        %v4345 = vpop.f32.mrf.mxu0
        %v4346 = vadd.f32 %v4145, %v4345
        %4347 = vmatmul.bf16.gmra.mxu0 %v4105
        %v4348 = vpop.f32.mrf.mxu0
        %v4349 = vadd.f32 %v4145, %v4348
        %v4350 = vpop.f32.mrf.mxu0
        %v4351 = vadd.f32 %v4145, %v4350
        %4352 = vmatmul.bf16.gmra.mxu0 %v4107
        %v4353 = vpop.f32.mrf.mxu0
        %v4354 = vadd.f32 %v4145, %v4353
        %v4355 = vpop.f32.mrf.mxu0
        %v4356 = vadd.f32 %v4145, %v4355
        %4357 = vdwg.mxu0
        %4358 = vmatpush.bf16.msra.mxu0 %v4275
        %4359 = vmatpush.bf16.msra.mxu0 %v4273
        %4360 = vmatpush.bf16.msra.mxu0 %v4271
        %4361 = vmatpush.bf16.msra.mxu0 %v4269
        %4362 = vmatpush.bf16.msra.mxu0 %v4267
        %4363 = vmatpush.bf16.msra.mxu0 %v4265
        %4364 = vmatpush.bf16.msra.mxu0 %v4263
        %4365 = vmatpush.bf16.msra.mxu0 %v4261
        %4366 = vmatmul.bf16.gmra.mxu0 %v4094
        %v4367 = vpop.f32.mrf.mxu0
        %v4368 = vadd.f32 %v4319, %v4367
        %v4369 = vpop.f32.mrf.mxu0
        %v4370 = vadd.f32 %v4321, %v4369
        %4371 = vmatmul.bf16.gmra.mxu0 %v4096
        %v4372 = vpop.f32.mrf.mxu0
        %v4373 = vadd.f32 %v4324, %v4372
        %v4374 = vpop.f32.mrf.mxu0
        %v4375 = vadd.f32 %v4326, %v4374
        %4376 = vmatmul.bf16.gmra.mxu0 %v4098
        %v4377 = vpop.f32.mrf.mxu0
        %v4378 = vadd.f32 %v4329, %v4377
        %v4379 = vpop.f32.mrf.mxu0
        %v4380 = vadd.f32 %v4331, %v4379
        %4381 = vmatmul.bf16.gmra.mxu0 %v4100
        %v4382 = vpop.f32.mrf.mxu0
        %v4383 = vadd.f32 %v4334, %v4382
        %v4384 = vpop.f32.mrf.mxu0
        %v4385 = vadd.f32 %v4336, %v4384
        %4386 = vmatmul.bf16.gmra.mxu0 %v4102
        %v4387 = vpop.f32.mrf.mxu0
        %v4388 = vadd.f32 %v4339, %v4387
        %v4389 = vpop.f32.mrf.mxu0
        %v4390 = vadd.f32 %v4341, %v4389
        %4391 = vmatmul.bf16.gmra.mxu0 %v4104
        %v4392 = vpop.f32.mrf.mxu0
        %v4393 = vadd.f32 %v4344, %v4392
        %v4394 = vpop.f32.mrf.mxu0
        %v4395 = vadd.f32 %v4346, %v4394
        %4396 = vmatmul.bf16.gmra.mxu0 %v4106
        %v4397 = vpop.f32.mrf.mxu0
        %v4398 = vadd.f32 %v4349, %v4397
        %v4399 = vpop.f32.mrf.mxu0
        %v4400 = vadd.f32 %v4351, %v4399
        %4401 = vmatmul.bf16.gmra.mxu0 %v4108
        %v4402 = vpop.f32.mrf.mxu0
        %v4403 = vadd.f32 %v4354, %v4402
        %v4404 = vpop.f32.mrf.mxu0
        %v4405 = vadd.f32 %v4356, %v4404
        %4406 = vdwg.mxu0
        %4407 = vmatpush.bf16.msra.mxu0 %v4260
        %4408 = vmatpush.bf16.msra.mxu0 %v4258
        %4409 = vmatpush.bf16.msra.mxu0 %v4256
        %4410 = vmatpush.bf16.msra.mxu0 %v4254
        %4411 = vmatpush.bf16.msra.mxu0 %v4252
        %4412 = vmatpush.bf16.msra.mxu0 %v4250
        %4413 = vmatpush.bf16.msra.mxu0 %v4248
        %4414 = vmatpush.bf16.msra.mxu0 %v4246
        %4415 = vmatmul.bf16.gmra.mxu0 %v4093
        %v4416 = vpop.f32.mrf.mxu0
        %v4417 = vadd.f32 %v4146, %v4416
        %v4418 = vpop.f32.mrf.mxu0
        %v4419 = vadd.f32 %v4146, %v4418
        %4420 = vmatmul.bf16.gmra.mxu0 %v4095
        %v4421 = vpop.f32.mrf.mxu0
        %v4422 = vadd.f32 %v4146, %v4421
        %v4423 = vpop.f32.mrf.mxu0
        %v4424 = vadd.f32 %v4146, %v4423
        %4425 = vmatmul.bf16.gmra.mxu0 %v4097
        %v4426 = vpop.f32.mrf.mxu0
        %v4427 = vadd.f32 %v4146, %v4426
        %v4428 = vpop.f32.mrf.mxu0
        %v4429 = vadd.f32 %v4146, %v4428
        %4430 = vmatmul.bf16.gmra.mxu0 %v4099
        %v4431 = vpop.f32.mrf.mxu0
        %v4432 = vadd.f32 %v4146, %v4431
        %v4433 = vpop.f32.mrf.mxu0
        %v4434 = vadd.f32 %v4146, %v4433
        %4435 = vmatmul.bf16.gmra.mxu0 %v4101
        %v4436 = vpop.f32.mrf.mxu0
        %v4437 = vadd.f32 %v4146, %v4436
        %v4438 = vpop.f32.mrf.mxu0
        %v4439 = vadd.f32 %v4146, %v4438
        %4440 = vmatmul.bf16.gmra.mxu0 %v4103
        %v4441 = vpop.f32.mrf.mxu0
        %v4442 = vadd.f32 %v4146, %v4441
        %v4443 = vpop.f32.mrf.mxu0
        %v4444 = vadd.f32 %v4146, %v4443
        %4445 = vmatmul.bf16.gmra.mxu0 %v4105
        %v4446 = vpop.f32.mrf.mxu0
        %v4447 = vadd.f32 %v4146, %v4446
        %v4448 = vpop.f32.mrf.mxu0
        %v4449 = vadd.f32 %v4146, %v4448
        %4450 = vmatmul.bf16.gmra.mxu0 %v4107
        %v4451 = vpop.f32.mrf.mxu0
        %v4452 = vadd.f32 %v4146, %v4451
        %v4453 = vpop.f32.mrf.mxu0
        %v4454 = vadd.f32 %v4146, %v4453
        %4455 = vdwg.mxu0
        %4456 = vmatpush.bf16.msra.mxu0 %v4276
        %4457 = vmatpush.bf16.msra.mxu0 %v4274
        %4458 = vmatpush.bf16.msra.mxu0 %v4272
        %4459 = vmatpush.bf16.msra.mxu0 %v4270
        %4460 = vmatpush.bf16.msra.mxu0 %v4268
        %4461 = vmatpush.bf16.msra.mxu0 %v4266
        %4462 = vmatpush.bf16.msra.mxu0 %v4264
        %4463 = vmatpush.bf16.msra.mxu0 %v4262
        %4464 = vmatmul.bf16.gmra.mxu0 %v4094
        %v4465 = vpop.f32.mrf.mxu0
        %v4466 = vadd.f32 %v4417, %v4465
        %v4467 = vpop.f32.mrf.mxu0
        %v4468 = vadd.f32 %v4419, %v4467
        %4469 = vmatmul.bf16.gmra.mxu0 %v4096
        %v4470 = vpop.f32.mrf.mxu0
        %v4471 = vadd.f32 %v4422, %v4470
        %v4472 = vpop.f32.mrf.mxu0
        %v4473 = vadd.f32 %v4424, %v4472
        %4474 = vmatmul.bf16.gmra.mxu0 %v4098
        %v4475 = vpop.f32.mrf.mxu0
        %v4476 = vadd.f32 %v4427, %v4475
        %v4477 = vpop.f32.mrf.mxu0
        %v4478 = vadd.f32 %v4429, %v4477
        %4479 = vmatmul.bf16.gmra.mxu0 %v4100
        %v4480 = vpop.f32.mrf.mxu0
        %v4481 = vadd.f32 %v4432, %v4480
        %v4482 = vpop.f32.mrf.mxu0
        %v4483 = vadd.f32 %v4434, %v4482
        %4484 = vmatmul.bf16.gmra.mxu0 %v4102
        %v4485 = vpop.f32.mrf.mxu0
        %v4486 = vadd.f32 %v4437, %v4485
        %v4487 = vpop.f32.mrf.mxu0
        %v4488 = vadd.f32 %v4439, %v4487
        %4489 = vmatmul.bf16.gmra.mxu0 %v4104
        %v4490 = vpop.f32.mrf.mxu0
        %v4491 = vadd.f32 %v4442, %v4490
        %v4492 = vpop.f32.mrf.mxu0
        %v4493 = vadd.f32 %v4444, %v4492
        %4494 = vmatmul.bf16.gmra.mxu0 %v4106
        %v4495 = vpop.f32.mrf.mxu0
        %v4496 = vadd.f32 %v4447, %v4495
        %v4497 = vpop.f32.mrf.mxu0
        %v4498 = vadd.f32 %v4449, %v4497
        %4499 = vmatmul.bf16.gmra.mxu0 %v4108
        %v4500 = vpop.f32.mrf.mxu0
        %v4501 = vadd.f32 %v4452, %v4500
        %v4502 = vpop.f32.mrf.mxu0
        %v4503 = vadd.f32 %v4454, %v4502
        %4504 = vdwg.mxu0
        %v4505 = vadd.f32 %v4368, %v4061
        %v4506 = vadd.f32 %v4466, %v4062
        %v4507 = vadd.f32 %v4370, %v4063
        %v4508 = vadd.f32 %v4468, %v4064
        %v4509 = vadd.f32 %v4373, %v4065
        %v4510 = vadd.f32 %v4471, %v4066
        %v4511 = vadd.f32 %v4375, %v4067
        %v4512 = vadd.f32 %v4473, %v4068
        %v4513 = vadd.f32 %v4378, %v4069
        %v4514 = vadd.f32 %v4476, %v4070
        %v4515 = vadd.f32 %v4380, %v4071
        %v4516 = vadd.f32 %v4478, %v4072
        %v4517 = vadd.f32 %v4383, %v4073
        %v4518 = vadd.f32 %v4481, %v4074
        %v4519 = vadd.f32 %v4385, %v4075
        %v4520 = vadd.f32 %v4483, %v4076
        %v4521 = vadd.f32 %v4388, %v4077
        %v4522 = vadd.f32 %v4486, %v4078
        %v4523 = vadd.f32 %v4390, %v4079
        %v4524 = vadd.f32 %v4488, %v4080
        %v4525 = vadd.f32 %v4393, %v4081
        %v4526 = vadd.f32 %v4491, %v4082
        %v4527 = vadd.f32 %v4395, %v4083
        %v4528 = vadd.f32 %v4493, %v4084
        %v4529 = vadd.f32 %v4398, %v4085
        %v4530 = vadd.f32 %v4496, %v4086
        %v4531 = vadd.f32 %v4400, %v4087
        %v4532 = vadd.f32 %v4498, %v4088
        %v4533 = vadd.f32 %v4403, %v4089
        %v4534 = vadd.f32 %v4501, %v4090
        %v4535 = vadd.f32 %v4405, %v4091
        %v4536 = vadd.f32 %v4503, %v4092
        %v4537 = vmax.f32 %v4505, 0.0
        %v4538 = vmax.f32 %v4506, 0.0
        %v4539 = vmax.f32 %v4507, 0.0
        %v4540 = vmax.f32 %v4508, 0.0
        %v4541 = vmax.f32 %v4509, 0.0
        %v4542 = vmax.f32 %v4510, 0.0
        %v4543 = vmax.f32 %v4511, 0.0
        %v4544 = vmax.f32 %v4512, 0.0
        %v4545 = vmax.f32 %v4513, 0.0
        %v4546 = vmax.f32 %v4514, 0.0
        %v4547 = vmax.f32 %v4515, 0.0
        %v4548 = vmax.f32 %v4516, 0.0
        %v4549 = vmax.f32 %v4517, 0.0
        %v4550 = vmax.f32 %v4518, 0.0
        %v4551 = vmax.f32 %v4519, 0.0
        %v4552 = vmax.f32 %v4520, 0.0
        %v4553 = vmax.f32 %v4521, 0.0
        %v4554 = vmax.f32 %v4522, 0.0
        %v4555 = vmax.f32 %v4523, 0.0
        %v4556 = vmax.f32 %v4524, 0.0
        %v4557 = vmax.f32 %v4525, 0.0
        %v4558 = vmax.f32 %v4526, 0.0
        %v4559 = vmax.f32 %v4527, 0.0
        %v4560 = vmax.f32 %v4528, 0.0
        %v4561 = vmax.f32 %v4529, 0.0
        %v4562 = vmax.f32 %v4530, 0.0
        %v4563 = vmax.f32 %v4531, 0.0
        %v4564 = vmax.f32 %v4532, 0.0
        %v4565 = vmax.f32 %v4533, 0.0
        %v4566 = vmax.f32 %v4534, 0.0
        %v4567 = vmax.f32 %v4535, 0.0
        %v4568 = vmax.f32 %v4536, 0.0
        %4569 = vst [vmem:[#allocation2] sm:$0xff] %v4537
        %4570 = vst [vmem:[#allocation2 + $0x8] sm:$0xff] %v4538
        %4571 = vst [vmem:[#allocation2 + $0x10] sm:$0xff] %v4539
        %4572 = vst [vmem:[#allocation2 + $0x18] sm:$0xff] %v4540
        %4573 = vst [vmem:[#allocation2 + $0x20] sm:$0xff] %v4541
        %4574 = vst [vmem:[#allocation2 + $0x28] sm:$0xff] %v4542
        %4575 = vst [vmem:[#allocation2 + $0x30] sm:$0xff] %v4543
        %4576 = vst [vmem:[#allocation2 + $0x38] sm:$0xff] %v4544
        %4577 = vst [vmem:[#allocation2 + $0x40] sm:$0xff] %v4545
        %4578 = vst [vmem:[#allocation2 + $0x48] sm:$0xff] %v4546
        %4579 = vst [vmem:[#allocation2 + $0x50] sm:$0xff] %v4547
        %4580 = vst [vmem:[#allocation2 + $0x58] sm:$0xff] %v4548
        %4581 = vst [vmem:[#allocation2 + $0x60] sm:$0xff] %v4549
        %4582 = vst [vmem:[#allocation2 + $0x68] sm:$0xff] %v4550
        %4583 = vst [vmem:[#allocation2 + $0x70] sm:$0xff] %v4551
        %4584 = vst [vmem:[#allocation2 + $0x78] sm:$0xff] %v4552
        %4585 = vst [vmem:[#allocation2 + $0x80] sm:$0xff] %v4553
        %4586 = vst [vmem:[#allocation2 + $0x88] sm:$0xff] %v4554
        %4587 = vst [vmem:[#allocation2 + $0x90] sm:$0xff] %v4555
        %4588 = vst [vmem:[#allocation2 + $0x98] sm:$0xff] %v4556
        %4589 = vst [vmem:[#allocation2 + $0xa0] sm:$0xff] %v4557
        %4590 = vst [vmem:[#allocation2 + $0xa8] sm:$0xff] %v4558
        %4591 = vst [vmem:[#allocation2 + $0xb0] sm:$0xff] %v4559
        %4592 = vst [vmem:[#allocation2 + $0xb8] sm:$0xff] %v4560
        %4593 = vst [vmem:[#allocation2 + $0xc0] sm:$0xff] %v4561
        %4594 = vst [vmem:[#allocation2 + $0xc8] sm:$0xff] %v4562
        %4595 = vst [vmem:[#allocation2 + $0xd0] sm:$0xff] %v4563
        %4596 = vst [vmem:[#allocation2 + $0xd8] sm:$0xff] %v4564
        %4597 = vst [vmem:[#allocation2 + $0xe0] sm:$0xff] %v4565
        %4598 = vst [vmem:[#allocation2 + $0xe8] sm:$0xff] %v4566
        %4599 = vst [vmem:[#allocation2 + $0xf0] sm:$0xff] %v4567
        %4600 = vst [vmem:[#allocation2 + $0xf8] sm:$0xff] %v4568
        %v4601 = vld [vmem:[#allocation2] sm:$0xff]
        %v4602 = vld [vmem:[#allocation2 + $0x8] sm:$0xff]
        %v4603 = vld [vmem:[#allocation2 + $0x10] sm:$0xff]
        %v4604 = vld [vmem:[#allocation2 + $0x18] sm:$0xff]
        %v4605 = vld [vmem:[#allocation2 + $0x20] sm:$0xff]
        %v4606 = vld [vmem:[#allocation2 + $0x28] sm:$0xff]
        %v4607 = vld [vmem:[#allocation2 + $0x30] sm:$0xff]
        %v4608 = vld [vmem:[#allocation2 + $0x38] sm:$0xff]
        %v4609 = vld [vmem:[#allocation2 + $0x40] sm:$0xff]
        %v4610 = vld [vmem:[#allocation2 + $0x48] sm:$0xff]
        %v4611 = vld [vmem:[#allocation2 + $0x50] sm:$0xff]
        %v4612 = vld [vmem:[#allocation2 + $0x58] sm:$0xff]
        %v4613 = vld [vmem:[#allocation2 + $0x60] sm:$0xff]
        %v4614 = vld [vmem:[#allocation2 + $0x68] sm:$0xff]
        %v4615 = vld [vmem:[#allocation2 + $0x70] sm:$0xff]
        %v4616 = vld [vmem:[#allocation2 + $0x78] sm:$0xff]
        %v4617 = vld [vmem:[#allocation2 + $0x80] sm:$0xff]
        %v4618 = vld [vmem:[#allocation2 + $0x88] sm:$0xff]
        %v4619 = vld [vmem:[#allocation2 + $0x90] sm:$0xff]
        %v4620 = vld [vmem:[#allocation2 + $0x98] sm:$0xff]
        %v4621 = vld [vmem:[#allocation2 + $0xa0] sm:$0xff]
        %v4622 = vld [vmem:[#allocation2 + $0xa8] sm:$0xff]
        %v4623 = vld [vmem:[#allocation2 + $0xb0] sm:$0xff]
        %v4624 = vld [vmem:[#allocation2 + $0xb8] sm:$0xff]
        %v4625 = vld [vmem:[#allocation2 + $0xc0] sm:$0xff]
        %v4626 = vld [vmem:[#allocation2 + $0xc8] sm:$0xff]
        %v4627 = vld [vmem:[#allocation2 + $0xd0] sm:$0xff]
        %v4628 = vld [vmem:[#allocation2 + $0xd8] sm:$0xff]
        %v4629 = vld [vmem:[#allocation2 + $0xe0] sm:$0xff]
        %v4630 = vld [vmem:[#allocation2 + $0xe8] sm:$0xff]
        %v4631 = vld [vmem:[#allocation2 + $0xf0] sm:$0xff]
        %v4632 = vld [vmem:[#allocation2 + $0xf8] sm:$0xff]
        %v4633 = vld [vmem:[#allocation13] sm:$0x3]
        %v4635 = vperm.slane %v4633, 0
        %v4636 = vperm.slane %v4633, 1
        %v4639 = vmul.f32 %v4601, %v4635
        %v4640 = vmul.f32 %v4602, %v4636
        %v4641 = vmul.f32 %v4603, %v4635
        %v4642 = vmul.f32 %v4604, %v4636
        %v4643 = vmul.f32 %v4605, %v4635
        %v4644 = vmul.f32 %v4606, %v4636
        %v4645 = vmul.f32 %v4607, %v4635
        %v4646 = vmul.f32 %v4608, %v4636
        %v4647 = vmul.f32 %v4609, %v4635
        %v4648 = vmul.f32 %v4610, %v4636
        %v4649 = vmul.f32 %v4611, %v4635
        %v4650 = vmul.f32 %v4612, %v4636
        %v4651 = vmul.f32 %v4613, %v4635
        %v4652 = vmul.f32 %v4614, %v4636
        %v4653 = vmul.f32 %v4615, %v4635
        %v4654 = vmul.f32 %v4616, %v4636
        %v4655 = vmul.f32 %v4617, %v4635
        %v4656 = vmul.f32 %v4618, %v4636
        %v4657 = vmul.f32 %v4619, %v4635
        %v4658 = vmul.f32 %v4620, %v4636
        %v4659 = vmul.f32 %v4621, %v4635
        %v4660 = vmul.f32 %v4622, %v4636
        %v4661 = vmul.f32 %v4623, %v4635
        %v4662 = vmul.f32 %v4624, %v4636
        %v4663 = vmul.f32 %v4625, %v4635
        %v4664 = vmul.f32 %v4626, %v4636
        %v4665 = vmul.f32 %v4627, %v4635
        %v4666 = vmul.f32 %v4628, %v4636
        %v4667 = vmul.f32 %v4629, %v4635
        %v4668 = vmul.f32 %v4630, %v4636
        %v4669 = vmul.f32 %v4631, %v4635
        %v4670 = vmul.f32 %v4632, %v4636
        %v4671 = vadd.f32 %v4639, %v4640
        %4672 = vadd.xlane.f32.xlu0 %v4671
        %v4673 = vpop.xlane.xlu0 %4672
        %v4674 = vadd.f32 %v4641, %v4642
        %4675 = vadd.xlane.f32.xlu0 %v4674
        %v4676 = vpop.xlane.xlu0 %4675
        %v4677 = vadd.f32 %v4643, %v4644
        %4678 = vadd.xlane.f32.xlu0 %v4677
        %v4679 = vpop.xlane.xlu0 %4678
        %v4680 = vadd.f32 %v4645, %v4646
        %4681 = vadd.xlane.f32.xlu0 %v4680
        %v4682 = vpop.xlane.xlu0 %4681
        %v4683 = vadd.f32 %v4647, %v4648
        %4684 = vadd.xlane.f32.xlu0 %v4683
        %v4685 = vpop.xlane.xlu0 %4684
        %v4686 = vadd.f32 %v4649, %v4650
        %4687 = vadd.xlane.f32.xlu0 %v4686
        %v4688 = vpop.xlane.xlu0 %4687
        %v4689 = vadd.f32 %v4651, %v4652
        %4690 = vadd.xlane.f32.xlu0 %v4689
        %v4691 = vpop.xlane.xlu0 %4690
        %v4692 = vadd.f32 %v4653, %v4654
        %4693 = vadd.xlane.f32.xlu0 %v4692
        %v4694 = vpop.xlane.xlu0 %4693
        %v4695 = vadd.f32 %v4655, %v4656
        %4696 = vadd.xlane.f32.xlu0 %v4695
        %v4697 = vpop.xlane.xlu0 %4696
        %v4698 = vadd.f32 %v4657, %v4658
        %4699 = vadd.xlane.f32.xlu0 %v4698
        %v4700 = vpop.xlane.xlu0 %4699
        %v4701 = vadd.f32 %v4659, %v4660
        %4702 = vadd.xlane.f32.xlu0 %v4701
        %v4703 = vpop.xlane.xlu0 %4702
        %v4704 = vadd.f32 %v4661, %v4662
        %4705 = vadd.xlane.f32.xlu0 %v4704
        %v4706 = vpop.xlane.xlu0 %4705
        %v4707 = vadd.f32 %v4663, %v4664
        %4708 = vadd.xlane.f32.xlu0 %v4707
        %v4709 = vpop.xlane.xlu0 %4708
        %v4710 = vadd.f32 %v4665, %v4666
        %4711 = vadd.xlane.f32.xlu0 %v4710
        %v4712 = vpop.xlane.xlu0 %4711
        %v4713 = vadd.f32 %v4667, %v4668
        %4714 = vadd.xlane.f32.xlu0 %v4713
        %v4715 = vpop.xlane.xlu0 %4714
        %v4716 = vadd.f32 %v4669, %v4670
        %4717 = vadd.xlane.f32.xlu0 %v4716
        %v4718 = vpop.xlane.xlu0 %4717
        %v4719 = vld [vmem:[#allocation3] sm:$0x1]
        %v4721 = vperm.slane %v4719, 0
        %v4723 = vadd.f32 %v4673, %v4721
        %v4724 = vadd.f32 %v4676, %v4721
        %v4725 = vadd.f32 %v4679, %v4721
        %v4726 = vadd.f32 %v4682, %v4721
        %v4727 = vadd.f32 %v4685, %v4721
        %v4728 = vadd.f32 %v4688, %v4721
        %v4729 = vadd.f32 %v4691, %v4721
        %v4730 = vadd.f32 %v4694, %v4721
        %v4731 = vadd.f32 %v4697, %v4721
        %v4732 = vadd.f32 %v4700, %v4721
        %v4733 = vadd.f32 %v4703, %v4721
        %v4734 = vadd.f32 %v4706, %v4721
        %v4735 = vadd.f32 %v4709, %v4721
        %v4736 = vadd.f32 %v4712, %v4721
        %v4737 = vadd.f32 %v4715, %v4721
        %v4738 = vadd.f32 %v4718, %v4721
        %vm4739 = vcmask 7168
        %4740 = vst.msk [vmem:[%s493] sm:$0xff] %vm4739, %v4723
        %4741 = vst.msk [vmem:[%s493 + $0x8] sm:$0xff] %vm4739, %v4724
        %4742 = vst.msk [vmem:[%s493 + $0x10] sm:$0xff] %vm4739, %v4725
        %4743 = vst.msk [vmem:[%s493 + $0x18] sm:$0xff] %vm4739, %v4726
        %4744 = vst.msk [vmem:[%s493 + $0x20] sm:$0xff] %vm4739, %v4727
        %4745 = vst.msk [vmem:[%s493 + $0x28] sm:$0xff] %vm4739, %v4728
        %4746 = vst.msk [vmem:[%s493 + $0x30] sm:$0xff] %vm4739, %v4729
        %4747 = vst.msk [vmem:[%s493 + $0x38] sm:$0xff] %vm4739, %v4730
        %4748 = vst.msk [vmem:[%s493 + $0x40] sm:$0xff] %vm4739, %v4731
        %4749 = vst.msk [vmem:[%s493 + $0x48] sm:$0xff] %vm4739, %v4732
        %4750 = vst.msk [vmem:[%s493 + $0x50] sm:$0xff] %vm4739, %v4733
        %4751 = vst.msk [vmem:[%s493 + $0x58] sm:$0xff] %vm4739, %v4734
        %4752 = vst.msk [vmem:[%s493 + $0x60] sm:$0xff] %vm4739, %v4735
        %4753 = vst.msk [vmem:[%s493 + $0x68] sm:$0xff] %vm4739, %v4736
        %4754 = vst.msk [vmem:[%s493 + $0x70] sm:$0xff] %vm4739, %v4737
        %4755 = vst.msk [vmem:[%s493 + $0x78] sm:$0xff] %vm4739, %v4738
        %v4756 = vld [vmem:[#allocation2] sm:$0xff]
        %v4757 = vld [vmem:[#allocation2 + $0x8] sm:$0xff]
        %v4758 = vld [vmem:[#allocation2 + $0x10] sm:$0xff]
        %v4759 = vld [vmem:[#allocation2 + $0x18] sm:$0xff]
        %v4760 = vld [vmem:[#allocation2 + $0x20] sm:$0xff]
        %v4761 = vld [vmem:[#allocation2 + $0x28] sm:$0xff]
        %v4762 = vld [vmem:[#allocation2 + $0x30] sm:$0xff]
        %v4763 = vld [vmem:[#allocation2 + $0x38] sm:$0xff]
        %v4764 = vld [vmem:[#allocation2 + $0x40] sm:$0xff]
        %v4765 = vld [vmem:[#allocation2 + $0x48] sm:$0xff]
        %v4766 = vld [vmem:[#allocation2 + $0x50] sm:$0xff]
        %v4767 = vld [vmem:[#allocation2 + $0x58] sm:$0xff]
        %v4768 = vld [vmem:[#allocation2 + $0x60] sm:$0xff]
        %v4769 = vld [vmem:[#allocation2 + $0x68] sm:$0xff]
        %v4770 = vld [vmem:[#allocation2 + $0x70] sm:$0xff]
        %v4771 = vld [vmem:[#allocation2 + $0x78] sm:$0xff]
        %v4772 = vld [vmem:[#allocation2 + $0x80] sm:$0xff]
        %v4773 = vld [vmem:[#allocation2 + $0x88] sm:$0xff]
        %v4774 = vld [vmem:[#allocation2 + $0x90] sm:$0xff]
        %v4775 = vld [vmem:[#allocation2 + $0x98] sm:$0xff]
        %v4776 = vld [vmem:[#allocation2 + $0xa0] sm:$0xff]
        %v4777 = vld [vmem:[#allocation2 + $0xa8] sm:$0xff]
        %v4778 = vld [vmem:[#allocation2 + $0xb0] sm:$0xff]
        %v4779 = vld [vmem:[#allocation2 + $0xb8] sm:$0xff]
        %v4780 = vld [vmem:[#allocation2 + $0xc0] sm:$0xff]
        %v4781 = vld [vmem:[#allocation2 + $0xc8] sm:$0xff]
        %v4782 = vld [vmem:[#allocation2 + $0xd0] sm:$0xff]
        %v4783 = vld [vmem:[#allocation2 + $0xd8] sm:$0xff]
        %v4784 = vld [vmem:[#allocation2 + $0xe0] sm:$0xff]
        %v4785 = vld [vmem:[#allocation2 + $0xe8] sm:$0xff]
        %v4786 = vld [vmem:[#allocation2 + $0xf0] sm:$0xff]
        %v4787 = vld [vmem:[#allocation2 + $0xf8] sm:$0xff]
        %v4788 = vpack.c.bf16 %v4758, %v4756
        %v4789 = vpack.c.bf16 %v4759, %v4757
        %v4790 = vpack.c.bf16 %v4762, %v4760
        %v4791 = vpack.c.bf16 %v4763, %v4761
        %v4792 = vpack.c.bf16 %v4766, %v4764
        %v4793 = vpack.c.bf16 %v4767, %v4765
        %v4794 = vpack.c.bf16 %v4770, %v4768
        %v4795 = vpack.c.bf16 %v4771, %v4769
        %v4796 = vpack.c.bf16 %v4774, %v4772
        %v4797 = vpack.c.bf16 %v4775, %v4773
        %v4798 = vpack.c.bf16 %v4778, %v4776
        %v4799 = vpack.c.bf16 %v4779, %v4777
        %v4800 = vpack.c.bf16 %v4782, %v4780
        %v4801 = vpack.c.bf16 %v4783, %v4781
        %v4802 = vpack.c.bf16 %v4786, %v4784
        %v4803 = vpack.c.bf16 %v4787, %v4785
        %s4804 = scalar_lea.vmem [#allocation10], 1792
        %v4805 = vld [vmem:[%s4804] sm:$0xff]
        %v4806 = vld [vmem:[%s4804 + $0x8] sm:$0xff]
        %v4807 = vld [vmem:[%s4804 + $0x10] sm:$0xff]
        %v4808 = vld [vmem:[%s4804 + $0x18] sm:$0xff]
        %v4809 = vld [vmem:[%s4804 + $0x20] sm:$0xff]
        %v4810 = vld [vmem:[%s4804 + $0x28] sm:$0xff]
        %v4811 = vld [vmem:[%s4804 + $0x30] sm:$0xff]
        %v4812 = vld [vmem:[%s4804 + $0x38] sm:$0xff]
        %v4813 = vld [vmem:[%s4804 + $0x40] sm:$0xff]
        %v4814 = vld [vmem:[%s4804 + $0x48] sm:$0xff]
        %v4815 = vld [vmem:[%s4804 + $0x50] sm:$0xff]
        %v4816 = vld [vmem:[%s4804 + $0x58] sm:$0xff]
        %v4817 = vld [vmem:[%s4804 + $0x60] sm:$0xff]
        %v4818 = vld [vmem:[%s4804 + $0x68] sm:$0xff]
        %v4819 = vld [vmem:[%s4804 + $0x70] sm:$0xff]
        %v4820 = vld [vmem:[%s4804 + $0x78] sm:$0xff]
        %v4821 = vld [vmem:[%s4804 + $0x80] sm:$0xff]
        %v4822 = vld [vmem:[%s4804 + $0x88] sm:$0xff]
        %v4823 = vld [vmem:[%s4804 + $0x90] sm:$0xff]
        %v4824 = vld [vmem:[%s4804 + $0x98] sm:$0xff]
        %v4825 = vld [vmem:[%s4804 + $0xa0] sm:$0xff]
        %v4826 = vld [vmem:[%s4804 + $0xa8] sm:$0xff]
        %v4827 = vld [vmem:[%s4804 + $0xb0] sm:$0xff]
        %v4828 = vld [vmem:[%s4804 + $0xb8] sm:$0xff]
        %v4829 = vld [vmem:[%s4804 + $0xc0] sm:$0xff]
        %v4830 = vld [vmem:[%s4804 + $0xc8] sm:$0xff]
        %v4831 = vld [vmem:[%s4804 + $0xd0] sm:$0xff]
        %v4832 = vld [vmem:[%s4804 + $0xd8] sm:$0xff]
        %v4833 = vld [vmem:[%s4804 + $0xe0] sm:$0xff]
        %v4834 = vld [vmem:[%s4804 + $0xe8] sm:$0xff]
        %v4835 = vld [vmem:[%s4804 + $0xf0] sm:$0xff]
        %v4836 = vld [vmem:[%s4804 + $0xf8] sm:$0xff]
        %s4837 = scalar_lea.vmem [#allocation12], 14
        %v4838 = vld [vmem:[%s4837] sm:$0x3]
        %v4840 = vperm.slane %v4838, 0
        %v4841 = vperm.slane %v4838, 1
        %v4876 = vunpack.c.l.b16 %v4805
        %v4877 = vunpack.c.h.b16 %v4805
        %v4878 = vunpack.c.l.b16 %v4806
        %v4879 = vunpack.c.h.b16 %v4806
        %v4880 = vunpack.c.l.b16 %v4807
        %v4881 = vunpack.c.h.b16 %v4807
        %v4882 = vunpack.c.l.b16 %v4808
        %v4883 = vunpack.c.h.b16 %v4808
        %v4884 = vunpack.c.l.b16 %v4809
        %v4885 = vunpack.c.h.b16 %v4809
        %v4886 = vunpack.c.l.b16 %v4810
        %v4887 = vunpack.c.h.b16 %v4810
        %v4888 = vunpack.c.l.b16 %v4811
        %v4889 = vunpack.c.h.b16 %v4811
        %v4890 = vunpack.c.l.b16 %v4812
        %v4891 = vunpack.c.h.b16 %v4812
        %v4892 = vunpack.c.l.b16 %v4813
        %v4893 = vunpack.c.h.b16 %v4813
        %v4894 = vunpack.c.l.b16 %v4814
        %v4895 = vunpack.c.h.b16 %v4814
        %v4896 = vunpack.c.l.b16 %v4815
        %v4897 = vunpack.c.h.b16 %v4815
        %v4898 = vunpack.c.l.b16 %v4816
        %v4899 = vunpack.c.h.b16 %v4816
        %v4900 = vunpack.c.l.b16 %v4817
        %v4901 = vunpack.c.h.b16 %v4817
        %v4902 = vunpack.c.l.b16 %v4818
        %v4903 = vunpack.c.h.b16 %v4818
        %v4904 = vunpack.c.l.b16 %v4819
        %v4905 = vunpack.c.h.b16 %v4819
        %v4906 = vunpack.c.l.b16 %v4820
        %v4907 = vunpack.c.h.b16 %v4820
        %v4908 = vunpack.c.l.b16 %v4821
        %v4909 = vunpack.c.h.b16 %v4821
        %v4910 = vunpack.c.l.b16 %v4822
        %v4911 = vunpack.c.h.b16 %v4822
        %v4912 = vunpack.c.l.b16 %v4823
        %v4913 = vunpack.c.h.b16 %v4823
        %v4914 = vunpack.c.l.b16 %v4824
        %v4915 = vunpack.c.h.b16 %v4824
        %v4916 = vunpack.c.l.b16 %v4825
        %v4917 = vunpack.c.h.b16 %v4825
        %v4918 = vunpack.c.l.b16 %v4826
        %v4919 = vunpack.c.h.b16 %v4826
        %v4920 = vunpack.c.l.b16 %v4827
        %v4921 = vunpack.c.h.b16 %v4827
        %v4922 = vunpack.c.l.b16 %v4828
        %v4923 = vunpack.c.h.b16 %v4828
        %v4924 = vunpack.c.l.b16 %v4829
        %v4925 = vunpack.c.h.b16 %v4829
        %v4926 = vunpack.c.l.b16 %v4830
        %v4927 = vunpack.c.h.b16 %v4830
        %v4928 = vunpack.c.l.b16 %v4831
        %v4929 = vunpack.c.h.b16 %v4831
        %v4930 = vunpack.c.l.b16 %v4832
        %v4931 = vunpack.c.h.b16 %v4832
        %v4932 = vunpack.c.l.b16 %v4833
        %v4933 = vunpack.c.h.b16 %v4833
        %v4934 = vunpack.c.l.b16 %v4834
        %v4935 = vunpack.c.h.b16 %v4834
        %v4936 = vunpack.c.l.b16 %v4835
        %v4937 = vunpack.c.h.b16 %v4835
        %v4938 = vunpack.c.l.b16 %v4836
        %v4939 = vunpack.c.h.b16 %v4836
        %v4940 = vpack.c.b16 %v4878, %v4876
        %v4941 = vpack.c.b16 %v4879, %v4877
        %v4942 = vpack.c.b16 %v4882, %v4880
        %v4943 = vpack.c.b16 %v4883, %v4881
        %v4944 = vpack.c.b16 %v4886, %v4884
        %v4945 = vpack.c.b16 %v4887, %v4885
        %v4946 = vpack.c.b16 %v4890, %v4888
        %v4947 = vpack.c.b16 %v4891, %v4889
        %v4948 = vpack.c.b16 %v4894, %v4892
        %v4949 = vpack.c.b16 %v4895, %v4893
        %v4950 = vpack.c.b16 %v4898, %v4896
        %v4951 = vpack.c.b16 %v4899, %v4897
        %v4952 = vpack.c.b16 %v4902, %v4900
        %v4953 = vpack.c.b16 %v4903, %v4901
        %v4954 = vpack.c.b16 %v4906, %v4904
        %v4955 = vpack.c.b16 %v4907, %v4905
        %v4956 = vpack.c.b16 %v4910, %v4908
        %v4957 = vpack.c.b16 %v4911, %v4909
        %v4958 = vpack.c.b16 %v4914, %v4912
        %v4959 = vpack.c.b16 %v4915, %v4913
        %v4960 = vpack.c.b16 %v4918, %v4916
        %v4961 = vpack.c.b16 %v4919, %v4917
        %v4962 = vpack.c.b16 %v4922, %v4920
        %v4963 = vpack.c.b16 %v4923, %v4921
        %v4964 = vpack.c.b16 %v4926, %v4924
        %v4965 = vpack.c.b16 %v4927, %v4925
        %v4966 = vpack.c.b16 %v4930, %v4928
        %v4967 = vpack.c.b16 %v4931, %v4929
        %v4968 = vpack.c.b16 %v4934, %v4932
        %v4969 = vpack.c.b16 %v4935, %v4933
        %v4970 = vpack.c.b16 %v4938, %v4936
        %v4971 = vpack.c.b16 %v4939, %v4937
        %5004 = vmatpush.bf16.msra.mxu0 %v4954
        %5005 = vmatpush.bf16.msra.mxu0 %v4952
        %5006 = vmatpush.bf16.msra.mxu0 %v4950
        %5007 = vmatpush.bf16.msra.mxu0 %v4948
        %5008 = vmatpush.bf16.msra.mxu0 %v4946
        %5009 = vmatpush.bf16.msra.mxu0 %v4944
        %5010 = vmatpush.bf16.msra.mxu0 %v4942
        %5011 = vmatpush.bf16.msra.mxu0 %v4940
        %5012 = vmatmul.bf16.gmra.mxu0 %v4788
        %v5013 = vpop.f32.mrf.mxu0
        %v5014 = vadd.f32 %v4840, %v5013
        %v5015 = vpop.f32.mrf.mxu0
        %v5016 = vadd.f32 %v4840, %v5015
        %5017 = vmatmul.bf16.gmra.mxu0 %v4790
        %v5018 = vpop.f32.mrf.mxu0
        %v5019 = vadd.f32 %v4840, %v5018
        %v5020 = vpop.f32.mrf.mxu0
        %v5021 = vadd.f32 %v4840, %v5020
        %5022 = vmatmul.bf16.gmra.mxu0 %v4792
        %v5023 = vpop.f32.mrf.mxu0
        %v5024 = vadd.f32 %v4840, %v5023
        %v5025 = vpop.f32.mrf.mxu0
        %v5026 = vadd.f32 %v4840, %v5025
        %5027 = vmatmul.bf16.gmra.mxu0 %v4794
        %v5028 = vpop.f32.mrf.mxu0
        %v5029 = vadd.f32 %v4840, %v5028
        %v5030 = vpop.f32.mrf.mxu0
        %v5031 = vadd.f32 %v4840, %v5030
        %5032 = vmatmul.bf16.gmra.mxu0 %v4796
        %v5033 = vpop.f32.mrf.mxu0
        %v5034 = vadd.f32 %v4840, %v5033
        %v5035 = vpop.f32.mrf.mxu0
        %v5036 = vadd.f32 %v4840, %v5035
        %5037 = vmatmul.bf16.gmra.mxu0 %v4798
        %v5038 = vpop.f32.mrf.mxu0
        %v5039 = vadd.f32 %v4840, %v5038
        %v5040 = vpop.f32.mrf.mxu0
        %v5041 = vadd.f32 %v4840, %v5040
        %5042 = vmatmul.bf16.gmra.mxu0 %v4800
        %v5043 = vpop.f32.mrf.mxu0
        %v5044 = vadd.f32 %v4840, %v5043
        %v5045 = vpop.f32.mrf.mxu0
        %v5046 = vadd.f32 %v4840, %v5045
        %5047 = vmatmul.bf16.gmra.mxu0 %v4802
        %v5048 = vpop.f32.mrf.mxu0
        %v5049 = vadd.f32 %v4840, %v5048
        %v5050 = vpop.f32.mrf.mxu0
        %v5051 = vadd.f32 %v4840, %v5050
        %5052 = vdwg.mxu0
        %5053 = vmatpush.bf16.msra.mxu0 %v4970
        %5054 = vmatpush.bf16.msra.mxu0 %v4968
        %5055 = vmatpush.bf16.msra.mxu0 %v4966
        %5056 = vmatpush.bf16.msra.mxu0 %v4964
        %5057 = vmatpush.bf16.msra.mxu0 %v4962
        %5058 = vmatpush.bf16.msra.mxu0 %v4960
        %5059 = vmatpush.bf16.msra.mxu0 %v4958
        %5060 = vmatpush.bf16.msra.mxu0 %v4956
        %5061 = vmatmul.bf16.gmra.mxu0 %v4789
        %v5062 = vpop.f32.mrf.mxu0
        %v5063 = vadd.f32 %v5014, %v5062
        %v5064 = vpop.f32.mrf.mxu0
        %v5065 = vadd.f32 %v5016, %v5064
        %5066 = vmatmul.bf16.gmra.mxu0 %v4791
        %v5067 = vpop.f32.mrf.mxu0
        %v5068 = vadd.f32 %v5019, %v5067
        %v5069 = vpop.f32.mrf.mxu0
        %v5070 = vadd.f32 %v5021, %v5069
        %5071 = vmatmul.bf16.gmra.mxu0 %v4793
        %v5072 = vpop.f32.mrf.mxu0
        %v5073 = vadd.f32 %v5024, %v5072
        %v5074 = vpop.f32.mrf.mxu0
        %v5075 = vadd.f32 %v5026, %v5074
        %5076 = vmatmul.bf16.gmra.mxu0 %v4795
        %v5077 = vpop.f32.mrf.mxu0
        %v5078 = vadd.f32 %v5029, %v5077
        %v5079 = vpop.f32.mrf.mxu0
        %v5080 = vadd.f32 %v5031, %v5079
        %5081 = vmatmul.bf16.gmra.mxu0 %v4797
        %v5082 = vpop.f32.mrf.mxu0
        %v5083 = vadd.f32 %v5034, %v5082
        %v5084 = vpop.f32.mrf.mxu0
        %v5085 = vadd.f32 %v5036, %v5084
        %5086 = vmatmul.bf16.gmra.mxu0 %v4799
        %v5087 = vpop.f32.mrf.mxu0
        %v5088 = vadd.f32 %v5039, %v5087
        %v5089 = vpop.f32.mrf.mxu0
        %v5090 = vadd.f32 %v5041, %v5089
        %5091 = vmatmul.bf16.gmra.mxu0 %v4801
        %v5092 = vpop.f32.mrf.mxu0
        %v5093 = vadd.f32 %v5044, %v5092
        %v5094 = vpop.f32.mrf.mxu0
        %v5095 = vadd.f32 %v5046, %v5094
        %5096 = vmatmul.bf16.gmra.mxu0 %v4803
        %v5097 = vpop.f32.mrf.mxu0
        %v5098 = vadd.f32 %v5049, %v5097
        %v5099 = vpop.f32.mrf.mxu0
        %v5100 = vadd.f32 %v5051, %v5099
        %5101 = vdwg.mxu0
        %5102 = vmatpush.bf16.msra.mxu0 %v4955
        %5103 = vmatpush.bf16.msra.mxu0 %v4953
        %5104 = vmatpush.bf16.msra.mxu0 %v4951
        %5105 = vmatpush.bf16.msra.mxu0 %v4949
        %5106 = vmatpush.bf16.msra.mxu0 %v4947
        %5107 = vmatpush.bf16.msra.mxu0 %v4945
        %5108 = vmatpush.bf16.msra.mxu0 %v4943
        %5109 = vmatpush.bf16.msra.mxu0 %v4941
        %5110 = vmatmul.bf16.gmra.mxu0 %v4788
        %v5111 = vpop.f32.mrf.mxu0
        %v5112 = vadd.f32 %v4841, %v5111
        %v5113 = vpop.f32.mrf.mxu0
        %v5114 = vadd.f32 %v4841, %v5113
        %5115 = vmatmul.bf16.gmra.mxu0 %v4790
        %v5116 = vpop.f32.mrf.mxu0
        %v5117 = vadd.f32 %v4841, %v5116
        %v5118 = vpop.f32.mrf.mxu0
        %v5119 = vadd.f32 %v4841, %v5118
        %5120 = vmatmul.bf16.gmra.mxu0 %v4792
        %v5121 = vpop.f32.mrf.mxu0
        %v5122 = vadd.f32 %v4841, %v5121
        %v5123 = vpop.f32.mrf.mxu0
        %v5124 = vadd.f32 %v4841, %v5123
        %5125 = vmatmul.bf16.gmra.mxu0 %v4794
        %v5126 = vpop.f32.mrf.mxu0
        %v5127 = vadd.f32 %v4841, %v5126
        %v5128 = vpop.f32.mrf.mxu0
        %v5129 = vadd.f32 %v4841, %v5128
        %5130 = vmatmul.bf16.gmra.mxu0 %v4796
        %v5131 = vpop.f32.mrf.mxu0
        %v5132 = vadd.f32 %v4841, %v5131
        %v5133 = vpop.f32.mrf.mxu0
        %v5134 = vadd.f32 %v4841, %v5133
        %5135 = vmatmul.bf16.gmra.mxu0 %v4798
        %v5136 = vpop.f32.mrf.mxu0
        %v5137 = vadd.f32 %v4841, %v5136
        %v5138 = vpop.f32.mrf.mxu0
        %v5139 = vadd.f32 %v4841, %v5138
        %5140 = vmatmul.bf16.gmra.mxu0 %v4800
        %v5141 = vpop.f32.mrf.mxu0
        %v5142 = vadd.f32 %v4841, %v5141
        %v5143 = vpop.f32.mrf.mxu0
        %v5144 = vadd.f32 %v4841, %v5143
        %5145 = vmatmul.bf16.gmra.mxu0 %v4802
        %v5146 = vpop.f32.mrf.mxu0
        %v5147 = vadd.f32 %v4841, %v5146
        %v5148 = vpop.f32.mrf.mxu0
        %v5149 = vadd.f32 %v4841, %v5148
        %5150 = vdwg.mxu0
        %5151 = vmatpush.bf16.msra.mxu0 %v4971
        %5152 = vmatpush.bf16.msra.mxu0 %v4969
        %5153 = vmatpush.bf16.msra.mxu0 %v4967
        %5154 = vmatpush.bf16.msra.mxu0 %v4965
        %5155 = vmatpush.bf16.msra.mxu0 %v4963
        %5156 = vmatpush.bf16.msra.mxu0 %v4961
        %5157 = vmatpush.bf16.msra.mxu0 %v4959
        %5158 = vmatpush.bf16.msra.mxu0 %v4957
        %5159 = vmatmul.bf16.gmra.mxu0 %v4789
        %v5160 = vpop.f32.mrf.mxu0
        %v5161 = vadd.f32 %v5112, %v5160
        %v5162 = vpop.f32.mrf.mxu0
        %v5163 = vadd.f32 %v5114, %v5162
        %5164 = vmatmul.bf16.gmra.mxu0 %v4791
        %v5165 = vpop.f32.mrf.mxu0
        %v5166 = vadd.f32 %v5117, %v5165
        %v5167 = vpop.f32.mrf.mxu0
        %v5168 = vadd.f32 %v5119, %v5167
        %5169 = vmatmul.bf16.gmra.mxu0 %v4793
        %v5170 = vpop.f32.mrf.mxu0
        %v5171 = vadd.f32 %v5122, %v5170
        %v5172 = vpop.f32.mrf.mxu0
        %v5173 = vadd.f32 %v5124, %v5172
        %5174 = vmatmul.bf16.gmra.mxu0 %v4795
        %v5175 = vpop.f32.mrf.mxu0
        %v5176 = vadd.f32 %v5127, %v5175
        %v5177 = vpop.f32.mrf.mxu0
        %v5178 = vadd.f32 %v5129, %v5177
        %5179 = vmatmul.bf16.gmra.mxu0 %v4797
        %v5180 = vpop.f32.mrf.mxu0
        %v5181 = vadd.f32 %v5132, %v5180
        %v5182 = vpop.f32.mrf.mxu0
        %v5183 = vadd.f32 %v5134, %v5182
        %5184 = vmatmul.bf16.gmra.mxu0 %v4799
        %v5185 = vpop.f32.mrf.mxu0
        %v5186 = vadd.f32 %v5137, %v5185
        %v5187 = vpop.f32.mrf.mxu0
        %v5188 = vadd.f32 %v5139, %v5187
        %5189 = vmatmul.bf16.gmra.mxu0 %v4801
        %v5190 = vpop.f32.mrf.mxu0
        %v5191 = vadd.f32 %v5142, %v5190
        %v5192 = vpop.f32.mrf.mxu0
        %v5193 = vadd.f32 %v5144, %v5192
        %5194 = vmatmul.bf16.gmra.mxu0 %v4803
        %v5195 = vpop.f32.mrf.mxu0
        %v5196 = vadd.f32 %v5147, %v5195
        %v5197 = vpop.f32.mrf.mxu0
        %v5198 = vadd.f32 %v5149, %v5197
        %5199 = vdwg.mxu0
        %v5200 = vadd.f32 %v5063, %v4756
        %v5201 = vadd.f32 %v5161, %v4757
        %v5202 = vadd.f32 %v5065, %v4758
        %v5203 = vadd.f32 %v5163, %v4759
        %v5204 = vadd.f32 %v5068, %v4760
        %v5205 = vadd.f32 %v5166, %v4761
        %v5206 = vadd.f32 %v5070, %v4762
        %v5207 = vadd.f32 %v5168, %v4763
        %v5208 = vadd.f32 %v5073, %v4764
        %v5209 = vadd.f32 %v5171, %v4765
        %v5210 = vadd.f32 %v5075, %v4766
        %v5211 = vadd.f32 %v5173, %v4767
        %v5212 = vadd.f32 %v5078, %v4768
        %v5213 = vadd.f32 %v5176, %v4769
        %v5214 = vadd.f32 %v5080, %v4770
        %v5215 = vadd.f32 %v5178, %v4771
        %v5216 = vadd.f32 %v5083, %v4772
        %v5217 = vadd.f32 %v5181, %v4773
        %v5218 = vadd.f32 %v5085, %v4774
        %v5219 = vadd.f32 %v5183, %v4775
        %v5220 = vadd.f32 %v5088, %v4776
        %v5221 = vadd.f32 %v5186, %v4777
        %v5222 = vadd.f32 %v5090, %v4778
        %v5223 = vadd.f32 %v5188, %v4779
        %v5224 = vadd.f32 %v5093, %v4780
        %v5225 = vadd.f32 %v5191, %v4781
        %v5226 = vadd.f32 %v5095, %v4782
        %v5227 = vadd.f32 %v5193, %v4783
        %v5228 = vadd.f32 %v5098, %v4784
        %v5229 = vadd.f32 %v5196, %v4785
        %v5230 = vadd.f32 %v5100, %v4786
        %v5231 = vadd.f32 %v5198, %v4787
        %v5232 = vmax.f32 %v5200, 0.0
        %v5233 = vmax.f32 %v5201, 0.0
        %v5234 = vmax.f32 %v5202, 0.0
        %v5235 = vmax.f32 %v5203, 0.0
        %v5236 = vmax.f32 %v5204, 0.0
        %v5237 = vmax.f32 %v5205, 0.0
        %v5238 = vmax.f32 %v5206, 0.0
        %v5239 = vmax.f32 %v5207, 0.0
        %v5240 = vmax.f32 %v5208, 0.0
        %v5241 = vmax.f32 %v5209, 0.0
        %v5242 = vmax.f32 %v5210, 0.0
        %v5243 = vmax.f32 %v5211, 0.0
        %v5244 = vmax.f32 %v5212, 0.0
        %v5245 = vmax.f32 %v5213, 0.0
        %v5246 = vmax.f32 %v5214, 0.0
        %v5247 = vmax.f32 %v5215, 0.0
        %v5248 = vmax.f32 %v5216, 0.0
        %v5249 = vmax.f32 %v5217, 0.0
        %v5250 = vmax.f32 %v5218, 0.0
        %v5251 = vmax.f32 %v5219, 0.0
        %v5252 = vmax.f32 %v5220, 0.0
        %v5253 = vmax.f32 %v5221, 0.0
        %v5254 = vmax.f32 %v5222, 0.0
        %v5255 = vmax.f32 %v5223, 0.0
        %v5256 = vmax.f32 %v5224, 0.0
        %v5257 = vmax.f32 %v5225, 0.0
        %v5258 = vmax.f32 %v5226, 0.0
        %v5259 = vmax.f32 %v5227, 0.0
        %v5260 = vmax.f32 %v5228, 0.0
        %v5261 = vmax.f32 %v5229, 0.0
        %v5262 = vmax.f32 %v5230, 0.0
        %v5263 = vmax.f32 %v5231, 0.0
        %5264 = vst [vmem:[#allocation2] sm:$0xff] %v5232
        %5265 = vst [vmem:[#allocation2 + $0x8] sm:$0xff] %v5233
        %5266 = vst [vmem:[#allocation2 + $0x10] sm:$0xff] %v5234
        %5267 = vst [vmem:[#allocation2 + $0x18] sm:$0xff] %v5235
        %5268 = vst [vmem:[#allocation2 + $0x20] sm:$0xff] %v5236
        %5269 = vst [vmem:[#allocation2 + $0x28] sm:$0xff] %v5237
        %5270 = vst [vmem:[#allocation2 + $0x30] sm:$0xff] %v5238
        %5271 = vst [vmem:[#allocation2 + $0x38] sm:$0xff] %v5239
        %5272 = vst [vmem:[#allocation2 + $0x40] sm:$0xff] %v5240
        %5273 = vst [vmem:[#allocation2 + $0x48] sm:$0xff] %v5241
        %5274 = vst [vmem:[#allocation2 + $0x50] sm:$0xff] %v5242
        %5275 = vst [vmem:[#allocation2 + $0x58] sm:$0xff] %v5243
        %5276 = vst [vmem:[#allocation2 + $0x60] sm:$0xff] %v5244
        %5277 = vst [vmem:[#allocation2 + $0x68] sm:$0xff] %v5245
        %5278 = vst [vmem:[#allocation2 + $0x70] sm:$0xff] %v5246
        %5279 = vst [vmem:[#allocation2 + $0x78] sm:$0xff] %v5247
        %5280 = vst [vmem:[#allocation2 + $0x80] sm:$0xff] %v5248
        %5281 = vst [vmem:[#allocation2 + $0x88] sm:$0xff] %v5249
        %5282 = vst [vmem:[#allocation2 + $0x90] sm:$0xff] %v5250
        %5283 = vst [vmem:[#allocation2 + $0x98] sm:$0xff] %v5251
        %5284 = vst [vmem:[#allocation2 + $0xa0] sm:$0xff] %v5252
        %5285 = vst [vmem:[#allocation2 + $0xa8] sm:$0xff] %v5253
        %5286 = vst [vmem:[#allocation2 + $0xb0] sm:$0xff] %v5254
        %5287 = vst [vmem:[#allocation2 + $0xb8] sm:$0xff] %v5255
        %5288 = vst [vmem:[#allocation2 + $0xc0] sm:$0xff] %v5256
        %5289 = vst [vmem:[#allocation2 + $0xc8] sm:$0xff] %v5257
        %5290 = vst [vmem:[#allocation2 + $0xd0] sm:$0xff] %v5258
        %5291 = vst [vmem:[#allocation2 + $0xd8] sm:$0xff] %v5259
        %5292 = vst [vmem:[#allocation2 + $0xe0] sm:$0xff] %v5260
        %5293 = vst [vmem:[#allocation2 + $0xe8] sm:$0xff] %v5261
        %5294 = vst [vmem:[#allocation2 + $0xf0] sm:$0xff] %v5262
        %5295 = vst [vmem:[#allocation2 + $0xf8] sm:$0xff] %v5263
        %v5296 = vld [vmem:[#allocation2] sm:$0xff]
        %v5297 = vld [vmem:[#allocation2 + $0x8] sm:$0xff]
        %v5298 = vld [vmem:[#allocation2 + $0x10] sm:$0xff]
        %v5299 = vld [vmem:[#allocation2 + $0x18] sm:$0xff]
        %v5300 = vld [vmem:[#allocation2 + $0x20] sm:$0xff]
        %v5301 = vld [vmem:[#allocation2 + $0x28] sm:$0xff]
        %v5302 = vld [vmem:[#allocation2 + $0x30] sm:$0xff]
        %v5303 = vld [vmem:[#allocation2 + $0x38] sm:$0xff]
        %v5304 = vld [vmem:[#allocation2 + $0x40] sm:$0xff]
        %v5305 = vld [vmem:[#allocation2 + $0x48] sm:$0xff]
        %v5306 = vld [vmem:[#allocation2 + $0x50] sm:$0xff]
        %v5307 = vld [vmem:[#allocation2 + $0x58] sm:$0xff]
        %v5308 = vld [vmem:[#allocation2 + $0x60] sm:$0xff]
        %v5309 = vld [vmem:[#allocation2 + $0x68] sm:$0xff]
        %v5310 = vld [vmem:[#allocation2 + $0x70] sm:$0xff]
        %v5311 = vld [vmem:[#allocation2 + $0x78] sm:$0xff]
        %v5312 = vld [vmem:[#allocation2 + $0x80] sm:$0xff]
        %v5313 = vld [vmem:[#allocation2 + $0x88] sm:$0xff]
        %v5314 = vld [vmem:[#allocation2 + $0x90] sm:$0xff]
        %v5315 = vld [vmem:[#allocation2 + $0x98] sm:$0xff]
        %v5316 = vld [vmem:[#allocation2 + $0xa0] sm:$0xff]
        %v5317 = vld [vmem:[#allocation2 + $0xa8] sm:$0xff]
        %v5318 = vld [vmem:[#allocation2 + $0xb0] sm:$0xff]
        %v5319 = vld [vmem:[#allocation2 + $0xb8] sm:$0xff]
        %v5320 = vld [vmem:[#allocation2 + $0xc0] sm:$0xff]
        %v5321 = vld [vmem:[#allocation2 + $0xc8] sm:$0xff]
        %v5322 = vld [vmem:[#allocation2 + $0xd0] sm:$0xff]
        %v5323 = vld [vmem:[#allocation2 + $0xd8] sm:$0xff]
        %v5324 = vld [vmem:[#allocation2 + $0xe0] sm:$0xff]
        %v5325 = vld [vmem:[#allocation2 + $0xe8] sm:$0xff]
        %v5326 = vld [vmem:[#allocation2 + $0xf0] sm:$0xff]
        %v5327 = vld [vmem:[#allocation2 + $0xf8] sm:$0xff]
        %v5328 = vpack.c.bf16 %v5298, %v5296
        %v5329 = vpack.c.bf16 %v5299, %v5297
        %v5330 = vpack.c.bf16 %v5302, %v5300
        %v5331 = vpack.c.bf16 %v5303, %v5301
        %v5332 = vpack.c.bf16 %v5306, %v5304
        %v5333 = vpack.c.bf16 %v5307, %v5305
        %v5334 = vpack.c.bf16 %v5310, %v5308
        %v5335 = vpack.c.bf16 %v5311, %v5309
        %v5336 = vpack.c.bf16 %v5314, %v5312
        %v5337 = vpack.c.bf16 %v5315, %v5313
        %v5338 = vpack.c.bf16 %v5318, %v5316
        %v5339 = vpack.c.bf16 %v5319, %v5317
        %v5340 = vpack.c.bf16 %v5322, %v5320
        %v5341 = vpack.c.bf16 %v5323, %v5321
        %v5342 = vpack.c.bf16 %v5326, %v5324
        %v5343 = vpack.c.bf16 %v5327, %v5325
        %s5344 = scalar_lea.vmem [#allocation10], 2048
        %v5345 = vld [vmem:[%s5344] sm:$0xff]
        %v5346 = vld [vmem:[%s5344 + $0x8] sm:$0xff]
        %v5347 = vld [vmem:[%s5344 + $0x10] sm:$0xff]
        %v5348 = vld [vmem:[%s5344 + $0x18] sm:$0xff]
        %v5349 = vld [vmem:[%s5344 + $0x20] sm:$0xff]
        %v5350 = vld [vmem:[%s5344 + $0x28] sm:$0xff]
        %v5351 = vld [vmem:[%s5344 + $0x30] sm:$0xff]
        %v5352 = vld [vmem:[%s5344 + $0x38] sm:$0xff]
        %v5353 = vld [vmem:[%s5344 + $0x40] sm:$0xff]
        %v5354 = vld [vmem:[%s5344 + $0x48] sm:$0xff]
        %v5355 = vld [vmem:[%s5344 + $0x50] sm:$0xff]
        %v5356 = vld [vmem:[%s5344 + $0x58] sm:$0xff]
        %v5357 = vld [vmem:[%s5344 + $0x60] sm:$0xff]
        %v5358 = vld [vmem:[%s5344 + $0x68] sm:$0xff]
        %v5359 = vld [vmem:[%s5344 + $0x70] sm:$0xff]
        %v5360 = vld [vmem:[%s5344 + $0x78] sm:$0xff]
        %v5361 = vld [vmem:[%s5344 + $0x80] sm:$0xff]
        %v5362 = vld [vmem:[%s5344 + $0x88] sm:$0xff]
        %v5363 = vld [vmem:[%s5344 + $0x90] sm:$0xff]
        %v5364 = vld [vmem:[%s5344 + $0x98] sm:$0xff]
        %v5365 = vld [vmem:[%s5344 + $0xa0] sm:$0xff]
        %v5366 = vld [vmem:[%s5344 + $0xa8] sm:$0xff]
        %v5367 = vld [vmem:[%s5344 + $0xb0] sm:$0xff]
        %v5368 = vld [vmem:[%s5344 + $0xb8] sm:$0xff]
        %v5369 = vld [vmem:[%s5344 + $0xc0] sm:$0xff]
        %v5370 = vld [vmem:[%s5344 + $0xc8] sm:$0xff]
        %v5371 = vld [vmem:[%s5344 + $0xd0] sm:$0xff]
        %v5372 = vld [vmem:[%s5344 + $0xd8] sm:$0xff]
        %v5373 = vld [vmem:[%s5344 + $0xe0] sm:$0xff]
        %v5374 = vld [vmem:[%s5344 + $0xe8] sm:$0xff]
        %v5375 = vld [vmem:[%s5344 + $0xf0] sm:$0xff]
        %v5376 = vld [vmem:[%s5344 + $0xf8] sm:$0xff]
        %s5377 = scalar_lea.vmem [#allocation12], 16
        %v5378 = vld [vmem:[%s5377] sm:$0x3]
        %v5380 = vperm.slane %v5378, 0
        %v5381 = vperm.slane %v5378, 1
        %v5416 = vunpack.c.l.b16 %v5345
        %v5417 = vunpack.c.h.b16 %v5345
        %v5418 = vunpack.c.l.b16 %v5346
        %v5419 = vunpack.c.h.b16 %v5346
        %v5420 = vunpack.c.l.b16 %v5347
        %v5421 = vunpack.c.h.b16 %v5347
        %v5422 = vunpack.c.l.b16 %v5348
        %v5423 = vunpack.c.h.b16 %v5348
        %v5424 = vunpack.c.l.b16 %v5349
        %v5425 = vunpack.c.h.b16 %v5349
        %v5426 = vunpack.c.l.b16 %v5350
        %v5427 = vunpack.c.h.b16 %v5350
        %v5428 = vunpack.c.l.b16 %v5351
        %v5429 = vunpack.c.h.b16 %v5351
        %v5430 = vunpack.c.l.b16 %v5352
        %v5431 = vunpack.c.h.b16 %v5352
        %v5432 = vunpack.c.l.b16 %v5353
        %v5433 = vunpack.c.h.b16 %v5353
        %v5434 = vunpack.c.l.b16 %v5354
        %v5435 = vunpack.c.h.b16 %v5354
        %v5436 = vunpack.c.l.b16 %v5355
        %v5437 = vunpack.c.h.b16 %v5355
        %v5438 = vunpack.c.l.b16 %v5356
        %v5439 = vunpack.c.h.b16 %v5356
        %v5440 = vunpack.c.l.b16 %v5357
        %v5441 = vunpack.c.h.b16 %v5357
        %v5442 = vunpack.c.l.b16 %v5358
        %v5443 = vunpack.c.h.b16 %v5358
        %v5444 = vunpack.c.l.b16 %v5359
        %v5445 = vunpack.c.h.b16 %v5359
        %v5446 = vunpack.c.l.b16 %v5360
        %v5447 = vunpack.c.h.b16 %v5360
        %v5448 = vunpack.c.l.b16 %v5361
        %v5449 = vunpack.c.h.b16 %v5361
        %v5450 = vunpack.c.l.b16 %v5362
        %v5451 = vunpack.c.h.b16 %v5362
        %v5452 = vunpack.c.l.b16 %v5363
        %v5453 = vunpack.c.h.b16 %v5363
        %v5454 = vunpack.c.l.b16 %v5364
        %v5455 = vunpack.c.h.b16 %v5364
        %v5456 = vunpack.c.l.b16 %v5365
        %v5457 = vunpack.c.h.b16 %v5365
        %v5458 = vunpack.c.l.b16 %v5366
        %v5459 = vunpack.c.h.b16 %v5366
        %v5460 = vunpack.c.l.b16 %v5367
        %v5461 = vunpack.c.h.b16 %v5367
        %v5462 = vunpack.c.l.b16 %v5368
        %v5463 = vunpack.c.h.b16 %v5368
        %v5464 = vunpack.c.l.b16 %v5369
        %v5465 = vunpack.c.h.b16 %v5369
        %v5466 = vunpack.c.l.b16 %v5370
        %v5467 = vunpack.c.h.b16 %v5370
        %v5468 = vunpack.c.l.b16 %v5371
        %v5469 = vunpack.c.h.b16 %v5371
        %v5470 = vunpack.c.l.b16 %v5372
        %v5471 = vunpack.c.h.b16 %v5372
        %v5472 = vunpack.c.l.b16 %v5373
        %v5473 = vunpack.c.h.b16 %v5373
        %v5474 = vunpack.c.l.b16 %v5374
        %v5475 = vunpack.c.h.b16 %v5374
        %v5476 = vunpack.c.l.b16 %v5375
        %v5477 = vunpack.c.h.b16 %v5375
        %v5478 = vunpack.c.l.b16 %v5376
        %v5479 = vunpack.c.h.b16 %v5376
        %v5480 = vpack.c.b16 %v5418, %v5416
        %v5481 = vpack.c.b16 %v5419, %v5417
        %v5482 = vpack.c.b16 %v5422, %v5420
        %v5483 = vpack.c.b16 %v5423, %v5421
        %v5484 = vpack.c.b16 %v5426, %v5424
        %v5485 = vpack.c.b16 %v5427, %v5425
        %v5486 = vpack.c.b16 %v5430, %v5428
        %v5487 = vpack.c.b16 %v5431, %v5429
        %v5488 = vpack.c.b16 %v5434, %v5432
        %v5489 = vpack.c.b16 %v5435, %v5433
        %v5490 = vpack.c.b16 %v5438, %v5436
        %v5491 = vpack.c.b16 %v5439, %v5437
        %v5492 = vpack.c.b16 %v5442, %v5440
        %v5493 = vpack.c.b16 %v5443, %v5441
        %v5494 = vpack.c.b16 %v5446, %v5444
        %v5495 = vpack.c.b16 %v5447, %v5445
        %v5496 = vpack.c.b16 %v5450, %v5448
        %v5497 = vpack.c.b16 %v5451, %v5449
        %v5498 = vpack.c.b16 %v5454, %v5452
        %v5499 = vpack.c.b16 %v5455, %v5453
        %v5500 = vpack.c.b16 %v5458, %v5456
        %v5501 = vpack.c.b16 %v5459, %v5457
        %v5502 = vpack.c.b16 %v5462, %v5460
        %v5503 = vpack.c.b16 %v5463, %v5461
        %v5504 = vpack.c.b16 %v5466, %v5464
        %v5505 = vpack.c.b16 %v5467, %v5465
        %v5506 = vpack.c.b16 %v5470, %v5468
        %v5507 = vpack.c.b16 %v5471, %v5469
        %v5508 = vpack.c.b16 %v5474, %v5472
        %v5509 = vpack.c.b16 %v5475, %v5473
        %v5510 = vpack.c.b16 %v5478, %v5476
        %v5511 = vpack.c.b16 %v5479, %v5477
        %5544 = vmatpush.bf16.msra.mxu0 %v5494
        %5545 = vmatpush.bf16.msra.mxu0 %v5492
        %5546 = vmatpush.bf16.msra.mxu0 %v5490
        %5547 = vmatpush.bf16.msra.mxu0 %v5488
        %5548 = vmatpush.bf16.msra.mxu0 %v5486
        %5549 = vmatpush.bf16.msra.mxu0 %v5484
        %5550 = vmatpush.bf16.msra.mxu0 %v5482
        %5551 = vmatpush.bf16.msra.mxu0 %v5480
        %5552 = vmatmul.bf16.gmra.mxu0 %v5328
        %v5553 = vpop.f32.mrf.mxu0
        %v5554 = vadd.f32 %v5380, %v5553
        %v5555 = vpop.f32.mrf.mxu0
        %v5556 = vadd.f32 %v5380, %v5555
        %5557 = vmatmul.bf16.gmra.mxu0 %v5330
        %v5558 = vpop.f32.mrf.mxu0
        %v5559 = vadd.f32 %v5380, %v5558
        %v5560 = vpop.f32.mrf.mxu0
        %v5561 = vadd.f32 %v5380, %v5560
        %5562 = vmatmul.bf16.gmra.mxu0 %v5332
        %v5563 = vpop.f32.mrf.mxu0
        %v5564 = vadd.f32 %v5380, %v5563
        %v5565 = vpop.f32.mrf.mxu0
        %v5566 = vadd.f32 %v5380, %v5565
        %5567 = vmatmul.bf16.gmra.mxu0 %v5334
        %v5568 = vpop.f32.mrf.mxu0
        %v5569 = vadd.f32 %v5380, %v5568
        %v5570 = vpop.f32.mrf.mxu0
        %v5571 = vadd.f32 %v5380, %v5570
        %5572 = vmatmul.bf16.gmra.mxu0 %v5336
        %v5573 = vpop.f32.mrf.mxu0
        %v5574 = vadd.f32 %v5380, %v5573
        %v5575 = vpop.f32.mrf.mxu0
        %v5576 = vadd.f32 %v5380, %v5575
        %5577 = vmatmul.bf16.gmra.mxu0 %v5338
        %v5578 = vpop.f32.mrf.mxu0
        %v5579 = vadd.f32 %v5380, %v5578
        %v5580 = vpop.f32.mrf.mxu0
        %v5581 = vadd.f32 %v5380, %v5580
        %5582 = vmatmul.bf16.gmra.mxu0 %v5340
        %v5583 = vpop.f32.mrf.mxu0
        %v5584 = vadd.f32 %v5380, %v5583
        %v5585 = vpop.f32.mrf.mxu0
        %v5586 = vadd.f32 %v5380, %v5585
        %5587 = vmatmul.bf16.gmra.mxu0 %v5342
        %v5588 = vpop.f32.mrf.mxu0
        %v5589 = vadd.f32 %v5380, %v5588
        %v5590 = vpop.f32.mrf.mxu0
        %v5591 = vadd.f32 %v5380, %v5590
        %5592 = vdwg.mxu0
        %5593 = vmatpush.bf16.msra.mxu0 %v5510
        %5594 = vmatpush.bf16.msra.mxu0 %v5508
        %5595 = vmatpush.bf16.msra.mxu0 %v5506
        %5596 = vmatpush.bf16.msra.mxu0 %v5504
        %5597 = vmatpush.bf16.msra.mxu0 %v5502
        %5598 = vmatpush.bf16.msra.mxu0 %v5500
        %5599 = vmatpush.bf16.msra.mxu0 %v5498
        %5600 = vmatpush.bf16.msra.mxu0 %v5496
        %5601 = vmatmul.bf16.gmra.mxu0 %v5329
        %v5602 = vpop.f32.mrf.mxu0
        %v5603 = vadd.f32 %v5554, %v5602
        %v5604 = vpop.f32.mrf.mxu0
        %v5605 = vadd.f32 %v5556, %v5604
        %5606 = vmatmul.bf16.gmra.mxu0 %v5331
        %v5607 = vpop.f32.mrf.mxu0
        %v5608 = vadd.f32 %v5559, %v5607
        %v5609 = vpop.f32.mrf.mxu0
        %v5610 = vadd.f32 %v5561, %v5609
        %5611 = vmatmul.bf16.gmra.mxu0 %v5333
        %v5612 = vpop.f32.mrf.mxu0
        %v5613 = vadd.f32 %v5564, %v5612
        %v5614 = vpop.f32.mrf.mxu0
        %v5615 = vadd.f32 %v5566, %v5614
        %5616 = vmatmul.bf16.gmra.mxu0 %v5335
        %v5617 = vpop.f32.mrf.mxu0
        %v5618 = vadd.f32 %v5569, %v5617
        %v5619 = vpop.f32.mrf.mxu0
        %v5620 = vadd.f32 %v5571, %v5619
        %5621 = vmatmul.bf16.gmra.mxu0 %v5337
        %v5622 = vpop.f32.mrf.mxu0
        %v5623 = vadd.f32 %v5574, %v5622
        %v5624 = vpop.f32.mrf.mxu0
        %v5625 = vadd.f32 %v5576, %v5624
        %5626 = vmatmul.bf16.gmra.mxu0 %v5339
        %v5627 = vpop.f32.mrf.mxu0
        %v5628 = vadd.f32 %v5579, %v5627
        %v5629 = vpop.f32.mrf.mxu0
        %v5630 = vadd.f32 %v5581, %v5629
        %5631 = vmatmul.bf16.gmra.mxu0 %v5341
        %v5632 = vpop.f32.mrf.mxu0
        %v5633 = vadd.f32 %v5584, %v5632
        %v5634 = vpop.f32.mrf.mxu0
        %v5635 = vadd.f32 %v5586, %v5634
        %5636 = vmatmul.bf16.gmra.mxu0 %v5343
        %v5637 = vpop.f32.mrf.mxu0
        %v5638 = vadd.f32 %v5589, %v5637
        %v5639 = vpop.f32.mrf.mxu0
        %v5640 = vadd.f32 %v5591, %v5639
        %5641 = vdwg.mxu0
        %5642 = vmatpush.bf16.msra.mxu0 %v5495
        %5643 = vmatpush.bf16.msra.mxu0 %v5493
        %5644 = vmatpush.bf16.msra.mxu0 %v5491
        %5645 = vmatpush.bf16.msra.mxu0 %v5489
        %5646 = vmatpush.bf16.msra.mxu0 %v5487
        %5647 = vmatpush.bf16.msra.mxu0 %v5485
        %5648 = vmatpush.bf16.msra.mxu0 %v5483
        %5649 = vmatpush.bf16.msra.mxu0 %v5481
        %5650 = vmatmul.bf16.gmra.mxu0 %v5328
        %v5651 = vpop.f32.mrf.mxu0
        %v5652 = vadd.f32 %v5381, %v5651
        %v5653 = vpop.f32.mrf.mxu0
        %v5654 = vadd.f32 %v5381, %v5653
        %5655 = vmatmul.bf16.gmra.mxu0 %v5330
        %v5656 = vpop.f32.mrf.mxu0
        %v5657 = vadd.f32 %v5381, %v5656
        %v5658 = vpop.f32.mrf.mxu0
        %v5659 = vadd.f32 %v5381, %v5658
        %5660 = vmatmul.bf16.gmra.mxu0 %v5332
        %v5661 = vpop.f32.mrf.mxu0
        %v5662 = vadd.f32 %v5381, %v5661
        %v5663 = vpop.f32.mrf.mxu0
        %v5664 = vadd.f32 %v5381, %v5663
        %5665 = vmatmul.bf16.gmra.mxu0 %v5334
        %v5666 = vpop.f32.mrf.mxu0
        %v5667 = vadd.f32 %v5381, %v5666
        %v5668 = vpop.f32.mrf.mxu0
        %v5669 = vadd.f32 %v5381, %v5668
        %5670 = vmatmul.bf16.gmra.mxu0 %v5336
        %v5671 = vpop.f32.mrf.mxu0
        %v5672 = vadd.f32 %v5381, %v5671
        %v5673 = vpop.f32.mrf.mxu0
        %v5674 = vadd.f32 %v5381, %v5673
        %5675 = vmatmul.bf16.gmra.mxu0 %v5338
        %v5676 = vpop.f32.mrf.mxu0
        %v5677 = vadd.f32 %v5381, %v5676
        %v5678 = vpop.f32.mrf.mxu0
        %v5679 = vadd.f32 %v5381, %v5678
        %5680 = vmatmul.bf16.gmra.mxu0 %v5340
        %v5681 = vpop.f32.mrf.mxu0
        %v5682 = vadd.f32 %v5381, %v5681
        %v5683 = vpop.f32.mrf.mxu0
        %v5684 = vadd.f32 %v5381, %v5683
        %5685 = vmatmul.bf16.gmra.mxu0 %v5342
        %v5686 = vpop.f32.mrf.mxu0
        %v5687 = vadd.f32 %v5381, %v5686
        %v5688 = vpop.f32.mrf.mxu0
        %v5689 = vadd.f32 %v5381, %v5688
        %5690 = vdwg.mxu0
        %5691 = vmatpush.bf16.msra.mxu0 %v5511
        %5692 = vmatpush.bf16.msra.mxu0 %v5509
        %5693 = vmatpush.bf16.msra.mxu0 %v5507
        %5694 = vmatpush.bf16.msra.mxu0 %v5505
        %5695 = vmatpush.bf16.msra.mxu0 %v5503
        %5696 = vmatpush.bf16.msra.mxu0 %v5501
        %5697 = vmatpush.bf16.msra.mxu0 %v5499
        %5698 = vmatpush.bf16.msra.mxu0 %v5497
        %5699 = vmatmul.bf16.gmra.mxu0 %v5329
        %v5700 = vpop.f32.mrf.mxu0
        %v5701 = vadd.f32 %v5652, %v5700
        %v5702 = vpop.f32.mrf.mxu0
        %v5703 = vadd.f32 %v5654, %v5702
        %5704 = vmatmul.bf16.gmra.mxu0 %v5331
        %v5705 = vpop.f32.mrf.mxu0
        %v5706 = vadd.f32 %v5657, %v5705
        %v5707 = vpop.f32.mrf.mxu0
        %v5708 = vadd.f32 %v5659, %v5707
        %5709 = vmatmul.bf16.gmra.mxu0 %v5333
        %v5710 = vpop.f32.mrf.mxu0
        %v5711 = vadd.f32 %v5662, %v5710
        %v5712 = vpop.f32.mrf.mxu0
        %v5713 = vadd.f32 %v5664, %v5712
        %5714 = vmatmul.bf16.gmra.mxu0 %v5335
        %v5715 = vpop.f32.mrf.mxu0
        %v5716 = vadd.f32 %v5667, %v5715
        %v5717 = vpop.f32.mrf.mxu0
        %v5718 = vadd.f32 %v5669, %v5717
        %5719 = vmatmul.bf16.gmra.mxu0 %v5337
        %v5720 = vpop.f32.mrf.mxu0
        %v5721 = vadd.f32 %v5672, %v5720
        %v5722 = vpop.f32.mrf.mxu0
        %v5723 = vadd.f32 %v5674, %v5722
        %5724 = vmatmul.bf16.gmra.mxu0 %v5339
        %v5725 = vpop.f32.mrf.mxu0
        %v5726 = vadd.f32 %v5677, %v5725
        %v5727 = vpop.f32.mrf.mxu0
        %v5728 = vadd.f32 %v5679, %v5727
        %5729 = vmatmul.bf16.gmra.mxu0 %v5341
        %v5730 = vpop.f32.mrf.mxu0
        %v5731 = vadd.f32 %v5682, %v5730
        %v5732 = vpop.f32.mrf.mxu0
        %v5733 = vadd.f32 %v5684, %v5732
        %5734 = vmatmul.bf16.gmra.mxu0 %v5343
        %v5735 = vpop.f32.mrf.mxu0
        %v5736 = vadd.f32 %v5687, %v5735
        %v5737 = vpop.f32.mrf.mxu0
        %v5738 = vadd.f32 %v5689, %v5737
        %5739 = vdwg.mxu0
        %v5740 = vadd.f32 %v5603, %v5296
        %v5741 = vadd.f32 %v5701, %v5297
        %v5742 = vadd.f32 %v5605, %v5298
        %v5743 = vadd.f32 %v5703, %v5299
        %v5744 = vadd.f32 %v5608, %v5300
        %v5745 = vadd.f32 %v5706, %v5301
        %v5746 = vadd.f32 %v5610, %v5302
        %v5747 = vadd.f32 %v5708, %v5303
        %v5748 = vadd.f32 %v5613, %v5304
        %v5749 = vadd.f32 %v5711, %v5305
        %v5750 = vadd.f32 %v5615, %v5306
        %v5751 = vadd.f32 %v5713, %v5307
        %v5752 = vadd.f32 %v5618, %v5308
        %v5753 = vadd.f32 %v5716, %v5309
        %v5754 = vadd.f32 %v5620, %v5310
        %v5755 = vadd.f32 %v5718, %v5311
        %v5756 = vadd.f32 %v5623, %v5312
        %v5757 = vadd.f32 %v5721, %v5313
        %v5758 = vadd.f32 %v5625, %v5314
        %v5759 = vadd.f32 %v5723, %v5315
        %v5760 = vadd.f32 %v5628, %v5316
        %v5761 = vadd.f32 %v5726, %v5317
        %v5762 = vadd.f32 %v5630, %v5318
        %v5763 = vadd.f32 %v5728, %v5319
        %v5764 = vadd.f32 %v5633, %v5320
        %v5765 = vadd.f32 %v5731, %v5321
        %v5766 = vadd.f32 %v5635, %v5322
        %v5767 = vadd.f32 %v5733, %v5323
        %v5768 = vadd.f32 %v5638, %v5324
        %v5769 = vadd.f32 %v5736, %v5325
        %v5770 = vadd.f32 %v5640, %v5326
        %v5771 = vadd.f32 %v5738, %v5327
        %v5772 = vmax.f32 %v5740, 0.0
        %v5773 = vmax.f32 %v5741, 0.0
        %v5774 = vmax.f32 %v5742, 0.0
        %v5775 = vmax.f32 %v5743, 0.0
        %v5776 = vmax.f32 %v5744, 0.0
        %v5777 = vmax.f32 %v5745, 0.0
        %v5778 = vmax.f32 %v5746, 0.0
        %v5779 = vmax.f32 %v5747, 0.0
        %v5780 = vmax.f32 %v5748, 0.0
        %v5781 = vmax.f32 %v5749, 0.0
        %v5782 = vmax.f32 %v5750, 0.0
        %v5783 = vmax.f32 %v5751, 0.0
        %v5784 = vmax.f32 %v5752, 0.0
        %v5785 = vmax.f32 %v5753, 0.0
        %v5786 = vmax.f32 %v5754, 0.0
        %v5787 = vmax.f32 %v5755, 0.0
        %v5788 = vmax.f32 %v5756, 0.0
        %v5789 = vmax.f32 %v5757, 0.0
        %v5790 = vmax.f32 %v5758, 0.0
        %v5791 = vmax.f32 %v5759, 0.0
        %v5792 = vmax.f32 %v5760, 0.0
        %v5793 = vmax.f32 %v5761, 0.0
        %v5794 = vmax.f32 %v5762, 0.0
        %v5795 = vmax.f32 %v5763, 0.0
        %v5796 = vmax.f32 %v5764, 0.0
        %v5797 = vmax.f32 %v5765, 0.0
        %v5798 = vmax.f32 %v5766, 0.0
        %v5799 = vmax.f32 %v5767, 0.0
        %v5800 = vmax.f32 %v5768, 0.0
        %v5801 = vmax.f32 %v5769, 0.0
        %v5802 = vmax.f32 %v5770, 0.0
        %v5803 = vmax.f32 %v5771, 0.0
        %5804 = vst [vmem:[#allocation2] sm:$0xff] %v5772
        %5805 = vst [vmem:[#allocation2 + $0x8] sm:$0xff] %v5773
        %5806 = vst [vmem:[#allocation2 + $0x10] sm:$0xff] %v5774
        %5807 = vst [vmem:[#allocation2 + $0x18] sm:$0xff] %v5775
        %5808 = vst [vmem:[#allocation2 + $0x20] sm:$0xff] %v5776
        %5809 = vst [vmem:[#allocation2 + $0x28] sm:$0xff] %v5777
        %5810 = vst [vmem:[#allocation2 + $0x30] sm:$0xff] %v5778
        %5811 = vst [vmem:[#allocation2 + $0x38] sm:$0xff] %v5779
        %5812 = vst [vmem:[#allocation2 + $0x40] sm:$0xff] %v5780
        %5813 = vst [vmem:[#allocation2 + $0x48] sm:$0xff] %v5781
        %5814 = vst [vmem:[#allocation2 + $0x50] sm:$0xff] %v5782
        %5815 = vst [vmem:[#allocation2 + $0x58] sm:$0xff] %v5783
        %5816 = vst [vmem:[#allocation2 + $0x60] sm:$0xff] %v5784
        %5817 = vst [vmem:[#allocation2 + $0x68] sm:$0xff] %v5785
        %5818 = vst [vmem:[#allocation2 + $0x70] sm:$0xff] %v5786
        %5819 = vst [vmem:[#allocation2 + $0x78] sm:$0xff] %v5787
        %5820 = vst [vmem:[#allocation2 + $0x80] sm:$0xff] %v5788
        %5821 = vst [vmem:[#allocation2 + $0x88] sm:$0xff] %v5789
        %5822 = vst [vmem:[#allocation2 + $0x90] sm:$0xff] %v5790
        %5823 = vst [vmem:[#allocation2 + $0x98] sm:$0xff] %v5791
        %5824 = vst [vmem:[#allocation2 + $0xa0] sm:$0xff] %v5792
        %5825 = vst [vmem:[#allocation2 + $0xa8] sm:$0xff] %v5793
        %5826 = vst [vmem:[#allocation2 + $0xb0] sm:$0xff] %v5794
        %5827 = vst [vmem:[#allocation2 + $0xb8] sm:$0xff] %v5795
        %5828 = vst [vmem:[#allocation2 + $0xc0] sm:$0xff] %v5796
        %5829 = vst [vmem:[#allocation2 + $0xc8] sm:$0xff] %v5797
        %5830 = vst [vmem:[#allocation2 + $0xd0] sm:$0xff] %v5798
        %5831 = vst [vmem:[#allocation2 + $0xd8] sm:$0xff] %v5799
        %5832 = vst [vmem:[#allocation2 + $0xe0] sm:$0xff] %v5800
        %5833 = vst [vmem:[#allocation2 + $0xe8] sm:$0xff] %v5801
        %5834 = vst [vmem:[#allocation2 + $0xf0] sm:$0xff] %v5802
        %5835 = vst [vmem:[#allocation2 + $0xf8] sm:$0xff] %v5803
        %v5836 = vld [vmem:[#allocation2] sm:$0xff]
        %v5837 = vld [vmem:[#allocation2 + $0x8] sm:$0xff]
        %v5838 = vld [vmem:[#allocation2 + $0x10] sm:$0xff]
        %v5839 = vld [vmem:[#allocation2 + $0x18] sm:$0xff]
        %v5840 = vld [vmem:[#allocation2 + $0x20] sm:$0xff]
        %v5841 = vld [vmem:[#allocation2 + $0x28] sm:$0xff]
        %v5842 = vld [vmem:[#allocation2 + $0x30] sm:$0xff]
        %v5843 = vld [vmem:[#allocation2 + $0x38] sm:$0xff]
        %v5844 = vld [vmem:[#allocation2 + $0x40] sm:$0xff]
        %v5845 = vld [vmem:[#allocation2 + $0x48] sm:$0xff]
        %v5846 = vld [vmem:[#allocation2 + $0x50] sm:$0xff]
        %v5847 = vld [vmem:[#allocation2 + $0x58] sm:$0xff]
        %v5848 = vld [vmem:[#allocation2 + $0x60] sm:$0xff]
        %v5849 = vld [vmem:[#allocation2 + $0x68] sm:$0xff]
        %v5850 = vld [vmem:[#allocation2 + $0x70] sm:$0xff]
        %v5851 = vld [vmem:[#allocation2 + $0x78] sm:$0xff]
        %v5852 = vld [vmem:[#allocation2 + $0x80] sm:$0xff]
        %v5853 = vld [vmem:[#allocation2 + $0x88] sm:$0xff]
        %v5854 = vld [vmem:[#allocation2 + $0x90] sm:$0xff]
        %v5855 = vld [vmem:[#allocation2 + $0x98] sm:$0xff]
        %v5856 = vld [vmem:[#allocation2 + $0xa0] sm:$0xff]
        %v5857 = vld [vmem:[#allocation2 + $0xa8] sm:$0xff]
        %v5858 = vld [vmem:[#allocation2 + $0xb0] sm:$0xff]
        %v5859 = vld [vmem:[#allocation2 + $0xb8] sm:$0xff]
        %v5860 = vld [vmem:[#allocation2 + $0xc0] sm:$0xff]
        %v5861 = vld [vmem:[#allocation2 + $0xc8] sm:$0xff]
        %v5862 = vld [vmem:[#allocation2 + $0xd0] sm:$0xff]
        %v5863 = vld [vmem:[#allocation2 + $0xd8] sm:$0xff]
        %v5864 = vld [vmem:[#allocation2 + $0xe0] sm:$0xff]
        %v5865 = vld [vmem:[#allocation2 + $0xe8] sm:$0xff]
        %v5866 = vld [vmem:[#allocation2 + $0xf0] sm:$0xff]
        %v5867 = vld [vmem:[#allocation2 + $0xf8] sm:$0xff]
        %v5868 = vpack.c.bf16 %v5838, %v5836
        %v5869 = vpack.c.bf16 %v5839, %v5837
        %v5870 = vpack.c.bf16 %v5842, %v5840
        %v5871 = vpack.c.bf16 %v5843, %v5841
        %v5872 = vpack.c.bf16 %v5846, %v5844
        %v5873 = vpack.c.bf16 %v5847, %v5845
        %v5874 = vpack.c.bf16 %v5850, %v5848
        %v5875 = vpack.c.bf16 %v5851, %v5849
        %v5876 = vpack.c.bf16 %v5854, %v5852
        %v5877 = vpack.c.bf16 %v5855, %v5853
        %v5878 = vpack.c.bf16 %v5858, %v5856
        %v5879 = vpack.c.bf16 %v5859, %v5857
        %v5880 = vpack.c.bf16 %v5862, %v5860
        %v5881 = vpack.c.bf16 %v5863, %v5861
        %v5882 = vpack.c.bf16 %v5866, %v5864
        %v5883 = vpack.c.bf16 %v5867, %v5865
        %s5884 = scalar_lea.vmem [#allocation10], 2304
        %v5885 = vld [vmem:[%s5884] sm:$0xff]
        %v5886 = vld [vmem:[%s5884 + $0x8] sm:$0xff]
        %v5887 = vld [vmem:[%s5884 + $0x10] sm:$0xff]
        %v5888 = vld [vmem:[%s5884 + $0x18] sm:$0xff]
        %v5889 = vld [vmem:[%s5884 + $0x20] sm:$0xff]
        %v5890 = vld [vmem:[%s5884 + $0x28] sm:$0xff]
        %v5891 = vld [vmem:[%s5884 + $0x30] sm:$0xff]
        %v5892 = vld [vmem:[%s5884 + $0x38] sm:$0xff]
        %v5893 = vld [vmem:[%s5884 + $0x40] sm:$0xff]
        %v5894 = vld [vmem:[%s5884 + $0x48] sm:$0xff]
        %v5895 = vld [vmem:[%s5884 + $0x50] sm:$0xff]
        %v5896 = vld [vmem:[%s5884 + $0x58] sm:$0xff]
        %v5897 = vld [vmem:[%s5884 + $0x60] sm:$0xff]
        %v5898 = vld [vmem:[%s5884 + $0x68] sm:$0xff]
        %v5899 = vld [vmem:[%s5884 + $0x70] sm:$0xff]
        %v5900 = vld [vmem:[%s5884 + $0x78] sm:$0xff]
        %v5901 = vld [vmem:[%s5884 + $0x80] sm:$0xff]
        %v5902 = vld [vmem:[%s5884 + $0x88] sm:$0xff]
        %v5903 = vld [vmem:[%s5884 + $0x90] sm:$0xff]
        %v5904 = vld [vmem:[%s5884 + $0x98] sm:$0xff]
        %v5905 = vld [vmem:[%s5884 + $0xa0] sm:$0xff]
        %v5906 = vld [vmem:[%s5884 + $0xa8] sm:$0xff]
        %v5907 = vld [vmem:[%s5884 + $0xb0] sm:$0xff]
        %v5908 = vld [vmem:[%s5884 + $0xb8] sm:$0xff]
        %v5909 = vld [vmem:[%s5884 + $0xc0] sm:$0xff]
        %v5910 = vld [vmem:[%s5884 + $0xc8] sm:$0xff]
        %v5911 = vld [vmem:[%s5884 + $0xd0] sm:$0xff]
        %v5912 = vld [vmem:[%s5884 + $0xd8] sm:$0xff]
        %v5913 = vld [vmem:[%s5884 + $0xe0] sm:$0xff]
        %v5914 = vld [vmem:[%s5884 + $0xe8] sm:$0xff]
        %v5915 = vld [vmem:[%s5884 + $0xf0] sm:$0xff]
        %v5916 = vld [vmem:[%s5884 + $0xf8] sm:$0xff]
        %s5917 = scalar_lea.vmem [#allocation12], 18
        %v5918 = vld [vmem:[%s5917] sm:$0x3]
        %v5920 = vperm.slane %v5918, 0
        %v5921 = vperm.slane %v5918, 1
        %v5956 = vunpack.c.l.b16 %v5885
        %v5957 = vunpack.c.h.b16 %v5885
        %v5958 = vunpack.c.l.b16 %v5886
        %v5959 = vunpack.c.h.b16 %v5886
        %v5960 = vunpack.c.l.b16 %v5887
        %v5961 = vunpack.c.h.b16 %v5887
        %v5962 = vunpack.c.l.b16 %v5888
        %v5963 = vunpack.c.h.b16 %v5888
        %v5964 = vunpack.c.l.b16 %v5889
        %v5965 = vunpack.c.h.b16 %v5889
        %v5966 = vunpack.c.l.b16 %v5890
        %v5967 = vunpack.c.h.b16 %v5890
        %v5968 = vunpack.c.l.b16 %v5891
        %v5969 = vunpack.c.h.b16 %v5891
        %v5970 = vunpack.c.l.b16 %v5892
        %v5971 = vunpack.c.h.b16 %v5892
        %v5972 = vunpack.c.l.b16 %v5893
        %v5973 = vunpack.c.h.b16 %v5893
        %v5974 = vunpack.c.l.b16 %v5894
        %v5975 = vunpack.c.h.b16 %v5894
        %v5976 = vunpack.c.l.b16 %v5895
        %v5977 = vunpack.c.h.b16 %v5895
        %v5978 = vunpack.c.l.b16 %v5896
        %v5979 = vunpack.c.h.b16 %v5896
        %v5980 = vunpack.c.l.b16 %v5897
        %v5981 = vunpack.c.h.b16 %v5897
        %v5982 = vunpack.c.l.b16 %v5898
        %v5983 = vunpack.c.h.b16 %v5898
        %v5984 = vunpack.c.l.b16 %v5899
        %v5985 = vunpack.c.h.b16 %v5899
        %v5986 = vunpack.c.l.b16 %v5900
        %v5987 = vunpack.c.h.b16 %v5900
        %v5988 = vunpack.c.l.b16 %v5901
        %v5989 = vunpack.c.h.b16 %v5901
        %v5990 = vunpack.c.l.b16 %v5902
        %v5991 = vunpack.c.h.b16 %v5902
        %v5992 = vunpack.c.l.b16 %v5903
        %v5993 = vunpack.c.h.b16 %v5903
        %v5994 = vunpack.c.l.b16 %v5904
        %v5995 = vunpack.c.h.b16 %v5904
        %v5996 = vunpack.c.l.b16 %v5905
        %v5997 = vunpack.c.h.b16 %v5905
        %v5998 = vunpack.c.l.b16 %v5906
        %v5999 = vunpack.c.h.b16 %v5906
        %v6000 = vunpack.c.l.b16 %v5907
        %v6001 = vunpack.c.h.b16 %v5907
        %v6002 = vunpack.c.l.b16 %v5908
        %v6003 = vunpack.c.h.b16 %v5908
        %v6004 = vunpack.c.l.b16 %v5909
        %v6005 = vunpack.c.h.b16 %v5909
        %v6006 = vunpack.c.l.b16 %v5910
        %v6007 = vunpack.c.h.b16 %v5910
        %v6008 = vunpack.c.l.b16 %v5911
        %v6009 = vunpack.c.h.b16 %v5911
        %v6010 = vunpack.c.l.b16 %v5912
        %v6011 = vunpack.c.h.b16 %v5912
        %v6012 = vunpack.c.l.b16 %v5913
        %v6013 = vunpack.c.h.b16 %v5913
        %v6014 = vunpack.c.l.b16 %v5914
        %v6015 = vunpack.c.h.b16 %v5914
        %v6016 = vunpack.c.l.b16 %v5915
        %v6017 = vunpack.c.h.b16 %v5915
        %v6018 = vunpack.c.l.b16 %v5916
        %v6019 = vunpack.c.h.b16 %v5916
        %v6020 = vpack.c.b16 %v5958, %v5956
        %v6021 = vpack.c.b16 %v5959, %v5957
        %v6022 = vpack.c.b16 %v5962, %v5960
        %v6023 = vpack.c.b16 %v5963, %v5961
        %v6024 = vpack.c.b16 %v5966, %v5964
        %v6025 = vpack.c.b16 %v5967, %v5965
        %v6026 = vpack.c.b16 %v5970, %v5968
        %v6027 = vpack.c.b16 %v5971, %v5969
        %v6028 = vpack.c.b16 %v5974, %v5972
        %v6029 = vpack.c.b16 %v5975, %v5973
        %v6030 = vpack.c.b16 %v5978, %v5976
        %v6031 = vpack.c.b16 %v5979, %v5977
        %v6032 = vpack.c.b16 %v5982, %v5980
        %v6033 = vpack.c.b16 %v5983, %v5981
        %v6034 = vpack.c.b16 %v5986, %v5984
        %v6035 = vpack.c.b16 %v5987, %v5985
        %v6036 = vpack.c.b16 %v5990, %v5988
        %v6037 = vpack.c.b16 %v5991, %v5989
        %v6038 = vpack.c.b16 %v5994, %v5992
        %v6039 = vpack.c.b16 %v5995, %v5993
        %v6040 = vpack.c.b16 %v5998, %v5996
        %v6041 = vpack.c.b16 %v5999, %v5997
        %v6042 = vpack.c.b16 %v6002, %v6000
        %v6043 = vpack.c.b16 %v6003, %v6001
        %v6044 = vpack.c.b16 %v6006, %v6004
        %v6045 = vpack.c.b16 %v6007, %v6005
        %v6046 = vpack.c.b16 %v6010, %v6008
        %v6047 = vpack.c.b16 %v6011, %v6009
        %v6048 = vpack.c.b16 %v6014, %v6012
        %v6049 = vpack.c.b16 %v6015, %v6013
        %v6050 = vpack.c.b16 %v6018, %v6016
        %v6051 = vpack.c.b16 %v6019, %v6017
        %6084 = vmatpush.bf16.msra.mxu0 %v6034
        %6085 = vmatpush.bf16.msra.mxu0 %v6032
        %6086 = vmatpush.bf16.msra.mxu0 %v6030
        %6087 = vmatpush.bf16.msra.mxu0 %v6028
        %6088 = vmatpush.bf16.msra.mxu0 %v6026
        %6089 = vmatpush.bf16.msra.mxu0 %v6024
        %6090 = vmatpush.bf16.msra.mxu0 %v6022
        %6091 = vmatpush.bf16.msra.mxu0 %v6020
        %6092 = vmatmul.bf16.gmra.mxu0 %v5868
        %v6093 = vpop.f32.mrf.mxu0
        %v6094 = vadd.f32 %v5920, %v6093
        %v6095 = vpop.f32.mrf.mxu0
        %v6096 = vadd.f32 %v5920, %v6095
        %6097 = vmatmul.bf16.gmra.mxu0 %v5870
        %v6098 = vpop.f32.mrf.mxu0
        %v6099 = vadd.f32 %v5920, %v6098
        %v6100 = vpop.f32.mrf.mxu0
        %v6101 = vadd.f32 %v5920, %v6100
        %6102 = vmatmul.bf16.gmra.mxu0 %v5872
        %v6103 = vpop.f32.mrf.mxu0
        %v6104 = vadd.f32 %v5920, %v6103
        %v6105 = vpop.f32.mrf.mxu0
        %v6106 = vadd.f32 %v5920, %v6105
        %6107 = vmatmul.bf16.gmra.mxu0 %v5874
        %v6108 = vpop.f32.mrf.mxu0
        %v6109 = vadd.f32 %v5920, %v6108
        %v6110 = vpop.f32.mrf.mxu0
        %v6111 = vadd.f32 %v5920, %v6110
        %6112 = vmatmul.bf16.gmra.mxu0 %v5876
        %v6113 = vpop.f32.mrf.mxu0
        %v6114 = vadd.f32 %v5920, %v6113
        %v6115 = vpop.f32.mrf.mxu0
        %v6116 = vadd.f32 %v5920, %v6115
        %6117 = vmatmul.bf16.gmra.mxu0 %v5878
        %v6118 = vpop.f32.mrf.mxu0
        %v6119 = vadd.f32 %v5920, %v6118
        %v6120 = vpop.f32.mrf.mxu0
        %v6121 = vadd.f32 %v5920, %v6120
        %6122 = vmatmul.bf16.gmra.mxu0 %v5880
        %v6123 = vpop.f32.mrf.mxu0
        %v6124 = vadd.f32 %v5920, %v6123
        %v6125 = vpop.f32.mrf.mxu0
        %v6126 = vadd.f32 %v5920, %v6125
        %6127 = vmatmul.bf16.gmra.mxu0 %v5882
        %v6128 = vpop.f32.mrf.mxu0
        %v6129 = vadd.f32 %v5920, %v6128
        %v6130 = vpop.f32.mrf.mxu0
        %v6131 = vadd.f32 %v5920, %v6130
        %6132 = vdwg.mxu0
        %6133 = vmatpush.bf16.msra.mxu0 %v6050
        %6134 = vmatpush.bf16.msra.mxu0 %v6048
        %6135 = vmatpush.bf16.msra.mxu0 %v6046
        %6136 = vmatpush.bf16.msra.mxu0 %v6044
        %6137 = vmatpush.bf16.msra.mxu0 %v6042
        %6138 = vmatpush.bf16.msra.mxu0 %v6040
        %6139 = vmatpush.bf16.msra.mxu0 %v6038
        %6140 = vmatpush.bf16.msra.mxu0 %v6036
        %6141 = vmatmul.bf16.gmra.mxu0 %v5869
        %v6142 = vpop.f32.mrf.mxu0
        %v6143 = vadd.f32 %v6094, %v6142
        %v6144 = vpop.f32.mrf.mxu0
        %v6145 = vadd.f32 %v6096, %v6144
        %6146 = vmatmul.bf16.gmra.mxu0 %v5871
        %v6147 = vpop.f32.mrf.mxu0
        %v6148 = vadd.f32 %v6099, %v6147
        %v6149 = vpop.f32.mrf.mxu0
        %v6150 = vadd.f32 %v6101, %v6149
        %6151 = vmatmul.bf16.gmra.mxu0 %v5873
        %v6152 = vpop.f32.mrf.mxu0
        %v6153 = vadd.f32 %v6104, %v6152
        %v6154 = vpop.f32.mrf.mxu0
        %v6155 = vadd.f32 %v6106, %v6154
        %6156 = vmatmul.bf16.gmra.mxu0 %v5875
        %v6157 = vpop.f32.mrf.mxu0
        %v6158 = vadd.f32 %v6109, %v6157
        %v6159 = vpop.f32.mrf.mxu0
        %v6160 = vadd.f32 %v6111, %v6159
        %6161 = vmatmul.bf16.gmra.mxu0 %v5877
        %v6162 = vpop.f32.mrf.mxu0
        %v6163 = vadd.f32 %v6114, %v6162
        %v6164 = vpop.f32.mrf.mxu0
        %v6165 = vadd.f32 %v6116, %v6164
        %6166 = vmatmul.bf16.gmra.mxu0 %v5879
        %v6167 = vpop.f32.mrf.mxu0
        %v6168 = vadd.f32 %v6119, %v6167
        %v6169 = vpop.f32.mrf.mxu0
        %v6170 = vadd.f32 %v6121, %v6169
        %6171 = vmatmul.bf16.gmra.mxu0 %v5881
        %v6172 = vpop.f32.mrf.mxu0
        %v6173 = vadd.f32 %v6124, %v6172
        %v6174 = vpop.f32.mrf.mxu0
        %v6175 = vadd.f32 %v6126, %v6174
        %6176 = vmatmul.bf16.gmra.mxu0 %v5883
        %v6177 = vpop.f32.mrf.mxu0
        %v6178 = vadd.f32 %v6129, %v6177
        %v6179 = vpop.f32.mrf.mxu0
        %v6180 = vadd.f32 %v6131, %v6179
        %6181 = vdwg.mxu0
        %6182 = vmatpush.bf16.msra.mxu0 %v6035
        %6183 = vmatpush.bf16.msra.mxu0 %v6033
        %6184 = vmatpush.bf16.msra.mxu0 %v6031
        %6185 = vmatpush.bf16.msra.mxu0 %v6029
        %6186 = vmatpush.bf16.msra.mxu0 %v6027
        %6187 = vmatpush.bf16.msra.mxu0 %v6025
        %6188 = vmatpush.bf16.msra.mxu0 %v6023
        %6189 = vmatpush.bf16.msra.mxu0 %v6021
        %6190 = vmatmul.bf16.gmra.mxu0 %v5868
        %v6191 = vpop.f32.mrf.mxu0
        %v6192 = vadd.f32 %v5921, %v6191
        %v6193 = vpop.f32.mrf.mxu0
        %v6194 = vadd.f32 %v5921, %v6193
        %6195 = vmatmul.bf16.gmra.mxu0 %v5870
        %v6196 = vpop.f32.mrf.mxu0
        %v6197 = vadd.f32 %v5921, %v6196
        %v6198 = vpop.f32.mrf.mxu0
        %v6199 = vadd.f32 %v5921, %v6198
        %6200 = vmatmul.bf16.gmra.mxu0 %v5872
        %v6201 = vpop.f32.mrf.mxu0
        %v6202 = vadd.f32 %v5921, %v6201
        %v6203 = vpop.f32.mrf.mxu0
        %v6204 = vadd.f32 %v5921, %v6203
        %6205 = vmatmul.bf16.gmra.mxu0 %v5874
        %v6206 = vpop.f32.mrf.mxu0
        %v6207 = vadd.f32 %v5921, %v6206
        %v6208 = vpop.f32.mrf.mxu0
        %v6209 = vadd.f32 %v5921, %v6208
        %6210 = vmatmul.bf16.gmra.mxu0 %v5876
        %v6211 = vpop.f32.mrf.mxu0
        %v6212 = vadd.f32 %v5921, %v6211
        %v6213 = vpop.f32.mrf.mxu0
        %v6214 = vadd.f32 %v5921, %v6213
        %6215 = vmatmul.bf16.gmra.mxu0 %v5878
        %v6216 = vpop.f32.mrf.mxu0
        %v6217 = vadd.f32 %v5921, %v6216
        %v6218 = vpop.f32.mrf.mxu0
        %v6219 = vadd.f32 %v5921, %v6218
        %6220 = vmatmul.bf16.gmra.mxu0 %v5880
        %v6221 = vpop.f32.mrf.mxu0
        %v6222 = vadd.f32 %v5921, %v6221
        %v6223 = vpop.f32.mrf.mxu0
        %v6224 = vadd.f32 %v5921, %v6223
        %6225 = vmatmul.bf16.gmra.mxu0 %v5882
        %v6226 = vpop.f32.mrf.mxu0
        %v6227 = vadd.f32 %v5921, %v6226
        %v6228 = vpop.f32.mrf.mxu0
        %v6229 = vadd.f32 %v5921, %v6228
        %6230 = vdwg.mxu0
        %6231 = vmatpush.bf16.msra.mxu0 %v6051
        %6232 = vmatpush.bf16.msra.mxu0 %v6049
        %6233 = vmatpush.bf16.msra.mxu0 %v6047
        %6234 = vmatpush.bf16.msra.mxu0 %v6045
        %6235 = vmatpush.bf16.msra.mxu0 %v6043
        %6236 = vmatpush.bf16.msra.mxu0 %v6041
        %6237 = vmatpush.bf16.msra.mxu0 %v6039
        %6238 = vmatpush.bf16.msra.mxu0 %v6037
        %6239 = vmatmul.bf16.gmra.mxu0 %v5869
        %v6240 = vpop.f32.mrf.mxu0
        %v6241 = vadd.f32 %v6192, %v6240
        %v6242 = vpop.f32.mrf.mxu0
        %v6243 = vadd.f32 %v6194, %v6242
        %6244 = vmatmul.bf16.gmra.mxu0 %v5871
        %v6245 = vpop.f32.mrf.mxu0
        %v6246 = vadd.f32 %v6197, %v6245
        %v6247 = vpop.f32.mrf.mxu0
        %v6248 = vadd.f32 %v6199, %v6247
        %6249 = vmatmul.bf16.gmra.mxu0 %v5873
        %v6250 = vpop.f32.mrf.mxu0
        %v6251 = vadd.f32 %v6202, %v6250
        %v6252 = vpop.f32.mrf.mxu0
        %v6253 = vadd.f32 %v6204, %v6252
        %6254 = vmatmul.bf16.gmra.mxu0 %v5875
        %v6255 = vpop.f32.mrf.mxu0
        %v6256 = vadd.f32 %v6207, %v6255
        %v6257 = vpop.f32.mrf.mxu0
        %v6258 = vadd.f32 %v6209, %v6257
        %6259 = vmatmul.bf16.gmra.mxu0 %v5877
        %v6260 = vpop.f32.mrf.mxu0
        %v6261 = vadd.f32 %v6212, %v6260
        %v6262 = vpop.f32.mrf.mxu0
        %v6263 = vadd.f32 %v6214, %v6262
        %6264 = vmatmul.bf16.gmra.mxu0 %v5879
        %v6265 = vpop.f32.mrf.mxu0
        %v6266 = vadd.f32 %v6217, %v6265
        %v6267 = vpop.f32.mrf.mxu0
        %v6268 = vadd.f32 %v6219, %v6267
        %6269 = vmatmul.bf16.gmra.mxu0 %v5881
        %v6270 = vpop.f32.mrf.mxu0
        %v6271 = vadd.f32 %v6222, %v6270
        %v6272 = vpop.f32.mrf.mxu0
        %v6273 = vadd.f32 %v6224, %v6272
        %6274 = vmatmul.bf16.gmra.mxu0 %v5883
        %v6275 = vpop.f32.mrf.mxu0
        %v6276 = vadd.f32 %v6227, %v6275
        %v6277 = vpop.f32.mrf.mxu0
        %v6278 = vadd.f32 %v6229, %v6277
        %6279 = vdwg.mxu0
        %v6280 = vadd.f32 %v6143, %v5836
        %v6281 = vadd.f32 %v6241, %v5837
        %v6282 = vadd.f32 %v6145, %v5838
        %v6283 = vadd.f32 %v6243, %v5839
        %v6284 = vadd.f32 %v6148, %v5840
        %v6285 = vadd.f32 %v6246, %v5841
        %v6286 = vadd.f32 %v6150, %v5842
        %v6287 = vadd.f32 %v6248, %v5843
        %v6288 = vadd.f32 %v6153, %v5844
        %v6289 = vadd.f32 %v6251, %v5845
        %v6290 = vadd.f32 %v6155, %v5846
        %v6291 = vadd.f32 %v6253, %v5847
        %v6292 = vadd.f32 %v6158, %v5848
        %v6293 = vadd.f32 %v6256, %v5849
        %v6294 = vadd.f32 %v6160, %v5850
        %v6295 = vadd.f32 %v6258, %v5851
        %v6296 = vadd.f32 %v6163, %v5852
        %v6297 = vadd.f32 %v6261, %v5853
        %v6298 = vadd.f32 %v6165, %v5854
        %v6299 = vadd.f32 %v6263, %v5855
        %v6300 = vadd.f32 %v6168, %v5856
        %v6301 = vadd.f32 %v6266, %v5857
        %v6302 = vadd.f32 %v6170, %v5858
        %v6303 = vadd.f32 %v6268, %v5859
        %v6304 = vadd.f32 %v6173, %v5860
        %v6305 = vadd.f32 %v6271, %v5861
        %v6306 = vadd.f32 %v6175, %v5862
        %v6307 = vadd.f32 %v6273, %v5863
        %v6308 = vadd.f32 %v6178, %v5864
        %v6309 = vadd.f32 %v6276, %v5865
        %v6310 = vadd.f32 %v6180, %v5866
        %v6311 = vadd.f32 %v6278, %v5867
        %v6312 = vmax.f32 %v6280, 0.0
        %v6313 = vmax.f32 %v6281, 0.0
        %v6314 = vmax.f32 %v6282, 0.0
        %v6315 = vmax.f32 %v6283, 0.0
        %v6316 = vmax.f32 %v6284, 0.0
        %v6317 = vmax.f32 %v6285, 0.0
        %v6318 = vmax.f32 %v6286, 0.0
        %v6319 = vmax.f32 %v6287, 0.0
        %v6320 = vmax.f32 %v6288, 0.0
        %v6321 = vmax.f32 %v6289, 0.0
        %v6322 = vmax.f32 %v6290, 0.0
        %v6323 = vmax.f32 %v6291, 0.0
        %v6324 = vmax.f32 %v6292, 0.0
        %v6325 = vmax.f32 %v6293, 0.0
        %v6326 = vmax.f32 %v6294, 0.0
        %v6327 = vmax.f32 %v6295, 0.0
        %v6328 = vmax.f32 %v6296, 0.0
        %v6329 = vmax.f32 %v6297, 0.0
        %v6330 = vmax.f32 %v6298, 0.0
        %v6331 = vmax.f32 %v6299, 0.0
        %v6332 = vmax.f32 %v6300, 0.0
        %v6333 = vmax.f32 %v6301, 0.0
        %v6334 = vmax.f32 %v6302, 0.0
        %v6335 = vmax.f32 %v6303, 0.0
        %v6336 = vmax.f32 %v6304, 0.0
        %v6337 = vmax.f32 %v6305, 0.0
        %v6338 = vmax.f32 %v6306, 0.0
        %v6339 = vmax.f32 %v6307, 0.0
        %v6340 = vmax.f32 %v6308, 0.0
        %v6341 = vmax.f32 %v6309, 0.0
        %v6342 = vmax.f32 %v6310, 0.0
        %v6343 = vmax.f32 %v6311, 0.0
        %6344 = vst [vmem:[#allocation2] sm:$0xff] %v6312
        %6345 = vst [vmem:[#allocation2 + $0x8] sm:$0xff] %v6313
        %6346 = vst [vmem:[#allocation2 + $0x10] sm:$0xff] %v6314
        %6347 = vst [vmem:[#allocation2 + $0x18] sm:$0xff] %v6315
        %6348 = vst [vmem:[#allocation2 + $0x20] sm:$0xff] %v6316
        %6349 = vst [vmem:[#allocation2 + $0x28] sm:$0xff] %v6317
        %6350 = vst [vmem:[#allocation2 + $0x30] sm:$0xff] %v6318
        %6351 = vst [vmem:[#allocation2 + $0x38] sm:$0xff] %v6319
        %6352 = vst [vmem:[#allocation2 + $0x40] sm:$0xff] %v6320
        %6353 = vst [vmem:[#allocation2 + $0x48] sm:$0xff] %v6321
        %6354 = vst [vmem:[#allocation2 + $0x50] sm:$0xff] %v6322
        %6355 = vst [vmem:[#allocation2 + $0x58] sm:$0xff] %v6323
        %6356 = vst [vmem:[#allocation2 + $0x60] sm:$0xff] %v6324
        %6357 = vst [vmem:[#allocation2 + $0x68] sm:$0xff] %v6325
        %6358 = vst [vmem:[#allocation2 + $0x70] sm:$0xff] %v6326
        %6359 = vst [vmem:[#allocation2 + $0x78] sm:$0xff] %v6327
        %6360 = vst [vmem:[#allocation2 + $0x80] sm:$0xff] %v6328
        %6361 = vst [vmem:[#allocation2 + $0x88] sm:$0xff] %v6329
        %6362 = vst [vmem:[#allocation2 + $0x90] sm:$0xff] %v6330
        %6363 = vst [vmem:[#allocation2 + $0x98] sm:$0xff] %v6331
        %6364 = vst [vmem:[#allocation2 + $0xa0] sm:$0xff] %v6332
        %6365 = vst [vmem:[#allocation2 + $0xa8] sm:$0xff] %v6333
        %6366 = vst [vmem:[#allocation2 + $0xb0] sm:$0xff] %v6334
        %6367 = vst [vmem:[#allocation2 + $0xb8] sm:$0xff] %v6335
        %6368 = vst [vmem:[#allocation2 + $0xc0] sm:$0xff] %v6336
        %6369 = vst [vmem:[#allocation2 + $0xc8] sm:$0xff] %v6337
        %6370 = vst [vmem:[#allocation2 + $0xd0] sm:$0xff] %v6338
        %6371 = vst [vmem:[#allocation2 + $0xd8] sm:$0xff] %v6339
        %6372 = vst [vmem:[#allocation2 + $0xe0] sm:$0xff] %v6340
        %6373 = vst [vmem:[#allocation2 + $0xe8] sm:$0xff] %v6341
        %6374 = vst [vmem:[#allocation2 + $0xf0] sm:$0xff] %v6342
        %6375 = vst [vmem:[#allocation2 + $0xf8] sm:$0xff] %v6343
        %v6376 = vld [vmem:[#allocation2] sm:$0xff]
        %v6377 = vld [vmem:[#allocation2 + $0x8] sm:$0xff]
        %v6378 = vld [vmem:[#allocation2 + $0x10] sm:$0xff]
        %v6379 = vld [vmem:[#allocation2 + $0x18] sm:$0xff]
        %v6380 = vld [vmem:[#allocation2 + $0x20] sm:$0xff]
        %v6381 = vld [vmem:[#allocation2 + $0x28] sm:$0xff]
        %v6382 = vld [vmem:[#allocation2 + $0x30] sm:$0xff]
        %v6383 = vld [vmem:[#allocation2 + $0x38] sm:$0xff]
        %v6384 = vld [vmem:[#allocation2 + $0x40] sm:$0xff]
        %v6385 = vld [vmem:[#allocation2 + $0x48] sm:$0xff]
        %v6386 = vld [vmem:[#allocation2 + $0x50] sm:$0xff]
        %v6387 = vld [vmem:[#allocation2 + $0x58] sm:$0xff]
        %v6388 = vld [vmem:[#allocation2 + $0x60] sm:$0xff]
        %v6389 = vld [vmem:[#allocation2 + $0x68] sm:$0xff]
        %v6390 = vld [vmem:[#allocation2 + $0x70] sm:$0xff]
        %v6391 = vld [vmem:[#allocation2 + $0x78] sm:$0xff]
        %v6392 = vld [vmem:[#allocation2 + $0x80] sm:$0xff]
        %v6393 = vld [vmem:[#allocation2 + $0x88] sm:$0xff]
        %v6394 = vld [vmem:[#allocation2 + $0x90] sm:$0xff]
        %v6395 = vld [vmem:[#allocation2 + $0x98] sm:$0xff]
        %v6396 = vld [vmem:[#allocation2 + $0xa0] sm:$0xff]
        %v6397 = vld [vmem:[#allocation2 + $0xa8] sm:$0xff]
        %v6398 = vld [vmem:[#allocation2 + $0xb0] sm:$0xff]
        %v6399 = vld [vmem:[#allocation2 + $0xb8] sm:$0xff]
        %v6400 = vld [vmem:[#allocation2 + $0xc0] sm:$0xff]
        %v6401 = vld [vmem:[#allocation2 + $0xc8] sm:$0xff]
        %v6402 = vld [vmem:[#allocation2 + $0xd0] sm:$0xff]
        %v6403 = vld [vmem:[#allocation2 + $0xd8] sm:$0xff]
        %v6404 = vld [vmem:[#allocation2 + $0xe0] sm:$0xff]
        %v6405 = vld [vmem:[#allocation2 + $0xe8] sm:$0xff]
        %v6406 = vld [vmem:[#allocation2 + $0xf0] sm:$0xff]
        %v6407 = vld [vmem:[#allocation2 + $0xf8] sm:$0xff]
        %v6408 = vpack.c.bf16 %v6378, %v6376
        %v6409 = vpack.c.bf16 %v6379, %v6377
        %v6410 = vpack.c.bf16 %v6382, %v6380
        %v6411 = vpack.c.bf16 %v6383, %v6381
        %v6412 = vpack.c.bf16 %v6386, %v6384
        %v6413 = vpack.c.bf16 %v6387, %v6385
        %v6414 = vpack.c.bf16 %v6390, %v6388
        %v6415 = vpack.c.bf16 %v6391, %v6389
        %v6416 = vpack.c.bf16 %v6394, %v6392
        %v6417 = vpack.c.bf16 %v6395, %v6393
        %v6418 = vpack.c.bf16 %v6398, %v6396
        %v6419 = vpack.c.bf16 %v6399, %v6397
        %v6420 = vpack.c.bf16 %v6402, %v6400
        %v6421 = vpack.c.bf16 %v6403, %v6401
        %v6422 = vpack.c.bf16 %v6406, %v6404
        %v6423 = vpack.c.bf16 %v6407, %v6405
        %s6424 = scalar_lea.vmem [#allocation10], 2560
        %v6425 = vld [vmem:[%s6424] sm:$0xff]
        %v6426 = vld [vmem:[%s6424 + $0x8] sm:$0xff]
        %v6427 = vld [vmem:[%s6424 + $0x10] sm:$0xff]
        %v6428 = vld [vmem:[%s6424 + $0x18] sm:$0xff]
        %v6429 = vld [vmem:[%s6424 + $0x20] sm:$0xff]
        %v6430 = vld [vmem:[%s6424 + $0x28] sm:$0xff]
        %v6431 = vld [vmem:[%s6424 + $0x30] sm:$0xff]
        %v6432 = vld [vmem:[%s6424 + $0x38] sm:$0xff]
        %v6433 = vld [vmem:[%s6424 + $0x40] sm:$0xff]
        %v6434 = vld [vmem:[%s6424 + $0x48] sm:$0xff]
        %v6435 = vld [vmem:[%s6424 + $0x50] sm:$0xff]
        %v6436 = vld [vmem:[%s6424 + $0x58] sm:$0xff]
        %v6437 = vld [vmem:[%s6424 + $0x60] sm:$0xff]
        %v6438 = vld [vmem:[%s6424 + $0x68] sm:$0xff]
        %v6439 = vld [vmem:[%s6424 + $0x70] sm:$0xff]
        %v6440 = vld [vmem:[%s6424 + $0x78] sm:$0xff]
        %v6441 = vld [vmem:[%s6424 + $0x80] sm:$0xff]
        %v6442 = vld [vmem:[%s6424 + $0x88] sm:$0xff]
        %v6443 = vld [vmem:[%s6424 + $0x90] sm:$0xff]
        %v6444 = vld [vmem:[%s6424 + $0x98] sm:$0xff]
        %v6445 = vld [vmem:[%s6424 + $0xa0] sm:$0xff]
        %v6446 = vld [vmem:[%s6424 + $0xa8] sm:$0xff]
        %v6447 = vld [vmem:[%s6424 + $0xb0] sm:$0xff]
        %v6448 = vld [vmem:[%s6424 + $0xb8] sm:$0xff]
        %v6449 = vld [vmem:[%s6424 + $0xc0] sm:$0xff]
        %v6450 = vld [vmem:[%s6424 + $0xc8] sm:$0xff]
        %v6451 = vld [vmem:[%s6424 + $0xd0] sm:$0xff]
        %v6452 = vld [vmem:[%s6424 + $0xd8] sm:$0xff]
        %v6453 = vld [vmem:[%s6424 + $0xe0] sm:$0xff]
        %v6454 = vld [vmem:[%s6424 + $0xe8] sm:$0xff]
        %v6455 = vld [vmem:[%s6424 + $0xf0] sm:$0xff]
        %v6456 = vld [vmem:[%s6424 + $0xf8] sm:$0xff]
        %s6457 = scalar_lea.vmem [#allocation12], 20
        %v6458 = vld [vmem:[%s6457] sm:$0x3]
        %v6460 = vperm.slane %v6458, 0
        %v6461 = vperm.slane %v6458, 1
        %v6496 = vunpack.c.l.b16 %v6425
        %v6497 = vunpack.c.h.b16 %v6425
        %v6498 = vunpack.c.l.b16 %v6426
        %v6499 = vunpack.c.h.b16 %v6426
        %v6500 = vunpack.c.l.b16 %v6427
        %v6501 = vunpack.c.h.b16 %v6427
        %v6502 = vunpack.c.l.b16 %v6428
        %v6503 = vunpack.c.h.b16 %v6428
        %v6504 = vunpack.c.l.b16 %v6429
        %v6505 = vunpack.c.h.b16 %v6429
        %v6506 = vunpack.c.l.b16 %v6430
        %v6507 = vunpack.c.h.b16 %v6430
        %v6508 = vunpack.c.l.b16 %v6431
        %v6509 = vunpack.c.h.b16 %v6431
        %v6510 = vunpack.c.l.b16 %v6432
        %v6511 = vunpack.c.h.b16 %v6432
        %v6512 = vunpack.c.l.b16 %v6433
        %v6513 = vunpack.c.h.b16 %v6433
        %v6514 = vunpack.c.l.b16 %v6434
        %v6515 = vunpack.c.h.b16 %v6434
        %v6516 = vunpack.c.l.b16 %v6435
        %v6517 = vunpack.c.h.b16 %v6435
        %v6518 = vunpack.c.l.b16 %v6436
        %v6519 = vunpack.c.h.b16 %v6436
        %v6520 = vunpack.c.l.b16 %v6437
        %v6521 = vunpack.c.h.b16 %v6437
        %v6522 = vunpack.c.l.b16 %v6438
        %v6523 = vunpack.c.h.b16 %v6438
        %v6524 = vunpack.c.l.b16 %v6439
        %v6525 = vunpack.c.h.b16 %v6439
        %v6526 = vunpack.c.l.b16 %v6440
        %v6527 = vunpack.c.h.b16 %v6440
        %v6528 = vunpack.c.l.b16 %v6441
        %v6529 = vunpack.c.h.b16 %v6441
        %v6530 = vunpack.c.l.b16 %v6442
        %v6531 = vunpack.c.h.b16 %v6442
        %v6532 = vunpack.c.l.b16 %v6443
        %v6533 = vunpack.c.h.b16 %v6443
        %v6534 = vunpack.c.l.b16 %v6444
        %v6535 = vunpack.c.h.b16 %v6444
        %v6536 = vunpack.c.l.b16 %v6445
        %v6537 = vunpack.c.h.b16 %v6445
        %v6538 = vunpack.c.l.b16 %v6446
        %v6539 = vunpack.c.h.b16 %v6446
        %v6540 = vunpack.c.l.b16 %v6447
        %v6541 = vunpack.c.h.b16 %v6447
        %v6542 = vunpack.c.l.b16 %v6448
        %v6543 = vunpack.c.h.b16 %v6448
        %v6544 = vunpack.c.l.b16 %v6449
        %v6545 = vunpack.c.h.b16 %v6449
        %v6546 = vunpack.c.l.b16 %v6450
        %v6547 = vunpack.c.h.b16 %v6450
        %v6548 = vunpack.c.l.b16 %v6451
        %v6549 = vunpack.c.h.b16 %v6451
        %v6550 = vunpack.c.l.b16 %v6452
        %v6551 = vunpack.c.h.b16 %v6452
        %v6552 = vunpack.c.l.b16 %v6453
        %v6553 = vunpack.c.h.b16 %v6453
        %v6554 = vunpack.c.l.b16 %v6454
        %v6555 = vunpack.c.h.b16 %v6454
        %v6556 = vunpack.c.l.b16 %v6455
        %v6557 = vunpack.c.h.b16 %v6455
        %v6558 = vunpack.c.l.b16 %v6456
        %v6559 = vunpack.c.h.b16 %v6456
        %v6560 = vpack.c.b16 %v6498, %v6496
        %v6561 = vpack.c.b16 %v6499, %v6497
        %v6562 = vpack.c.b16 %v6502, %v6500
        %v6563 = vpack.c.b16 %v6503, %v6501
        %v6564 = vpack.c.b16 %v6506, %v6504
        %v6565 = vpack.c.b16 %v6507, %v6505
        %v6566 = vpack.c.b16 %v6510, %v6508
        %v6567 = vpack.c.b16 %v6511, %v6509
        %v6568 = vpack.c.b16 %v6514, %v6512
        %v6569 = vpack.c.b16 %v6515, %v6513
        %v6570 = vpack.c.b16 %v6518, %v6516
        %v6571 = vpack.c.b16 %v6519, %v6517
        %v6572 = vpack.c.b16 %v6522, %v6520
        %v6573 = vpack.c.b16 %v6523, %v6521
        %v6574 = vpack.c.b16 %v6526, %v6524
        %v6575 = vpack.c.b16 %v6527, %v6525
        %v6576 = vpack.c.b16 %v6530, %v6528
        %v6577 = vpack.c.b16 %v6531, %v6529
        %v6578 = vpack.c.b16 %v6534, %v6532
        %v6579 = vpack.c.b16 %v6535, %v6533
        %v6580 = vpack.c.b16 %v6538, %v6536
        %v6581 = vpack.c.b16 %v6539, %v6537
        %v6582 = vpack.c.b16 %v6542, %v6540
        %v6583 = vpack.c.b16 %v6543, %v6541
        %v6584 = vpack.c.b16 %v6546, %v6544
        %v6585 = vpack.c.b16 %v6547, %v6545
        %v6586 = vpack.c.b16 %v6550, %v6548
        %v6587 = vpack.c.b16 %v6551, %v6549
        %v6588 = vpack.c.b16 %v6554, %v6552
        %v6589 = vpack.c.b16 %v6555, %v6553
        %v6590 = vpack.c.b16 %v6558, %v6556
        %v6591 = vpack.c.b16 %v6559, %v6557
        %6624 = vmatpush.bf16.msra.mxu0 %v6574
        %6625 = vmatpush.bf16.msra.mxu0 %v6572
        %6626 = vmatpush.bf16.msra.mxu0 %v6570
        %6627 = vmatpush.bf16.msra.mxu0 %v6568
        %6628 = vmatpush.bf16.msra.mxu0 %v6566
        %6629 = vmatpush.bf16.msra.mxu0 %v6564
        %6630 = vmatpush.bf16.msra.mxu0 %v6562
        %6631 = vmatpush.bf16.msra.mxu0 %v6560
        %6632 = vmatmul.bf16.gmra.mxu0 %v6408
        %v6633 = vpop.f32.mrf.mxu0
        %v6634 = vadd.f32 %v6460, %v6633
        %v6635 = vpop.f32.mrf.mxu0
        %v6636 = vadd.f32 %v6460, %v6635
        %6637 = vmatmul.bf16.gmra.mxu0 %v6410
        %v6638 = vpop.f32.mrf.mxu0
        %v6639 = vadd.f32 %v6460, %v6638
        %v6640 = vpop.f32.mrf.mxu0
        %v6641 = vadd.f32 %v6460, %v6640
        %6642 = vmatmul.bf16.gmra.mxu0 %v6412
        %v6643 = vpop.f32.mrf.mxu0
        %v6644 = vadd.f32 %v6460, %v6643
        %v6645 = vpop.f32.mrf.mxu0
        %v6646 = vadd.f32 %v6460, %v6645
        %6647 = vmatmul.bf16.gmra.mxu0 %v6414
        %v6648 = vpop.f32.mrf.mxu0
        %v6649 = vadd.f32 %v6460, %v6648
        %v6650 = vpop.f32.mrf.mxu0
        %v6651 = vadd.f32 %v6460, %v6650
        %6652 = vmatmul.bf16.gmra.mxu0 %v6416
        %v6653 = vpop.f32.mrf.mxu0
        %v6654 = vadd.f32 %v6460, %v6653
        %v6655 = vpop.f32.mrf.mxu0
        %v6656 = vadd.f32 %v6460, %v6655
        %6657 = vmatmul.bf16.gmra.mxu0 %v6418
        %v6658 = vpop.f32.mrf.mxu0
        %v6659 = vadd.f32 %v6460, %v6658
        %v6660 = vpop.f32.mrf.mxu0
        %v6661 = vadd.f32 %v6460, %v6660
        %6662 = vmatmul.bf16.gmra.mxu0 %v6420
        %v6663 = vpop.f32.mrf.mxu0
        %v6664 = vadd.f32 %v6460, %v6663
        %v6665 = vpop.f32.mrf.mxu0
        %v6666 = vadd.f32 %v6460, %v6665
        %6667 = vmatmul.bf16.gmra.mxu0 %v6422
        %v6668 = vpop.f32.mrf.mxu0
        %v6669 = vadd.f32 %v6460, %v6668
        %v6670 = vpop.f32.mrf.mxu0
        %v6671 = vadd.f32 %v6460, %v6670
        %6672 = vdwg.mxu0
        %6673 = vmatpush.bf16.msra.mxu0 %v6590
        %6674 = vmatpush.bf16.msra.mxu0 %v6588
        %6675 = vmatpush.bf16.msra.mxu0 %v6586
        %6676 = vmatpush.bf16.msra.mxu0 %v6584
        %6677 = vmatpush.bf16.msra.mxu0 %v6582
        %6678 = vmatpush.bf16.msra.mxu0 %v6580
        %6679 = vmatpush.bf16.msra.mxu0 %v6578
        %6680 = vmatpush.bf16.msra.mxu0 %v6576
        %6681 = vmatmul.bf16.gmra.mxu0 %v6409
        %v6682 = vpop.f32.mrf.mxu0
        %v6683 = vadd.f32 %v6634, %v6682
        %v6684 = vpop.f32.mrf.mxu0
        %v6685 = vadd.f32 %v6636, %v6684
        %6686 = vmatmul.bf16.gmra.mxu0 %v6411
        %v6687 = vpop.f32.mrf.mxu0
        %v6688 = vadd.f32 %v6639, %v6687
        %v6689 = vpop.f32.mrf.mxu0
        %v6690 = vadd.f32 %v6641, %v6689
        %6691 = vmatmul.bf16.gmra.mxu0 %v6413
        %v6692 = vpop.f32.mrf.mxu0
        %v6693 = vadd.f32 %v6644, %v6692
        %v6694 = vpop.f32.mrf.mxu0
        %v6695 = vadd.f32 %v6646, %v6694
        %6696 = vmatmul.bf16.gmra.mxu0 %v6415
        %v6697 = vpop.f32.mrf.mxu0
        %v6698 = vadd.f32 %v6649, %v6697
        %v6699 = vpop.f32.mrf.mxu0
        %v6700 = vadd.f32 %v6651, %v6699
        %6701 = vmatmul.bf16.gmra.mxu0 %v6417
        %v6702 = vpop.f32.mrf.mxu0
        %v6703 = vadd.f32 %v6654, %v6702
        %v6704 = vpop.f32.mrf.mxu0
        %v6705 = vadd.f32 %v6656, %v6704
        %6706 = vmatmul.bf16.gmra.mxu0 %v6419
        %v6707 = vpop.f32.mrf.mxu0
        %v6708 = vadd.f32 %v6659, %v6707
        %v6709 = vpop.f32.mrf.mxu0
        %v6710 = vadd.f32 %v6661, %v6709
        %6711 = vmatmul.bf16.gmra.mxu0 %v6421
        %v6712 = vpop.f32.mrf.mxu0
        %v6713 = vadd.f32 %v6664, %v6712
        %v6714 = vpop.f32.mrf.mxu0
        %v6715 = vadd.f32 %v6666, %v6714
        %6716 = vmatmul.bf16.gmra.mxu0 %v6423
        %v6717 = vpop.f32.mrf.mxu0
        %v6718 = vadd.f32 %v6669, %v6717
        %v6719 = vpop.f32.mrf.mxu0
        %v6720 = vadd.f32 %v6671, %v6719
        %6721 = vdwg.mxu0
        %6722 = vmatpush.bf16.msra.mxu0 %v6575
        %6723 = vmatpush.bf16.msra.mxu0 %v6573
        %6724 = vmatpush.bf16.msra.mxu0 %v6571
        %6725 = vmatpush.bf16.msra.mxu0 %v6569
        %6726 = vmatpush.bf16.msra.mxu0 %v6567
        %6727 = vmatpush.bf16.msra.mxu0 %v6565
        %6728 = vmatpush.bf16.msra.mxu0 %v6563
        %6729 = vmatpush.bf16.msra.mxu0 %v6561
        %6730 = vmatmul.bf16.gmra.mxu0 %v6408
        %v6731 = vpop.f32.mrf.mxu0
        %v6732 = vadd.f32 %v6461, %v6731
        %v6733 = vpop.f32.mrf.mxu0
        %v6734 = vadd.f32 %v6461, %v6733
        %6735 = vmatmul.bf16.gmra.mxu0 %v6410
        %v6736 = vpop.f32.mrf.mxu0
        %v6737 = vadd.f32 %v6461, %v6736
        %v6738 = vpop.f32.mrf.mxu0
        %v6739 = vadd.f32 %v6461, %v6738
        %6740 = vmatmul.bf16.gmra.mxu0 %v6412
        %v6741 = vpop.f32.mrf.mxu0
        %v6742 = vadd.f32 %v6461, %v6741
        %v6743 = vpop.f32.mrf.mxu0
        %v6744 = vadd.f32 %v6461, %v6743
        %6745 = vmatmul.bf16.gmra.mxu0 %v6414
        %v6746 = vpop.f32.mrf.mxu0
        %v6747 = vadd.f32 %v6461, %v6746
        %v6748 = vpop.f32.mrf.mxu0
        %v6749 = vadd.f32 %v6461, %v6748
        %6750 = vmatmul.bf16.gmra.mxu0 %v6416
        %v6751 = vpop.f32.mrf.mxu0
        %v6752 = vadd.f32 %v6461, %v6751
        %v6753 = vpop.f32.mrf.mxu0
        %v6754 = vadd.f32 %v6461, %v6753
        %6755 = vmatmul.bf16.gmra.mxu0 %v6418
        %v6756 = vpop.f32.mrf.mxu0
        %v6757 = vadd.f32 %v6461, %v6756
        %v6758 = vpop.f32.mrf.mxu0
        %v6759 = vadd.f32 %v6461, %v6758
        %6760 = vmatmul.bf16.gmra.mxu0 %v6420
        %v6761 = vpop.f32.mrf.mxu0
        %v6762 = vadd.f32 %v6461, %v6761
        %v6763 = vpop.f32.mrf.mxu0
        %v6764 = vadd.f32 %v6461, %v6763
        %6765 = vmatmul.bf16.gmra.mxu0 %v6422
        %v6766 = vpop.f32.mrf.mxu0
        %v6767 = vadd.f32 %v6461, %v6766
        %v6768 = vpop.f32.mrf.mxu0
        %v6769 = vadd.f32 %v6461, %v6768
        %6770 = vdwg.mxu0
        %6771 = vmatpush.bf16.msra.mxu0 %v6591
        %6772 = vmatpush.bf16.msra.mxu0 %v6589
        %6773 = vmatpush.bf16.msra.mxu0 %v6587
        %6774 = vmatpush.bf16.msra.mxu0 %v6585
        %6775 = vmatpush.bf16.msra.mxu0 %v6583
        %6776 = vmatpush.bf16.msra.mxu0 %v6581
        %6777 = vmatpush.bf16.msra.mxu0 %v6579
        %6778 = vmatpush.bf16.msra.mxu0 %v6577
        %6779 = vmatmul.bf16.gmra.mxu0 %v6409
        %v6780 = vpop.f32.mrf.mxu0
        %v6781 = vadd.f32 %v6732, %v6780
        %v6782 = vpop.f32.mrf.mxu0
        %v6783 = vadd.f32 %v6734, %v6782
        %6784 = vmatmul.bf16.gmra.mxu0 %v6411
        %v6785 = vpop.f32.mrf.mxu0
        %v6786 = vadd.f32 %v6737, %v6785
        %v6787 = vpop.f32.mrf.mxu0
        %v6788 = vadd.f32 %v6739, %v6787
        %6789 = vmatmul.bf16.gmra.mxu0 %v6413
        %v6790 = vpop.f32.mrf.mxu0
        %v6791 = vadd.f32 %v6742, %v6790
        %v6792 = vpop.f32.mrf.mxu0
        %v6793 = vadd.f32 %v6744, %v6792
        %6794 = vmatmul.bf16.gmra.mxu0 %v6415
        %v6795 = vpop.f32.mrf.mxu0
        %v6796 = vadd.f32 %v6747, %v6795
        %v6797 = vpop.f32.mrf.mxu0
        %v6798 = vadd.f32 %v6749, %v6797
        %6799 = vmatmul.bf16.gmra.mxu0 %v6417
        %v6800 = vpop.f32.mrf.mxu0
        %v6801 = vadd.f32 %v6752, %v6800
        %v6802 = vpop.f32.mrf.mxu0
        %v6803 = vadd.f32 %v6754, %v6802
        %6804 = vmatmul.bf16.gmra.mxu0 %v6419
        %v6805 = vpop.f32.mrf.mxu0
        %v6806 = vadd.f32 %v6757, %v6805
        %v6807 = vpop.f32.mrf.mxu0
        %v6808 = vadd.f32 %v6759, %v6807
        %6809 = vmatmul.bf16.gmra.mxu0 %v6421
        %v6810 = vpop.f32.mrf.mxu0
        %v6811 = vadd.f32 %v6762, %v6810
        %v6812 = vpop.f32.mrf.mxu0
        %v6813 = vadd.f32 %v6764, %v6812
        %6814 = vmatmul.bf16.gmra.mxu0 %v6423
        %v6815 = vpop.f32.mrf.mxu0
        %v6816 = vadd.f32 %v6767, %v6815
        %v6817 = vpop.f32.mrf.mxu0
        %v6818 = vadd.f32 %v6769, %v6817
        %6819 = vdwg.mxu0
        %v6820 = vadd.f32 %v6683, %v6376
        %v6821 = vadd.f32 %v6781, %v6377
        %v6822 = vadd.f32 %v6685, %v6378
        %v6823 = vadd.f32 %v6783, %v6379
        %v6824 = vadd.f32 %v6688, %v6380
        %v6825 = vadd.f32 %v6786, %v6381
        %v6826 = vadd.f32 %v6690, %v6382
        %v6827 = vadd.f32 %v6788, %v6383
        %v6828 = vadd.f32 %v6693, %v6384
        %v6829 = vadd.f32 %v6791, %v6385
        %v6830 = vadd.f32 %v6695, %v6386
        %v6831 = vadd.f32 %v6793, %v6387
        %v6832 = vadd.f32 %v6698, %v6388
        %v6833 = vadd.f32 %v6796, %v6389
        %v6834 = vadd.f32 %v6700, %v6390
        %v6835 = vadd.f32 %v6798, %v6391
        %v6836 = vadd.f32 %v6703, %v6392
        %v6837 = vadd.f32 %v6801, %v6393
        %v6838 = vadd.f32 %v6705, %v6394
        %v6839 = vadd.f32 %v6803, %v6395
        %v6840 = vadd.f32 %v6708, %v6396
        %v6841 = vadd.f32 %v6806, %v6397
        %v6842 = vadd.f32 %v6710, %v6398
        %v6843 = vadd.f32 %v6808, %v6399
        %v6844 = vadd.f32 %v6713, %v6400
        %v6845 = vadd.f32 %v6811, %v6401
        %v6846 = vadd.f32 %v6715, %v6402
        %v6847 = vadd.f32 %v6813, %v6403
        %v6848 = vadd.f32 %v6718, %v6404
        %v6849 = vadd.f32 %v6816, %v6405
        %v6850 = vadd.f32 %v6720, %v6406
        %v6851 = vadd.f32 %v6818, %v6407
        %v6852 = vmax.f32 %v6820, 0.0
        %v6853 = vmax.f32 %v6821, 0.0
        %v6854 = vmax.f32 %v6822, 0.0
        %v6855 = vmax.f32 %v6823, 0.0
        %v6856 = vmax.f32 %v6824, 0.0
        %v6857 = vmax.f32 %v6825, 0.0
        %v6858 = vmax.f32 %v6826, 0.0
        %v6859 = vmax.f32 %v6827, 0.0
        %v6860 = vmax.f32 %v6828, 0.0
        %v6861 = vmax.f32 %v6829, 0.0
        %v6862 = vmax.f32 %v6830, 0.0
        %v6863 = vmax.f32 %v6831, 0.0
        %v6864 = vmax.f32 %v6832, 0.0
        %v6865 = vmax.f32 %v6833, 0.0
        %v6866 = vmax.f32 %v6834, 0.0
        %v6867 = vmax.f32 %v6835, 0.0
        %v6868 = vmax.f32 %v6836, 0.0
        %v6869 = vmax.f32 %v6837, 0.0
        %v6870 = vmax.f32 %v6838, 0.0
        %v6871 = vmax.f32 %v6839, 0.0
        %v6872 = vmax.f32 %v6840, 0.0
        %v6873 = vmax.f32 %v6841, 0.0
        %v6874 = vmax.f32 %v6842, 0.0
        %v6875 = vmax.f32 %v6843, 0.0
        %v6876 = vmax.f32 %v6844, 0.0
        %v6877 = vmax.f32 %v6845, 0.0
        %v6878 = vmax.f32 %v6846, 0.0
        %v6879 = vmax.f32 %v6847, 0.0
        %v6880 = vmax.f32 %v6848, 0.0
        %v6881 = vmax.f32 %v6849, 0.0
        %v6882 = vmax.f32 %v6850, 0.0
        %v6883 = vmax.f32 %v6851, 0.0
        %6884 = vst [vmem:[#allocation2] sm:$0xff] %v6852
        %6885 = vst [vmem:[#allocation2 + $0x8] sm:$0xff] %v6853
        %6886 = vst [vmem:[#allocation2 + $0x10] sm:$0xff] %v6854
        %6887 = vst [vmem:[#allocation2 + $0x18] sm:$0xff] %v6855
        %6888 = vst [vmem:[#allocation2 + $0x20] sm:$0xff] %v6856
        %6889 = vst [vmem:[#allocation2 + $0x28] sm:$0xff] %v6857
        %6890 = vst [vmem:[#allocation2 + $0x30] sm:$0xff] %v6858
        %6891 = vst [vmem:[#allocation2 + $0x38] sm:$0xff] %v6859
        %6892 = vst [vmem:[#allocation2 + $0x40] sm:$0xff] %v6860
        %6893 = vst [vmem:[#allocation2 + $0x48] sm:$0xff] %v6861
        %6894 = vst [vmem:[#allocation2 + $0x50] sm:$0xff] %v6862
        %6895 = vst [vmem:[#allocation2 + $0x58] sm:$0xff] %v6863
        %6896 = vst [vmem:[#allocation2 + $0x60] sm:$0xff] %v6864
        %6897 = vst [vmem:[#allocation2 + $0x68] sm:$0xff] %v6865
        %6898 = vst [vmem:[#allocation2 + $0x70] sm:$0xff] %v6866
        %6899 = vst [vmem:[#allocation2 + $0x78] sm:$0xff] %v6867
        %6900 = vst [vmem:[#allocation2 + $0x80] sm:$0xff] %v6868
        %6901 = vst [vmem:[#allocation2 + $0x88] sm:$0xff] %v6869
        %6902 = vst [vmem:[#allocation2 + $0x90] sm:$0xff] %v6870
        %6903 = vst [vmem:[#allocation2 + $0x98] sm:$0xff] %v6871
        %6904 = vst [vmem:[#allocation2 + $0xa0] sm:$0xff] %v6872
        %6905 = vst [vmem:[#allocation2 + $0xa8] sm:$0xff] %v6873
        %6906 = vst [vmem:[#allocation2 + $0xb0] sm:$0xff] %v6874
        %6907 = vst [vmem:[#allocation2 + $0xb8] sm:$0xff] %v6875
        %6908 = vst [vmem:[#allocation2 + $0xc0] sm:$0xff] %v6876
        %6909 = vst [vmem:[#allocation2 + $0xc8] sm:$0xff] %v6877
        %6910 = vst [vmem:[#allocation2 + $0xd0] sm:$0xff] %v6878
        %6911 = vst [vmem:[#allocation2 + $0xd8] sm:$0xff] %v6879
        %6912 = vst [vmem:[#allocation2 + $0xe0] sm:$0xff] %v6880
        %6913 = vst [vmem:[#allocation2 + $0xe8] sm:$0xff] %v6881
        %6914 = vst [vmem:[#allocation2 + $0xf0] sm:$0xff] %v6882
        %6915 = vst [vmem:[#allocation2 + $0xf8] sm:$0xff] %v6883
        %v6916 = vld [vmem:[#allocation2] sm:$0xff]
        %v6917 = vld [vmem:[#allocation2 + $0x8] sm:$0xff]
        %v6918 = vld [vmem:[#allocation2 + $0x10] sm:$0xff]
        %v6919 = vld [vmem:[#allocation2 + $0x18] sm:$0xff]
        %v6920 = vld [vmem:[#allocation2 + $0x20] sm:$0xff]
        %v6921 = vld [vmem:[#allocation2 + $0x28] sm:$0xff]
        %v6922 = vld [vmem:[#allocation2 + $0x30] sm:$0xff]
        %v6923 = vld [vmem:[#allocation2 + $0x38] sm:$0xff]
        %v6924 = vld [vmem:[#allocation2 + $0x40] sm:$0xff]
        %v6925 = vld [vmem:[#allocation2 + $0x48] sm:$0xff]
        %v6926 = vld [vmem:[#allocation2 + $0x50] sm:$0xff]
        %v6927 = vld [vmem:[#allocation2 + $0x58] sm:$0xff]
        %v6928 = vld [vmem:[#allocation2 + $0x60] sm:$0xff]
        %v6929 = vld [vmem:[#allocation2 + $0x68] sm:$0xff]
        %v6930 = vld [vmem:[#allocation2 + $0x70] sm:$0xff]
        %v6931 = vld [vmem:[#allocation2 + $0x78] sm:$0xff]
        %v6932 = vld [vmem:[#allocation2 + $0x80] sm:$0xff]
        %v6933 = vld [vmem:[#allocation2 + $0x88] sm:$0xff]
        %v6934 = vld [vmem:[#allocation2 + $0x90] sm:$0xff]
        %v6935 = vld [vmem:[#allocation2 + $0x98] sm:$0xff]
        %v6936 = vld [vmem:[#allocation2 + $0xa0] sm:$0xff]
        %v6937 = vld [vmem:[#allocation2 + $0xa8] sm:$0xff]
        %v6938 = vld [vmem:[#allocation2 + $0xb0] sm:$0xff]
        %v6939 = vld [vmem:[#allocation2 + $0xb8] sm:$0xff]
        %v6940 = vld [vmem:[#allocation2 + $0xc0] sm:$0xff]
        %v6941 = vld [vmem:[#allocation2 + $0xc8] sm:$0xff]
        %v6942 = vld [vmem:[#allocation2 + $0xd0] sm:$0xff]
        %v6943 = vld [vmem:[#allocation2 + $0xd8] sm:$0xff]
        %v6944 = vld [vmem:[#allocation2 + $0xe0] sm:$0xff]
        %v6945 = vld [vmem:[#allocation2 + $0xe8] sm:$0xff]
        %v6946 = vld [vmem:[#allocation2 + $0xf0] sm:$0xff]
        %v6947 = vld [vmem:[#allocation2 + $0xf8] sm:$0xff]
        %v6948 = vpack.c.bf16 %v6918, %v6916
        %v6949 = vpack.c.bf16 %v6919, %v6917
        %v6950 = vpack.c.bf16 %v6922, %v6920
        %v6951 = vpack.c.bf16 %v6923, %v6921
        %v6952 = vpack.c.bf16 %v6926, %v6924
        %v6953 = vpack.c.bf16 %v6927, %v6925
        %v6954 = vpack.c.bf16 %v6930, %v6928
        %v6955 = vpack.c.bf16 %v6931, %v6929
        %v6956 = vpack.c.bf16 %v6934, %v6932
        %v6957 = vpack.c.bf16 %v6935, %v6933
        %v6958 = vpack.c.bf16 %v6938, %v6936
        %v6959 = vpack.c.bf16 %v6939, %v6937
        %v6960 = vpack.c.bf16 %v6942, %v6940
        %v6961 = vpack.c.bf16 %v6943, %v6941
        %v6962 = vpack.c.bf16 %v6946, %v6944
        %v6963 = vpack.c.bf16 %v6947, %v6945
        %s6964 = scalar_lea.vmem [#allocation10], 2816
        %v6965 = vld [vmem:[%s6964] sm:$0xff]
        %v6966 = vld [vmem:[%s6964 + $0x8] sm:$0xff]
        %v6967 = vld [vmem:[%s6964 + $0x10] sm:$0xff]
        %v6968 = vld [vmem:[%s6964 + $0x18] sm:$0xff]
        %v6969 = vld [vmem:[%s6964 + $0x20] sm:$0xff]
        %v6970 = vld [vmem:[%s6964 + $0x28] sm:$0xff]
        %v6971 = vld [vmem:[%s6964 + $0x30] sm:$0xff]
        %v6972 = vld [vmem:[%s6964 + $0x38] sm:$0xff]
        %v6973 = vld [vmem:[%s6964 + $0x40] sm:$0xff]
        %v6974 = vld [vmem:[%s6964 + $0x48] sm:$0xff]
        %v6975 = vld [vmem:[%s6964 + $0x50] sm:$0xff]
        %v6976 = vld [vmem:[%s6964 + $0x58] sm:$0xff]
        %v6977 = vld [vmem:[%s6964 + $0x60] sm:$0xff]
        %v6978 = vld [vmem:[%s6964 + $0x68] sm:$0xff]
        %v6979 = vld [vmem:[%s6964 + $0x70] sm:$0xff]
        %v6980 = vld [vmem:[%s6964 + $0x78] sm:$0xff]
        %v6981 = vld [vmem:[%s6964 + $0x80] sm:$0xff]
        %v6982 = vld [vmem:[%s6964 + $0x88] sm:$0xff]
        %v6983 = vld [vmem:[%s6964 + $0x90] sm:$0xff]
        %v6984 = vld [vmem:[%s6964 + $0x98] sm:$0xff]
        %v6985 = vld [vmem:[%s6964 + $0xa0] sm:$0xff]
        %v6986 = vld [vmem:[%s6964 + $0xa8] sm:$0xff]
        %v6987 = vld [vmem:[%s6964 + $0xb0] sm:$0xff]
        %v6988 = vld [vmem:[%s6964 + $0xb8] sm:$0xff]
        %v6989 = vld [vmem:[%s6964 + $0xc0] sm:$0xff]
        %v6990 = vld [vmem:[%s6964 + $0xc8] sm:$0xff]
        %v6991 = vld [vmem:[%s6964 + $0xd0] sm:$0xff]
        %v6992 = vld [vmem:[%s6964 + $0xd8] sm:$0xff]
        %v6993 = vld [vmem:[%s6964 + $0xe0] sm:$0xff]
        %v6994 = vld [vmem:[%s6964 + $0xe8] sm:$0xff]
        %v6995 = vld [vmem:[%s6964 + $0xf0] sm:$0xff]
        %v6996 = vld [vmem:[%s6964 + $0xf8] sm:$0xff]
        %s6997 = scalar_lea.vmem [#allocation12], 22
        %v6998 = vld [vmem:[%s6997] sm:$0x3]
        %v7000 = vperm.slane %v6998, 0
        %v7001 = vperm.slane %v6998, 1
        %v7036 = vunpack.c.l.b16 %v6965
        %v7037 = vunpack.c.h.b16 %v6965
        %v7038 = vunpack.c.l.b16 %v6966
        %v7039 = vunpack.c.h.b16 %v6966
        %v7040 = vunpack.c.l.b16 %v6967
        %v7041 = vunpack.c.h.b16 %v6967
        %v7042 = vunpack.c.l.b16 %v6968
        %v7043 = vunpack.c.h.b16 %v6968
        %v7044 = vunpack.c.l.b16 %v6969
        %v7045 = vunpack.c.h.b16 %v6969
        %v7046 = vunpack.c.l.b16 %v6970
        %v7047 = vunpack.c.h.b16 %v6970
        %v7048 = vunpack.c.l.b16 %v6971
        %v7049 = vunpack.c.h.b16 %v6971
        %v7050 = vunpack.c.l.b16 %v6972
        %v7051 = vunpack.c.h.b16 %v6972
        %v7052 = vunpack.c.l.b16 %v6973
        %v7053 = vunpack.c.h.b16 %v6973
        %v7054 = vunpack.c.l.b16 %v6974
        %v7055 = vunpack.c.h.b16 %v6974
        %v7056 = vunpack.c.l.b16 %v6975
        %v7057 = vunpack.c.h.b16 %v6975
        %v7058 = vunpack.c.l.b16 %v6976
        %v7059 = vunpack.c.h.b16 %v6976
        %v7060 = vunpack.c.l.b16 %v6977
        %v7061 = vunpack.c.h.b16 %v6977
        %v7062 = vunpack.c.l.b16 %v6978
        %v7063 = vunpack.c.h.b16 %v6978
        %v7064 = vunpack.c.l.b16 %v6979
        %v7065 = vunpack.c.h.b16 %v6979
        %v7066 = vunpack.c.l.b16 %v6980
        %v7067 = vunpack.c.h.b16 %v6980
        %v7068 = vunpack.c.l.b16 %v6981
        %v7069 = vunpack.c.h.b16 %v6981
        %v7070 = vunpack.c.l.b16 %v6982
        %v7071 = vunpack.c.h.b16 %v6982
        %v7072 = vunpack.c.l.b16 %v6983
        %v7073 = vunpack.c.h.b16 %v6983
        %v7074 = vunpack.c.l.b16 %v6984
        %v7075 = vunpack.c.h.b16 %v6984
        %v7076 = vunpack.c.l.b16 %v6985
        %v7077 = vunpack.c.h.b16 %v6985
        %v7078 = vunpack.c.l.b16 %v6986
        %v7079 = vunpack.c.h.b16 %v6986
        %v7080 = vunpack.c.l.b16 %v6987
        %v7081 = vunpack.c.h.b16 %v6987
        %v7082 = vunpack.c.l.b16 %v6988
        %v7083 = vunpack.c.h.b16 %v6988
        %v7084 = vunpack.c.l.b16 %v6989
        %v7085 = vunpack.c.h.b16 %v6989
        %v7086 = vunpack.c.l.b16 %v6990
        %v7087 = vunpack.c.h.b16 %v6990
        %v7088 = vunpack.c.l.b16 %v6991
        %v7089 = vunpack.c.h.b16 %v6991
        %v7090 = vunpack.c.l.b16 %v6992
        %v7091 = vunpack.c.h.b16 %v6992
        %v7092 = vunpack.c.l.b16 %v6993
        %v7093 = vunpack.c.h.b16 %v6993
        %v7094 = vunpack.c.l.b16 %v6994
        %v7095 = vunpack.c.h.b16 %v6994
        %v7096 = vunpack.c.l.b16 %v6995
        %v7097 = vunpack.c.h.b16 %v6995
        %v7098 = vunpack.c.l.b16 %v6996
        %v7099 = vunpack.c.h.b16 %v6996
        %v7100 = vpack.c.b16 %v7038, %v7036
        %v7101 = vpack.c.b16 %v7039, %v7037
        %v7102 = vpack.c.b16 %v7042, %v7040
        %v7103 = vpack.c.b16 %v7043, %v7041
        %v7104 = vpack.c.b16 %v7046, %v7044
        %v7105 = vpack.c.b16 %v7047, %v7045
        %v7106 = vpack.c.b16 %v7050, %v7048
        %v7107 = vpack.c.b16 %v7051, %v7049
        %v7108 = vpack.c.b16 %v7054, %v7052
        %v7109 = vpack.c.b16 %v7055, %v7053
        %v7110 = vpack.c.b16 %v7058, %v7056
        %v7111 = vpack.c.b16 %v7059, %v7057
        %v7112 = vpack.c.b16 %v7062, %v7060
        %v7113 = vpack.c.b16 %v7063, %v7061
        %v7114 = vpack.c.b16 %v7066, %v7064
        %v7115 = vpack.c.b16 %v7067, %v7065
        %v7116 = vpack.c.b16 %v7070, %v7068
        %v7117 = vpack.c.b16 %v7071, %v7069
        %v7118 = vpack.c.b16 %v7074, %v7072
        %v7119 = vpack.c.b16 %v7075, %v7073
        %v7120 = vpack.c.b16 %v7078, %v7076
        %v7121 = vpack.c.b16 %v7079, %v7077
        %v7122 = vpack.c.b16 %v7082, %v7080
        %v7123 = vpack.c.b16 %v7083, %v7081
        %v7124 = vpack.c.b16 %v7086, %v7084
        %v7125 = vpack.c.b16 %v7087, %v7085
        %v7126 = vpack.c.b16 %v7090, %v7088
        %v7127 = vpack.c.b16 %v7091, %v7089
        %v7128 = vpack.c.b16 %v7094, %v7092
        %v7129 = vpack.c.b16 %v7095, %v7093
        %v7130 = vpack.c.b16 %v7098, %v7096
        %v7131 = vpack.c.b16 %v7099, %v7097
        %7164 = vmatpush.bf16.msra.mxu0 %v7114
        %7165 = vmatpush.bf16.msra.mxu0 %v7112
        %7166 = vmatpush.bf16.msra.mxu0 %v7110
        %7167 = vmatpush.bf16.msra.mxu0 %v7108
        %7168 = vmatpush.bf16.msra.mxu0 %v7106
        %7169 = vmatpush.bf16.msra.mxu0 %v7104
        %7170 = vmatpush.bf16.msra.mxu0 %v7102
        %7171 = vmatpush.bf16.msra.mxu0 %v7100
        %7172 = vmatmul.bf16.gmra.mxu0 %v6948
        %v7173 = vpop.f32.mrf.mxu0
        %v7174 = vadd.f32 %v7000, %v7173
        %v7175 = vpop.f32.mrf.mxu0
        %v7176 = vadd.f32 %v7000, %v7175
        %7177 = vmatmul.bf16.gmra.mxu0 %v6950
        %v7178 = vpop.f32.mrf.mxu0
        %v7179 = vadd.f32 %v7000, %v7178
        %v7180 = vpop.f32.mrf.mxu0
        %v7181 = vadd.f32 %v7000, %v7180
        %7182 = vmatmul.bf16.gmra.mxu0 %v6952
        %v7183 = vpop.f32.mrf.mxu0
        %v7184 = vadd.f32 %v7000, %v7183
        %v7185 = vpop.f32.mrf.mxu0
        %v7186 = vadd.f32 %v7000, %v7185
        %7187 = vmatmul.bf16.gmra.mxu0 %v6954
        %v7188 = vpop.f32.mrf.mxu0
        %v7189 = vadd.f32 %v7000, %v7188
        %v7190 = vpop.f32.mrf.mxu0
        %v7191 = vadd.f32 %v7000, %v7190
        %7192 = vmatmul.bf16.gmra.mxu0 %v6956
        %v7193 = vpop.f32.mrf.mxu0
        %v7194 = vadd.f32 %v7000, %v7193
        %v7195 = vpop.f32.mrf.mxu0
        %v7196 = vadd.f32 %v7000, %v7195
        %7197 = vmatmul.bf16.gmra.mxu0 %v6958
        %v7198 = vpop.f32.mrf.mxu0
        %v7199 = vadd.f32 %v7000, %v7198
        %v7200 = vpop.f32.mrf.mxu0
        %v7201 = vadd.f32 %v7000, %v7200
        %7202 = vmatmul.bf16.gmra.mxu0 %v6960
        %v7203 = vpop.f32.mrf.mxu0
        %v7204 = vadd.f32 %v7000, %v7203
        %v7205 = vpop.f32.mrf.mxu0
        %v7206 = vadd.f32 %v7000, %v7205
        %7207 = vmatmul.bf16.gmra.mxu0 %v6962
        %v7208 = vpop.f32.mrf.mxu0
        %v7209 = vadd.f32 %v7000, %v7208
        %v7210 = vpop.f32.mrf.mxu0
        %v7211 = vadd.f32 %v7000, %v7210
        %7212 = vdwg.mxu0
        %7213 = vmatpush.bf16.msra.mxu0 %v7130
        %7214 = vmatpush.bf16.msra.mxu0 %v7128
        %7215 = vmatpush.bf16.msra.mxu0 %v7126
        %7216 = vmatpush.bf16.msra.mxu0 %v7124
        %7217 = vmatpush.bf16.msra.mxu0 %v7122
        %7218 = vmatpush.bf16.msra.mxu0 %v7120
        %7219 = vmatpush.bf16.msra.mxu0 %v7118
        %7220 = vmatpush.bf16.msra.mxu0 %v7116
        %7221 = vmatmul.bf16.gmra.mxu0 %v6949
        %v7222 = vpop.f32.mrf.mxu0
        %v7223 = vadd.f32 %v7174, %v7222
        %v7224 = vpop.f32.mrf.mxu0
        %v7225 = vadd.f32 %v7176, %v7224
        %7226 = vmatmul.bf16.gmra.mxu0 %v6951
        %v7227 = vpop.f32.mrf.mxu0
        %v7228 = vadd.f32 %v7179, %v7227
        %v7229 = vpop.f32.mrf.mxu0
        %v7230 = vadd.f32 %v7181, %v7229
        %7231 = vmatmul.bf16.gmra.mxu0 %v6953
        %v7232 = vpop.f32.mrf.mxu0
        %v7233 = vadd.f32 %v7184, %v7232
        %v7234 = vpop.f32.mrf.mxu0
        %v7235 = vadd.f32 %v7186, %v7234
        %7236 = vmatmul.bf16.gmra.mxu0 %v6955
        %v7237 = vpop.f32.mrf.mxu0
        %v7238 = vadd.f32 %v7189, %v7237
        %v7239 = vpop.f32.mrf.mxu0
        %v7240 = vadd.f32 %v7191, %v7239
        %7241 = vmatmul.bf16.gmra.mxu0 %v6957
        %v7242 = vpop.f32.mrf.mxu0
        %v7243 = vadd.f32 %v7194, %v7242
        %v7244 = vpop.f32.mrf.mxu0
        %v7245 = vadd.f32 %v7196, %v7244
        %7246 = vmatmul.bf16.gmra.mxu0 %v6959
        %v7247 = vpop.f32.mrf.mxu0
        %v7248 = vadd.f32 %v7199, %v7247
        %v7249 = vpop.f32.mrf.mxu0
        %v7250 = vadd.f32 %v7201, %v7249
        %7251 = vmatmul.bf16.gmra.mxu0 %v6961
        %v7252 = vpop.f32.mrf.mxu0
        %v7253 = vadd.f32 %v7204, %v7252
        %v7254 = vpop.f32.mrf.mxu0
        %v7255 = vadd.f32 %v7206, %v7254
        %7256 = vmatmul.bf16.gmra.mxu0 %v6963
        %v7257 = vpop.f32.mrf.mxu0
        %v7258 = vadd.f32 %v7209, %v7257
        %v7259 = vpop.f32.mrf.mxu0
        %v7260 = vadd.f32 %v7211, %v7259
        %7261 = vdwg.mxu0
        %7262 = vmatpush.bf16.msra.mxu0 %v7115
        %7263 = vmatpush.bf16.msra.mxu0 %v7113
        %7264 = vmatpush.bf16.msra.mxu0 %v7111
        %7265 = vmatpush.bf16.msra.mxu0 %v7109
        %7266 = vmatpush.bf16.msra.mxu0 %v7107
        %7267 = vmatpush.bf16.msra.mxu0 %v7105
        %7268 = vmatpush.bf16.msra.mxu0 %v7103
        %7269 = vmatpush.bf16.msra.mxu0 %v7101
        %7270 = vmatmul.bf16.gmra.mxu0 %v6948
        %v7271 = vpop.f32.mrf.mxu0
        %v7272 = vadd.f32 %v7001, %v7271
        %v7273 = vpop.f32.mrf.mxu0
        %v7274 = vadd.f32 %v7001, %v7273
        %7275 = vmatmul.bf16.gmra.mxu0 %v6950
        %v7276 = vpop.f32.mrf.mxu0
        %v7277 = vadd.f32 %v7001, %v7276
        %v7278 = vpop.f32.mrf.mxu0
        %v7279 = vadd.f32 %v7001, %v7278
        %7280 = vmatmul.bf16.gmra.mxu0 %v6952
        %v7281 = vpop.f32.mrf.mxu0
        %v7282 = vadd.f32 %v7001, %v7281
        %v7283 = vpop.f32.mrf.mxu0
        %v7284 = vadd.f32 %v7001, %v7283
        %7285 = vmatmul.bf16.gmra.mxu0 %v6954
        %v7286 = vpop.f32.mrf.mxu0
        %v7287 = vadd.f32 %v7001, %v7286
        %v7288 = vpop.f32.mrf.mxu0
        %v7289 = vadd.f32 %v7001, %v7288
        %7290 = vmatmul.bf16.gmra.mxu0 %v6956
        %v7291 = vpop.f32.mrf.mxu0
        %v7292 = vadd.f32 %v7001, %v7291
        %v7293 = vpop.f32.mrf.mxu0
        %v7294 = vadd.f32 %v7001, %v7293
        %7295 = vmatmul.bf16.gmra.mxu0 %v6958
        %v7296 = vpop.f32.mrf.mxu0
        %v7297 = vadd.f32 %v7001, %v7296
        %v7298 = vpop.f32.mrf.mxu0
        %v7299 = vadd.f32 %v7001, %v7298
        %7300 = vmatmul.bf16.gmra.mxu0 %v6960
        %v7301 = vpop.f32.mrf.mxu0
        %v7302 = vadd.f32 %v7001, %v7301
        %v7303 = vpop.f32.mrf.mxu0
        %v7304 = vadd.f32 %v7001, %v7303
        %7305 = vmatmul.bf16.gmra.mxu0 %v6962
        %v7306 = vpop.f32.mrf.mxu0
        %v7307 = vadd.f32 %v7001, %v7306
        %v7308 = vpop.f32.mrf.mxu0
        %v7309 = vadd.f32 %v7001, %v7308
        %7310 = vdwg.mxu0
        %7311 = vmatpush.bf16.msra.mxu0 %v7131
        %7312 = vmatpush.bf16.msra.mxu0 %v7129
        %7313 = vmatpush.bf16.msra.mxu0 %v7127
        %7314 = vmatpush.bf16.msra.mxu0 %v7125
        %7315 = vmatpush.bf16.msra.mxu0 %v7123
        %7316 = vmatpush.bf16.msra.mxu0 %v7121
        %7317 = vmatpush.bf16.msra.mxu0 %v7119
        %7318 = vmatpush.bf16.msra.mxu0 %v7117
        %7319 = vmatmul.bf16.gmra.mxu0 %v6949
        %v7320 = vpop.f32.mrf.mxu0
        %v7321 = vadd.f32 %v7272, %v7320
        %v7322 = vpop.f32.mrf.mxu0
        %v7323 = vadd.f32 %v7274, %v7322
        %7324 = vmatmul.bf16.gmra.mxu0 %v6951
        %v7325 = vpop.f32.mrf.mxu0
        %v7326 = vadd.f32 %v7277, %v7325
        %v7327 = vpop.f32.mrf.mxu0
        %v7328 = vadd.f32 %v7279, %v7327
        %7329 = vmatmul.bf16.gmra.mxu0 %v6953
        %v7330 = vpop.f32.mrf.mxu0
        %v7331 = vadd.f32 %v7282, %v7330
        %v7332 = vpop.f32.mrf.mxu0
        %v7333 = vadd.f32 %v7284, %v7332
        %7334 = vmatmul.bf16.gmra.mxu0 %v6955
        %v7335 = vpop.f32.mrf.mxu0
        %v7336 = vadd.f32 %v7287, %v7335
        %v7337 = vpop.f32.mrf.mxu0
        %v7338 = vadd.f32 %v7289, %v7337
        %7339 = vmatmul.bf16.gmra.mxu0 %v6957
        %v7340 = vpop.f32.mrf.mxu0
        %v7341 = vadd.f32 %v7292, %v7340
        %v7342 = vpop.f32.mrf.mxu0
        %v7343 = vadd.f32 %v7294, %v7342
        %7344 = vmatmul.bf16.gmra.mxu0 %v6959
        %v7345 = vpop.f32.mrf.mxu0
        %v7346 = vadd.f32 %v7297, %v7345
        %v7347 = vpop.f32.mrf.mxu0
        %v7348 = vadd.f32 %v7299, %v7347
        %7349 = vmatmul.bf16.gmra.mxu0 %v6961
        %v7350 = vpop.f32.mrf.mxu0
        %v7351 = vadd.f32 %v7302, %v7350
        %v7352 = vpop.f32.mrf.mxu0
        %v7353 = vadd.f32 %v7304, %v7352
        %7354 = vmatmul.bf16.gmra.mxu0 %v6963
        %v7355 = vpop.f32.mrf.mxu0
        %v7356 = vadd.f32 %v7307, %v7355
        %v7357 = vpop.f32.mrf.mxu0
        %v7358 = vadd.f32 %v7309, %v7357
        %7359 = vdwg.mxu0
        %v7360 = vadd.f32 %v7223, %v6916
        %v7361 = vadd.f32 %v7321, %v6917
        %v7362 = vadd.f32 %v7225, %v6918
        %v7363 = vadd.f32 %v7323, %v6919
        %v7364 = vadd.f32 %v7228, %v6920
        %v7365 = vadd.f32 %v7326, %v6921
        %v7366 = vadd.f32 %v7230, %v6922
        %v7367 = vadd.f32 %v7328, %v6923
        %v7368 = vadd.f32 %v7233, %v6924
        %v7369 = vadd.f32 %v7331, %v6925
        %v7370 = vadd.f32 %v7235, %v6926
        %v7371 = vadd.f32 %v7333, %v6927
        %v7372 = vadd.f32 %v7238, %v6928
        %v7373 = vadd.f32 %v7336, %v6929
        %v7374 = vadd.f32 %v7240, %v6930
        %v7375 = vadd.f32 %v7338, %v6931
        %v7376 = vadd.f32 %v7243, %v6932
        %v7377 = vadd.f32 %v7341, %v6933
        %v7378 = vadd.f32 %v7245, %v6934
        %v7379 = vadd.f32 %v7343, %v6935
        %v7380 = vadd.f32 %v7248, %v6936
        %v7381 = vadd.f32 %v7346, %v6937
        %v7382 = vadd.f32 %v7250, %v6938
        %v7383 = vadd.f32 %v7348, %v6939
        %v7384 = vadd.f32 %v7253, %v6940
        %v7385 = vadd.f32 %v7351, %v6941
        %v7386 = vadd.f32 %v7255, %v6942
        %v7387 = vadd.f32 %v7353, %v6943
        %v7388 = vadd.f32 %v7258, %v6944
        %v7389 = vadd.f32 %v7356, %v6945
        %v7390 = vadd.f32 %v7260, %v6946
        %v7391 = vadd.f32 %v7358, %v6947
        %v7392 = vmax.f32 %v7360, 0.0
        %v7393 = vmax.f32 %v7361, 0.0
        %v7394 = vmax.f32 %v7362, 0.0
        %v7395 = vmax.f32 %v7363, 0.0
        %v7396 = vmax.f32 %v7364, 0.0
        %v7397 = vmax.f32 %v7365, 0.0
        %v7398 = vmax.f32 %v7366, 0.0
        %v7399 = vmax.f32 %v7367, 0.0
        %v7400 = vmax.f32 %v7368, 0.0
        %v7401 = vmax.f32 %v7369, 0.0
        %v7402 = vmax.f32 %v7370, 0.0
        %v7403 = vmax.f32 %v7371, 0.0
        %v7404 = vmax.f32 %v7372, 0.0
        %v7405 = vmax.f32 %v7373, 0.0
        %v7406 = vmax.f32 %v7374, 0.0
        %v7407 = vmax.f32 %v7375, 0.0
        %v7408 = vmax.f32 %v7376, 0.0
        %v7409 = vmax.f32 %v7377, 0.0
        %v7410 = vmax.f32 %v7378, 0.0
        %v7411 = vmax.f32 %v7379, 0.0
        %v7412 = vmax.f32 %v7380, 0.0
        %v7413 = vmax.f32 %v7381, 0.0
        %v7414 = vmax.f32 %v7382, 0.0
        %v7415 = vmax.f32 %v7383, 0.0
        %v7416 = vmax.f32 %v7384, 0.0
        %v7417 = vmax.f32 %v7385, 0.0
        %v7418 = vmax.f32 %v7386, 0.0
        %v7419 = vmax.f32 %v7387, 0.0
        %v7420 = vmax.f32 %v7388, 0.0
        %v7421 = vmax.f32 %v7389, 0.0
        %v7422 = vmax.f32 %v7390, 0.0
        %v7423 = vmax.f32 %v7391, 0.0
        %7424 = vst [vmem:[#allocation2] sm:$0xff] %v7392
        %7425 = vst [vmem:[#allocation2 + $0x8] sm:$0xff] %v7393
        %7426 = vst [vmem:[#allocation2 + $0x10] sm:$0xff] %v7394
        %7427 = vst [vmem:[#allocation2 + $0x18] sm:$0xff] %v7395
        %7428 = vst [vmem:[#allocation2 + $0x20] sm:$0xff] %v7396
        %7429 = vst [vmem:[#allocation2 + $0x28] sm:$0xff] %v7397
        %7430 = vst [vmem:[#allocation2 + $0x30] sm:$0xff] %v7398
        %7431 = vst [vmem:[#allocation2 + $0x38] sm:$0xff] %v7399
        %7432 = vst [vmem:[#allocation2 + $0x40] sm:$0xff] %v7400
        %7433 = vst [vmem:[#allocation2 + $0x48] sm:$0xff] %v7401
        %7434 = vst [vmem:[#allocation2 + $0x50] sm:$0xff] %v7402
        %7435 = vst [vmem:[#allocation2 + $0x58] sm:$0xff] %v7403
        %7436 = vst [vmem:[#allocation2 + $0x60] sm:$0xff] %v7404
        %7437 = vst [vmem:[#allocation2 + $0x68] sm:$0xff] %v7405
        %7438 = vst [vmem:[#allocation2 + $0x70] sm:$0xff] %v7406
        %7439 = vst [vmem:[#allocation2 + $0x78] sm:$0xff] %v7407
        %7440 = vst [vmem:[#allocation2 + $0x80] sm:$0xff] %v7408
        %7441 = vst [vmem:[#allocation2 + $0x88] sm:$0xff] %v7409
        %7442 = vst [vmem:[#allocation2 + $0x90] sm:$0xff] %v7410
        %7443 = vst [vmem:[#allocation2 + $0x98] sm:$0xff] %v7411
        %7444 = vst [vmem:[#allocation2 + $0xa0] sm:$0xff] %v7412
        %7445 = vst [vmem:[#allocation2 + $0xa8] sm:$0xff] %v7413
        %7446 = vst [vmem:[#allocation2 + $0xb0] sm:$0xff] %v7414
        %7447 = vst [vmem:[#allocation2 + $0xb8] sm:$0xff] %v7415
        %7448 = vst [vmem:[#allocation2 + $0xc0] sm:$0xff] %v7416
        %7449 = vst [vmem:[#allocation2 + $0xc8] sm:$0xff] %v7417
        %7450 = vst [vmem:[#allocation2 + $0xd0] sm:$0xff] %v7418
        %7451 = vst [vmem:[#allocation2 + $0xd8] sm:$0xff] %v7419
        %7452 = vst [vmem:[#allocation2 + $0xe0] sm:$0xff] %v7420
        %7453 = vst [vmem:[#allocation2 + $0xe8] sm:$0xff] %v7421
        %7454 = vst [vmem:[#allocation2 + $0xf0] sm:$0xff] %v7422
        %7455 = vst [vmem:[#allocation2 + $0xf8] sm:$0xff] %v7423
        %v7456 = vld [vmem:[#allocation2] sm:$0xff]
        %v7457 = vld [vmem:[#allocation2 + $0x8] sm:$0xff]
        %v7458 = vld [vmem:[#allocation2 + $0x10] sm:$0xff]
        %v7459 = vld [vmem:[#allocation2 + $0x18] sm:$0xff]
        %v7460 = vld [vmem:[#allocation2 + $0x20] sm:$0xff]
        %v7461 = vld [vmem:[#allocation2 + $0x28] sm:$0xff]
        %v7462 = vld [vmem:[#allocation2 + $0x30] sm:$0xff]
        %v7463 = vld [vmem:[#allocation2 + $0x38] sm:$0xff]
        %v7464 = vld [vmem:[#allocation2 + $0x40] sm:$0xff]
        %v7465 = vld [vmem:[#allocation2 + $0x48] sm:$0xff]
        %v7466 = vld [vmem:[#allocation2 + $0x50] sm:$0xff]
        %v7467 = vld [vmem:[#allocation2 + $0x58] sm:$0xff]
        %v7468 = vld [vmem:[#allocation2 + $0x60] sm:$0xff]
        %v7469 = vld [vmem:[#allocation2 + $0x68] sm:$0xff]
        %v7470 = vld [vmem:[#allocation2 + $0x70] sm:$0xff]
        %v7471 = vld [vmem:[#allocation2 + $0x78] sm:$0xff]
        %v7472 = vld [vmem:[#allocation2 + $0x80] sm:$0xff]
        %v7473 = vld [vmem:[#allocation2 + $0x88] sm:$0xff]
        %v7474 = vld [vmem:[#allocation2 + $0x90] sm:$0xff]
        %v7475 = vld [vmem:[#allocation2 + $0x98] sm:$0xff]
        %v7476 = vld [vmem:[#allocation2 + $0xa0] sm:$0xff]
        %v7477 = vld [vmem:[#allocation2 + $0xa8] sm:$0xff]
        %v7478 = vld [vmem:[#allocation2 + $0xb0] sm:$0xff]
        %v7479 = vld [vmem:[#allocation2 + $0xb8] sm:$0xff]
        %v7480 = vld [vmem:[#allocation2 + $0xc0] sm:$0xff]
        %v7481 = vld [vmem:[#allocation2 + $0xc8] sm:$0xff]
        %v7482 = vld [vmem:[#allocation2 + $0xd0] sm:$0xff]
        %v7483 = vld [vmem:[#allocation2 + $0xd8] sm:$0xff]
        %v7484 = vld [vmem:[#allocation2 + $0xe0] sm:$0xff]
        %v7485 = vld [vmem:[#allocation2 + $0xe8] sm:$0xff]
        %v7486 = vld [vmem:[#allocation2 + $0xf0] sm:$0xff]
        %v7487 = vld [vmem:[#allocation2 + $0xf8] sm:$0xff]
        %v7488 = vpack.c.bf16 %v7458, %v7456
        %v7489 = vpack.c.bf16 %v7459, %v7457
        %v7490 = vpack.c.bf16 %v7462, %v7460
        %v7491 = vpack.c.bf16 %v7463, %v7461
        %v7492 = vpack.c.bf16 %v7466, %v7464
        %v7493 = vpack.c.bf16 %v7467, %v7465
        %v7494 = vpack.c.bf16 %v7470, %v7468
        %v7495 = vpack.c.bf16 %v7471, %v7469
        %v7496 = vpack.c.bf16 %v7474, %v7472
        %v7497 = vpack.c.bf16 %v7475, %v7473
        %v7498 = vpack.c.bf16 %v7478, %v7476
        %v7499 = vpack.c.bf16 %v7479, %v7477
        %v7500 = vpack.c.bf16 %v7482, %v7480
        %v7501 = vpack.c.bf16 %v7483, %v7481
        %v7502 = vpack.c.bf16 %v7486, %v7484
        %v7503 = vpack.c.bf16 %v7487, %v7485
        %s7504 = scalar_lea.vmem [#allocation10], 3072
        %v7505 = vld [vmem:[%s7504] sm:$0xff]
        %v7506 = vld [vmem:[%s7504 + $0x8] sm:$0xff]
        %v7507 = vld [vmem:[%s7504 + $0x10] sm:$0xff]
        %v7508 = vld [vmem:[%s7504 + $0x18] sm:$0xff]
        %v7509 = vld [vmem:[%s7504 + $0x20] sm:$0xff]
        %v7510 = vld [vmem:[%s7504 + $0x28] sm:$0xff]
        %v7511 = vld [vmem:[%s7504 + $0x30] sm:$0xff]
        %v7512 = vld [vmem:[%s7504 + $0x38] sm:$0xff]
        %v7513 = vld [vmem:[%s7504 + $0x40] sm:$0xff]
        %v7514 = vld [vmem:[%s7504 + $0x48] sm:$0xff]
        %v7515 = vld [vmem:[%s7504 + $0x50] sm:$0xff]
        %v7516 = vld [vmem:[%s7504 + $0x58] sm:$0xff]
        %v7517 = vld [vmem:[%s7504 + $0x60] sm:$0xff]
        %v7518 = vld [vmem:[%s7504 + $0x68] sm:$0xff]
        %v7519 = vld [vmem:[%s7504 + $0x70] sm:$0xff]
        %v7520 = vld [vmem:[%s7504 + $0x78] sm:$0xff]
        %v7521 = vld [vmem:[%s7504 + $0x80] sm:$0xff]
        %v7522 = vld [vmem:[%s7504 + $0x88] sm:$0xff]
        %v7523 = vld [vmem:[%s7504 + $0x90] sm:$0xff]
        %v7524 = vld [vmem:[%s7504 + $0x98] sm:$0xff]
        %v7525 = vld [vmem:[%s7504 + $0xa0] sm:$0xff]
        %v7526 = vld [vmem:[%s7504 + $0xa8] sm:$0xff]
        %v7527 = vld [vmem:[%s7504 + $0xb0] sm:$0xff]
        %v7528 = vld [vmem:[%s7504 + $0xb8] sm:$0xff]
        %v7529 = vld [vmem:[%s7504 + $0xc0] sm:$0xff]
        %v7530 = vld [vmem:[%s7504 + $0xc8] sm:$0xff]
        %v7531 = vld [vmem:[%s7504 + $0xd0] sm:$0xff]
        %v7532 = vld [vmem:[%s7504 + $0xd8] sm:$0xff]
        %v7533 = vld [vmem:[%s7504 + $0xe0] sm:$0xff]
        %v7534 = vld [vmem:[%s7504 + $0xe8] sm:$0xff]
        %v7535 = vld [vmem:[%s7504 + $0xf0] sm:$0xff]
        %v7536 = vld [vmem:[%s7504 + $0xf8] sm:$0xff]
        %s7537 = scalar_lea.vmem [#allocation12], 24
        %v7538 = vld [vmem:[%s7537] sm:$0x3]
        %v7540 = vperm.slane %v7538, 0
        %v7541 = vperm.slane %v7538, 1
        %v7576 = vunpack.c.l.b16 %v7505
        %v7577 = vunpack.c.h.b16 %v7505
        %v7578 = vunpack.c.l.b16 %v7506
        %v7579 = vunpack.c.h.b16 %v7506
        %v7580 = vunpack.c.l.b16 %v7507
        %v7581 = vunpack.c.h.b16 %v7507
        %v7582 = vunpack.c.l.b16 %v7508
        %v7583 = vunpack.c.h.b16 %v7508
        %v7584 = vunpack.c.l.b16 %v7509
        %v7585 = vunpack.c.h.b16 %v7509
        %v7586 = vunpack.c.l.b16 %v7510
        %v7587 = vunpack.c.h.b16 %v7510
        %v7588 = vunpack.c.l.b16 %v7511
        %v7589 = vunpack.c.h.b16 %v7511
        %v7590 = vunpack.c.l.b16 %v7512
        %v7591 = vunpack.c.h.b16 %v7512
        %v7592 = vunpack.c.l.b16 %v7513
        %v7593 = vunpack.c.h.b16 %v7513
        %v7594 = vunpack.c.l.b16 %v7514
        %v7595 = vunpack.c.h.b16 %v7514
        %v7596 = vunpack.c.l.b16 %v7515
        %v7597 = vunpack.c.h.b16 %v7515
        %v7598 = vunpack.c.l.b16 %v7516
        %v7599 = vunpack.c.h.b16 %v7516
        %v7600 = vunpack.c.l.b16 %v7517
        %v7601 = vunpack.c.h.b16 %v7517
        %v7602 = vunpack.c.l.b16 %v7518
        %v7603 = vunpack.c.h.b16 %v7518
        %v7604 = vunpack.c.l.b16 %v7519
        %v7605 = vunpack.c.h.b16 %v7519
        %v7606 = vunpack.c.l.b16 %v7520
        %v7607 = vunpack.c.h.b16 %v7520
        %v7608 = vunpack.c.l.b16 %v7521
        %v7609 = vunpack.c.h.b16 %v7521
        %v7610 = vunpack.c.l.b16 %v7522
        %v7611 = vunpack.c.h.b16 %v7522
        %v7612 = vunpack.c.l.b16 %v7523
        %v7613 = vunpack.c.h.b16 %v7523
        %v7614 = vunpack.c.l.b16 %v7524
        %v7615 = vunpack.c.h.b16 %v7524
        %v7616 = vunpack.c.l.b16 %v7525
        %v7617 = vunpack.c.h.b16 %v7525
        %v7618 = vunpack.c.l.b16 %v7526
        %v7619 = vunpack.c.h.b16 %v7526
        %v7620 = vunpack.c.l.b16 %v7527
        %v7621 = vunpack.c.h.b16 %v7527
        %v7622 = vunpack.c.l.b16 %v7528
        %v7623 = vunpack.c.h.b16 %v7528
        %v7624 = vunpack.c.l.b16 %v7529
        %v7625 = vunpack.c.h.b16 %v7529
        %v7626 = vunpack.c.l.b16 %v7530
        %v7627 = vunpack.c.h.b16 %v7530
        %v7628 = vunpack.c.l.b16 %v7531
        %v7629 = vunpack.c.h.b16 %v7531
        %v7630 = vunpack.c.l.b16 %v7532
        %v7631 = vunpack.c.h.b16 %v7532
        %v7632 = vunpack.c.l.b16 %v7533
        %v7633 = vunpack.c.h.b16 %v7533
        %v7634 = vunpack.c.l.b16 %v7534
        %v7635 = vunpack.c.h.b16 %v7534
        %v7636 = vunpack.c.l.b16 %v7535
        %v7637 = vunpack.c.h.b16 %v7535
        %v7638 = vunpack.c.l.b16 %v7536
        %v7639 = vunpack.c.h.b16 %v7536
        %v7640 = vpack.c.b16 %v7578, %v7576
        %v7641 = vpack.c.b16 %v7579, %v7577
        %v7642 = vpack.c.b16 %v7582, %v7580
        %v7643 = vpack.c.b16 %v7583, %v7581
        %v7644 = vpack.c.b16 %v7586, %v7584
        %v7645 = vpack.c.b16 %v7587, %v7585
        %v7646 = vpack.c.b16 %v7590, %v7588
        %v7647 = vpack.c.b16 %v7591, %v7589
        %v7648 = vpack.c.b16 %v7594, %v7592
        %v7649 = vpack.c.b16 %v7595, %v7593
        %v7650 = vpack.c.b16 %v7598, %v7596
        %v7651 = vpack.c.b16 %v7599, %v7597
        %v7652 = vpack.c.b16 %v7602, %v7600
        %v7653 = vpack.c.b16 %v7603, %v7601
        %v7654 = vpack.c.b16 %v7606, %v7604
        %v7655 = vpack.c.b16 %v7607, %v7605
        %v7656 = vpack.c.b16 %v7610, %v7608
        %v7657 = vpack.c.b16 %v7611, %v7609
        %v7658 = vpack.c.b16 %v7614, %v7612
        %v7659 = vpack.c.b16 %v7615, %v7613
        %v7660 = vpack.c.b16 %v7618, %v7616
        %v7661 = vpack.c.b16 %v7619, %v7617
        %v7662 = vpack.c.b16 %v7622, %v7620
        %v7663 = vpack.c.b16 %v7623, %v7621
        %v7664 = vpack.c.b16 %v7626, %v7624
        %v7665 = vpack.c.b16 %v7627, %v7625
        %v7666 = vpack.c.b16 %v7630, %v7628
        %v7667 = vpack.c.b16 %v7631, %v7629
        %v7668 = vpack.c.b16 %v7634, %v7632
        %v7669 = vpack.c.b16 %v7635, %v7633
        %v7670 = vpack.c.b16 %v7638, %v7636
        %v7671 = vpack.c.b16 %v7639, %v7637
        %7704 = vmatpush.bf16.msra.mxu0 %v7654
        %7705 = vmatpush.bf16.msra.mxu0 %v7652
        %7706 = vmatpush.bf16.msra.mxu0 %v7650
        %7707 = vmatpush.bf16.msra.mxu0 %v7648
        %7708 = vmatpush.bf16.msra.mxu0 %v7646
        %7709 = vmatpush.bf16.msra.mxu0 %v7644
        %7710 = vmatpush.bf16.msra.mxu0 %v7642
        %7711 = vmatpush.bf16.msra.mxu0 %v7640
        %7712 = vmatmul.bf16.gmra.mxu0 %v7488
        %v7713 = vpop.f32.mrf.mxu0
        %v7714 = vadd.f32 %v7540, %v7713
        %v7715 = vpop.f32.mrf.mxu0
        %v7716 = vadd.f32 %v7540, %v7715
        %7717 = vmatmul.bf16.gmra.mxu0 %v7490
        %v7718 = vpop.f32.mrf.mxu0
        %v7719 = vadd.f32 %v7540, %v7718
        %v7720 = vpop.f32.mrf.mxu0
        %v7721 = vadd.f32 %v7540, %v7720
        %7722 = vmatmul.bf16.gmra.mxu0 %v7492
        %v7723 = vpop.f32.mrf.mxu0
        %v7724 = vadd.f32 %v7540, %v7723
        %v7725 = vpop.f32.mrf.mxu0
        %v7726 = vadd.f32 %v7540, %v7725
        %7727 = vmatmul.bf16.gmra.mxu0 %v7494
        %v7728 = vpop.f32.mrf.mxu0
        %v7729 = vadd.f32 %v7540, %v7728
        %v7730 = vpop.f32.mrf.mxu0
        %v7731 = vadd.f32 %v7540, %v7730
        %7732 = vmatmul.bf16.gmra.mxu0 %v7496
        %v7733 = vpop.f32.mrf.mxu0
        %v7734 = vadd.f32 %v7540, %v7733
        %v7735 = vpop.f32.mrf.mxu0
        %v7736 = vadd.f32 %v7540, %v7735
        %7737 = vmatmul.bf16.gmra.mxu0 %v7498
        %v7738 = vpop.f32.mrf.mxu0
        %v7739 = vadd.f32 %v7540, %v7738
        %v7740 = vpop.f32.mrf.mxu0
        %v7741 = vadd.f32 %v7540, %v7740
        %7742 = vmatmul.bf16.gmra.mxu0 %v7500
        %v7743 = vpop.f32.mrf.mxu0
        %v7744 = vadd.f32 %v7540, %v7743
        %v7745 = vpop.f32.mrf.mxu0
        %v7746 = vadd.f32 %v7540, %v7745
        %7747 = vmatmul.bf16.gmra.mxu0 %v7502
        %v7748 = vpop.f32.mrf.mxu0
        %v7749 = vadd.f32 %v7540, %v7748
        %v7750 = vpop.f32.mrf.mxu0
        %v7751 = vadd.f32 %v7540, %v7750
        %7752 = vdwg.mxu0
        %7753 = vmatpush.bf16.msra.mxu0 %v7670
        %7754 = vmatpush.bf16.msra.mxu0 %v7668
        %7755 = vmatpush.bf16.msra.mxu0 %v7666
        %7756 = vmatpush.bf16.msra.mxu0 %v7664
        %7757 = vmatpush.bf16.msra.mxu0 %v7662
        %7758 = vmatpush.bf16.msra.mxu0 %v7660
        %7759 = vmatpush.bf16.msra.mxu0 %v7658
        %7760 = vmatpush.bf16.msra.mxu0 %v7656
        %7761 = vmatmul.bf16.gmra.mxu0 %v7489
        %v7762 = vpop.f32.mrf.mxu0
        %v7763 = vadd.f32 %v7714, %v7762
        %v7764 = vpop.f32.mrf.mxu0
        %v7765 = vadd.f32 %v7716, %v7764
        %7766 = vmatmul.bf16.gmra.mxu0 %v7491
        %v7767 = vpop.f32.mrf.mxu0
        %v7768 = vadd.f32 %v7719, %v7767
        %v7769 = vpop.f32.mrf.mxu0
        %v7770 = vadd.f32 %v7721, %v7769
        %7771 = vmatmul.bf16.gmra.mxu0 %v7493
        %v7772 = vpop.f32.mrf.mxu0
        %v7773 = vadd.f32 %v7724, %v7772
        %v7774 = vpop.f32.mrf.mxu0
        %v7775 = vadd.f32 %v7726, %v7774
        %7776 = vmatmul.bf16.gmra.mxu0 %v7495
        %v7777 = vpop.f32.mrf.mxu0
        %v7778 = vadd.f32 %v7729, %v7777
        %v7779 = vpop.f32.mrf.mxu0
        %v7780 = vadd.f32 %v7731, %v7779
        %7781 = vmatmul.bf16.gmra.mxu0 %v7497
        %v7782 = vpop.f32.mrf.mxu0
        %v7783 = vadd.f32 %v7734, %v7782
        %v7784 = vpop.f32.mrf.mxu0
        %v7785 = vadd.f32 %v7736, %v7784
        %7786 = vmatmul.bf16.gmra.mxu0 %v7499
        %v7787 = vpop.f32.mrf.mxu0
        %v7788 = vadd.f32 %v7739, %v7787
        %v7789 = vpop.f32.mrf.mxu0
        %v7790 = vadd.f32 %v7741, %v7789
        %7791 = vmatmul.bf16.gmra.mxu0 %v7501
        %v7792 = vpop.f32.mrf.mxu0
        %v7793 = vadd.f32 %v7744, %v7792
        %v7794 = vpop.f32.mrf.mxu0
        %v7795 = vadd.f32 %v7746, %v7794
        %7796 = vmatmul.bf16.gmra.mxu0 %v7503
        %v7797 = vpop.f32.mrf.mxu0
        %v7798 = vadd.f32 %v7749, %v7797
        %v7799 = vpop.f32.mrf.mxu0
        %v7800 = vadd.f32 %v7751, %v7799
        %7801 = vdwg.mxu0
        %7802 = vmatpush.bf16.msra.mxu0 %v7655
        %7803 = vmatpush.bf16.msra.mxu0 %v7653
        %7804 = vmatpush.bf16.msra.mxu0 %v7651
        %7805 = vmatpush.bf16.msra.mxu0 %v7649
        %7806 = vmatpush.bf16.msra.mxu0 %v7647
        %7807 = vmatpush.bf16.msra.mxu0 %v7645
        %7808 = vmatpush.bf16.msra.mxu0 %v7643
        %7809 = vmatpush.bf16.msra.mxu0 %v7641
        %7810 = vmatmul.bf16.gmra.mxu0 %v7488
        %v7811 = vpop.f32.mrf.mxu0
        %v7812 = vadd.f32 %v7541, %v7811
        %v7813 = vpop.f32.mrf.mxu0
        %v7814 = vadd.f32 %v7541, %v7813
        %7815 = vmatmul.bf16.gmra.mxu0 %v7490
        %v7816 = vpop.f32.mrf.mxu0
        %v7817 = vadd.f32 %v7541, %v7816
        %v7818 = vpop.f32.mrf.mxu0
        %v7819 = vadd.f32 %v7541, %v7818
        %7820 = vmatmul.bf16.gmra.mxu0 %v7492
        %v7821 = vpop.f32.mrf.mxu0
        %v7822 = vadd.f32 %v7541, %v7821
        %v7823 = vpop.f32.mrf.mxu0
        %v7824 = vadd.f32 %v7541, %v7823
        %7825 = vmatmul.bf16.gmra.mxu0 %v7494
        %v7826 = vpop.f32.mrf.mxu0
        %v7827 = vadd.f32 %v7541, %v7826
        %v7828 = vpop.f32.mrf.mxu0
        %v7829 = vadd.f32 %v7541, %v7828
        %7830 = vmatmul.bf16.gmra.mxu0 %v7496
        %v7831 = vpop.f32.mrf.mxu0
        %v7832 = vadd.f32 %v7541, %v7831
        %v7833 = vpop.f32.mrf.mxu0
        %v7834 = vadd.f32 %v7541, %v7833
        %7835 = vmatmul.bf16.gmra.mxu0 %v7498
        %v7836 = vpop.f32.mrf.mxu0
        %v7837 = vadd.f32 %v7541, %v7836
        %v7838 = vpop.f32.mrf.mxu0
        %v7839 = vadd.f32 %v7541, %v7838
        %7840 = vmatmul.bf16.gmra.mxu0 %v7500
        %v7841 = vpop.f32.mrf.mxu0
        %v7842 = vadd.f32 %v7541, %v7841
        %v7843 = vpop.f32.mrf.mxu0
        %v7844 = vadd.f32 %v7541, %v7843
        %7845 = vmatmul.bf16.gmra.mxu0 %v7502
        %v7846 = vpop.f32.mrf.mxu0
        %v7847 = vadd.f32 %v7541, %v7846
        %v7848 = vpop.f32.mrf.mxu0
        %v7849 = vadd.f32 %v7541, %v7848
        %7850 = vdwg.mxu0
        %7851 = vmatpush.bf16.msra.mxu0 %v7671
        %7852 = vmatpush.bf16.msra.mxu0 %v7669
        %7853 = vmatpush.bf16.msra.mxu0 %v7667
        %7854 = vmatpush.bf16.msra.mxu0 %v7665
        %7855 = vmatpush.bf16.msra.mxu0 %v7663
        %7856 = vmatpush.bf16.msra.mxu0 %v7661
        %7857 = vmatpush.bf16.msra.mxu0 %v7659
        %7858 = vmatpush.bf16.msra.mxu0 %v7657
        %7859 = vmatmul.bf16.gmra.mxu0 %v7489
        %v7860 = vpop.f32.mrf.mxu0
        %v7861 = vadd.f32 %v7812, %v7860
        %v7862 = vpop.f32.mrf.mxu0
        %v7863 = vadd.f32 %v7814, %v7862
        %7864 = vmatmul.bf16.gmra.mxu0 %v7491
        %v7865 = vpop.f32.mrf.mxu0
        %v7866 = vadd.f32 %v7817, %v7865
        %v7867 = vpop.f32.mrf.mxu0
        %v7868 = vadd.f32 %v7819, %v7867
        %7869 = vmatmul.bf16.gmra.mxu0 %v7493
        %v7870 = vpop.f32.mrf.mxu0
        %v7871 = vadd.f32 %v7822, %v7870
        %v7872 = vpop.f32.mrf.mxu0
        %v7873 = vadd.f32 %v7824, %v7872
        %7874 = vmatmul.bf16.gmra.mxu0 %v7495
        %v7875 = vpop.f32.mrf.mxu0
        %v7876 = vadd.f32 %v7827, %v7875
        %v7877 = vpop.f32.mrf.mxu0
        %v7878 = vadd.f32 %v7829, %v7877
        %7879 = vmatmul.bf16.gmra.mxu0 %v7497
        %v7880 = vpop.f32.mrf.mxu0
        %v7881 = vadd.f32 %v7832, %v7880
        %v7882 = vpop.f32.mrf.mxu0
        %v7883 = vadd.f32 %v7834, %v7882
        %7884 = vmatmul.bf16.gmra.mxu0 %v7499
        %v7885 = vpop.f32.mrf.mxu0
        %v7886 = vadd.f32 %v7837, %v7885
        %v7887 = vpop.f32.mrf.mxu0
        %v7888 = vadd.f32 %v7839, %v7887
        %7889 = vmatmul.bf16.gmra.mxu0 %v7501
        %v7890 = vpop.f32.mrf.mxu0
        %v7891 = vadd.f32 %v7842, %v7890
        %v7892 = vpop.f32.mrf.mxu0
        %v7893 = vadd.f32 %v7844, %v7892
        %7894 = vmatmul.bf16.gmra.mxu0 %v7503
        %v7895 = vpop.f32.mrf.mxu0
        %v7896 = vadd.f32 %v7847, %v7895
        %v7897 = vpop.f32.mrf.mxu0
        %v7898 = vadd.f32 %v7849, %v7897
        %7899 = vdwg.mxu0
        %v7900 = vadd.f32 %v7763, %v7456
        %v7901 = vadd.f32 %v7861, %v7457
        %v7902 = vadd.f32 %v7765, %v7458
        %v7903 = vadd.f32 %v7863, %v7459
        %v7904 = vadd.f32 %v7768, %v7460
        %v7905 = vadd.f32 %v7866, %v7461
        %v7906 = vadd.f32 %v7770, %v7462
        %v7907 = vadd.f32 %v7868, %v7463
        %v7908 = vadd.f32 %v7773, %v7464
        %v7909 = vadd.f32 %v7871, %v7465
        %v7910 = vadd.f32 %v7775, %v7466
        %v7911 = vadd.f32 %v7873, %v7467
        %v7912 = vadd.f32 %v7778, %v7468
        %v7913 = vadd.f32 %v7876, %v7469
        %v7914 = vadd.f32 %v7780, %v7470
        %v7915 = vadd.f32 %v7878, %v7471
        %v7916 = vadd.f32 %v7783, %v7472
        %v7917 = vadd.f32 %v7881, %v7473
        %v7918 = vadd.f32 %v7785, %v7474
        %v7919 = vadd.f32 %v7883, %v7475
        %v7920 = vadd.f32 %v7788, %v7476
        %v7921 = vadd.f32 %v7886, %v7477
        %v7922 = vadd.f32 %v7790, %v7478
        %v7923 = vadd.f32 %v7888, %v7479
        %v7924 = vadd.f32 %v7793, %v7480
        %v7925 = vadd.f32 %v7891, %v7481
        %v7926 = vadd.f32 %v7795, %v7482
        %v7927 = vadd.f32 %v7893, %v7483
        %v7928 = vadd.f32 %v7798, %v7484
        %v7929 = vadd.f32 %v7896, %v7485
        %v7930 = vadd.f32 %v7800, %v7486
        %v7931 = vadd.f32 %v7898, %v7487
        %v7932 = vmax.f32 %v7900, 0.0
        %v7933 = vmax.f32 %v7901, 0.0
        %v7934 = vmax.f32 %v7902, 0.0
        %v7935 = vmax.f32 %v7903, 0.0
        %v7936 = vmax.f32 %v7904, 0.0
        %v7937 = vmax.f32 %v7905, 0.0
        %v7938 = vmax.f32 %v7906, 0.0
        %v7939 = vmax.f32 %v7907, 0.0
        %v7940 = vmax.f32 %v7908, 0.0
        %v7941 = vmax.f32 %v7909, 0.0
        %v7942 = vmax.f32 %v7910, 0.0
        %v7943 = vmax.f32 %v7911, 0.0
        %v7944 = vmax.f32 %v7912, 0.0
        %v7945 = vmax.f32 %v7913, 0.0
        %v7946 = vmax.f32 %v7914, 0.0
        %v7947 = vmax.f32 %v7915, 0.0
        %v7948 = vmax.f32 %v7916, 0.0
        %v7949 = vmax.f32 %v7917, 0.0
        %v7950 = vmax.f32 %v7918, 0.0
        %v7951 = vmax.f32 %v7919, 0.0
        %v7952 = vmax.f32 %v7920, 0.0
        %v7953 = vmax.f32 %v7921, 0.0
        %v7954 = vmax.f32 %v7922, 0.0
        %v7955 = vmax.f32 %v7923, 0.0
        %v7956 = vmax.f32 %v7924, 0.0
        %v7957 = vmax.f32 %v7925, 0.0
        %v7958 = vmax.f32 %v7926, 0.0
        %v7959 = vmax.f32 %v7927, 0.0
        %v7960 = vmax.f32 %v7928, 0.0
        %v7961 = vmax.f32 %v7929, 0.0
        %v7962 = vmax.f32 %v7930, 0.0
        %v7963 = vmax.f32 %v7931, 0.0
        %7964 = vst [vmem:[#allocation2] sm:$0xff] %v7932
        %7965 = vst [vmem:[#allocation2 + $0x8] sm:$0xff] %v7933
        %7966 = vst [vmem:[#allocation2 + $0x10] sm:$0xff] %v7934
        %7967 = vst [vmem:[#allocation2 + $0x18] sm:$0xff] %v7935
        %7968 = vst [vmem:[#allocation2 + $0x20] sm:$0xff] %v7936
        %7969 = vst [vmem:[#allocation2 + $0x28] sm:$0xff] %v7937
        %7970 = vst [vmem:[#allocation2 + $0x30] sm:$0xff] %v7938
        %7971 = vst [vmem:[#allocation2 + $0x38] sm:$0xff] %v7939
        %7972 = vst [vmem:[#allocation2 + $0x40] sm:$0xff] %v7940
        %7973 = vst [vmem:[#allocation2 + $0x48] sm:$0xff] %v7941
        %7974 = vst [vmem:[#allocation2 + $0x50] sm:$0xff] %v7942
        %7975 = vst [vmem:[#allocation2 + $0x58] sm:$0xff] %v7943
        %7976 = vst [vmem:[#allocation2 + $0x60] sm:$0xff] %v7944
        %7977 = vst [vmem:[#allocation2 + $0x68] sm:$0xff] %v7945
        %7978 = vst [vmem:[#allocation2 + $0x70] sm:$0xff] %v7946
        %7979 = vst [vmem:[#allocation2 + $0x78] sm:$0xff] %v7947
        %7980 = vst [vmem:[#allocation2 + $0x80] sm:$0xff] %v7948
        %7981 = vst [vmem:[#allocation2 + $0x88] sm:$0xff] %v7949
        %7982 = vst [vmem:[#allocation2 + $0x90] sm:$0xff] %v7950
        %7983 = vst [vmem:[#allocation2 + $0x98] sm:$0xff] %v7951
        %7984 = vst [vmem:[#allocation2 + $0xa0] sm:$0xff] %v7952
        %7985 = vst [vmem:[#allocation2 + $0xa8] sm:$0xff] %v7953
        %7986 = vst [vmem:[#allocation2 + $0xb0] sm:$0xff] %v7954
        %7987 = vst [vmem:[#allocation2 + $0xb8] sm:$0xff] %v7955
        %7988 = vst [vmem:[#allocation2 + $0xc0] sm:$0xff] %v7956
        %7989 = vst [vmem:[#allocation2 + $0xc8] sm:$0xff] %v7957
        %7990 = vst [vmem:[#allocation2 + $0xd0] sm:$0xff] %v7958
        %7991 = vst [vmem:[#allocation2 + $0xd8] sm:$0xff] %v7959
        %7992 = vst [vmem:[#allocation2 + $0xe0] sm:$0xff] %v7960
        %7993 = vst [vmem:[#allocation2 + $0xe8] sm:$0xff] %v7961
        %7994 = vst [vmem:[#allocation2 + $0xf0] sm:$0xff] %v7962
        %7995 = vst [vmem:[#allocation2 + $0xf8] sm:$0xff] %v7963
        %v7996 = vld [vmem:[#allocation2] sm:$0xff]
        %v7997 = vld [vmem:[#allocation2 + $0x8] sm:$0xff]
        %v7998 = vld [vmem:[#allocation2 + $0x10] sm:$0xff]
        %v7999 = vld [vmem:[#allocation2 + $0x18] sm:$0xff]
        %v8000 = vld [vmem:[#allocation2 + $0x20] sm:$0xff]
        %v8001 = vld [vmem:[#allocation2 + $0x28] sm:$0xff]
        %v8002 = vld [vmem:[#allocation2 + $0x30] sm:$0xff]
        %v8003 = vld [vmem:[#allocation2 + $0x38] sm:$0xff]
        %v8004 = vld [vmem:[#allocation2 + $0x40] sm:$0xff]
        %v8005 = vld [vmem:[#allocation2 + $0x48] sm:$0xff]
        %v8006 = vld [vmem:[#allocation2 + $0x50] sm:$0xff]
        %v8007 = vld [vmem:[#allocation2 + $0x58] sm:$0xff]
        %v8008 = vld [vmem:[#allocation2 + $0x60] sm:$0xff]
        %v8009 = vld [vmem:[#allocation2 + $0x68] sm:$0xff]
        %v8010 = vld [vmem:[#allocation2 + $0x70] sm:$0xff]
        %v8011 = vld [vmem:[#allocation2 + $0x78] sm:$0xff]
        %v8012 = vld [vmem:[#allocation2 + $0x80] sm:$0xff]
        %v8013 = vld [vmem:[#allocation2 + $0x88] sm:$0xff]
        %v8014 = vld [vmem:[#allocation2 + $0x90] sm:$0xff]
        %v8015 = vld [vmem:[#allocation2 + $0x98] sm:$0xff]
        %v8016 = vld [vmem:[#allocation2 + $0xa0] sm:$0xff]
        %v8017 = vld [vmem:[#allocation2 + $0xa8] sm:$0xff]
        %v8018 = vld [vmem:[#allocation2 + $0xb0] sm:$0xff]
        %v8019 = vld [vmem:[#allocation2 + $0xb8] sm:$0xff]
        %v8020 = vld [vmem:[#allocation2 + $0xc0] sm:$0xff]
        %v8021 = vld [vmem:[#allocation2 + $0xc8] sm:$0xff]
        %v8022 = vld [vmem:[#allocation2 + $0xd0] sm:$0xff]
        %v8023 = vld [vmem:[#allocation2 + $0xd8] sm:$0xff]
        %v8024 = vld [vmem:[#allocation2 + $0xe0] sm:$0xff]
        %v8025 = vld [vmem:[#allocation2 + $0xe8] sm:$0xff]
        %v8026 = vld [vmem:[#allocation2 + $0xf0] sm:$0xff]
        %v8027 = vld [vmem:[#allocation2 + $0xf8] sm:$0xff]
        %v8028 = vpack.c.bf16 %v7998, %v7996
        %v8029 = vpack.c.bf16 %v7999, %v7997
        %v8030 = vpack.c.bf16 %v8002, %v8000
        %v8031 = vpack.c.bf16 %v8003, %v8001
        %v8032 = vpack.c.bf16 %v8006, %v8004
        %v8033 = vpack.c.bf16 %v8007, %v8005
        %v8034 = vpack.c.bf16 %v8010, %v8008
        %v8035 = vpack.c.bf16 %v8011, %v8009
        %v8036 = vpack.c.bf16 %v8014, %v8012
        %v8037 = vpack.c.bf16 %v8015, %v8013
        %v8038 = vpack.c.bf16 %v8018, %v8016
        %v8039 = vpack.c.bf16 %v8019, %v8017
        %v8040 = vpack.c.bf16 %v8022, %v8020
        %v8041 = vpack.c.bf16 %v8023, %v8021
        %v8042 = vpack.c.bf16 %v8026, %v8024
        %v8043 = vpack.c.bf16 %v8027, %v8025
        %s8044 = scalar_lea.vmem [#allocation10], 3328
        %v8045 = vld [vmem:[%s8044] sm:$0xff]
        %v8046 = vld [vmem:[%s8044 + $0x8] sm:$0xff]
        %v8047 = vld [vmem:[%s8044 + $0x10] sm:$0xff]
        %v8048 = vld [vmem:[%s8044 + $0x18] sm:$0xff]
        %v8049 = vld [vmem:[%s8044 + $0x20] sm:$0xff]
        %v8050 = vld [vmem:[%s8044 + $0x28] sm:$0xff]
        %v8051 = vld [vmem:[%s8044 + $0x30] sm:$0xff]
        %v8052 = vld [vmem:[%s8044 + $0x38] sm:$0xff]
        %v8053 = vld [vmem:[%s8044 + $0x40] sm:$0xff]
        %v8054 = vld [vmem:[%s8044 + $0x48] sm:$0xff]
        %v8055 = vld [vmem:[%s8044 + $0x50] sm:$0xff]
        %v8056 = vld [vmem:[%s8044 + $0x58] sm:$0xff]
        %v8057 = vld [vmem:[%s8044 + $0x60] sm:$0xff]
        %v8058 = vld [vmem:[%s8044 + $0x68] sm:$0xff]
        %v8059 = vld [vmem:[%s8044 + $0x70] sm:$0xff]
        %v8060 = vld [vmem:[%s8044 + $0x78] sm:$0xff]
        %v8061 = vld [vmem:[%s8044 + $0x80] sm:$0xff]
        %v8062 = vld [vmem:[%s8044 + $0x88] sm:$0xff]
        %v8063 = vld [vmem:[%s8044 + $0x90] sm:$0xff]
        %v8064 = vld [vmem:[%s8044 + $0x98] sm:$0xff]
        %v8065 = vld [vmem:[%s8044 + $0xa0] sm:$0xff]
        %v8066 = vld [vmem:[%s8044 + $0xa8] sm:$0xff]
        %v8067 = vld [vmem:[%s8044 + $0xb0] sm:$0xff]
        %v8068 = vld [vmem:[%s8044 + $0xb8] sm:$0xff]
        %v8069 = vld [vmem:[%s8044 + $0xc0] sm:$0xff]
        %v8070 = vld [vmem:[%s8044 + $0xc8] sm:$0xff]
        %v8071 = vld [vmem:[%s8044 + $0xd0] sm:$0xff]
        %v8072 = vld [vmem:[%s8044 + $0xd8] sm:$0xff]
        %v8073 = vld [vmem:[%s8044 + $0xe0] sm:$0xff]
        %v8074 = vld [vmem:[%s8044 + $0xe8] sm:$0xff]
        %v8075 = vld [vmem:[%s8044 + $0xf0] sm:$0xff]
        %v8076 = vld [vmem:[%s8044 + $0xf8] sm:$0xff]
        %s8077 = scalar_lea.vmem [#allocation12], 26
        %v8078 = vld [vmem:[%s8077] sm:$0x3]
        %v8080 = vperm.slane %v8078, 0
        %v8081 = vperm.slane %v8078, 1
        %v8116 = vunpack.c.l.b16 %v8045
        %v8117 = vunpack.c.h.b16 %v8045
        %v8118 = vunpack.c.l.b16 %v8046
        %v8119 = vunpack.c.h.b16 %v8046
        %v8120 = vunpack.c.l.b16 %v8047
        %v8121 = vunpack.c.h.b16 %v8047
        %v8122 = vunpack.c.l.b16 %v8048
        %v8123 = vunpack.c.h.b16 %v8048
        %v8124 = vunpack.c.l.b16 %v8049
        %v8125 = vunpack.c.h.b16 %v8049
        %v8126 = vunpack.c.l.b16 %v8050
        %v8127 = vunpack.c.h.b16 %v8050
        %v8128 = vunpack.c.l.b16 %v8051
        %v8129 = vunpack.c.h.b16 %v8051
        %v8130 = vunpack.c.l.b16 %v8052
        %v8131 = vunpack.c.h.b16 %v8052
        %v8132 = vunpack.c.l.b16 %v8053
        %v8133 = vunpack.c.h.b16 %v8053
        %v8134 = vunpack.c.l.b16 %v8054
        %v8135 = vunpack.c.h.b16 %v8054
        %v8136 = vunpack.c.l.b16 %v8055
        %v8137 = vunpack.c.h.b16 %v8055
        %v8138 = vunpack.c.l.b16 %v8056
        %v8139 = vunpack.c.h.b16 %v8056
        %v8140 = vunpack.c.l.b16 %v8057
        %v8141 = vunpack.c.h.b16 %v8057
        %v8142 = vunpack.c.l.b16 %v8058
        %v8143 = vunpack.c.h.b16 %v8058
        %v8144 = vunpack.c.l.b16 %v8059
        %v8145 = vunpack.c.h.b16 %v8059
        %v8146 = vunpack.c.l.b16 %v8060
        %v8147 = vunpack.c.h.b16 %v8060
        %v8148 = vunpack.c.l.b16 %v8061
        %v8149 = vunpack.c.h.b16 %v8061
        %v8150 = vunpack.c.l.b16 %v8062
        %v8151 = vunpack.c.h.b16 %v8062
        %v8152 = vunpack.c.l.b16 %v8063
        %v8153 = vunpack.c.h.b16 %v8063
        %v8154 = vunpack.c.l.b16 %v8064
        %v8155 = vunpack.c.h.b16 %v8064
        %v8156 = vunpack.c.l.b16 %v8065
        %v8157 = vunpack.c.h.b16 %v8065
        %v8158 = vunpack.c.l.b16 %v8066
        %v8159 = vunpack.c.h.b16 %v8066
        %v8160 = vunpack.c.l.b16 %v8067
        %v8161 = vunpack.c.h.b16 %v8067
        %v8162 = vunpack.c.l.b16 %v8068
        %v8163 = vunpack.c.h.b16 %v8068
        %v8164 = vunpack.c.l.b16 %v8069
        %v8165 = vunpack.c.h.b16 %v8069
        %v8166 = vunpack.c.l.b16 %v8070
        %v8167 = vunpack.c.h.b16 %v8070
        %v8168 = vunpack.c.l.b16 %v8071
        %v8169 = vunpack.c.h.b16 %v8071
        %v8170 = vunpack.c.l.b16 %v8072
        %v8171 = vunpack.c.h.b16 %v8072
        %v8172 = vunpack.c.l.b16 %v8073
        %v8173 = vunpack.c.h.b16 %v8073
        %v8174 = vunpack.c.l.b16 %v8074
        %v8175 = vunpack.c.h.b16 %v8074
        %v8176 = vunpack.c.l.b16 %v8075
        %v8177 = vunpack.c.h.b16 %v8075
        %v8178 = vunpack.c.l.b16 %v8076
        %v8179 = vunpack.c.h.b16 %v8076
        %v8180 = vpack.c.b16 %v8118, %v8116
        %v8181 = vpack.c.b16 %v8119, %v8117
        %v8182 = vpack.c.b16 %v8122, %v8120
        %v8183 = vpack.c.b16 %v8123, %v8121
        %v8184 = vpack.c.b16 %v8126, %v8124
        %v8185 = vpack.c.b16 %v8127, %v8125
        %v8186 = vpack.c.b16 %v8130, %v8128
        %v8187 = vpack.c.b16 %v8131, %v8129
        %v8188 = vpack.c.b16 %v8134, %v8132
        %v8189 = vpack.c.b16 %v8135, %v8133
        %v8190 = vpack.c.b16 %v8138, %v8136
        %v8191 = vpack.c.b16 %v8139, %v8137
        %v8192 = vpack.c.b16 %v8142, %v8140
        %v8193 = vpack.c.b16 %v8143, %v8141
        %v8194 = vpack.c.b16 %v8146, %v8144
        %v8195 = vpack.c.b16 %v8147, %v8145
        %v8196 = vpack.c.b16 %v8150, %v8148
        %v8197 = vpack.c.b16 %v8151, %v8149
        %v8198 = vpack.c.b16 %v8154, %v8152
        %v8199 = vpack.c.b16 %v8155, %v8153
        %v8200 = vpack.c.b16 %v8158, %v8156
        %v8201 = vpack.c.b16 %v8159, %v8157
        %v8202 = vpack.c.b16 %v8162, %v8160
        %v8203 = vpack.c.b16 %v8163, %v8161
        %v8204 = vpack.c.b16 %v8166, %v8164
        %v8205 = vpack.c.b16 %v8167, %v8165
        %v8206 = vpack.c.b16 %v8170, %v8168
        %v8207 = vpack.c.b16 %v8171, %v8169
        %v8208 = vpack.c.b16 %v8174, %v8172
        %v8209 = vpack.c.b16 %v8175, %v8173
        %v8210 = vpack.c.b16 %v8178, %v8176
        %v8211 = vpack.c.b16 %v8179, %v8177
        %8244 = vmatpush.bf16.msra.mxu0 %v8194
        %8245 = vmatpush.bf16.msra.mxu0 %v8192
        %8246 = vmatpush.bf16.msra.mxu0 %v8190
        %8247 = vmatpush.bf16.msra.mxu0 %v8188
        %8248 = vmatpush.bf16.msra.mxu0 %v8186
        %8249 = vmatpush.bf16.msra.mxu0 %v8184
        %8250 = vmatpush.bf16.msra.mxu0 %v8182
        %8251 = vmatpush.bf16.msra.mxu0 %v8180
        %8252 = vmatmul.bf16.gmra.mxu0 %v8028
        %v8253 = vpop.f32.mrf.mxu0
        %v8254 = vadd.f32 %v8080, %v8253
        %v8255 = vpop.f32.mrf.mxu0
        %v8256 = vadd.f32 %v8080, %v8255
        %8257 = vmatmul.bf16.gmra.mxu0 %v8030
        %v8258 = vpop.f32.mrf.mxu0
        %v8259 = vadd.f32 %v8080, %v8258
        %v8260 = vpop.f32.mrf.mxu0
        %v8261 = vadd.f32 %v8080, %v8260
        %8262 = vmatmul.bf16.gmra.mxu0 %v8032
        %v8263 = vpop.f32.mrf.mxu0
        %v8264 = vadd.f32 %v8080, %v8263
        %v8265 = vpop.f32.mrf.mxu0
        %v8266 = vadd.f32 %v8080, %v8265
        %8267 = vmatmul.bf16.gmra.mxu0 %v8034
        %v8268 = vpop.f32.mrf.mxu0
        %v8269 = vadd.f32 %v8080, %v8268
        %v8270 = vpop.f32.mrf.mxu0
        %v8271 = vadd.f32 %v8080, %v8270
        %8272 = vmatmul.bf16.gmra.mxu0 %v8036
        %v8273 = vpop.f32.mrf.mxu0
        %v8274 = vadd.f32 %v8080, %v8273
        %v8275 = vpop.f32.mrf.mxu0
        %v8276 = vadd.f32 %v8080, %v8275
        %8277 = vmatmul.bf16.gmra.mxu0 %v8038
        %v8278 = vpop.f32.mrf.mxu0
        %v8279 = vadd.f32 %v8080, %v8278
        %v8280 = vpop.f32.mrf.mxu0
        %v8281 = vadd.f32 %v8080, %v8280
        %8282 = vmatmul.bf16.gmra.mxu0 %v8040
        %v8283 = vpop.f32.mrf.mxu0
        %v8284 = vadd.f32 %v8080, %v8283
        %v8285 = vpop.f32.mrf.mxu0
        %v8286 = vadd.f32 %v8080, %v8285
        %8287 = vmatmul.bf16.gmra.mxu0 %v8042
        %v8288 = vpop.f32.mrf.mxu0
        %v8289 = vadd.f32 %v8080, %v8288
        %v8290 = vpop.f32.mrf.mxu0
        %v8291 = vadd.f32 %v8080, %v8290
        %8292 = vdwg.mxu0
        %8293 = vmatpush.bf16.msra.mxu0 %v8210
        %8294 = vmatpush.bf16.msra.mxu0 %v8208
        %8295 = vmatpush.bf16.msra.mxu0 %v8206
        %8296 = vmatpush.bf16.msra.mxu0 %v8204
        %8297 = vmatpush.bf16.msra.mxu0 %v8202
        %8298 = vmatpush.bf16.msra.mxu0 %v8200
        %8299 = vmatpush.bf16.msra.mxu0 %v8198
        %8300 = vmatpush.bf16.msra.mxu0 %v8196
        %8301 = vmatmul.bf16.gmra.mxu0 %v8029
        %v8302 = vpop.f32.mrf.mxu0
        %v8303 = vadd.f32 %v8254, %v8302
        %v8304 = vpop.f32.mrf.mxu0
        %v8305 = vadd.f32 %v8256, %v8304
        %8306 = vmatmul.bf16.gmra.mxu0 %v8031
        %v8307 = vpop.f32.mrf.mxu0
        %v8308 = vadd.f32 %v8259, %v8307
        %v8309 = vpop.f32.mrf.mxu0
        %v8310 = vadd.f32 %v8261, %v8309
        %8311 = vmatmul.bf16.gmra.mxu0 %v8033
        %v8312 = vpop.f32.mrf.mxu0
        %v8313 = vadd.f32 %v8264, %v8312
        %v8314 = vpop.f32.mrf.mxu0
        %v8315 = vadd.f32 %v8266, %v8314
        %8316 = vmatmul.bf16.gmra.mxu0 %v8035
        %v8317 = vpop.f32.mrf.mxu0
        %v8318 = vadd.f32 %v8269, %v8317
        %v8319 = vpop.f32.mrf.mxu0
        %v8320 = vadd.f32 %v8271, %v8319
        %8321 = vmatmul.bf16.gmra.mxu0 %v8037
        %v8322 = vpop.f32.mrf.mxu0
        %v8323 = vadd.f32 %v8274, %v8322
        %v8324 = vpop.f32.mrf.mxu0
        %v8325 = vadd.f32 %v8276, %v8324
        %8326 = vmatmul.bf16.gmra.mxu0 %v8039
        %v8327 = vpop.f32.mrf.mxu0
        %v8328 = vadd.f32 %v8279, %v8327
        %v8329 = vpop.f32.mrf.mxu0
        %v8330 = vadd.f32 %v8281, %v8329
        %8331 = vmatmul.bf16.gmra.mxu0 %v8041
        %v8332 = vpop.f32.mrf.mxu0
        %v8333 = vadd.f32 %v8284, %v8332
        %v8334 = vpop.f32.mrf.mxu0
        %v8335 = vadd.f32 %v8286, %v8334
        %8336 = vmatmul.bf16.gmra.mxu0 %v8043
        %v8337 = vpop.f32.mrf.mxu0
        %v8338 = vadd.f32 %v8289, %v8337
        %v8339 = vpop.f32.mrf.mxu0
        %v8340 = vadd.f32 %v8291, %v8339
        %8341 = vdwg.mxu0
        %8342 = vmatpush.bf16.msra.mxu0 %v8195
        %8343 = vmatpush.bf16.msra.mxu0 %v8193
        %8344 = vmatpush.bf16.msra.mxu0 %v8191
        %8345 = vmatpush.bf16.msra.mxu0 %v8189
        %8346 = vmatpush.bf16.msra.mxu0 %v8187
        %8347 = vmatpush.bf16.msra.mxu0 %v8185
        %8348 = vmatpush.bf16.msra.mxu0 %v8183
        %8349 = vmatpush.bf16.msra.mxu0 %v8181
        %8350 = vmatmul.bf16.gmra.mxu0 %v8028
        %v8351 = vpop.f32.mrf.mxu0
        %v8352 = vadd.f32 %v8081, %v8351
        %v8353 = vpop.f32.mrf.mxu0
        %v8354 = vadd.f32 %v8081, %v8353
        %8355 = vmatmul.bf16.gmra.mxu0 %v8030
        %v8356 = vpop.f32.mrf.mxu0
        %v8357 = vadd.f32 %v8081, %v8356
        %v8358 = vpop.f32.mrf.mxu0
        %v8359 = vadd.f32 %v8081, %v8358
        %8360 = vmatmul.bf16.gmra.mxu0 %v8032
        %v8361 = vpop.f32.mrf.mxu0
        %v8362 = vadd.f32 %v8081, %v8361
        %v8363 = vpop.f32.mrf.mxu0
        %v8364 = vadd.f32 %v8081, %v8363
        %8365 = vmatmul.bf16.gmra.mxu0 %v8034
        %v8366 = vpop.f32.mrf.mxu0
        %v8367 = vadd.f32 %v8081, %v8366
        %v8368 = vpop.f32.mrf.mxu0
        %v8369 = vadd.f32 %v8081, %v8368
        %8370 = vmatmul.bf16.gmra.mxu0 %v8036
        %v8371 = vpop.f32.mrf.mxu0
        %v8372 = vadd.f32 %v8081, %v8371
        %v8373 = vpop.f32.mrf.mxu0
        %v8374 = vadd.f32 %v8081, %v8373
        %8375 = vmatmul.bf16.gmra.mxu0 %v8038
        %v8376 = vpop.f32.mrf.mxu0
        %v8377 = vadd.f32 %v8081, %v8376
        %v8378 = vpop.f32.mrf.mxu0
        %v8379 = vadd.f32 %v8081, %v8378
        %8380 = vmatmul.bf16.gmra.mxu0 %v8040
        %v8381 = vpop.f32.mrf.mxu0
        %v8382 = vadd.f32 %v8081, %v8381
        %v8383 = vpop.f32.mrf.mxu0
        %v8384 = vadd.f32 %v8081, %v8383
        %8385 = vmatmul.bf16.gmra.mxu0 %v8042
        %v8386 = vpop.f32.mrf.mxu0
        %v8387 = vadd.f32 %v8081, %v8386
        %v8388 = vpop.f32.mrf.mxu0
        %v8389 = vadd.f32 %v8081, %v8388
        %8390 = vdwg.mxu0
        %8391 = vmatpush.bf16.msra.mxu0 %v8211
        %8392 = vmatpush.bf16.msra.mxu0 %v8209
        %8393 = vmatpush.bf16.msra.mxu0 %v8207
        %8394 = vmatpush.bf16.msra.mxu0 %v8205
        %8395 = vmatpush.bf16.msra.mxu0 %v8203
        %8396 = vmatpush.bf16.msra.mxu0 %v8201
        %8397 = vmatpush.bf16.msra.mxu0 %v8199
        %8398 = vmatpush.bf16.msra.mxu0 %v8197
        %8399 = vmatmul.bf16.gmra.mxu0 %v8029
        %v8400 = vpop.f32.mrf.mxu0
        %v8401 = vadd.f32 %v8352, %v8400
        %v8402 = vpop.f32.mrf.mxu0
        %v8403 = vadd.f32 %v8354, %v8402
        %8404 = vmatmul.bf16.gmra.mxu0 %v8031
        %v8405 = vpop.f32.mrf.mxu0
        %v8406 = vadd.f32 %v8357, %v8405
        %v8407 = vpop.f32.mrf.mxu0
        %v8408 = vadd.f32 %v8359, %v8407
        %8409 = vmatmul.bf16.gmra.mxu0 %v8033
        %v8410 = vpop.f32.mrf.mxu0
        %v8411 = vadd.f32 %v8362, %v8410
        %v8412 = vpop.f32.mrf.mxu0
        %v8413 = vadd.f32 %v8364, %v8412
        %8414 = vmatmul.bf16.gmra.mxu0 %v8035
        %v8415 = vpop.f32.mrf.mxu0
        %v8416 = vadd.f32 %v8367, %v8415
        %v8417 = vpop.f32.mrf.mxu0
        %v8418 = vadd.f32 %v8369, %v8417
        %8419 = vmatmul.bf16.gmra.mxu0 %v8037
        %v8420 = vpop.f32.mrf.mxu0
        %v8421 = vadd.f32 %v8372, %v8420
        %v8422 = vpop.f32.mrf.mxu0
        %v8423 = vadd.f32 %v8374, %v8422
        %8424 = vmatmul.bf16.gmra.mxu0 %v8039
        %v8425 = vpop.f32.mrf.mxu0
        %v8426 = vadd.f32 %v8377, %v8425
        %v8427 = vpop.f32.mrf.mxu0
        %v8428 = vadd.f32 %v8379, %v8427
        %8429 = vmatmul.bf16.gmra.mxu0 %v8041
        %v8430 = vpop.f32.mrf.mxu0
        %v8431 = vadd.f32 %v8382, %v8430
        %v8432 = vpop.f32.mrf.mxu0
        %v8433 = vadd.f32 %v8384, %v8432
        %8434 = vmatmul.bf16.gmra.mxu0 %v8043
        %v8435 = vpop.f32.mrf.mxu0
        %v8436 = vadd.f32 %v8387, %v8435
        %v8437 = vpop.f32.mrf.mxu0
        %v8438 = vadd.f32 %v8389, %v8437
        %8439 = vdwg.mxu0
        %v8440 = vadd.f32 %v8303, %v7996
        %v8441 = vadd.f32 %v8401, %v7997
        %v8442 = vadd.f32 %v8305, %v7998
        %v8443 = vadd.f32 %v8403, %v7999
        %v8444 = vadd.f32 %v8308, %v8000
        %v8445 = vadd.f32 %v8406, %v8001
        %v8446 = vadd.f32 %v8310, %v8002
        %v8447 = vadd.f32 %v8408, %v8003
        %v8448 = vadd.f32 %v8313, %v8004
        %v8449 = vadd.f32 %v8411, %v8005
        %v8450 = vadd.f32 %v8315, %v8006
        %v8451 = vadd.f32 %v8413, %v8007
        %v8452 = vadd.f32 %v8318, %v8008
        %v8453 = vadd.f32 %v8416, %v8009
        %v8454 = vadd.f32 %v8320, %v8010
        %v8455 = vadd.f32 %v8418, %v8011
        %v8456 = vadd.f32 %v8323, %v8012
        %v8457 = vadd.f32 %v8421, %v8013
        %v8458 = vadd.f32 %v8325, %v8014
        %v8459 = vadd.f32 %v8423, %v8015
        %v8460 = vadd.f32 %v8328, %v8016
        %v8461 = vadd.f32 %v8426, %v8017
        %v8462 = vadd.f32 %v8330, %v8018
        %v8463 = vadd.f32 %v8428, %v8019
        %v8464 = vadd.f32 %v8333, %v8020
        %v8465 = vadd.f32 %v8431, %v8021
        %v8466 = vadd.f32 %v8335, %v8022
        %v8467 = vadd.f32 %v8433, %v8023
        %v8468 = vadd.f32 %v8338, %v8024
        %v8469 = vadd.f32 %v8436, %v8025
        %v8470 = vadd.f32 %v8340, %v8026
        %v8471 = vadd.f32 %v8438, %v8027
        %v8472 = vmax.f32 %v8440, 0.0
        %v8473 = vmax.f32 %v8441, 0.0
        %v8474 = vmax.f32 %v8442, 0.0
        %v8475 = vmax.f32 %v8443, 0.0
        %v8476 = vmax.f32 %v8444, 0.0
        %v8477 = vmax.f32 %v8445, 0.0
        %v8478 = vmax.f32 %v8446, 0.0
        %v8479 = vmax.f32 %v8447, 0.0
        %v8480 = vmax.f32 %v8448, 0.0
        %v8481 = vmax.f32 %v8449, 0.0
        %v8482 = vmax.f32 %v8450, 0.0
        %v8483 = vmax.f32 %v8451, 0.0
        %v8484 = vmax.f32 %v8452, 0.0
        %v8485 = vmax.f32 %v8453, 0.0
        %v8486 = vmax.f32 %v8454, 0.0
        %v8487 = vmax.f32 %v8455, 0.0
        %v8488 = vmax.f32 %v8456, 0.0
        %v8489 = vmax.f32 %v8457, 0.0
        %v8490 = vmax.f32 %v8458, 0.0
        %v8491 = vmax.f32 %v8459, 0.0
        %v8492 = vmax.f32 %v8460, 0.0
        %v8493 = vmax.f32 %v8461, 0.0
        %v8494 = vmax.f32 %v8462, 0.0
        %v8495 = vmax.f32 %v8463, 0.0
        %v8496 = vmax.f32 %v8464, 0.0
        %v8497 = vmax.f32 %v8465, 0.0
        %v8498 = vmax.f32 %v8466, 0.0
        %v8499 = vmax.f32 %v8467, 0.0
        %v8500 = vmax.f32 %v8468, 0.0
        %v8501 = vmax.f32 %v8469, 0.0
        %v8502 = vmax.f32 %v8470, 0.0
        %v8503 = vmax.f32 %v8471, 0.0
        %8504 = vst [vmem:[#allocation2] sm:$0xff] %v8472
        %8505 = vst [vmem:[#allocation2 + $0x8] sm:$0xff] %v8473
        %8506 = vst [vmem:[#allocation2 + $0x10] sm:$0xff] %v8474
        %8507 = vst [vmem:[#allocation2 + $0x18] sm:$0xff] %v8475
        %8508 = vst [vmem:[#allocation2 + $0x20] sm:$0xff] %v8476
        %8509 = vst [vmem:[#allocation2 + $0x28] sm:$0xff] %v8477
        %8510 = vst [vmem:[#allocation2 + $0x30] sm:$0xff] %v8478
        %8511 = vst [vmem:[#allocation2 + $0x38] sm:$0xff] %v8479
        %8512 = vst [vmem:[#allocation2 + $0x40] sm:$0xff] %v8480
        %8513 = vst [vmem:[#allocation2 + $0x48] sm:$0xff] %v8481
        %8514 = vst [vmem:[#allocation2 + $0x50] sm:$0xff] %v8482
        %8515 = vst [vmem:[#allocation2 + $0x58] sm:$0xff] %v8483
        %8516 = vst [vmem:[#allocation2 + $0x60] sm:$0xff] %v8484
        %8517 = vst [vmem:[#allocation2 + $0x68] sm:$0xff] %v8485
        %8518 = vst [vmem:[#allocation2 + $0x70] sm:$0xff] %v8486
        %8519 = vst [vmem:[#allocation2 + $0x78] sm:$0xff] %v8487
        %8520 = vst [vmem:[#allocation2 + $0x80] sm:$0xff] %v8488
        %8521 = vst [vmem:[#allocation2 + $0x88] sm:$0xff] %v8489
        %8522 = vst [vmem:[#allocation2 + $0x90] sm:$0xff] %v8490
        %8523 = vst [vmem:[#allocation2 + $0x98] sm:$0xff] %v8491
        %8524 = vst [vmem:[#allocation2 + $0xa0] sm:$0xff] %v8492
        %8525 = vst [vmem:[#allocation2 + $0xa8] sm:$0xff] %v8493
        %8526 = vst [vmem:[#allocation2 + $0xb0] sm:$0xff] %v8494
        %8527 = vst [vmem:[#allocation2 + $0xb8] sm:$0xff] %v8495
        %8528 = vst [vmem:[#allocation2 + $0xc0] sm:$0xff] %v8496
        %8529 = vst [vmem:[#allocation2 + $0xc8] sm:$0xff] %v8497
        %8530 = vst [vmem:[#allocation2 + $0xd0] sm:$0xff] %v8498
        %8531 = vst [vmem:[#allocation2 + $0xd8] sm:$0xff] %v8499
        %8532 = vst [vmem:[#allocation2 + $0xe0] sm:$0xff] %v8500
        %8533 = vst [vmem:[#allocation2 + $0xe8] sm:$0xff] %v8501
        %8534 = vst [vmem:[#allocation2 + $0xf0] sm:$0xff] %v8502
        %8535 = vst [vmem:[#allocation2 + $0xf8] sm:$0xff] %v8503
        %v8536 = vld [vmem:[#allocation2] sm:$0xff]
        %v8537 = vld [vmem:[#allocation2 + $0x8] sm:$0xff]
        %v8538 = vld [vmem:[#allocation2 + $0x10] sm:$0xff]
        %v8539 = vld [vmem:[#allocation2 + $0x18] sm:$0xff]
        %v8540 = vld [vmem:[#allocation2 + $0x20] sm:$0xff]
        %v8541 = vld [vmem:[#allocation2 + $0x28] sm:$0xff]
        %v8542 = vld [vmem:[#allocation2 + $0x30] sm:$0xff]
        %v8543 = vld [vmem:[#allocation2 + $0x38] sm:$0xff]
        %v8544 = vld [vmem:[#allocation2 + $0x40] sm:$0xff]
        %v8545 = vld [vmem:[#allocation2 + $0x48] sm:$0xff]
        %v8546 = vld [vmem:[#allocation2 + $0x50] sm:$0xff]
        %v8547 = vld [vmem:[#allocation2 + $0x58] sm:$0xff]
        %v8548 = vld [vmem:[#allocation2 + $0x60] sm:$0xff]
        %v8549 = vld [vmem:[#allocation2 + $0x68] sm:$0xff]
        %v8550 = vld [vmem:[#allocation2 + $0x70] sm:$0xff]
        %v8551 = vld [vmem:[#allocation2 + $0x78] sm:$0xff]
        %v8552 = vld [vmem:[#allocation2 + $0x80] sm:$0xff]
        %v8553 = vld [vmem:[#allocation2 + $0x88] sm:$0xff]
        %v8554 = vld [vmem:[#allocation2 + $0x90] sm:$0xff]
        %v8555 = vld [vmem:[#allocation2 + $0x98] sm:$0xff]
        %v8556 = vld [vmem:[#allocation2 + $0xa0] sm:$0xff]
        %v8557 = vld [vmem:[#allocation2 + $0xa8] sm:$0xff]
        %v8558 = vld [vmem:[#allocation2 + $0xb0] sm:$0xff]
        %v8559 = vld [vmem:[#allocation2 + $0xb8] sm:$0xff]
        %v8560 = vld [vmem:[#allocation2 + $0xc0] sm:$0xff]
        %v8561 = vld [vmem:[#allocation2 + $0xc8] sm:$0xff]
        %v8562 = vld [vmem:[#allocation2 + $0xd0] sm:$0xff]
        %v8563 = vld [vmem:[#allocation2 + $0xd8] sm:$0xff]
        %v8564 = vld [vmem:[#allocation2 + $0xe0] sm:$0xff]
        %v8565 = vld [vmem:[#allocation2 + $0xe8] sm:$0xff]
        %v8566 = vld [vmem:[#allocation2 + $0xf0] sm:$0xff]
        %v8567 = vld [vmem:[#allocation2 + $0xf8] sm:$0xff]
        %v8568 = vpack.c.bf16 %v8538, %v8536
        %v8569 = vpack.c.bf16 %v8539, %v8537
        %v8570 = vpack.c.bf16 %v8542, %v8540
        %v8571 = vpack.c.bf16 %v8543, %v8541
        %v8572 = vpack.c.bf16 %v8546, %v8544
        %v8573 = vpack.c.bf16 %v8547, %v8545
        %v8574 = vpack.c.bf16 %v8550, %v8548
        %v8575 = vpack.c.bf16 %v8551, %v8549
        %v8576 = vpack.c.bf16 %v8554, %v8552
        %v8577 = vpack.c.bf16 %v8555, %v8553
        %v8578 = vpack.c.bf16 %v8558, %v8556
        %v8579 = vpack.c.bf16 %v8559, %v8557
        %v8580 = vpack.c.bf16 %v8562, %v8560
        %v8581 = vpack.c.bf16 %v8563, %v8561
        %v8582 = vpack.c.bf16 %v8566, %v8564
        %v8583 = vpack.c.bf16 %v8567, %v8565
        %s8584 = scalar_lea.vmem [#allocation10], 3584
        %v8585 = vld [vmem:[%s8584] sm:$0xff]
        %v8586 = vld [vmem:[%s8584 + $0x8] sm:$0xff]
        %v8587 = vld [vmem:[%s8584 + $0x10] sm:$0xff]
        %v8588 = vld [vmem:[%s8584 + $0x18] sm:$0xff]
        %v8589 = vld [vmem:[%s8584 + $0x20] sm:$0xff]
        %v8590 = vld [vmem:[%s8584 + $0x28] sm:$0xff]
        %v8591 = vld [vmem:[%s8584 + $0x30] sm:$0xff]
        %v8592 = vld [vmem:[%s8584 + $0x38] sm:$0xff]
        %v8593 = vld [vmem:[%s8584 + $0x40] sm:$0xff]
        %v8594 = vld [vmem:[%s8584 + $0x48] sm:$0xff]
        %v8595 = vld [vmem:[%s8584 + $0x50] sm:$0xff]
        %v8596 = vld [vmem:[%s8584 + $0x58] sm:$0xff]
        %v8597 = vld [vmem:[%s8584 + $0x60] sm:$0xff]
        %v8598 = vld [vmem:[%s8584 + $0x68] sm:$0xff]
        %v8599 = vld [vmem:[%s8584 + $0x70] sm:$0xff]
        %v8600 = vld [vmem:[%s8584 + $0x78] sm:$0xff]
        %v8601 = vld [vmem:[%s8584 + $0x80] sm:$0xff]
        %v8602 = vld [vmem:[%s8584 + $0x88] sm:$0xff]
        %v8603 = vld [vmem:[%s8584 + $0x90] sm:$0xff]
        %v8604 = vld [vmem:[%s8584 + $0x98] sm:$0xff]
        %v8605 = vld [vmem:[%s8584 + $0xa0] sm:$0xff]
        %v8606 = vld [vmem:[%s8584 + $0xa8] sm:$0xff]
        %v8607 = vld [vmem:[%s8584 + $0xb0] sm:$0xff]
        %v8608 = vld [vmem:[%s8584 + $0xb8] sm:$0xff]
        %v8609 = vld [vmem:[%s8584 + $0xc0] sm:$0xff]
        %v8610 = vld [vmem:[%s8584 + $0xc8] sm:$0xff]
        %v8611 = vld [vmem:[%s8584 + $0xd0] sm:$0xff]
        %v8612 = vld [vmem:[%s8584 + $0xd8] sm:$0xff]
        %v8613 = vld [vmem:[%s8584 + $0xe0] sm:$0xff]
        %v8614 = vld [vmem:[%s8584 + $0xe8] sm:$0xff]
        %v8615 = vld [vmem:[%s8584 + $0xf0] sm:$0xff]
        %v8616 = vld [vmem:[%s8584 + $0xf8] sm:$0xff]
        %s8617 = scalar_lea.vmem [#allocation12], 28
        %v8618 = vld [vmem:[%s8617] sm:$0x3]
        %v8620 = vperm.slane %v8618, 0
        %v8621 = vperm.slane %v8618, 1
        %v8656 = vunpack.c.l.b16 %v8585
        %v8657 = vunpack.c.h.b16 %v8585
        %v8658 = vunpack.c.l.b16 %v8586
        %v8659 = vunpack.c.h.b16 %v8586
        %v8660 = vunpack.c.l.b16 %v8587
        %v8661 = vunpack.c.h.b16 %v8587
        %v8662 = vunpack.c.l.b16 %v8588
        %v8663 = vunpack.c.h.b16 %v8588
        %v8664 = vunpack.c.l.b16 %v8589
        %v8665 = vunpack.c.h.b16 %v8589
        %v8666 = vunpack.c.l.b16 %v8590
        %v8667 = vunpack.c.h.b16 %v8590
        %v8668 = vunpack.c.l.b16 %v8591
        %v8669 = vunpack.c.h.b16 %v8591
        %v8670 = vunpack.c.l.b16 %v8592
        %v8671 = vunpack.c.h.b16 %v8592
        %v8672 = vunpack.c.l.b16 %v8593
        %v8673 = vunpack.c.h.b16 %v8593
        %v8674 = vunpack.c.l.b16 %v8594
        %v8675 = vunpack.c.h.b16 %v8594
        %v8676 = vunpack.c.l.b16 %v8595
        %v8677 = vunpack.c.h.b16 %v8595
        %v8678 = vunpack.c.l.b16 %v8596
        %v8679 = vunpack.c.h.b16 %v8596
        %v8680 = vunpack.c.l.b16 %v8597
        %v8681 = vunpack.c.h.b16 %v8597
        %v8682 = vunpack.c.l.b16 %v8598
        %v8683 = vunpack.c.h.b16 %v8598
        %v8684 = vunpack.c.l.b16 %v8599
        %v8685 = vunpack.c.h.b16 %v8599
        %v8686 = vunpack.c.l.b16 %v8600
        %v8687 = vunpack.c.h.b16 %v8600
        %v8688 = vunpack.c.l.b16 %v8601
        %v8689 = vunpack.c.h.b16 %v8601
        %v8690 = vunpack.c.l.b16 %v8602
        %v8691 = vunpack.c.h.b16 %v8602
        %v8692 = vunpack.c.l.b16 %v8603
        %v8693 = vunpack.c.h.b16 %v8603
        %v8694 = vunpack.c.l.b16 %v8604
        %v8695 = vunpack.c.h.b16 %v8604
        %v8696 = vunpack.c.l.b16 %v8605
        %v8697 = vunpack.c.h.b16 %v8605
        %v8698 = vunpack.c.l.b16 %v8606
        %v8699 = vunpack.c.h.b16 %v8606
        %v8700 = vunpack.c.l.b16 %v8607
        %v8701 = vunpack.c.h.b16 %v8607
        %v8702 = vunpack.c.l.b16 %v8608
        %v8703 = vunpack.c.h.b16 %v8608
        %v8704 = vunpack.c.l.b16 %v8609
        %v8705 = vunpack.c.h.b16 %v8609
        %v8706 = vunpack.c.l.b16 %v8610
        %v8707 = vunpack.c.h.b16 %v8610
        %v8708 = vunpack.c.l.b16 %v8611
        %v8709 = vunpack.c.h.b16 %v8611
        %v8710 = vunpack.c.l.b16 %v8612
        %v8711 = vunpack.c.h.b16 %v8612
        %v8712 = vunpack.c.l.b16 %v8613
        %v8713 = vunpack.c.h.b16 %v8613
        %v8714 = vunpack.c.l.b16 %v8614
        %v8715 = vunpack.c.h.b16 %v8614
        %v8716 = vunpack.c.l.b16 %v8615
        %v8717 = vunpack.c.h.b16 %v8615
        %v8718 = vunpack.c.l.b16 %v8616
        %v8719 = vunpack.c.h.b16 %v8616
        %v8720 = vpack.c.b16 %v8658, %v8656
        %v8721 = vpack.c.b16 %v8659, %v8657
        %v8722 = vpack.c.b16 %v8662, %v8660
        %v8723 = vpack.c.b16 %v8663, %v8661
        %v8724 = vpack.c.b16 %v8666, %v8664
        %v8725 = vpack.c.b16 %v8667, %v8665
        %v8726 = vpack.c.b16 %v8670, %v8668
        %v8727 = vpack.c.b16 %v8671, %v8669
        %v8728 = vpack.c.b16 %v8674, %v8672
        %v8729 = vpack.c.b16 %v8675, %v8673
        %v8730 = vpack.c.b16 %v8678, %v8676
        %v8731 = vpack.c.b16 %v8679, %v8677
        %v8732 = vpack.c.b16 %v8682, %v8680
        %v8733 = vpack.c.b16 %v8683, %v8681
        %v8734 = vpack.c.b16 %v8686, %v8684
        %v8735 = vpack.c.b16 %v8687, %v8685
        %v8736 = vpack.c.b16 %v8690, %v8688
        %v8737 = vpack.c.b16 %v8691, %v8689
        %v8738 = vpack.c.b16 %v8694, %v8692
        %v8739 = vpack.c.b16 %v8695, %v8693
        %v8740 = vpack.c.b16 %v8698, %v8696
        %v8741 = vpack.c.b16 %v8699, %v8697
        %v8742 = vpack.c.b16 %v8702, %v8700
        %v8743 = vpack.c.b16 %v8703, %v8701
        %v8744 = vpack.c.b16 %v8706, %v8704
        %v8745 = vpack.c.b16 %v8707, %v8705
        %v8746 = vpack.c.b16 %v8710, %v8708
        %v8747 = vpack.c.b16 %v8711, %v8709
        %v8748 = vpack.c.b16 %v8714, %v8712
        %v8749 = vpack.c.b16 %v8715, %v8713
        %v8750 = vpack.c.b16 %v8718, %v8716
        %v8751 = vpack.c.b16 %v8719, %v8717
        %8784 = vmatpush.bf16.msra.mxu0 %v8734
        %8785 = vmatpush.bf16.msra.mxu0 %v8732
        %8786 = vmatpush.bf16.msra.mxu0 %v8730
        %8787 = vmatpush.bf16.msra.mxu0 %v8728
        %8788 = vmatpush.bf16.msra.mxu0 %v8726
        %8789 = vmatpush.bf16.msra.mxu0 %v8724
        %8790 = vmatpush.bf16.msra.mxu0 %v8722
        %8791 = vmatpush.bf16.msra.mxu0 %v8720
        %8792 = vmatmul.bf16.gmra.mxu0 %v8568
        %v8793 = vpop.f32.mrf.mxu0
        %v8794 = vadd.f32 %v8620, %v8793
        %v8795 = vpop.f32.mrf.mxu0
        %v8796 = vadd.f32 %v8620, %v8795
        %8797 = vmatmul.bf16.gmra.mxu0 %v8570
        %v8798 = vpop.f32.mrf.mxu0
        %v8799 = vadd.f32 %v8620, %v8798
        %v8800 = vpop.f32.mrf.mxu0
        %v8801 = vadd.f32 %v8620, %v8800
        %8802 = vmatmul.bf16.gmra.mxu0 %v8572
        %v8803 = vpop.f32.mrf.mxu0
        %v8804 = vadd.f32 %v8620, %v8803
        %v8805 = vpop.f32.mrf.mxu0
        %v8806 = vadd.f32 %v8620, %v8805
        %8807 = vmatmul.bf16.gmra.mxu0 %v8574
        %v8808 = vpop.f32.mrf.mxu0
        %v8809 = vadd.f32 %v8620, %v8808
        %v8810 = vpop.f32.mrf.mxu0
        %v8811 = vadd.f32 %v8620, %v8810
        %8812 = vmatmul.bf16.gmra.mxu0 %v8576
        %v8813 = vpop.f32.mrf.mxu0
        %v8814 = vadd.f32 %v8620, %v8813
        %v8815 = vpop.f32.mrf.mxu0
        %v8816 = vadd.f32 %v8620, %v8815
        %8817 = vmatmul.bf16.gmra.mxu0 %v8578
        %v8818 = vpop.f32.mrf.mxu0
        %v8819 = vadd.f32 %v8620, %v8818
        %v8820 = vpop.f32.mrf.mxu0
        %v8821 = vadd.f32 %v8620, %v8820
        %8822 = vmatmul.bf16.gmra.mxu0 %v8580
        %v8823 = vpop.f32.mrf.mxu0
        %v8824 = vadd.f32 %v8620, %v8823
        %v8825 = vpop.f32.mrf.mxu0
        %v8826 = vadd.f32 %v8620, %v8825
        %8827 = vmatmul.bf16.gmra.mxu0 %v8582
        %v8828 = vpop.f32.mrf.mxu0
        %v8829 = vadd.f32 %v8620, %v8828
        %v8830 = vpop.f32.mrf.mxu0
        %v8831 = vadd.f32 %v8620, %v8830
        %8832 = vdwg.mxu0
        %8833 = vmatpush.bf16.msra.mxu0 %v8750
        %8834 = vmatpush.bf16.msra.mxu0 %v8748
        %8835 = vmatpush.bf16.msra.mxu0 %v8746
        %8836 = vmatpush.bf16.msra.mxu0 %v8744
        %8837 = vmatpush.bf16.msra.mxu0 %v8742
        %8838 = vmatpush.bf16.msra.mxu0 %v8740
        %8839 = vmatpush.bf16.msra.mxu0 %v8738
        %8840 = vmatpush.bf16.msra.mxu0 %v8736
        %8841 = vmatmul.bf16.gmra.mxu0 %v8569
        %v8842 = vpop.f32.mrf.mxu0
        %v8843 = vadd.f32 %v8794, %v8842
        %v8844 = vpop.f32.mrf.mxu0
        %v8845 = vadd.f32 %v8796, %v8844
        %8846 = vmatmul.bf16.gmra.mxu0 %v8571
        %v8847 = vpop.f32.mrf.mxu0
        %v8848 = vadd.f32 %v8799, %v8847
        %v8849 = vpop.f32.mrf.mxu0
        %v8850 = vadd.f32 %v8801, %v8849
        %8851 = vmatmul.bf16.gmra.mxu0 %v8573
        %v8852 = vpop.f32.mrf.mxu0
        %v8853 = vadd.f32 %v8804, %v8852
        %v8854 = vpop.f32.mrf.mxu0
        %v8855 = vadd.f32 %v8806, %v8854
        %8856 = vmatmul.bf16.gmra.mxu0 %v8575
        %v8857 = vpop.f32.mrf.mxu0
        %v8858 = vadd.f32 %v8809, %v8857
        %v8859 = vpop.f32.mrf.mxu0
        %v8860 = vadd.f32 %v8811, %v8859
        %8861 = vmatmul.bf16.gmra.mxu0 %v8577
        %v8862 = vpop.f32.mrf.mxu0
        %v8863 = vadd.f32 %v8814, %v8862
        %v8864 = vpop.f32.mrf.mxu0
        %v8865 = vadd.f32 %v8816, %v8864
        %8866 = vmatmul.bf16.gmra.mxu0 %v8579
        %v8867 = vpop.f32.mrf.mxu0
        %v8868 = vadd.f32 %v8819, %v8867
        %v8869 = vpop.f32.mrf.mxu0
        %v8870 = vadd.f32 %v8821, %v8869
        %8871 = vmatmul.bf16.gmra.mxu0 %v8581
        %v8872 = vpop.f32.mrf.mxu0
        %v8873 = vadd.f32 %v8824, %v8872
        %v8874 = vpop.f32.mrf.mxu0
        %v8875 = vadd.f32 %v8826, %v8874
        %8876 = vmatmul.bf16.gmra.mxu0 %v8583
        %v8877 = vpop.f32.mrf.mxu0
        %v8878 = vadd.f32 %v8829, %v8877
        %v8879 = vpop.f32.mrf.mxu0
        %v8880 = vadd.f32 %v8831, %v8879
        %8881 = vdwg.mxu0
        %8882 = vmatpush.bf16.msra.mxu0 %v8735
        %8883 = vmatpush.bf16.msra.mxu0 %v8733
        %8884 = vmatpush.bf16.msra.mxu0 %v8731
        %8885 = vmatpush.bf16.msra.mxu0 %v8729
        %8886 = vmatpush.bf16.msra.mxu0 %v8727
        %8887 = vmatpush.bf16.msra.mxu0 %v8725
        %8888 = vmatpush.bf16.msra.mxu0 %v8723
        %8889 = vmatpush.bf16.msra.mxu0 %v8721
        %8890 = vmatmul.bf16.gmra.mxu0 %v8568
        %v8891 = vpop.f32.mrf.mxu0
        %v8892 = vadd.f32 %v8621, %v8891
        %v8893 = vpop.f32.mrf.mxu0
        %v8894 = vadd.f32 %v8621, %v8893
        %8895 = vmatmul.bf16.gmra.mxu0 %v8570
        %v8896 = vpop.f32.mrf.mxu0
        %v8897 = vadd.f32 %v8621, %v8896
        %v8898 = vpop.f32.mrf.mxu0
        %v8899 = vadd.f32 %v8621, %v8898
        %8900 = vmatmul.bf16.gmra.mxu0 %v8572
        %v8901 = vpop.f32.mrf.mxu0
        %v8902 = vadd.f32 %v8621, %v8901
        %v8903 = vpop.f32.mrf.mxu0
        %v8904 = vadd.f32 %v8621, %v8903
        %8905 = vmatmul.bf16.gmra.mxu0 %v8574
        %v8906 = vpop.f32.mrf.mxu0
        %v8907 = vadd.f32 %v8621, %v8906
        %v8908 = vpop.f32.mrf.mxu0
        %v8909 = vadd.f32 %v8621, %v8908
        %8910 = vmatmul.bf16.gmra.mxu0 %v8576
        %v8911 = vpop.f32.mrf.mxu0
        %v8912 = vadd.f32 %v8621, %v8911
        %v8913 = vpop.f32.mrf.mxu0
        %v8914 = vadd.f32 %v8621, %v8913
        %8915 = vmatmul.bf16.gmra.mxu0 %v8578
        %v8916 = vpop.f32.mrf.mxu0
        %v8917 = vadd.f32 %v8621, %v8916
        %v8918 = vpop.f32.mrf.mxu0
        %v8919 = vadd.f32 %v8621, %v8918
        %8920 = vmatmul.bf16.gmra.mxu0 %v8580
        %v8921 = vpop.f32.mrf.mxu0
        %v8922 = vadd.f32 %v8621, %v8921
        %v8923 = vpop.f32.mrf.mxu0
        %v8924 = vadd.f32 %v8621, %v8923
        %8925 = vmatmul.bf16.gmra.mxu0 %v8582
        %v8926 = vpop.f32.mrf.mxu0
        %v8927 = vadd.f32 %v8621, %v8926
        %v8928 = vpop.f32.mrf.mxu0
        %v8929 = vadd.f32 %v8621, %v8928
        %8930 = vdwg.mxu0
        %8931 = vmatpush.bf16.msra.mxu0 %v8751
        %8932 = vmatpush.bf16.msra.mxu0 %v8749
        %8933 = vmatpush.bf16.msra.mxu0 %v8747
        %8934 = vmatpush.bf16.msra.mxu0 %v8745
        %8935 = vmatpush.bf16.msra.mxu0 %v8743
        %8936 = vmatpush.bf16.msra.mxu0 %v8741
        %8937 = vmatpush.bf16.msra.mxu0 %v8739
        %8938 = vmatpush.bf16.msra.mxu0 %v8737
        %8939 = vmatmul.bf16.gmra.mxu0 %v8569
        %v8940 = vpop.f32.mrf.mxu0
        %v8941 = vadd.f32 %v8892, %v8940
        %v8942 = vpop.f32.mrf.mxu0
        %v8943 = vadd.f32 %v8894, %v8942
        %8944 = vmatmul.bf16.gmra.mxu0 %v8571
        %v8945 = vpop.f32.mrf.mxu0
        %v8946 = vadd.f32 %v8897, %v8945
        %v8947 = vpop.f32.mrf.mxu0
        %v8948 = vadd.f32 %v8899, %v8947
        %8949 = vmatmul.bf16.gmra.mxu0 %v8573
        %v8950 = vpop.f32.mrf.mxu0
        %v8951 = vadd.f32 %v8902, %v8950
        %v8952 = vpop.f32.mrf.mxu0
        %v8953 = vadd.f32 %v8904, %v8952
        %8954 = vmatmul.bf16.gmra.mxu0 %v8575
        %v8955 = vpop.f32.mrf.mxu0
        %v8956 = vadd.f32 %v8907, %v8955
        %v8957 = vpop.f32.mrf.mxu0
        %v8958 = vadd.f32 %v8909, %v8957
        %8959 = vmatmul.bf16.gmra.mxu0 %v8577
        %v8960 = vpop.f32.mrf.mxu0
        %v8961 = vadd.f32 %v8912, %v8960
        %v8962 = vpop.f32.mrf.mxu0
        %v8963 = vadd.f32 %v8914, %v8962
        %8964 = vmatmul.bf16.gmra.mxu0 %v8579
        %v8965 = vpop.f32.mrf.mxu0
        %v8966 = vadd.f32 %v8917, %v8965
        %v8967 = vpop.f32.mrf.mxu0
        %v8968 = vadd.f32 %v8919, %v8967
        %8969 = vmatmul.bf16.gmra.mxu0 %v8581
        %v8970 = vpop.f32.mrf.mxu0
        %v8971 = vadd.f32 %v8922, %v8970
        %v8972 = vpop.f32.mrf.mxu0
        %v8973 = vadd.f32 %v8924, %v8972
        %8974 = vmatmul.bf16.gmra.mxu0 %v8583
        %v8975 = vpop.f32.mrf.mxu0
        %v8976 = vadd.f32 %v8927, %v8975
        %v8977 = vpop.f32.mrf.mxu0
        %v8978 = vadd.f32 %v8929, %v8977
        %8979 = vdwg.mxu0
        %v8980 = vadd.f32 %v8843, %v8536
        %v8981 = vadd.f32 %v8941, %v8537
        %v8982 = vadd.f32 %v8845, %v8538
        %v8983 = vadd.f32 %v8943, %v8539
        %v8984 = vadd.f32 %v8848, %v8540
        %v8985 = vadd.f32 %v8946, %v8541
        %v8986 = vadd.f32 %v8850, %v8542
        %v8987 = vadd.f32 %v8948, %v8543
        %v8988 = vadd.f32 %v8853, %v8544
        %v8989 = vadd.f32 %v8951, %v8545
        %v8990 = vadd.f32 %v8855, %v8546
        %v8991 = vadd.f32 %v8953, %v8547
        %v8992 = vadd.f32 %v8858, %v8548
        %v8993 = vadd.f32 %v8956, %v8549
        %v8994 = vadd.f32 %v8860, %v8550
        %v8995 = vadd.f32 %v8958, %v8551
        %v8996 = vadd.f32 %v8863, %v8552
        %v8997 = vadd.f32 %v8961, %v8553
        %v8998 = vadd.f32 %v8865, %v8554
        %v8999 = vadd.f32 %v8963, %v8555
        %v9000 = vadd.f32 %v8868, %v8556
        %v9001 = vadd.f32 %v8966, %v8557
        %v9002 = vadd.f32 %v8870, %v8558
        %v9003 = vadd.f32 %v8968, %v8559
        %v9004 = vadd.f32 %v8873, %v8560
        %v9005 = vadd.f32 %v8971, %v8561
        %v9006 = vadd.f32 %v8875, %v8562
        %v9007 = vadd.f32 %v8973, %v8563
        %v9008 = vadd.f32 %v8878, %v8564
        %v9009 = vadd.f32 %v8976, %v8565
        %v9010 = vadd.f32 %v8880, %v8566
        %v9011 = vadd.f32 %v8978, %v8567
        %v9012 = vmax.f32 %v8980, 0.0
        %v9013 = vmax.f32 %v8981, 0.0
        %v9014 = vmax.f32 %v8982, 0.0
        %v9015 = vmax.f32 %v8983, 0.0
        %v9016 = vmax.f32 %v8984, 0.0
        %v9017 = vmax.f32 %v8985, 0.0
        %v9018 = vmax.f32 %v8986, 0.0
        %v9019 = vmax.f32 %v8987, 0.0
        %v9020 = vmax.f32 %v8988, 0.0
        %v9021 = vmax.f32 %v8989, 0.0
        %v9022 = vmax.f32 %v8990, 0.0
        %v9023 = vmax.f32 %v8991, 0.0
        %v9024 = vmax.f32 %v8992, 0.0
        %v9025 = vmax.f32 %v8993, 0.0
        %v9026 = vmax.f32 %v8994, 0.0
        %v9027 = vmax.f32 %v8995, 0.0
        %v9028 = vmax.f32 %v8996, 0.0
        %v9029 = vmax.f32 %v8997, 0.0
        %v9030 = vmax.f32 %v8998, 0.0
        %v9031 = vmax.f32 %v8999, 0.0
        %v9032 = vmax.f32 %v9000, 0.0
        %v9033 = vmax.f32 %v9001, 0.0
        %v9034 = vmax.f32 %v9002, 0.0
        %v9035 = vmax.f32 %v9003, 0.0
        %v9036 = vmax.f32 %v9004, 0.0
        %v9037 = vmax.f32 %v9005, 0.0
        %v9038 = vmax.f32 %v9006, 0.0
        %v9039 = vmax.f32 %v9007, 0.0
        %v9040 = vmax.f32 %v9008, 0.0
        %v9041 = vmax.f32 %v9009, 0.0
        %v9042 = vmax.f32 %v9010, 0.0
        %v9043 = vmax.f32 %v9011, 0.0
        %9044 = vst [vmem:[#allocation2] sm:$0xff] %v9012
        %9045 = vst [vmem:[#allocation2 + $0x8] sm:$0xff] %v9013
        %9046 = vst [vmem:[#allocation2 + $0x10] sm:$0xff] %v9014
        %9047 = vst [vmem:[#allocation2 + $0x18] sm:$0xff] %v9015
        %9048 = vst [vmem:[#allocation2 + $0x20] sm:$0xff] %v9016
        %9049 = vst [vmem:[#allocation2 + $0x28] sm:$0xff] %v9017
        %9050 = vst [vmem:[#allocation2 + $0x30] sm:$0xff] %v9018
        %9051 = vst [vmem:[#allocation2 + $0x38] sm:$0xff] %v9019
        %9052 = vst [vmem:[#allocation2 + $0x40] sm:$0xff] %v9020
        %9053 = vst [vmem:[#allocation2 + $0x48] sm:$0xff] %v9021
        %9054 = vst [vmem:[#allocation2 + $0x50] sm:$0xff] %v9022
        %9055 = vst [vmem:[#allocation2 + $0x58] sm:$0xff] %v9023
        %9056 = vst [vmem:[#allocation2 + $0x60] sm:$0xff] %v9024
        %9057 = vst [vmem:[#allocation2 + $0x68] sm:$0xff] %v9025
        %9058 = vst [vmem:[#allocation2 + $0x70] sm:$0xff] %v9026
        %9059 = vst [vmem:[#allocation2 + $0x78] sm:$0xff] %v9027
        %9060 = vst [vmem:[#allocation2 + $0x80] sm:$0xff] %v9028
        %9061 = vst [vmem:[#allocation2 + $0x88] sm:$0xff] %v9029
        %9062 = vst [vmem:[#allocation2 + $0x90] sm:$0xff] %v9030
        %9063 = vst [vmem:[#allocation2 + $0x98] sm:$0xff] %v9031
        %9064 = vst [vmem:[#allocation2 + $0xa0] sm:$0xff] %v9032
        %9065 = vst [vmem:[#allocation2 + $0xa8] sm:$0xff] %v9033
        %9066 = vst [vmem:[#allocation2 + $0xb0] sm:$0xff] %v9034
        %9067 = vst [vmem:[#allocation2 + $0xb8] sm:$0xff] %v9035
        %9068 = vst [vmem:[#allocation2 + $0xc0] sm:$0xff] %v9036
        %9069 = vst [vmem:[#allocation2 + $0xc8] sm:$0xff] %v9037
        %9070 = vst [vmem:[#allocation2 + $0xd0] sm:$0xff] %v9038
        %9071 = vst [vmem:[#allocation2 + $0xd8] sm:$0xff] %v9039
        %9072 = vst [vmem:[#allocation2 + $0xe0] sm:$0xff] %v9040
        %9073 = vst [vmem:[#allocation2 + $0xe8] sm:$0xff] %v9041
        %9074 = vst [vmem:[#allocation2 + $0xf0] sm:$0xff] %v9042
        %9075 = vst [vmem:[#allocation2 + $0xf8] sm:$0xff] %v9043
        %v9076 = vld [vmem:[#allocation2] sm:$0xff]
        %v9077 = vld [vmem:[#allocation2 + $0x8] sm:$0xff]
        %v9078 = vld [vmem:[#allocation2 + $0x10] sm:$0xff]
        %v9079 = vld [vmem:[#allocation2 + $0x18] sm:$0xff]
        %v9080 = vld [vmem:[#allocation2 + $0x20] sm:$0xff]
        %v9081 = vld [vmem:[#allocation2 + $0x28] sm:$0xff]
        %v9082 = vld [vmem:[#allocation2 + $0x30] sm:$0xff]
        %v9083 = vld [vmem:[#allocation2 + $0x38] sm:$0xff]
        %v9084 = vld [vmem:[#allocation2 + $0x40] sm:$0xff]
        %v9085 = vld [vmem:[#allocation2 + $0x48] sm:$0xff]
        %v9086 = vld [vmem:[#allocation2 + $0x50] sm:$0xff]
        %v9087 = vld [vmem:[#allocation2 + $0x58] sm:$0xff]
        %v9088 = vld [vmem:[#allocation2 + $0x60] sm:$0xff]
        %v9089 = vld [vmem:[#allocation2 + $0x68] sm:$0xff]
        %v9090 = vld [vmem:[#allocation2 + $0x70] sm:$0xff]
        %v9091 = vld [vmem:[#allocation2 + $0x78] sm:$0xff]
        %v9092 = vld [vmem:[#allocation2 + $0x80] sm:$0xff]
        %v9093 = vld [vmem:[#allocation2 + $0x88] sm:$0xff]
        %v9094 = vld [vmem:[#allocation2 + $0x90] sm:$0xff]
        %v9095 = vld [vmem:[#allocation2 + $0x98] sm:$0xff]
        %v9096 = vld [vmem:[#allocation2 + $0xa0] sm:$0xff]
        %v9097 = vld [vmem:[#allocation2 + $0xa8] sm:$0xff]
        %v9098 = vld [vmem:[#allocation2 + $0xb0] sm:$0xff]
        %v9099 = vld [vmem:[#allocation2 + $0xb8] sm:$0xff]
        %v9100 = vld [vmem:[#allocation2 + $0xc0] sm:$0xff]
        %v9101 = vld [vmem:[#allocation2 + $0xc8] sm:$0xff]
        %v9102 = vld [vmem:[#allocation2 + $0xd0] sm:$0xff]
        %v9103 = vld [vmem:[#allocation2 + $0xd8] sm:$0xff]
        %v9104 = vld [vmem:[#allocation2 + $0xe0] sm:$0xff]
        %v9105 = vld [vmem:[#allocation2 + $0xe8] sm:$0xff]
        %v9106 = vld [vmem:[#allocation2 + $0xf0] sm:$0xff]
        %v9107 = vld [vmem:[#allocation2 + $0xf8] sm:$0xff]
        %v9108 = vld [vmem:[#allocation15] sm:$0x3]
        %v9110 = vperm.slane %v9108, 0
        %v9111 = vperm.slane %v9108, 1
        %v9114 = vmul.f32 %v9076, %v9110
        %v9115 = vmul.f32 %v9077, %v9111
        %v9116 = vmul.f32 %v9078, %v9110
        %v9117 = vmul.f32 %v9079, %v9111
        %v9118 = vmul.f32 %v9080, %v9110
        %v9119 = vmul.f32 %v9081, %v9111
        %v9120 = vmul.f32 %v9082, %v9110
        %v9121 = vmul.f32 %v9083, %v9111
        %v9122 = vmul.f32 %v9084, %v9110
        %v9123 = vmul.f32 %v9085, %v9111
        %v9124 = vmul.f32 %v9086, %v9110
        %v9125 = vmul.f32 %v9087, %v9111
        %v9126 = vmul.f32 %v9088, %v9110
        %v9127 = vmul.f32 %v9089, %v9111
        %v9128 = vmul.f32 %v9090, %v9110
        %v9129 = vmul.f32 %v9091, %v9111
        %v9130 = vmul.f32 %v9092, %v9110
        %v9131 = vmul.f32 %v9093, %v9111
        %v9132 = vmul.f32 %v9094, %v9110
        %v9133 = vmul.f32 %v9095, %v9111
        %v9134 = vmul.f32 %v9096, %v9110
        %v9135 = vmul.f32 %v9097, %v9111
        %v9136 = vmul.f32 %v9098, %v9110
        %v9137 = vmul.f32 %v9099, %v9111
        %v9138 = vmul.f32 %v9100, %v9110
        %v9139 = vmul.f32 %v9101, %v9111
        %v9140 = vmul.f32 %v9102, %v9110
        %v9141 = vmul.f32 %v9103, %v9111
        %v9142 = vmul.f32 %v9104, %v9110
        %v9143 = vmul.f32 %v9105, %v9111
        %v9144 = vmul.f32 %v9106, %v9110
        %v9145 = vmul.f32 %v9107, %v9111
        %v9146 = vadd.f32 %v9114, %v9115
        %9147 = vadd.xlane.f32.xlu0 %v9146
        %v9148 = vpop.xlane.xlu0 %9147
        %v9149 = vadd.f32 %v9116, %v9117
        %9150 = vadd.xlane.f32.xlu0 %v9149
        %v9151 = vpop.xlane.xlu0 %9150
        %v9152 = vadd.f32 %v9118, %v9119
        %9153 = vadd.xlane.f32.xlu0 %v9152
        %v9154 = vpop.xlane.xlu0 %9153
        %v9155 = vadd.f32 %v9120, %v9121
        %9156 = vadd.xlane.f32.xlu0 %v9155
        %v9157 = vpop.xlane.xlu0 %9156
        %v9158 = vadd.f32 %v9122, %v9123
        %9159 = vadd.xlane.f32.xlu0 %v9158
        %v9160 = vpop.xlane.xlu0 %9159
        %v9161 = vadd.f32 %v9124, %v9125
        %9162 = vadd.xlane.f32.xlu0 %v9161
        %v9163 = vpop.xlane.xlu0 %9162
        %v9164 = vadd.f32 %v9126, %v9127
        %9165 = vadd.xlane.f32.xlu0 %v9164
        %v9166 = vpop.xlane.xlu0 %9165
        %v9167 = vadd.f32 %v9128, %v9129
        %9168 = vadd.xlane.f32.xlu0 %v9167
        %v9169 = vpop.xlane.xlu0 %9168
        %v9170 = vadd.f32 %v9130, %v9131
        %9171 = vadd.xlane.f32.xlu0 %v9170
        %v9172 = vpop.xlane.xlu0 %9171
        %v9173 = vadd.f32 %v9132, %v9133
        %9174 = vadd.xlane.f32.xlu0 %v9173
        %v9175 = vpop.xlane.xlu0 %9174
        %v9176 = vadd.f32 %v9134, %v9135
        %9177 = vadd.xlane.f32.xlu0 %v9176
        %v9178 = vpop.xlane.xlu0 %9177
        %v9179 = vadd.f32 %v9136, %v9137
        %9180 = vadd.xlane.f32.xlu0 %v9179
        %v9181 = vpop.xlane.xlu0 %9180
        %v9182 = vadd.f32 %v9138, %v9139
        %9183 = vadd.xlane.f32.xlu0 %v9182
        %v9184 = vpop.xlane.xlu0 %9183
        %v9185 = vadd.f32 %v9140, %v9141
        %9186 = vadd.xlane.f32.xlu0 %v9185
        %v9187 = vpop.xlane.xlu0 %9186
        %v9188 = vadd.f32 %v9142, %v9143
        %9189 = vadd.xlane.f32.xlu0 %v9188
        %v9190 = vpop.xlane.xlu0 %9189
        %v9191 = vadd.f32 %v9144, %v9145
        %9192 = vadd.xlane.f32.xlu0 %v9191
        %v9193 = vpop.xlane.xlu0 %9192
        %v9194 = vld [vmem:[#allocation4] sm:$0x1]
        %v9196 = vperm.slane %v9194, 0
        %v9198 = vadd.f32 %v9148, %v9196
        %v9199 = vadd.f32 %v9151, %v9196
        %v9200 = vadd.f32 %v9154, %v9196
        %v9201 = vadd.f32 %v9157, %v9196
        %v9202 = vadd.f32 %v9160, %v9196
        %v9203 = vadd.f32 %v9163, %v9196
        %v9204 = vadd.f32 %v9166, %v9196
        %v9205 = vadd.f32 %v9169, %v9196
        %v9206 = vadd.f32 %v9172, %v9196
        %v9207 = vadd.f32 %v9175, %v9196
        %v9208 = vadd.f32 %v9178, %v9196
        %v9209 = vadd.f32 %v9181, %v9196
        %v9210 = vadd.f32 %v9184, %v9196
        %v9211 = vadd.f32 %v9187, %v9196
        %v9212 = vadd.f32 %v9190, %v9196
        %v9213 = vadd.f32 %v9193, %v9196
        %9214 = vst.msk [vmem:[%s487] sm:$0xff] %vm4739, %v9198
        %9215 = vst.msk [vmem:[%s487 + $0x8] sm:$0xff] %vm4739, %v9199
        %9216 = vst.msk [vmem:[%s487 + $0x10] sm:$0xff] %vm4739, %v9200
        %9217 = vst.msk [vmem:[%s487 + $0x18] sm:$0xff] %vm4739, %v9201
        %9218 = vst.msk [vmem:[%s487 + $0x20] sm:$0xff] %vm4739, %v9202
        %9219 = vst.msk [vmem:[%s487 + $0x28] sm:$0xff] %vm4739, %v9203
        %9220 = vst.msk [vmem:[%s487 + $0x30] sm:$0xff] %vm4739, %v9204
        %9221 = vst.msk [vmem:[%s487 + $0x38] sm:$0xff] %vm4739, %v9205
        %9222 = vst.msk [vmem:[%s487 + $0x40] sm:$0xff] %vm4739, %v9206
        %9223 = vst.msk [vmem:[%s487 + $0x48] sm:$0xff] %vm4739, %v9207
        %9224 = vst.msk [vmem:[%s487 + $0x50] sm:$0xff] %vm4739, %v9208
        %9225 = vst.msk [vmem:[%s487 + $0x58] sm:$0xff] %vm4739, %v9209
        %9226 = vst.msk [vmem:[%s487 + $0x60] sm:$0xff] %vm4739, %v9210
        %9227 = vst.msk [vmem:[%s487 + $0x68] sm:$0xff] %vm4739, %v9211
        %9228 = vst.msk [vmem:[%s487 + $0x70] sm:$0xff] %vm4739, %v9212
        %9229 = vst.msk [vmem:[%s487 + $0x78] sm:$0xff] %vm4739, %v9213
        %s9230 = smul.u32 16, %s32
        %p9231 = scmp.lt.s32.totalorder %s9230, 31
        %s9232 = scalar_select %p9231, %s9230, 31
        %s9233 = smul.addr %s9232, 8
        %s9234 = scalar_lea.vmem %s9, %s9233
        %s9235 = smul.u32 16, %s32
        %p9236 = scmp.lt.s32.totalorder %s9235, 31
        %s9237 = scalar_select %p9236, %s9235, 31
        %s9238 = smul.addr %s9237, 8
        %s9239 = scalar_lea.vmem %s10, %s9238
        // Predicated region
        $region85: #{fully_connected_net_forward.1} parent=55 // pred_check
          %p9240 = pneg %p244
        $region86: #{fully_connected_net_forward.1} parent=55 // pred_check_branch
          %9242 = sbr.rel (%p9240) target = $region88
        $region87: #{fully_connected_net_forward.1} parent=55 // pred_region
          %s9243 = smul.u32 16, %s32
        $region88: #{fully_connected_net_forward.1} parent=55 // pred_fallthru
          _
        // Predicated region
        $region89: #{fully_connected_net_forward.1} parent=55 // pred_check
          %p9244 = pneg %p270
        $region90: #{fully_connected_net_forward.1} parent=55 // pred_check_branch
          %9246 = sbr.rel (%p9244) target = $region92
        $region91: #{fully_connected_net_forward.1} parent=55 // pred_region
          %s9247 = smul.u32 16, %s32
        $region92: #{fully_connected_net_forward.1} parent=55 // pred_fallthru
          _
      $region56: #{fully_connected_net_forward.1} parent=5 // pred_fallthru
        _
      %p9248 = scmp.le.s32.totalorder 2, %s27
      // Predicated region
      $region93: #{fully_connected_net_forward.1} parent=5 // pred_check
        %p9249 = pneg %p9248
      $region94: #{fully_connected_net_forward.1} parent=5 // pred_check_branch
        %9251 = sbr.rel (%p9249) target = $region96
      $region95: #{fully_connected_net_forward.1} parent=5 // pred_region
        %s9252 = ssub.s32 %s27, 2
        // Predicated region
        $region97: #{fully_connected_net_forward.1} parent=95 // pred_check
          %p9253 = pneg %p250
        $region98: #{fully_connected_net_forward.1} parent=95 // pred_check_branch
          %9255 = sbr.rel (%p9253) target = $region100
        $region99: #{fully_connected_net_forward.1} parent=95 // pred_region
          %s9256 = smul.u32 16, %s33
          %p9257 = scmp.lt.s32.totalorder %s9256, 31
          %s9258 = scalar_select %p9257, %s9256, 31
          %s9259 = smul.addr %s9258, 8
          %s9260 = scalar_lea.vmem %s9, %s9259
        $region100: #{fully_connected_net_forward.1} parent=95 // pred_fallthru
          _
        // Predicated region
        $region101: #{fully_connected_net_forward.1} parent=95 // pred_check
          %p9261 = pneg %p276
        $region102: #{fully_connected_net_forward.1} parent=95 // pred_check_branch
          %9263 = sbr.rel (%p9261) target = $region104
        $region103: #{fully_connected_net_forward.1} parent=95 // pred_region
          %s9264 = smul.u32 16, %s33
          %p9265 = scmp.lt.s32.totalorder %s9264, 31
          %s9266 = scalar_select %p9265, %s9264, 31
          %s9267 = smul.addr %s9266, 8
          %s9268 = scalar_lea.vmem %s10, %s9267
        $region104: #{fully_connected_net_forward.1} parent=95 // pred_fallthru
          _
      $region96: #{fully_connected_net_forward.1} parent=5 // pred_fallthru
        _
    $region6: #{fully_connected_net_forward.1} parent=1 // loop_footer
      %s31 = sadd.s32 1, %s27
    $region7: #{fully_connected_net_forward.1} parent=1 // loop_footer_branch
      %26 = sbr.rel target = $region3
    $region8: #{fully_connected_net_forward.1} parent=1 // loop_exit
      _
    %9269 = vsyncpa [#allocation6], 1
    %s9270 = scalar_lea.sflag [#allocation6], 1
    %9271 = vsyncpa %s9270, 1
    %9272 = vsyncpa [#allocation8], 1
    %9273 = vsyncpa [#allocation11], 1
    %9274 = vsyncpa [#allocation14], 1

</llo_original>
